<compile_context>
chip_gen: v5e
topology: v5e:2x2
jax: 0.10.0
libtpu: 0.0.40
codegen_flags: <defaults>
</compile_context>

<pallas_src>
import functools

import jax
import jax.numpy as jnp
from jax.experimental import pallas as pl
from jax.experimental.pallas import tpu as pltpu

BN_EPS = 1e-5


def _encoder_fused_kernel(*refs):
    # refs = (x_ref, w1_ref, p1_ref, w2_ref, p2_ref, ..., w5_ref, p5_ref, o_ref)
    x_ref = refs[0]
    o_ref = refs[-1]
    layer_refs = refs[1:-1]
    n_layers = len(layer_refs) // 2

    h = x_ref[...]                                        # (B, K0) f32
    for l in range(n_layers):                             # unrolled at trace time
        w_ref = layer_refs[2 * l]                         # (K, N)
        p_ref = layer_refs[2 * l + 1]                     # (3, N): bias, gamma, beta
        y = jnp.dot(h, w_ref[...], preferred_element_type=jnp.float32)  # MXU
        p = p_ref[...]
        y = y + p[0:1, :]                                 # Linear bias
        mean = jnp.mean(y, axis=0, keepdims=True)         # training-mode BN stats
        ctr = y - mean
        var = jnp.mean(ctr * ctr, axis=0, keepdims=True)  # biased variance
        inv = jax.lax.rsqrt(var + BN_EPS)
        out = p[1:2, :] * (ctr * inv) + p[2:3, :]         # BN affine
        h = jnp.maximum(out, 0.0)                         # ReLU
    o_ref[...] = h


def encoder_forward_pallas(x, weights, packed_params):
    """x: (B, dim_in) f32; weights[i]: (K_i, N_i) f32; packed_params[i]: (3, N_i) f32."""
    B, dim_in = x.shape
    n_out = weights[-1].shape[1]

    # TODO(synk): for production batch sizes (>~2K rows on v7x) the
    # "whole batch in one block" BN design needs a batch-tiled two-pass
    # sum / sum-of-squares formulation; not needed at the toy B=8 here.
    flat_inputs = [x]
    in_specs = [pl.BlockSpec((B, dim_in), lambda i: (0, 0))]
    for w_t, p in zip(weights, packed_params):
        K, N = w_t.shape
        flat_inputs.append(w_t)
        in_specs.append(pl.BlockSpec((K, N), lambda i: (0, 0)))
        flat_inputs.append(p)
        in_specs.append(pl.BlockSpec((3, N), lambda i: (0, 0)))

    return pl.pallas_call(
        _encoder_fused_kernel,
        out_shape=jax.ShapeDtypeStruct((B, n_out), jnp.float32),
        grid=(1,),
        in_specs=in_specs,
        out_specs=pl.BlockSpec((B, n_out), lambda i: (0, 0)),
        compiler_params=pltpu.CompilerParams(
            dimension_semantics=("arbitrary",),
            vmem_limit_bytes=40 << 20,   # ~24 MiB actually needed; < v7x 64 MiB
        ),
    )(*flat_inputs)


def init_encoder_params(key, dim_in):
    """Deterministic init mirroring the PyTorch module shapes.

    Linear i: weight (out, in) stored transposed as (in, out), bias (out,).
    BatchNorm1d i: gamma (out,), beta (out,) (nontrivial values for testing).
    """
    dims = [dim_in, 2048, 1024, 512, 256, 128]
    params = []
    for i in range(5):
        fan_in, fan_out = dims[i], dims[i + 1]
        key, kw, kb, kg, kbe = jax.random.split(key, 5)
        bound = 1.0 / (fan_in ** 0.5)
        w_t = jax.random.uniform(kw, (fan_in, fan_out), jnp.float32, -bound, bound)
        b = jax.random.uniform(kb, (fan_out,), jnp.float32, -bound, bound)
        gamma = 1.0 + 0.1 * jax.random.normal(kg, (fan_out,), jnp.float32)
        beta = 0.1 * jax.random.normal(kbe, (fan_out,), jnp.float32)
        params.append((w_t, b, gamma, beta))
    return params


@jax.jit
def encoder_forward(x, params):
    weights = [w_t for (w_t, b, g, be) in params]
    packed = [jnp.stack([b, g, be], axis=0) for (w_t, b, g, be) in params]
    return encoder_forward_pallas(x, weights, packed)


def encoder_forward_ref(x, params):
    """Pure-JAX reference (training-mode BatchNorm1d semantics)."""
    out = x
    for (w_t, b, gamma, beta) in params:
        y = out @ w_t + b
        mean = jnp.mean(y, axis=0, keepdims=True)
        var = jnp.mean((y - mean) ** 2, axis=0, keepdims=True)
        yhat = (y - mean) / jnp.sqrt(var + BN_EPS)
        out = jnp.maximum(gamma * yhat + beta, 0.0)
    return out


if __name__ == "__main__":
    key = jax.random.PRNGKey(0)
    k_params, k_x = jax.random.split(key)

    dim_in = 64
    batch = 8
    params = init_encoder_params(k_params, dim_in)
    x = jax.random.normal(k_x, (batch, dim_in), jnp.float32)

    out = encoder_forward(x, params)
    out = jax.block_until_ready(out)

    ref = encoder_forward_ref(x, params)
    assert out.shape == (batch, 128), out.shape
    assert jnp.allclose(out, ref, atol=1e-4, rtol=1e-4), \
        float(jnp.max(jnp.abs(out - ref)))

    print("KERNEL_OK")
</pallas_src>

<mosaic_0001>
module attributes {stable_mosaic.version = 11 : i64} {
  func.func @_encoder_fused_kernel(%arg0: i32, %arg1: memref<8x64xf32, #tpu.memory_space<vmem>>, %arg2: memref<64x2048xf32, #tpu.memory_space<vmem>>, %arg3: memref<3x2048xf32, #tpu.memory_space<vmem>>, %arg4: memref<2048x1024xf32, #tpu.memory_space<vmem>>, %arg5: memref<3x1024xf32, #tpu.memory_space<vmem>>, %arg6: memref<1024x512xf32, #tpu.memory_space<vmem>>, %arg7: memref<3x512xf32, #tpu.memory_space<vmem>>, %arg8: memref<512x256xf32, #tpu.memory_space<vmem>>, %arg9: memref<3x256xf32, #tpu.memory_space<vmem>>, %arg10: memref<256x128xf32, #tpu.memory_space<vmem>>, %arg11: memref<3x128xf32, #tpu.memory_space<vmem>>, %arg12: memref<8x128xf32, #tpu.memory_space<vmem>>) attributes {dimension_semantics = [#tpu.dimension_semantics<arbitrary>], iteration_bounds = array<i64: 1>, scalar_prefetch = 0 : i64, scratch_operands = 0 : i64, tpu.core_type = #tpu.core_type<tc>, window_params = [{pipeline_mode = #tpu.pipeline_mode<synchronous>, transform_indices = @transform_0, window_bounds = array<i64: 8, 64>}, {pipeline_mode = #tpu.pipeline_mode<synchronous>, transform_indices = @transform_1, window_bounds = array<i64: 64, 2048>}, {pipeline_mode = #tpu.pipeline_mode<synchronous>, transform_indices = @transform_2, window_bounds = array<i64: 3, 2048>}, {pipeline_mode = #tpu.pipeline_mode<synchronous>, transform_indices = @transform_3, window_bounds = array<i64: 2048, 1024>}, {pipeline_mode = #tpu.pipeline_mode<synchronous>, transform_indices = @transform_4, window_bounds = array<i64: 3, 1024>}, {pipeline_mode = #tpu.pipeline_mode<synchronous>, transform_indices = @transform_5, window_bounds = array<i64: 1024, 512>}, {pipeline_mode = #tpu.pipeline_mode<synchronous>, transform_indices = @transform_6, window_bounds = array<i64: 3, 512>}, {pipeline_mode = #tpu.pipeline_mode<synchronous>, transform_indices = @transform_7, window_bounds = array<i64: 512, 256>}, {pipeline_mode = #tpu.pipeline_mode<synchronous>, transform_indices = @transform_8, window_bounds = array<i64: 3, 256>}, {pipeline_mode = #tpu.pipeline_mode<synchronous>, transform_indices = @transform_9, window_bounds = array<i64: 256, 128>}, {pipeline_mode = #tpu.pipeline_mode<synchronous>, transform_indices = @transform_10, window_bounds = array<i64: 3, 128>}, {pipeline_mode = #tpu.pipeline_mode<synchronous>, transform_indices = @transform_11, window_bounds = array<i64: 8, 128>}]} {
    %c0 = arith.constant 0 : index
    %c0_0 = arith.constant 0 : index
    %0 = vector.load %arg1[%c0, %c0_0] : memref<8x64xf32, #tpu.memory_space<vmem>>, vector<8x64xf32>
    %c0_1 = arith.constant 0 : index
    %c0_2 = arith.constant 0 : index
    %1 = vector.load %arg2[%c0_1, %c0_2] : memref<64x2048xf32, #tpu.memory_space<vmem>>, vector<64x2048xf32>
    %cst = arith.constant dense<0.000000e+00> : vector<8x2048xf32>
    %2 = tpu.matmul %0, %1, %cst {dimension_numbers = #tpu.dot_dimension_numbers<[1], [0], [0], [1], [0, 0, 1, 1], [], []>} : vector<8x64xf32>, vector<64x2048xf32>, vector<8x2048xf32> -> vector<8x2048xf32>
    %c0_3 = arith.constant 0 : index
    %c0_4 = arith.constant 0 : index
    %3 = vector.load %arg3[%c0_3, %c0_4] : memref<3x2048xf32, #tpu.memory_space<vmem>>, vector<3x2048xf32>
    %4 = vector.extract_strided_slice %3 {offsets = [0, 0], sizes = [1, 2048], strides = [1, 1]} : vector<3x2048xf32> to vector<1x2048xf32>
    %5 = vector.broadcast %4 : vector<1x2048xf32> to vector<8x2048xf32>
    %6 = arith.addf %2, %5 : vector<8x2048xf32>
    %cst_5 = arith.constant dense<0.000000e+00> : vector<2048xf32>
    %7 = vector.multi_reduction <add>, %6, %cst_5 [0] : vector<8x2048xf32> to vector<2048xf32>
    %8 = vector.shape_cast %7 : vector<2048xf32> to vector<1x2048xf32>
    %cst_6 = arith.constant 8.000000e+00 : f32
    %9 = vector.broadcast %cst_6 : f32 to vector<1x2048xf32>
    %10 = arith.divf %8, %9 : vector<1x2048xf32>
    %11 = vector.broadcast %10 : vector<1x2048xf32> to vector<8x2048xf32>
    %12 = arith.subf %6, %11 : vector<8x2048xf32>
    %13 = arith.mulf %12, %12 : vector<8x2048xf32>
    %cst_7 = arith.constant dense<0.000000e+00> : vector<2048xf32>
    %14 = vector.multi_reduction <add>, %13, %cst_7 [0] : vector<8x2048xf32> to vector<2048xf32>
    %15 = vector.shape_cast %14 : vector<2048xf32> to vector<1x2048xf32>
    %cst_8 = arith.constant 8.000000e+00 : f32
    %16 = vector.broadcast %cst_8 : f32 to vector<1x2048xf32>
    %17 = arith.divf %15, %16 : vector<1x2048xf32>
    %cst_9 = arith.constant 9.99999974E-6 : f32
    %18 = vector.broadcast %cst_9 : f32 to vector<1x2048xf32>
    %19 = arith.addf %17, %18 : vector<1x2048xf32>
    %20 = math.rsqrt %19 : vector<1x2048xf32>
    %21 = vector.extract_strided_slice %3 {offsets = [1, 0], sizes = [1, 2048], strides = [1, 1]} : vector<3x2048xf32> to vector<1x2048xf32>
    %22 = vector.broadcast %20 : vector<1x2048xf32> to vector<8x2048xf32>
    %23 = arith.mulf %12, %22 : vector<8x2048xf32>
    %24 = vector.broadcast %21 : vector<1x2048xf32> to vector<8x2048xf32>
    %25 = arith.mulf %24, %23 : vector<8x2048xf32>
    %26 = vector.extract_strided_slice %3 {offsets = [2, 0], sizes = [1, 2048], strides = [1, 1]} : vector<3x2048xf32> to vector<1x2048xf32>
    %27 = vector.broadcast %26 : vector<1x2048xf32> to vector<8x2048xf32>
    %28 = arith.addf %25, %27 : vector<8x2048xf32>
    %cst_10 = arith.constant 0.000000e+00 : f32
    %29 = vector.broadcast %cst_10 : f32 to vector<8x2048xf32>
    %30 = arith.maximumf %28, %29 : vector<8x2048xf32>
    %c0_11 = arith.constant 0 : index
    %c0_12 = arith.constant 0 : index
    %31 = vector.load %arg4[%c0_11, %c0_12] : memref<2048x1024xf32, #tpu.memory_space<vmem>>, vector<2048x1024xf32>
    %cst_13 = arith.constant dense<0.000000e+00> : vector<8x1024xf32>
    %32 = tpu.matmul %30, %31, %cst_13 {dimension_numbers = #tpu.dot_dimension_numbers<[1], [0], [0], [1], [0, 0, 1, 1], [], []>} : vector<8x2048xf32>, vector<2048x1024xf32>, vector<8x1024xf32> -> vector<8x1024xf32>
    %c0_14 = arith.constant 0 : index
    %c0_15 = arith.constant 0 : index
    %33 = vector.load %arg5[%c0_14, %c0_15] : memref<3x1024xf32, #tpu.memory_space<vmem>>, vector<3x1024xf32>
    %34 = vector.extract_strided_slice %33 {offsets = [0, 0], sizes = [1, 1024], strides = [1, 1]} : vector<3x1024xf32> to vector<1x1024xf32>
    %35 = vector.broadcast %34 : vector<1x1024xf32> to vector<8x1024xf32>
    %36 = arith.addf %32, %35 : vector<8x1024xf32>
    %cst_16 = arith.constant dense<0.000000e+00> : vector<1024xf32>
    %37 = vector.multi_reduction <add>, %36, %cst_16 [0] : vector<8x1024xf32> to vector<1024xf32>
    %38 = vector.shape_cast %37 : vector<1024xf32> to vector<1x1024xf32>
    %cst_17 = arith.constant 8.000000e+00 : f32
    %39 = vector.broadcast %cst_17 : f32 to vector<1x1024xf32>
    %40 = arith.divf %38, %39 : vector<1x1024xf32>
    %41 = vector.broadcast %40 : vector<1x1024xf32> to vector<8x1024xf32>
    %42 = arith.subf %36, %41 : vector<8x1024xf32>
    %43 = arith.mulf %42, %42 : vector<8x1024xf32>
    %cst_18 = arith.constant dense<0.000000e+00> : vector<1024xf32>
    %44 = vector.multi_reduction <add>, %43, %cst_18 [0] : vector<8x1024xf32> to vector<1024xf32>
    %45 = vector.shape_cast %44 : vector<1024xf32> to vector<1x1024xf32>
    %cst_19 = arith.constant 8.000000e+00 : f32
    %46 = vector.broadcast %cst_19 : f32 to vector<1x1024xf32>
    %47 = arith.divf %45, %46 : vector<1x1024xf32>
    %cst_20 = arith.constant 9.99999974E-6 : f32
    %48 = vector.broadcast %cst_20 : f32 to vector<1x1024xf32>
    %49 = arith.addf %47, %48 : vector<1x1024xf32>
    %50 = math.rsqrt %49 : vector<1x1024xf32>
    %51 = vector.extract_strided_slice %33 {offsets = [1, 0], sizes = [1, 1024], strides = [1, 1]} : vector<3x1024xf32> to vector<1x1024xf32>
    %52 = vector.broadcast %50 : vector<1x1024xf32> to vector<8x1024xf32>
    %53 = arith.mulf %42, %52 : vector<8x1024xf32>
    %54 = vector.broadcast %51 : vector<1x1024xf32> to vector<8x1024xf32>
    %55 = arith.mulf %54, %53 : vector<8x1024xf32>
    %56 = vector.extract_strided_slice %33 {offsets = [2, 0], sizes = [1, 1024], strides = [1, 1]} : vector<3x1024xf32> to vector<1x1024xf32>
    %57 = vector.broadcast %56 : vector<1x1024xf32> to vector<8x1024xf32>
    %58 = arith.addf %55, %57 : vector<8x1024xf32>
    %cst_21 = arith.constant 0.000000e+00 : f32
    %59 = vector.broadcast %cst_21 : f32 to vector<8x1024xf32>
    %60 = arith.maximumf %58, %59 : vector<8x1024xf32>
    %c0_22 = arith.constant 0 : index
    %c0_23 = arith.constant 0 : index
    %61 = vector.load %arg6[%c0_22, %c0_23] : memref<1024x512xf32, #tpu.memory_space<vmem>>, vector<1024x512xf32>
    %cst_24 = arith.constant dense<0.000000e+00> : vector<8x512xf32>
    %62 = tpu.matmul %60, %61, %cst_24 {dimension_numbers = #tpu.dot_dimension_numbers<[1], [0], [0], [1], [0, 0, 1, 1], [], []>} : vector<8x1024xf32>, vector<1024x512xf32>, vector<8x512xf32> -> vector<8x512xf32>
    %c0_25 = arith.constant 0 : index
    %c0_26 = arith.constant 0 : index
    %63 = vector.load %arg7[%c0_25, %c0_26] : memref<3x512xf32, #tpu.memory_space<vmem>>, vector<3x512xf32>
    %64 = vector.extract_strided_slice %63 {offsets = [0, 0], sizes = [1, 512], strides = [1, 1]} : vector<3x512xf32> to vector<1x512xf32>
    %65 = vector.broadcast %64 : vector<1x512xf32> to vector<8x512xf32>
    %66 = arith.addf %62, %65 : vector<8x512xf32>
    %cst_27 = arith.constant dense<0.000000e+00> : vector<512xf32>
    %67 = vector.multi_reduction <add>, %66, %cst_27 [0] : vector<8x512xf32> to vector<512xf32>
    %68 = vector.shape_cast %67 : vector<512xf32> to vector<1x512xf32>
    %cst_28 = arith.constant 8.000000e+00 : f32
    %69 = vector.broadcast %cst_28 : f32 to vector<1x512xf32>
    %70 = arith.divf %68, %69 : vector<1x512xf32>
    %71 = vector.broadcast %70 : vector<1x512xf32> to vector<8x512xf32>
    %72 = arith.subf %66, %71 : vector<8x512xf32>
    %73 = arith.mulf %72, %72 : vector<8x512xf32>
    %cst_29 = arith.constant dense<0.000000e+00> : vector<512xf32>
    %74 = vector.multi_reduction <add>, %73, %cst_29 [0] : vector<8x512xf32> to vector<512xf32>
    %75 = vector.shape_cast %74 : vector<512xf32> to vector<1x512xf32>
    %cst_30 = arith.constant 8.000000e+00 : f32
    %76 = vector.broadcast %cst_30 : f32 to vector<1x512xf32>
    %77 = arith.divf %75, %76 : vector<1x512xf32>
    %cst_31 = arith.constant 9.99999974E-6 : f32
    %78 = vector.broadcast %cst_31 : f32 to vector<1x512xf32>
    %79 = arith.addf %77, %78 : vector<1x512xf32>
    %80 = math.rsqrt %79 : vector<1x512xf32>
    %81 = vector.extract_strided_slice %63 {offsets = [1, 0], sizes = [1, 512], strides = [1, 1]} : vector<3x512xf32> to vector<1x512xf32>
    %82 = vector.broadcast %80 : vector<1x512xf32> to vector<8x512xf32>
    %83 = arith.mulf %72, %82 : vector<8x512xf32>
    %84 = vector.broadcast %81 : vector<1x512xf32> to vector<8x512xf32>
    %85 = arith.mulf %84, %83 : vector<8x512xf32>
    %86 = vector.extract_strided_slice %63 {offsets = [2, 0], sizes = [1, 512], strides = [1, 1]} : vector<3x512xf32> to vector<1x512xf32>
    %87 = vector.broadcast %86 : vector<1x512xf32> to vector<8x512xf32>
    %88 = arith.addf %85, %87 : vector<8x512xf32>
    %cst_32 = arith.constant 0.000000e+00 : f32
    %89 = vector.broadcast %cst_32 : f32 to vector<8x512xf32>
    %90 = arith.maximumf %88, %89 : vector<8x512xf32>
    %c0_33 = arith.constant 0 : index
    %c0_34 = arith.constant 0 : index
    %91 = vector.load %arg8[%c0_33, %c0_34] : memref<512x256xf32, #tpu.memory_space<vmem>>, vector<512x256xf32>
    %cst_35 = arith.constant dense<0.000000e+00> : vector<8x256xf32>
    %92 = tpu.matmul %90, %91, %cst_35 {dimension_numbers = #tpu.dot_dimension_numbers<[1], [0], [0], [1], [0, 0, 1, 1], [], []>} : vector<8x512xf32>, vector<512x256xf32>, vector<8x256xf32> -> vector<8x256xf32>
    %c0_36 = arith.constant 0 : index
    %c0_37 = arith.constant 0 : index
    %93 = vector.load %arg9[%c0_36, %c0_37] : memref<3x256xf32, #tpu.memory_space<vmem>>, vector<3x256xf32>
    %94 = vector.extract_strided_slice %93 {offsets = [0, 0], sizes = [1, 256], strides = [1, 1]} : vector<3x256xf32> to vector<1x256xf32>
    %95 = vector.broadcast %94 : vector<1x256xf32> to vector<8x256xf32>
    %96 = arith.addf %92, %95 : vector<8x256xf32>
    %cst_38 = arith.constant dense<0.000000e+00> : vector<256xf32>
    %97 = vector.multi_reduction <add>, %96, %cst_38 [0] : vector<8x256xf32> to vector<256xf32>
    %98 = vector.shape_cast %97 : vector<256xf32> to vector<1x256xf32>
    %cst_39 = arith.constant 8.000000e+00 : f32
    %99 = vector.broadcast %cst_39 : f32 to vector<1x256xf32>
    %100 = arith.divf %98, %99 : vector<1x256xf32>
    %101 = vector.broadcast %100 : vector<1x256xf32> to vector<8x256xf32>
    %102 = arith.subf %96, %101 : vector<8x256xf32>
    %103 = arith.mulf %102, %102 : vector<8x256xf32>
    %cst_40 = arith.constant dense<0.000000e+00> : vector<256xf32>
    %104 = vector.multi_reduction <add>, %103, %cst_40 [0] : vector<8x256xf32> to vector<256xf32>
    %105 = vector.shape_cast %104 : vector<256xf32> to vector<1x256xf32>
    %cst_41 = arith.constant 8.000000e+00 : f32
    %106 = vector.broadcast %cst_41 : f32 to vector<1x256xf32>
    %107 = arith.divf %105, %106 : vector<1x256xf32>
    %cst_42 = arith.constant 9.99999974E-6 : f32
    %108 = vector.broadcast %cst_42 : f32 to vector<1x256xf32>
    %109 = arith.addf %107, %108 : vector<1x256xf32>
    %110 = math.rsqrt %109 : vector<1x256xf32>
    %111 = vector.extract_strided_slice %93 {offsets = [1, 0], sizes = [1, 256], strides = [1, 1]} : vector<3x256xf32> to vector<1x256xf32>
    %112 = vector.broadcast %110 : vector<1x256xf32> to vector<8x256xf32>
    %113 = arith.mulf %102, %112 : vector<8x256xf32>
    %114 = vector.broadcast %111 : vector<1x256xf32> to vector<8x256xf32>
    %115 = arith.mulf %114, %113 : vector<8x256xf32>
    %116 = vector.extract_strided_slice %93 {offsets = [2, 0], sizes = [1, 256], strides = [1, 1]} : vector<3x256xf32> to vector<1x256xf32>
    %117 = vector.broadcast %116 : vector<1x256xf32> to vector<8x256xf32>
    %118 = arith.addf %115, %117 : vector<8x256xf32>
    %cst_43 = arith.constant 0.000000e+00 : f32
    %119 = vector.broadcast %cst_43 : f32 to vector<8x256xf32>
    %120 = arith.maximumf %118, %119 : vector<8x256xf32>
    %c0_44 = arith.constant 0 : index
    %c0_45 = arith.constant 0 : index
    %121 = vector.load %arg10[%c0_44, %c0_45] : memref<256x128xf32, #tpu.memory_space<vmem>>, vector<256x128xf32>
    %cst_46 = arith.constant dense<0.000000e+00> : vector<8x128xf32>
    %122 = tpu.matmul %120, %121, %cst_46 {dimension_numbers = #tpu.dot_dimension_numbers<[1], [0], [0], [1], [0, 0, 1, 1], [], []>} : vector<8x256xf32>, vector<256x128xf32>, vector<8x128xf32> -> vector<8x128xf32>
    %c0_47 = arith.constant 0 : index
    %c0_48 = arith.constant 0 : index
    %123 = vector.load %arg11[%c0_47, %c0_48] : memref<3x128xf32, #tpu.memory_space<vmem>>, vector<3x128xf32>
    %124 = vector.extract_strided_slice %123 {offsets = [0, 0], sizes = [1, 128], strides = [1, 1]} : vector<3x128xf32> to vector<1x128xf32>
    %125 = vector.broadcast %124 : vector<1x128xf32> to vector<8x128xf32>
    %126 = arith.addf %122, %125 : vector<8x128xf32>
    %cst_49 = arith.constant dense<0.000000e+00> : vector<128xf32>
    %127 = vector.multi_reduction <add>, %126, %cst_49 [0] : vector<8x128xf32> to vector<128xf32>
    %128 = vector.shape_cast %127 : vector<128xf32> to vector<1x128xf32>
    %cst_50 = arith.constant 8.000000e+00 : f32
    %129 = vector.broadcast %cst_50 : f32 to vector<1x128xf32>
    %130 = arith.divf %128, %129 : vector<1x128xf32>
    %131 = vector.broadcast %130 : vector<1x128xf32> to vector<8x128xf32>
    %132 = arith.subf %126, %131 : vector<8x128xf32>
    %133 = arith.mulf %132, %132 : vector<8x128xf32>
    %cst_51 = arith.constant dense<0.000000e+00> : vector<128xf32>
    %134 = vector.multi_reduction <add>, %133, %cst_51 [0] : vector<8x128xf32> to vector<128xf32>
    %135 = vector.shape_cast %134 : vector<128xf32> to vector<1x128xf32>
    %cst_52 = arith.constant 8.000000e+00 : f32
    %136 = vector.broadcast %cst_52 : f32 to vector<1x128xf32>
    %137 = arith.divf %135, %136 : vector<1x128xf32>
    %cst_53 = arith.constant 9.99999974E-6 : f32
    %138 = vector.broadcast %cst_53 : f32 to vector<1x128xf32>
    %139 = arith.addf %137, %138 : vector<1x128xf32>
    %140 = math.rsqrt %139 : vector<1x128xf32>
    %141 = vector.extract_strided_slice %123 {offsets = [1, 0], sizes = [1, 128], strides = [1, 1]} : vector<3x128xf32> to vector<1x128xf32>
    %142 = vector.broadcast %140 : vector<1x128xf32> to vector<8x128xf32>
    %143 = arith.mulf %132, %142 : vector<8x128xf32>
    %144 = vector.broadcast %141 : vector<1x128xf32> to vector<8x128xf32>
    %145 = arith.mulf %144, %143 : vector<8x128xf32>
    %146 = vector.extract_strided_slice %123 {offsets = [2, 0], sizes = [1, 128], strides = [1, 1]} : vector<3x128xf32> to vector<1x128xf32>
    %147 = vector.broadcast %146 : vector<1x128xf32> to vector<8x128xf32>
    %148 = arith.addf %145, %147 : vector<8x128xf32>
    %cst_54 = arith.constant 0.000000e+00 : f32
    %149 = vector.broadcast %cst_54 : f32 to vector<8x128xf32>
    %150 = arith.maximumf %148, %149 : vector<8x128xf32>
    %c0_55 = arith.constant 0 : index
    %c0_56 = arith.constant 0 : index
    %151 = vector.load %arg12[%c0_55, %c0_56] : memref<8x128xf32, #tpu.memory_space<vmem>>, vector<8x128xf32>
    tpu.vector_store %arg12[%c0_55, %c0_56], %150 {strides = array<i32>} : memref<8x128xf32, #tpu.memory_space<vmem>>, vector<8x128xf32>,
    return
  }
  func.func @transform_0(%arg0: i32) -> (i32, i32) {
    %c0_i32 = arith.constant 0 : i32
    %c0_i32_0 = arith.constant 0 : i32
    %c0_i32_1 = arith.constant 0 : i32
    return %c0_i32, %c0_i32_0 : i32, i32
  }
  func.func @transform_1(%arg0: i32) -> (i32, i32) {
    %c0_i32 = arith.constant 0 : i32
    %c0_i32_0 = arith.constant 0 : i32
    %c0_i32_1 = arith.constant 0 : i32
    return %c0_i32, %c0_i32_0 : i32, i32
  }
  func.func @transform_2(%arg0: i32) -> (i32, i32) {
    %c0_i32 = arith.constant 0 : i32
    %c0_i32_0 = arith.constant 0 : i32
    %c0_i32_1 = arith.constant 0 : i32
    return %c0_i32, %c0_i32_0 : i32, i32
  }
  func.func @transform_3(%arg0: i32) -> (i32, i32) {
    %c0_i32 = arith.constant 0 : i32
    %c0_i32_0 = arith.constant 0 : i32
    %c0_i32_1 = arith.constant 0 : i32
    return %c0_i32, %c0_i32_0 : i32, i32
  }
  func.func @transform_4(%arg0: i32) -> (i32, i32) {
    %c0_i32 = arith.constant 0 : i32
    %c0_i32_0 = arith.constant 0 : i32
    %c0_i32_1 = arith.constant 0 : i32
    return %c0_i32, %c0_i32_0 : i32, i32
  }
  func.func @transform_5(%arg0: i32) -> (i32, i32) {
    %c0_i32 = arith.constant 0 : i32
    %c0_i32_0 = arith.constant 0 : i32
    %c0_i32_1 = arith.constant 0 : i32
    return %c0_i32, %c0_i32_0 : i32, i32
  }
  func.func @transform_6(%arg0: i32) -> (i32, i32) {
    %c0_i32 = arith.constant 0 : i32
    %c0_i32_0 = arith.constant 0 : i32
    %c0_i32_1 = arith.constant 0 : i32
    return %c0_i32, %c0_i32_0 : i32, i32
  }
  func.func @transform_7(%arg0: i32) -> (i32, i32) {
    %c0_i32 = arith.constant 0 : i32
    %c0_i32_0 = arith.constant 0 : i32
    %c0_i32_1 = arith.constant 0 : i32
    return %c0_i32, %c0_i32_0 : i32, i32
  }
  func.func @transform_8(%arg0: i32) -> (i32, i32) {
    %c0_i32 = arith.constant 0 : i32
    %c0_i32_0 = arith.constant 0 : i32
    %c0_i32_1 = arith.constant 0 : i32
    return %c0_i32, %c0_i32_0 : i32, i32
  }
  func.func @transform_9(%arg0: i32) -> (i32, i32) {
    %c0_i32 = arith.constant 0 : i32
    %c0_i32_0 = arith.constant 0 : i32
    %c0_i32_1 = arith.constant 0 : i32
    return %c0_i32, %c0_i32_0 : i32, i32
  }
  func.func @transform_10(%arg0: i32) -> (i32, i32) {
    %c0_i32 = arith.constant 0 : i32
    %c0_i32_0 = arith.constant 0 : i32
    %c0_i32_1 = arith.constant 0 : i32
    return %c0_i32, %c0_i32_0 : i32, i32
  }
  func.func @transform_11(%arg0: i32) -> (i32, i32) {
    %c0_i32 = arith.constant 0 : i32
    %c0_i32_0 = arith.constant 0 : i32
    %c0_i32_1 = arith.constant 0 : i32
    return %c0_i32, %c0_i32_0 : i32, i32
  }
}

</mosaic_0001>

<llo_original>
// kernel: encoder_forward.1
$region0: #{encoder_forward.1}
  #allocation0 [shape = 'u32[]', space=smem, size = 0x4, offset = 0x4, fixed_abs, tag = 'smem constant byte address 0x4 - core index']
  #allocation1 [shape = 'u32[72,128]{1,0:T(1,128)}', space=vmem, size = 0x9000, scoped, tag = 'internal scratch']
  %s0 = inlined_call_operand.hbm [shape: f32[8,64], index: 0, kind: input, shape index: {}]
  %s1 = inlined_call_operand.hbm [shape: f32[64,2048], index: 1, kind: input, shape index: {}]
  %s2 = inlined_call_operand.vmem [shape: f32[3,2048], index: 2, kind: input, shape index: {}]
  %s3 = inlined_call_operand.hbm [shape: f32[2048,1024], index: 3, kind: input, shape index: {}]
  %s4 = inlined_call_operand.vmem [shape: f32[3,1024], index: 4, kind: input, shape index: {}]
  %s5 = inlined_call_operand.hbm [shape: f32[1024,512], index: 5, kind: input, shape index: {}]
  %s6 = inlined_call_operand.vmem [shape: f32[3,512], index: 6, kind: input, shape index: {}]
  %s7 = inlined_call_operand.hbm [shape: f32[512,256], index: 7, kind: input, shape index: {}]
  %s8 = inlined_call_operand.vmem [shape: f32[3,256], index: 8, kind: input, shape index: {}]
  %s9 = inlined_call_operand.hbm [shape: f32[256,128], index: 9, kind: input, shape index: {}]
  %s10 = inlined_call_operand.vmem [shape: f32[3,128], index: 10, kind: input, shape index: {}]
  %s11 = inlined_call_operand.hbm [shape: f32[8,128], index: 11, kind: output, shape index: {}]
  %s12 = sld [smem:[#allocation0]]
  $region78: #{encoder_forward.1} parent=0
    _
  %s14 = ssub.s32 1, %s12
  %s15 = scalar_select 0, %s14, %s12
  $region1: #{encoder_forward.1} parent=0
    #allocation2 [shape = 'u8[4096]{0}', space=vmem, size = 0x1000, scoped, tag = 'input window, operand 0, single buffered']
    #allocation3 [shape = 's32[1]{0}', space=sflag, size = 0x4, scoped, tag = 'scoped memory for encoder_forward.1']
    #allocation4 [shape = 's32[1]{0}', space=sflag, size = 0x4, scoped, tag = 'scoped memory for encoder_forward.1']
    #allocation5 [shape = 'u8[524288]{0}', space=vmem, size = 0x80000, scoped, tag = 'input window, operand 1, single buffered']
    #allocation6 [shape = 's32[1]{0}', space=sflag, size = 0x4, scoped, tag = 'scoped memory for encoder_forward.1']
    #allocation7 [shape = 'u8[8388608]{0}', space=vmem, size = 0x800000, scoped, tag = 'input window, operand 3, single buffered']
    #allocation8 [shape = 'u8[2097152]{0}', space=vmem, size = 0x200000, scoped, tag = 'input window, operand 5, single buffered']
    #allocation9 [shape = 's32[1]{0}', space=sflag, size = 0x4, scoped, tag = 'scoped memory for encoder_forward.1']
    #allocation10 [shape = 'u8[524288]{0}', space=vmem, size = 0x80000, scoped, tag = 'input window, operand 7, single buffered']
    #allocation11 [shape = 'u8[131072]{0}', space=vmem, size = 0x20000, scoped, tag = 'input window, operand 9, single buffered']
    #allocation12 [shape = 's32[1]{0}', space=sflag, size = 0x4, scoped, tag = 'scoped memory for encoder_forward.1']
    #allocation13 [shape = 'u8[4096]{0}', space=vmem, size = 0x1000, scoped, tag = 'output window, operand 0, single buffered']
    %16 = vsyncpa [#allocation3], 0
    %17 = vsyncpa [#allocation6], 0
    %18 = vsyncpa [#allocation9], 0
    %19 = vsyncpa [#allocation12], 0
    %20 = vsyncpa [#allocation4], 0
    // Predicated region
    $region2: #{encoder_forward.1} parent=1 // pred_check
      _
    $region3: #{encoder_forward.1} parent=1 // pred_check_branch
      %22 = sbr.rel (0) target = $region5
    $region4: #{encoder_forward.1} parent=1 // pred_region
      %24 = vsyncadd [#allocation3], 0
      %s26 = sshll.u32 %s0, 4
      %s27 = int_to_ptr.hbm [resolvable:$true] %s26
      %s28 = sshll.u32 [#allocation2], 4
      %s29 = int_to_ptr.vmem [resolvable:$true] %s28
      %31 = dma.hbm_to_vmem [thread:$0]  %s27, 128, %s29, [#allocation3]
    $region5: #{encoder_forward.1} parent=1 // pred_fallthru
      _
    // Predicated region
    $region6: #{encoder_forward.1} parent=1 // pred_check
      _
    $region7: #{encoder_forward.1} parent=1 // pred_check_branch
      %33 = sbr.rel (0) target = $region9
    $region8: #{encoder_forward.1} parent=1 // pred_region
      %35 = vsyncadd [#allocation6], 0
      %s36 = sshll.u32 %s1, 4
      %s37 = int_to_ptr.hbm [resolvable:$true] %s36
      %s38 = sshll.u32 [#allocation5], 4
      %s39 = int_to_ptr.vmem [resolvable:$true] %s38
      %44 = dma.hbm_to_vmem [thread:$0]  %s37, 16384, %s39, [#allocation6], 2048, 2048, 128
    $region9: #{encoder_forward.1} parent=1 // pred_fallthru
      _
    // Predicated region
    $region10: #{encoder_forward.1} parent=1 // pred_check
      _
    $region11: #{encoder_forward.1} parent=1 // pred_check_branch
      %46 = sbr.rel (0) target = $region13
    $region12: #{encoder_forward.1} parent=1 // pred_region
      _
    $region13: #{encoder_forward.1} parent=1 // pred_fallthru
      _
    // Predicated region
    $region14: #{encoder_forward.1} parent=1 // pred_check
      _
    $region15: #{encoder_forward.1} parent=1 // pred_check_branch
      %48 = sbr.rel (0) target = $region17
    $region16: #{encoder_forward.1} parent=1 // pred_region
      %50 = vsyncadd [#allocation6], 0
      %s51 = sshll.u32 %s3, 4
      %s52 = int_to_ptr.hbm [resolvable:$true] %s51
      %s53 = sshll.u32 [#allocation7], 4
      %s54 = int_to_ptr.vmem [resolvable:$true] %s53
      %59 = dma.hbm_to_vmem [thread:$0]  %s52, 262144, %s54, [#allocation6], 1024, 1024, 64
    $region17: #{encoder_forward.1} parent=1 // pred_fallthru
      _
    // Predicated region
    $region18: #{encoder_forward.1} parent=1 // pred_check
      _
    $region19: #{encoder_forward.1} parent=1 // pred_check_branch
      %61 = sbr.rel (0) target = $region21
    $region20: #{encoder_forward.1} parent=1 // pred_region
      _
    $region21: #{encoder_forward.1} parent=1 // pred_fallthru
      _
    // Predicated region
    $region22: #{encoder_forward.1} parent=1 // pred_check
      _
    $region23: #{encoder_forward.1} parent=1 // pred_check_branch
      %63 = sbr.rel (0) target = $region25
    $region24: #{encoder_forward.1} parent=1 // pred_region
      %65 = vsyncadd [#allocation9], 0
      %s66 = sshll.u32 %s5, 4
      %s67 = int_to_ptr.hbm [resolvable:$true] %s66
      %s68 = sshll.u32 [#allocation8], 4
      %s69 = int_to_ptr.vmem [resolvable:$true] %s68
      %74 = dma.hbm_to_vmem [thread:$0]  %s67, 65536, %s69, [#allocation9], 512, 512, 32
    $region25: #{encoder_forward.1} parent=1 // pred_fallthru
      _
    // Predicated region
    $region26: #{encoder_forward.1} parent=1 // pred_check
      _
    $region27: #{encoder_forward.1} parent=1 // pred_check_branch
      %76 = sbr.rel (0) target = $region29
    $region28: #{encoder_forward.1} parent=1 // pred_region
      _
    $region29: #{encoder_forward.1} parent=1 // pred_fallthru
      _
    // Predicated region
    $region30: #{encoder_forward.1} parent=1 // pred_check
      _
    $region31: #{encoder_forward.1} parent=1 // pred_check_branch
      %78 = sbr.rel (0) target = $region33
    $region32: #{encoder_forward.1} parent=1 // pred_region
      %80 = vsyncadd [#allocation9], 0
      %s81 = sshll.u32 %s7, 4
      %s82 = int_to_ptr.hbm [resolvable:$true] %s81
      %s83 = sshll.u32 [#allocation10], 4
      %s84 = int_to_ptr.vmem [resolvable:$true] %s83
      %89 = dma.hbm_to_vmem [thread:$0]  %s82, 16384, %s84, [#allocation9], 256, 256, 16
    $region33: #{encoder_forward.1} parent=1 // pred_fallthru
      _
    // Predicated region
    $region34: #{encoder_forward.1} parent=1 // pred_check
      _
    $region35: #{encoder_forward.1} parent=1 // pred_check_branch
      %91 = sbr.rel (0) target = $region37
    $region36: #{encoder_forward.1} parent=1 // pred_region
      _
    $region37: #{encoder_forward.1} parent=1 // pred_fallthru
      _
    // Predicated region
    $region38: #{encoder_forward.1} parent=1 // pred_check
      _
    $region39: #{encoder_forward.1} parent=1 // pred_check_branch
      %93 = sbr.rel (0) target = $region41
    $region40: #{encoder_forward.1} parent=1 // pred_region
      %95 = vsyncadd [#allocation12], 0
      %s96 = sshll.u32 %s9, 4
      %s97 = int_to_ptr.hbm [resolvable:$true] %s96
      %s98 = sshll.u32 [#allocation11], 4
      %s99 = int_to_ptr.vmem [resolvable:$true] %s98
      %104 = dma.hbm_to_vmem [thread:$0]  %s97, 4096, %s99, [#allocation12], 128, 128, 8
    $region41: #{encoder_forward.1} parent=1 // pred_fallthru
      _
    // Predicated region
    $region42: #{encoder_forward.1} parent=1 // pred_check
      _
    $region43: #{encoder_forward.1} parent=1 // pred_check_branch
      %106 = sbr.rel (0) target = $region45
    $region44: #{encoder_forward.1} parent=1 // pred_region
      _
    $region45: #{encoder_forward.1} parent=1 // pred_fallthru
      _
    // Predicated region
    $region46: #{encoder_forward.1} parent=1 // pred_check
      _
    $region47: #{encoder_forward.1} parent=1 // pred_check_branch
      %108 = sbr.rel (0) target = $region49
    $region48: #{encoder_forward.1} parent=1 // pred_region
      %110 = dma.done [#allocation3], 128
    $region49: #{encoder_forward.1} parent=1 // pred_fallthru
      _
    // Predicated region
    $region50: #{encoder_forward.1} parent=1 // pred_check
      _
    $region51: #{encoder_forward.1} parent=1 // pred_check_branch
      %112 = sbr.rel (0) target = $region53
    $region52: #{encoder_forward.1} parent=1 // pred_region
      %114 = dma.done [#allocation6], 16384
    $region53: #{encoder_forward.1} parent=1 // pred_fallthru
      _
    // Predicated region
    $region54: #{encoder_forward.1} parent=1 // pred_check
      _
    $region55: #{encoder_forward.1} parent=1 // pred_check_branch
      %116 = sbr.rel (0) target = $region57
    $region56: #{encoder_forward.1} parent=1 // pred_region
      %118 = dma.done [#allocation6], 262144
    $region57: #{encoder_forward.1} parent=1 // pred_fallthru
      _
    // Predicated region
    $region58: #{encoder_forward.1} parent=1 // pred_check
      _
    $region59: #{encoder_forward.1} parent=1 // pred_check_branch
      %120 = sbr.rel (0) target = $region61
    $region60: #{encoder_forward.1} parent=1 // pred_region
      %122 = dma.done [#allocation9], 65536
    $region61: #{encoder_forward.1} parent=1 // pred_fallthru
      _
    // Predicated region
    $region62: #{encoder_forward.1} parent=1 // pred_check
      _
    $region63: #{encoder_forward.1} parent=1 // pred_check_branch
      %124 = sbr.rel (0) target = $region65
    $region64: #{encoder_forward.1} parent=1 // pred_region
      %126 = dma.done [#allocation9], 16384
    $region65: #{encoder_forward.1} parent=1 // pred_fallthru
      _
    // Predicated region
    $region66: #{encoder_forward.1} parent=1 // pred_check
      _
    $region67: #{encoder_forward.1} parent=1 // pred_check_branch
      %128 = sbr.rel (0) target = $region69
    $region68: #{encoder_forward.1} parent=1 // pred_region
      %130 = dma.done [#allocation12], 4096
    $region69: #{encoder_forward.1} parent=1 // pred_fallthru
      _
    %v131 = vld [vmem:[#allocation2] sm:$0xff]
    %v132 = vld [vmem:[#allocation5] sm:$0xff]
    %v133 = vld [vmem:[#allocation5 + $0x8] sm:$0xff]
    %v134 = vld [vmem:[#allocation5 + $0x10] sm:$0xff]
    %v135 = vld [vmem:[#allocation5 + $0x18] sm:$0xff]
    %v136 = vld [vmem:[#allocation5 + $0x20] sm:$0xff]
    %v137 = vld [vmem:[#allocation5 + $0x28] sm:$0xff]
    %v138 = vld [vmem:[#allocation5 + $0x30] sm:$0xff]
    %v139 = vld [vmem:[#allocation5 + $0x38] sm:$0xff]
    %v140 = vld [vmem:[#allocation5 + $0x40] sm:$0xff]
    %v141 = vld [vmem:[#allocation5 + $0x48] sm:$0xff]
    %v142 = vld [vmem:[#allocation5 + $0x50] sm:$0xff]
    %v143 = vld [vmem:[#allocation5 + $0x58] sm:$0xff]
    %v144 = vld [vmem:[#allocation5 + $0x60] sm:$0xff]
    %v145 = vld [vmem:[#allocation5 + $0x68] sm:$0xff]
    %v146 = vld [vmem:[#allocation5 + $0x70] sm:$0xff]
    %v147 = vld [vmem:[#allocation5 + $0x78] sm:$0xff]
    %v148 = vld [vmem:[#allocation5 + $0x80] sm:$0xff]
    %v149 = vld [vmem:[#allocation5 + $0x88] sm:$0xff]
    %v150 = vld [vmem:[#allocation5 + $0x90] sm:$0xff]
    %v151 = vld [vmem:[#allocation5 + $0x98] sm:$0xff]
    %v152 = vld [vmem:[#allocation5 + $0xa0] sm:$0xff]
    %v153 = vld [vmem:[#allocation5 + $0xa8] sm:$0xff]
    %v154 = vld [vmem:[#allocation5 + $0xb0] sm:$0xff]
    %v155 = vld [vmem:[#allocation5 + $0xb8] sm:$0xff]
    %v156 = vld [vmem:[#allocation5 + $0xc0] sm:$0xff]
    %v157 = vld [vmem:[#allocation5 + $0xc8] sm:$0xff]
    %v158 = vld [vmem:[#allocation5 + $0xd0] sm:$0xff]
    %v159 = vld [vmem:[#allocation5 + $0xd8] sm:$0xff]
    %v160 = vld [vmem:[#allocation5 + $0xe0] sm:$0xff]
    %v161 = vld [vmem:[#allocation5 + $0xe8] sm:$0xff]
    %v162 = vld [vmem:[#allocation5 + $0xf0] sm:$0xff]
    %v163 = vld [vmem:[#allocation5 + $0xf8] sm:$0xff]
    %v164 = vld [vmem:[#allocation5 + $0x100] sm:$0xff]
    %v165 = vld [vmem:[#allocation5 + $0x108] sm:$0xff]
    %v166 = vld [vmem:[#allocation5 + $0x110] sm:$0xff]
    %v167 = vld [vmem:[#allocation5 + $0x118] sm:$0xff]
    %v168 = vld [vmem:[#allocation5 + $0x120] sm:$0xff]
    %v169 = vld [vmem:[#allocation5 + $0x128] sm:$0xff]
    %v170 = vld [vmem:[#allocation5 + $0x130] sm:$0xff]
    %v171 = vld [vmem:[#allocation5 + $0x138] sm:$0xff]
    %v172 = vld [vmem:[#allocation5 + $0x140] sm:$0xff]
    %v173 = vld [vmem:[#allocation5 + $0x148] sm:$0xff]
    %v174 = vld [vmem:[#allocation5 + $0x150] sm:$0xff]
    %v175 = vld [vmem:[#allocation5 + $0x158] sm:$0xff]
    %v176 = vld [vmem:[#allocation5 + $0x160] sm:$0xff]
    %v177 = vld [vmem:[#allocation5 + $0x168] sm:$0xff]
    %v178 = vld [vmem:[#allocation5 + $0x170] sm:$0xff]
    %v179 = vld [vmem:[#allocation5 + $0x178] sm:$0xff]
    %v180 = vld [vmem:[#allocation5 + $0x180] sm:$0xff]
    %v181 = vld [vmem:[#allocation5 + $0x188] sm:$0xff]
    %v182 = vld [vmem:[#allocation5 + $0x190] sm:$0xff]
    %v183 = vld [vmem:[#allocation5 + $0x198] sm:$0xff]
    %v184 = vld [vmem:[#allocation5 + $0x1a0] sm:$0xff]
    %v185 = vld [vmem:[#allocation5 + $0x1a8] sm:$0xff]
    %v186 = vld [vmem:[#allocation5 + $0x1b0] sm:$0xff]
    %v187 = vld [vmem:[#allocation5 + $0x1b8] sm:$0xff]
    %v188 = vld [vmem:[#allocation5 + $0x1c0] sm:$0xff]
    %v189 = vld [vmem:[#allocation5 + $0x1c8] sm:$0xff]
    %v190 = vld [vmem:[#allocation5 + $0x1d0] sm:$0xff]
    %v191 = vld [vmem:[#allocation5 + $0x1d8] sm:$0xff]
    %v192 = vld [vmem:[#allocation5 + $0x1e0] sm:$0xff]
    %v193 = vld [vmem:[#allocation5 + $0x1e8] sm:$0xff]
    %v194 = vld [vmem:[#allocation5 + $0x1f0] sm:$0xff]
    %v195 = vld [vmem:[#allocation5 + $0x1f8] sm:$0xff]
    %v196 = vld [vmem:[#allocation5 + $0x200] sm:$0xff]
    %v197 = vld [vmem:[#allocation5 + $0x208] sm:$0xff]
    %v198 = vld [vmem:[#allocation5 + $0x210] sm:$0xff]
    %v199 = vld [vmem:[#allocation5 + $0x218] sm:$0xff]
    %v200 = vld [vmem:[#allocation5 + $0x220] sm:$0xff]
    %v201 = vld [vmem:[#allocation5 + $0x228] sm:$0xff]
    %v202 = vld [vmem:[#allocation5 + $0x230] sm:$0xff]
    %v203 = vld [vmem:[#allocation5 + $0x238] sm:$0xff]
    %v204 = vld [vmem:[#allocation5 + $0x240] sm:$0xff]
    %v205 = vld [vmem:[#allocation5 + $0x248] sm:$0xff]
    %v206 = vld [vmem:[#allocation5 + $0x250] sm:$0xff]
    %v207 = vld [vmem:[#allocation5 + $0x258] sm:$0xff]
    %v208 = vld [vmem:[#allocation5 + $0x260] sm:$0xff]
    %v209 = vld [vmem:[#allocation5 + $0x268] sm:$0xff]
    %v210 = vld [vmem:[#allocation5 + $0x270] sm:$0xff]
    %v211 = vld [vmem:[#allocation5 + $0x278] sm:$0xff]
    %v212 = vld [vmem:[#allocation5 + $0x280] sm:$0xff]
    %v213 = vld [vmem:[#allocation5 + $0x288] sm:$0xff]
    %v214 = vld [vmem:[#allocation5 + $0x290] sm:$0xff]
    %v215 = vld [vmem:[#allocation5 + $0x298] sm:$0xff]
    %v216 = vld [vmem:[#allocation5 + $0x2a0] sm:$0xff]
    %v217 = vld [vmem:[#allocation5 + $0x2a8] sm:$0xff]
    %v218 = vld [vmem:[#allocation5 + $0x2b0] sm:$0xff]
    %v219 = vld [vmem:[#allocation5 + $0x2b8] sm:$0xff]
    %v220 = vld [vmem:[#allocation5 + $0x2c0] sm:$0xff]
    %v221 = vld [vmem:[#allocation5 + $0x2c8] sm:$0xff]
    %v222 = vld [vmem:[#allocation5 + $0x2d0] sm:$0xff]
    %v223 = vld [vmem:[#allocation5 + $0x2d8] sm:$0xff]
    %v224 = vld [vmem:[#allocation5 + $0x2e0] sm:$0xff]
    %v225 = vld [vmem:[#allocation5 + $0x2e8] sm:$0xff]
    %v226 = vld [vmem:[#allocation5 + $0x2f0] sm:$0xff]
    %v227 = vld [vmem:[#allocation5 + $0x2f8] sm:$0xff]
    %v228 = vld [vmem:[#allocation5 + $0x300] sm:$0xff]
    %v229 = vld [vmem:[#allocation5 + $0x308] sm:$0xff]
    %v230 = vld [vmem:[#allocation5 + $0x310] sm:$0xff]
    %v231 = vld [vmem:[#allocation5 + $0x318] sm:$0xff]
    %v232 = vld [vmem:[#allocation5 + $0x320] sm:$0xff]
    %v233 = vld [vmem:[#allocation5 + $0x328] sm:$0xff]
    %v234 = vld [vmem:[#allocation5 + $0x330] sm:$0xff]
    %v235 = vld [vmem:[#allocation5 + $0x338] sm:$0xff]
    %v236 = vld [vmem:[#allocation5 + $0x340] sm:$0xff]
    %v237 = vld [vmem:[#allocation5 + $0x348] sm:$0xff]
    %v238 = vld [vmem:[#allocation5 + $0x350] sm:$0xff]
    %v239 = vld [vmem:[#allocation5 + $0x358] sm:$0xff]
    %v240 = vld [vmem:[#allocation5 + $0x360] sm:$0xff]
    %v241 = vld [vmem:[#allocation5 + $0x368] sm:$0xff]
    %v242 = vld [vmem:[#allocation5 + $0x370] sm:$0xff]
    %v243 = vld [vmem:[#allocation5 + $0x378] sm:$0xff]
    %v244 = vld [vmem:[#allocation5 + $0x380] sm:$0xff]
    %v245 = vld [vmem:[#allocation5 + $0x388] sm:$0xff]
    %v246 = vld [vmem:[#allocation5 + $0x390] sm:$0xff]
    %v247 = vld [vmem:[#allocation5 + $0x398] sm:$0xff]
    %v248 = vld [vmem:[#allocation5 + $0x3a0] sm:$0xff]
    %v249 = vld [vmem:[#allocation5 + $0x3a8] sm:$0xff]
    %v250 = vld [vmem:[#allocation5 + $0x3b0] sm:$0xff]
    %v251 = vld [vmem:[#allocation5 + $0x3b8] sm:$0xff]
    %v252 = vld [vmem:[#allocation5 + $0x3c0] sm:$0xff]
    %v253 = vld [vmem:[#allocation5 + $0x3c8] sm:$0xff]
    %v254 = vld [vmem:[#allocation5 + $0x3d0] sm:$0xff]
    %v255 = vld [vmem:[#allocation5 + $0x3d8] sm:$0xff]
    %v256 = vld [vmem:[#allocation5 + $0x3e0] sm:$0xff]
    %v257 = vld [vmem:[#allocation5 + $0x3e8] sm:$0xff]
    %v258 = vld [vmem:[#allocation5 + $0x3f0] sm:$0xff]
    %v259 = vld [vmem:[#allocation5 + $0x3f8] sm:$0xff]
    %v260 = vld [vmem:[%s2] sm:$0x77]
    %v261 = vld [vmem:[%s2 + $0x8] sm:$0x77]
    %v262 = vld [vmem:[%s2 + $0x10] sm:$0x77]
    %v263 = vld [vmem:[%s2 + $0x18] sm:$0x77]
    %v264 = vld [vmem:[%s2 + $0x20] sm:$0x77]
    %v265 = vld [vmem:[%s2 + $0x28] sm:$0x77]
    %v266 = vld [vmem:[%s2 + $0x30] sm:$0x77]
    %v267 = vld [vmem:[%s2 + $0x38] sm:$0x77]
    %v276 = vperm.slane %v260, 0
    %v277 = vperm.slane %v260, 4
    %v278 = vperm.slane %v261, 0
    %v279 = vperm.slane %v261, 4
    %v280 = vperm.slane %v262, 0
    %v281 = vperm.slane %v262, 4
    %v282 = vperm.slane %v263, 0
    %v283 = vperm.slane %v263, 4
    %v284 = vperm.slane %v264, 0
    %v285 = vperm.slane %v264, 4
    %v286 = vperm.slane %v265, 0
    %v287 = vperm.slane %v265, 4
    %v288 = vperm.slane %v266, 0
    %v289 = vperm.slane %v266, 4
    %v290 = vperm.slane %v267, 0
    %v291 = vperm.slane %v267, 4
    %v308 = vperm.slane %v276, 0
    %v309 = vperm.slane %v277, 0
    %v310 = vperm.slane %v278, 0
    %v311 = vperm.slane %v279, 0
    %v312 = vperm.slane %v280, 0
    %v313 = vperm.slane %v281, 0
    %v314 = vperm.slane %v282, 0
    %v315 = vperm.slane %v283, 0
    %v316 = vperm.slane %v284, 0
    %v317 = vperm.slane %v285, 0
    %v318 = vperm.slane %v286, 0
    %v319 = vperm.slane %v287, 0
    %v320 = vperm.slane %v288, 0
    %v321 = vperm.slane %v289, 0
    %v322 = vperm.slane %v290, 0
    %v323 = vperm.slane %v291, 0
    %vm324 = vcmask 523264
    %v326 = vsel %vm324, %v131, 0
    %328 = vmatpush.msra.mxu0 0.0
    %329 = vmatpush.msra.mxu0 0.0
    %330 = vmatpush.msra.mxu0 0.0
    %331 = vmatpush.msra.mxu0 0.0
    %332 = vmatpush.msra.mxu0 0.0
    %333 = vmatpush.msra.mxu0 0.0
    %334 = vmatpush.msra.mxu0 0.0
    %335 = vmatpush.msra.mxu0 0.0
    %336 = vmatpush.msra.mxu0 %v244
    %337 = vmatpush.msra.mxu0 %v228
    %338 = vmatpush.msra.mxu0 %v212
    %339 = vmatpush.msra.mxu0 %v196
    %340 = vmatpush.msra.mxu0 %v180
    %341 = vmatpush.msra.mxu0 %v164
    %342 = vmatpush.msra.mxu0 %v148
    %343 = vmatpush.msra.mxu0 %v132
    %344 = vmatmul.f32.gmra.mxu0 %v326
    %v345 = vpop.f32.mrf.mxu0
    %v346 = vadd.f32 %v308, %v345
    %347 = vdwg.mxu0
    %348 = vmatpush.msra.mxu0 0.0
    %349 = vmatpush.msra.mxu0 0.0
    %350 = vmatpush.msra.mxu0 0.0
    %351 = vmatpush.msra.mxu0 0.0
    %352 = vmatpush.msra.mxu0 0.0
    %353 = vmatpush.msra.mxu0 0.0
    %354 = vmatpush.msra.mxu0 0.0
    %355 = vmatpush.msra.mxu0 0.0
    %356 = vmatpush.msra.mxu0 %v245
    %357 = vmatpush.msra.mxu0 %v229
    %358 = vmatpush.msra.mxu0 %v213
    %359 = vmatpush.msra.mxu0 %v197
    %360 = vmatpush.msra.mxu0 %v181
    %361 = vmatpush.msra.mxu0 %v165
    %362 = vmatpush.msra.mxu0 %v149
    %363 = vmatpush.msra.mxu0 %v133
    %364 = vmatmul.f32.gmra.mxu0 %v326
    %v365 = vpop.f32.mrf.mxu0
    %v366 = vadd.f32 %v309, %v365
    %367 = vdwg.mxu0
    %368 = vmatpush.msra.mxu0 0.0
    %369 = vmatpush.msra.mxu0 0.0
    %370 = vmatpush.msra.mxu0 0.0
    %371 = vmatpush.msra.mxu0 0.0
    %372 = vmatpush.msra.mxu0 0.0
    %373 = vmatpush.msra.mxu0 0.0
    %374 = vmatpush.msra.mxu0 0.0
    %375 = vmatpush.msra.mxu0 0.0
    %376 = vmatpush.msra.mxu0 %v246
    %377 = vmatpush.msra.mxu0 %v230
    %378 = vmatpush.msra.mxu0 %v214
    %379 = vmatpush.msra.mxu0 %v198
    %380 = vmatpush.msra.mxu0 %v182
    %381 = vmatpush.msra.mxu0 %v166
    %382 = vmatpush.msra.mxu0 %v150
    %383 = vmatpush.msra.mxu0 %v134
    %384 = vmatmul.f32.gmra.mxu0 %v326
    %v385 = vpop.f32.mrf.mxu0
    %v386 = vadd.f32 %v310, %v385
    %387 = vdwg.mxu0
    %388 = vmatpush.msra.mxu0 0.0
    %389 = vmatpush.msra.mxu0 0.0
    %390 = vmatpush.msra.mxu0 0.0
    %391 = vmatpush.msra.mxu0 0.0
    %392 = vmatpush.msra.mxu0 0.0
    %393 = vmatpush.msra.mxu0 0.0
    %394 = vmatpush.msra.mxu0 0.0
    %395 = vmatpush.msra.mxu0 0.0
    %396 = vmatpush.msra.mxu0 %v247
    %397 = vmatpush.msra.mxu0 %v231
    %398 = vmatpush.msra.mxu0 %v215
    %399 = vmatpush.msra.mxu0 %v199
    %400 = vmatpush.msra.mxu0 %v183
    %401 = vmatpush.msra.mxu0 %v167
    %402 = vmatpush.msra.mxu0 %v151
    %403 = vmatpush.msra.mxu0 %v135
    %404 = vmatmul.f32.gmra.mxu0 %v326
    %v405 = vpop.f32.mrf.mxu0
    %v406 = vadd.f32 %v311, %v405
    %407 = vdwg.mxu0
    %408 = vmatpush.msra.mxu0 0.0
    %409 = vmatpush.msra.mxu0 0.0
    %410 = vmatpush.msra.mxu0 0.0
    %411 = vmatpush.msra.mxu0 0.0
    %412 = vmatpush.msra.mxu0 0.0
    %413 = vmatpush.msra.mxu0 0.0
    %414 = vmatpush.msra.mxu0 0.0
    %415 = vmatpush.msra.mxu0 0.0
    %416 = vmatpush.msra.mxu0 %v248
    %417 = vmatpush.msra.mxu0 %v232
    %418 = vmatpush.msra.mxu0 %v216
    %419 = vmatpush.msra.mxu0 %v200
    %420 = vmatpush.msra.mxu0 %v184
    %421 = vmatpush.msra.mxu0 %v168
    %422 = vmatpush.msra.mxu0 %v152
    %423 = vmatpush.msra.mxu0 %v136
    %424 = vmatmul.f32.gmra.mxu0 %v326
    %v425 = vpop.f32.mrf.mxu0
    %v426 = vadd.f32 %v312, %v425
    %427 = vdwg.mxu0
    %428 = vmatpush.msra.mxu0 0.0
    %429 = vmatpush.msra.mxu0 0.0
    %430 = vmatpush.msra.mxu0 0.0
    %431 = vmatpush.msra.mxu0 0.0
    %432 = vmatpush.msra.mxu0 0.0
    %433 = vmatpush.msra.mxu0 0.0
    %434 = vmatpush.msra.mxu0 0.0
    %435 = vmatpush.msra.mxu0 0.0
    %436 = vmatpush.msra.mxu0 %v249
    %437 = vmatpush.msra.mxu0 %v233
    %438 = vmatpush.msra.mxu0 %v217
    %439 = vmatpush.msra.mxu0 %v201
    %440 = vmatpush.msra.mxu0 %v185
    %441 = vmatpush.msra.mxu0 %v169
    %442 = vmatpush.msra.mxu0 %v153
    %443 = vmatpush.msra.mxu0 %v137
    %444 = vmatmul.f32.gmra.mxu0 %v326
    %v445 = vpop.f32.mrf.mxu0
    %v446 = vadd.f32 %v313, %v445
    %447 = vdwg.mxu0
    %448 = vmatpush.msra.mxu0 0.0
    %449 = vmatpush.msra.mxu0 0.0
    %450 = vmatpush.msra.mxu0 0.0
    %451 = vmatpush.msra.mxu0 0.0
    %452 = vmatpush.msra.mxu0 0.0
    %453 = vmatpush.msra.mxu0 0.0
    %454 = vmatpush.msra.mxu0 0.0
    %455 = vmatpush.msra.mxu0 0.0
    %456 = vmatpush.msra.mxu0 %v250
    %457 = vmatpush.msra.mxu0 %v234
    %458 = vmatpush.msra.mxu0 %v218
    %459 = vmatpush.msra.mxu0 %v202
    %460 = vmatpush.msra.mxu0 %v186
    %461 = vmatpush.msra.mxu0 %v170
    %462 = vmatpush.msra.mxu0 %v154
    %463 = vmatpush.msra.mxu0 %v138
    %464 = vmatmul.f32.gmra.mxu0 %v326
    %v465 = vpop.f32.mrf.mxu0
    %v466 = vadd.f32 %v314, %v465
    %467 = vdwg.mxu0
    %468 = vmatpush.msra.mxu0 0.0
    %469 = vmatpush.msra.mxu0 0.0
    %470 = vmatpush.msra.mxu0 0.0
    %471 = vmatpush.msra.mxu0 0.0
    %472 = vmatpush.msra.mxu0 0.0
    %473 = vmatpush.msra.mxu0 0.0
    %474 = vmatpush.msra.mxu0 0.0
    %475 = vmatpush.msra.mxu0 0.0
    %476 = vmatpush.msra.mxu0 %v251
    %477 = vmatpush.msra.mxu0 %v235
    %478 = vmatpush.msra.mxu0 %v219
    %479 = vmatpush.msra.mxu0 %v203
    %480 = vmatpush.msra.mxu0 %v187
    %481 = vmatpush.msra.mxu0 %v171
    %482 = vmatpush.msra.mxu0 %v155
    %483 = vmatpush.msra.mxu0 %v139
    %484 = vmatmul.f32.gmra.mxu0 %v326
    %v485 = vpop.f32.mrf.mxu0
    %v486 = vadd.f32 %v315, %v485
    %487 = vdwg.mxu0
    %488 = vmatpush.msra.mxu0 0.0
    %489 = vmatpush.msra.mxu0 0.0
    %490 = vmatpush.msra.mxu0 0.0
    %491 = vmatpush.msra.mxu0 0.0
    %492 = vmatpush.msra.mxu0 0.0
    %493 = vmatpush.msra.mxu0 0.0
    %494 = vmatpush.msra.mxu0 0.0
    %495 = vmatpush.msra.mxu0 0.0
    %496 = vmatpush.msra.mxu0 %v252
    %497 = vmatpush.msra.mxu0 %v236
    %498 = vmatpush.msra.mxu0 %v220
    %499 = vmatpush.msra.mxu0 %v204
    %500 = vmatpush.msra.mxu0 %v188
    %501 = vmatpush.msra.mxu0 %v172
    %502 = vmatpush.msra.mxu0 %v156
    %503 = vmatpush.msra.mxu0 %v140
    %504 = vmatmul.f32.gmra.mxu0 %v326
    %v505 = vpop.f32.mrf.mxu0
    %v506 = vadd.f32 %v316, %v505
    %507 = vdwg.mxu0
    %508 = vmatpush.msra.mxu0 0.0
    %509 = vmatpush.msra.mxu0 0.0
    %510 = vmatpush.msra.mxu0 0.0
    %511 = vmatpush.msra.mxu0 0.0
    %512 = vmatpush.msra.mxu0 0.0
    %513 = vmatpush.msra.mxu0 0.0
    %514 = vmatpush.msra.mxu0 0.0
    %515 = vmatpush.msra.mxu0 0.0
    %516 = vmatpush.msra.mxu0 %v253
    %517 = vmatpush.msra.mxu0 %v237
    %518 = vmatpush.msra.mxu0 %v221
    %519 = vmatpush.msra.mxu0 %v205
    %520 = vmatpush.msra.mxu0 %v189
    %521 = vmatpush.msra.mxu0 %v173
    %522 = vmatpush.msra.mxu0 %v157
    %523 = vmatpush.msra.mxu0 %v141
    %524 = vmatmul.f32.gmra.mxu0 %v326
    %v525 = vpop.f32.mrf.mxu0
    %v526 = vadd.f32 %v317, %v525
    %527 = vdwg.mxu0
    %528 = vmatpush.msra.mxu0 0.0
    %529 = vmatpush.msra.mxu0 0.0
    %530 = vmatpush.msra.mxu0 0.0
    %531 = vmatpush.msra.mxu0 0.0
    %532 = vmatpush.msra.mxu0 0.0
    %533 = vmatpush.msra.mxu0 0.0
    %534 = vmatpush.msra.mxu0 0.0
    %535 = vmatpush.msra.mxu0 0.0
    %536 = vmatpush.msra.mxu0 %v254
    %537 = vmatpush.msra.mxu0 %v238
    %538 = vmatpush.msra.mxu0 %v222
    %539 = vmatpush.msra.mxu0 %v206
    %540 = vmatpush.msra.mxu0 %v190
    %541 = vmatpush.msra.mxu0 %v174
    %542 = vmatpush.msra.mxu0 %v158
    %543 = vmatpush.msra.mxu0 %v142
    %544 = vmatmul.f32.gmra.mxu0 %v326
    %v545 = vpop.f32.mrf.mxu0
    %v546 = vadd.f32 %v318, %v545
    %547 = vdwg.mxu0
    %548 = vmatpush.msra.mxu0 0.0
    %549 = vmatpush.msra.mxu0 0.0
    %550 = vmatpush.msra.mxu0 0.0
    %551 = vmatpush.msra.mxu0 0.0
    %552 = vmatpush.msra.mxu0 0.0
    %553 = vmatpush.msra.mxu0 0.0
    %554 = vmatpush.msra.mxu0 0.0
    %555 = vmatpush.msra.mxu0 0.0
    %556 = vmatpush.msra.mxu0 %v255
    %557 = vmatpush.msra.mxu0 %v239
    %558 = vmatpush.msra.mxu0 %v223
    %559 = vmatpush.msra.mxu0 %v207
    %560 = vmatpush.msra.mxu0 %v191
    %561 = vmatpush.msra.mxu0 %v175
    %562 = vmatpush.msra.mxu0 %v159
    %563 = vmatpush.msra.mxu0 %v143
    %564 = vmatmul.f32.gmra.mxu0 %v326
    %v565 = vpop.f32.mrf.mxu0
    %v566 = vadd.f32 %v319, %v565
    %567 = vdwg.mxu0
    %568 = vmatpush.msra.mxu0 0.0
    %569 = vmatpush.msra.mxu0 0.0
    %570 = vmatpush.msra.mxu0 0.0
    %571 = vmatpush.msra.mxu0 0.0
    %572 = vmatpush.msra.mxu0 0.0
    %573 = vmatpush.msra.mxu0 0.0
    %574 = vmatpush.msra.mxu0 0.0
    %575 = vmatpush.msra.mxu0 0.0
    %576 = vmatpush.msra.mxu0 %v256
    %577 = vmatpush.msra.mxu0 %v240
    %578 = vmatpush.msra.mxu0 %v224
    %579 = vmatpush.msra.mxu0 %v208
    %580 = vmatpush.msra.mxu0 %v192
    %581 = vmatpush.msra.mxu0 %v176
    %582 = vmatpush.msra.mxu0 %v160
    %583 = vmatpush.msra.mxu0 %v144
    %584 = vmatmul.f32.gmra.mxu0 %v326
    %v585 = vpop.f32.mrf.mxu0
    %v586 = vadd.f32 %v320, %v585
    %587 = vdwg.mxu0
    %588 = vmatpush.msra.mxu0 0.0
    %589 = vmatpush.msra.mxu0 0.0
    %590 = vmatpush.msra.mxu0 0.0
    %591 = vmatpush.msra.mxu0 0.0
    %592 = vmatpush.msra.mxu0 0.0
    %593 = vmatpush.msra.mxu0 0.0
    %594 = vmatpush.msra.mxu0 0.0
    %595 = vmatpush.msra.mxu0 0.0
    %596 = vmatpush.msra.mxu0 %v257
    %597 = vmatpush.msra.mxu0 %v241
    %598 = vmatpush.msra.mxu0 %v225
    %599 = vmatpush.msra.mxu0 %v209
    %600 = vmatpush.msra.mxu0 %v193
    %601 = vmatpush.msra.mxu0 %v177
    %602 = vmatpush.msra.mxu0 %v161
    %603 = vmatpush.msra.mxu0 %v145
    %604 = vmatmul.f32.gmra.mxu0 %v326
    %v605 = vpop.f32.mrf.mxu0
    %v606 = vadd.f32 %v321, %v605
    %607 = vdwg.mxu0
    %608 = vmatpush.msra.mxu0 0.0
    %609 = vmatpush.msra.mxu0 0.0
    %610 = vmatpush.msra.mxu0 0.0
    %611 = vmatpush.msra.mxu0 0.0
    %612 = vmatpush.msra.mxu0 0.0
    %613 = vmatpush.msra.mxu0 0.0
    %614 = vmatpush.msra.mxu0 0.0
    %615 = vmatpush.msra.mxu0 0.0
    %616 = vmatpush.msra.mxu0 %v258
    %617 = vmatpush.msra.mxu0 %v242
    %618 = vmatpush.msra.mxu0 %v226
    %619 = vmatpush.msra.mxu0 %v210
    %620 = vmatpush.msra.mxu0 %v194
    %621 = vmatpush.msra.mxu0 %v178
    %622 = vmatpush.msra.mxu0 %v162
    %623 = vmatpush.msra.mxu0 %v146
    %624 = vmatmul.f32.gmra.mxu0 %v326
    %v625 = vpop.f32.mrf.mxu0
    %v626 = vadd.f32 %v322, %v625
    %627 = vdwg.mxu0
    %628 = vmatpush.msra.mxu0 0.0
    %629 = vmatpush.msra.mxu0 0.0
    %630 = vmatpush.msra.mxu0 0.0
    %631 = vmatpush.msra.mxu0 0.0
    %632 = vmatpush.msra.mxu0 0.0
    %633 = vmatpush.msra.mxu0 0.0
    %634 = vmatpush.msra.mxu0 0.0
    %635 = vmatpush.msra.mxu0 0.0
    %636 = vmatpush.msra.mxu0 %v259
    %637 = vmatpush.msra.mxu0 %v243
    %638 = vmatpush.msra.mxu0 %v227
    %639 = vmatpush.msra.mxu0 %v211
    %640 = vmatpush.msra.mxu0 %v195
    %641 = vmatpush.msra.mxu0 %v179
    %642 = vmatpush.msra.mxu0 %v163
    %643 = vmatpush.msra.mxu0 %v147
    %644 = vmatmul.f32.gmra.mxu0 %v326
    %v645 = vpop.f32.mrf.mxu0
    %v646 = vadd.f32 %v323, %v645
    %647 = vdwg.mxu0
    %v648 = vrot.slane %v346, 4
    %v649 = vadd.f32 %v346, %v648
    %v650 = vrot.slane %v649, 2
    %v651 = vadd.f32 %v649, %v650
    %v652 = vrot.slane %v651, 1
    %v653 = vadd.f32 %v651, %v652
    %v654 = vrot.slane %v366, 4
    %v655 = vadd.f32 %v366, %v654
    %v656 = vrot.slane %v655, 2
    %v657 = vadd.f32 %v655, %v656
    %v658 = vrot.slane %v657, 1
    %v659 = vadd.f32 %v657, %v658
    %v660 = vrot.slane %v386, 4
    %v661 = vadd.f32 %v386, %v660
    %v662 = vrot.slane %v661, 2
    %v663 = vadd.f32 %v661, %v662
    %v664 = vrot.slane %v663, 1
    %v665 = vadd.f32 %v663, %v664
    %v666 = vrot.slane %v406, 4
    %v667 = vadd.f32 %v406, %v666
    %v668 = vrot.slane %v667, 2
    %v669 = vadd.f32 %v667, %v668
    %v670 = vrot.slane %v669, 1
    %v671 = vadd.f32 %v669, %v670
    %v672 = vrot.slane %v426, 4
    %v673 = vadd.f32 %v426, %v672
    %v674 = vrot.slane %v673, 2
    %v675 = vadd.f32 %v673, %v674
    %v676 = vrot.slane %v675, 1
    %v677 = vadd.f32 %v675, %v676
    %v678 = vrot.slane %v446, 4
    %v679 = vadd.f32 %v446, %v678
    %v680 = vrot.slane %v679, 2
    %v681 = vadd.f32 %v679, %v680
    %v682 = vrot.slane %v681, 1
    %v683 = vadd.f32 %v681, %v682
    %v684 = vrot.slane %v466, 4
    %v685 = vadd.f32 %v466, %v684
    %v686 = vrot.slane %v685, 2
    %v687 = vadd.f32 %v685, %v686
    %v688 = vrot.slane %v687, 1
    %v689 = vadd.f32 %v687, %v688
    %v690 = vrot.slane %v486, 4
    %v691 = vadd.f32 %v486, %v690
    %v692 = vrot.slane %v691, 2
    %v693 = vadd.f32 %v691, %v692
    %v694 = vrot.slane %v693, 1
    %v695 = vadd.f32 %v693, %v694
    %v696 = vrot.slane %v506, 4
    %v697 = vadd.f32 %v506, %v696
    %v698 = vrot.slane %v697, 2
    %v699 = vadd.f32 %v697, %v698
    %v700 = vrot.slane %v699, 1
    %v701 = vadd.f32 %v699, %v700
    %v702 = vrot.slane %v526, 4
    %v703 = vadd.f32 %v526, %v702
    %v704 = vrot.slane %v703, 2
    %v705 = vadd.f32 %v703, %v704
    %v706 = vrot.slane %v705, 1
    %v707 = vadd.f32 %v705, %v706
    %v708 = vrot.slane %v546, 4
    %v709 = vadd.f32 %v546, %v708
    %v710 = vrot.slane %v709, 2
    %v711 = vadd.f32 %v709, %v710
    %v712 = vrot.slane %v711, 1
    %v713 = vadd.f32 %v711, %v712
    %v714 = vrot.slane %v566, 4
    %v715 = vadd.f32 %v566, %v714
    %v716 = vrot.slane %v715, 2
    %v717 = vadd.f32 %v715, %v716
    %v718 = vrot.slane %v717, 1
    %v719 = vadd.f32 %v717, %v718
    %v720 = vrot.slane %v586, 4
    %v721 = vadd.f32 %v586, %v720
    %v722 = vrot.slane %v721, 2
    %v723 = vadd.f32 %v721, %v722
    %v724 = vrot.slane %v723, 1
    %v725 = vadd.f32 %v723, %v724
    %v726 = vrot.slane %v606, 4
    %v727 = vadd.f32 %v606, %v726
    %v728 = vrot.slane %v727, 2
    %v729 = vadd.f32 %v727, %v728
    %v730 = vrot.slane %v729, 1
    %v731 = vadd.f32 %v729, %v730
    %v732 = vrot.slane %v626, 4
    %v733 = vadd.f32 %v626, %v732
    %v734 = vrot.slane %v733, 2
    %v735 = vadd.f32 %v733, %v734
    %v736 = vrot.slane %v735, 1
    %v737 = vadd.f32 %v735, %v736
    %v738 = vrot.slane %v646, 4
    %v739 = vadd.f32 %v646, %v738
    %v740 = vrot.slane %v739, 2
    %v741 = vadd.f32 %v739, %v740
    %v742 = vrot.slane %v741, 1
    %v743 = vadd.f32 %v741, %v742
    %v744 = vrcp.pop 8.0
    %v745 = vmul.f32 8.0, %v744
    %v746 = vsub.f32 1.0, %v745
    %v747 = vmul.f32 %v744, %v746
    %v748 = vadd.f32 %v744, %v747
    %vm749 = vweird.f32 %v744
    %v750 = vsel %vm749, %v744, %v748
    %v751 = vmul.f32 %v653, %v750
    %v752 = vmul.f32 %v659, %v750
    %v753 = vmul.f32 %v665, %v750
    %v754 = vmul.f32 %v671, %v750
    %v755 = vmul.f32 %v677, %v750
    %v756 = vmul.f32 %v683, %v750
    %v757 = vmul.f32 %v689, %v750
    %v758 = vmul.f32 %v695, %v750
    %v759 = vmul.f32 %v701, %v750
    %v760 = vmul.f32 %v707, %v750
    %v761 = vmul.f32 %v713, %v750
    %v762 = vmul.f32 %v719, %v750
    %v763 = vmul.f32 %v725, %v750
    %v764 = vmul.f32 %v731, %v750
    %v765 = vmul.f32 %v737, %v750
    %v766 = vmul.f32 %v743, %v750
    %v767 = vsub.f32 %v346, %v751
    %v768 = vsub.f32 %v366, %v752
    %v769 = vsub.f32 %v386, %v753
    %v770 = vsub.f32 %v406, %v754
    %v771 = vsub.f32 %v426, %v755
    %v772 = vsub.f32 %v446, %v756
    %v773 = vsub.f32 %v466, %v757
    %v774 = vsub.f32 %v486, %v758
    %v775 = vsub.f32 %v506, %v759
    %v776 = vsub.f32 %v526, %v760
    %v777 = vsub.f32 %v546, %v761
    %v778 = vsub.f32 %v566, %v762
    %v779 = vsub.f32 %v586, %v763
    %v780 = vsub.f32 %v606, %v764
    %v781 = vsub.f32 %v626, %v765
    %v782 = vsub.f32 %v646, %v766
    %v783 = vmul.f32 %v767, %v767
    %v784 = vmul.f32 %v768, %v768
    %v785 = vmul.f32 %v769, %v769
    %v786 = vmul.f32 %v770, %v770
    %v787 = vmul.f32 %v771, %v771
    %v788 = vmul.f32 %v772, %v772
    %v789 = vmul.f32 %v773, %v773
    %v790 = vmul.f32 %v774, %v774
    %v791 = vmul.f32 %v775, %v775
    %v792 = vmul.f32 %v776, %v776
    %v793 = vmul.f32 %v777, %v777
    %v794 = vmul.f32 %v778, %v778
    %v795 = vmul.f32 %v779, %v779
    %v796 = vmul.f32 %v780, %v780
    %v797 = vmul.f32 %v781, %v781
    %v798 = vmul.f32 %v782, %v782
    %v799 = vrot.slane %v783, 4
    %v800 = vadd.f32 %v783, %v799
    %v801 = vrot.slane %v800, 2
    %v802 = vadd.f32 %v800, %v801
    %v803 = vrot.slane %v802, 1
    %v804 = vadd.f32 %v802, %v803
    %v805 = vrot.slane %v784, 4
    %v806 = vadd.f32 %v784, %v805
    %v807 = vrot.slane %v806, 2
    %v808 = vadd.f32 %v806, %v807
    %v809 = vrot.slane %v808, 1
    %v810 = vadd.f32 %v808, %v809
    %v811 = vrot.slane %v785, 4
    %v812 = vadd.f32 %v785, %v811
    %v813 = vrot.slane %v812, 2
    %v814 = vadd.f32 %v812, %v813
    %v815 = vrot.slane %v814, 1
    %v816 = vadd.f32 %v814, %v815
    %v817 = vrot.slane %v786, 4
    %v818 = vadd.f32 %v786, %v817
    %v819 = vrot.slane %v818, 2
    %v820 = vadd.f32 %v818, %v819
    %v821 = vrot.slane %v820, 1
    %v822 = vadd.f32 %v820, %v821
    %v823 = vrot.slane %v787, 4
    %v824 = vadd.f32 %v787, %v823
    %v825 = vrot.slane %v824, 2
    %v826 = vadd.f32 %v824, %v825
    %v827 = vrot.slane %v826, 1
    %v828 = vadd.f32 %v826, %v827
    %v829 = vrot.slane %v788, 4
    %v830 = vadd.f32 %v788, %v829
    %v831 = vrot.slane %v830, 2
    %v832 = vadd.f32 %v830, %v831
    %v833 = vrot.slane %v832, 1
    %v834 = vadd.f32 %v832, %v833
    %v835 = vrot.slane %v789, 4
    %v836 = vadd.f32 %v789, %v835
    %v837 = vrot.slane %v836, 2
    %v838 = vadd.f32 %v836, %v837
    %v839 = vrot.slane %v838, 1
    %v840 = vadd.f32 %v838, %v839
    %v841 = vrot.slane %v790, 4
    %v842 = vadd.f32 %v790, %v841
    %v843 = vrot.slane %v842, 2
    %v844 = vadd.f32 %v842, %v843
    %v845 = vrot.slane %v844, 1
    %v846 = vadd.f32 %v844, %v845
    %v847 = vrot.slane %v791, 4
    %v848 = vadd.f32 %v791, %v847
    %v849 = vrot.slane %v848, 2
    %v850 = vadd.f32 %v848, %v849
    %v851 = vrot.slane %v850, 1
    %v852 = vadd.f32 %v850, %v851
    %v853 = vrot.slane %v792, 4
    %v854 = vadd.f32 %v792, %v853
    %v855 = vrot.slane %v854, 2
    %v856 = vadd.f32 %v854, %v855
    %v857 = vrot.slane %v856, 1
    %v858 = vadd.f32 %v856, %v857
    %v859 = vrot.slane %v793, 4
    %v860 = vadd.f32 %v793, %v859
    %v861 = vrot.slane %v860, 2
    %v862 = vadd.f32 %v860, %v861
    %v863 = vrot.slane %v862, 1
    %v864 = vadd.f32 %v862, %v863
    %v865 = vrot.slane %v794, 4
    %v866 = vadd.f32 %v794, %v865
    %v867 = vrot.slane %v866, 2
    %v868 = vadd.f32 %v866, %v867
    %v869 = vrot.slane %v868, 1
    %v870 = vadd.f32 %v868, %v869
    %v871 = vrot.slane %v795, 4
    %v872 = vadd.f32 %v795, %v871
    %v873 = vrot.slane %v872, 2
    %v874 = vadd.f32 %v872, %v873
    %v875 = vrot.slane %v874, 1
    %v876 = vadd.f32 %v874, %v875
    %v877 = vrot.slane %v796, 4
    %v878 = vadd.f32 %v796, %v877
    %v879 = vrot.slane %v878, 2
    %v880 = vadd.f32 %v878, %v879
    %v881 = vrot.slane %v880, 1
    %v882 = vadd.f32 %v880, %v881
    %v883 = vrot.slane %v797, 4
    %v884 = vadd.f32 %v797, %v883
    %v885 = vrot.slane %v884, 2
    %v886 = vadd.f32 %v884, %v885
    %v887 = vrot.slane %v886, 1
    %v888 = vadd.f32 %v886, %v887
    %v889 = vrot.slane %v798, 4
    %v890 = vadd.f32 %v798, %v889
    %v891 = vrot.slane %v890, 2
    %v892 = vadd.f32 %v890, %v891
    %v893 = vrot.slane %v892, 1
    %v894 = vadd.f32 %v892, %v893
    %v895 = vmul.f32 %v804, %v750
    %v896 = vmul.f32 %v810, %v750
    %v897 = vmul.f32 %v816, %v750
    %v898 = vmul.f32 %v822, %v750
    %v899 = vmul.f32 %v828, %v750
    %v900 = vmul.f32 %v834, %v750
    %v901 = vmul.f32 %v840, %v750
    %v902 = vmul.f32 %v846, %v750
    %v903 = vmul.f32 %v852, %v750
    %v904 = vmul.f32 %v858, %v750
    %v905 = vmul.f32 %v864, %v750
    %v906 = vmul.f32 %v870, %v750
    %v907 = vmul.f32 %v876, %v750
    %v908 = vmul.f32 %v882, %v750
    %v909 = vmul.f32 %v888, %v750
    %v910 = vmul.f32 %v894, %v750
    %v911 = vadd.f32 %v895, 1e-05
    %v912 = vadd.f32 %v896, 1e-05
    %v913 = vadd.f32 %v897, 1e-05
    %v914 = vadd.f32 %v898, 1e-05
    %v915 = vadd.f32 %v899, 1e-05
    %v916 = vadd.f32 %v900, 1e-05
    %v917 = vadd.f32 %v901, 1e-05
    %v918 = vadd.f32 %v902, 1e-05
    %v919 = vadd.f32 %v903, 1e-05
    %v920 = vadd.f32 %v904, 1e-05
    %v921 = vadd.f32 %v905, 1e-05
    %v922 = vadd.f32 %v906, 1e-05
    %v923 = vadd.f32 %v907, 1e-05
    %v924 = vadd.f32 %v908, 1e-05
    %v925 = vadd.f32 %v909, 1e-05
    %v926 = vadd.f32 %v910, 1e-05
    %v927 = vrsqrt.pop %v911
    %v928 = vmul.f32 %v927, %v911
    %v929 = vmul.f32 %v928, %v927
    %v930 = vmul.f32 0.5, %v929
    %v931 = vsub.f32 1.5, %v930
    %v932 = vmul.f32 %v927, %v931
    %vm933 = vweird.f32 %v911
    %vm934 = vweird.f32 %v927
    %vm935 = vmor %vm933, %vm934
    %v936 = vsel %vm935, %v927, %v932
    %v937 = vrsqrt.pop %v912
    %v938 = vmul.f32 %v937, %v912
    %v939 = vmul.f32 %v938, %v937
    %v940 = vmul.f32 0.5, %v939
    %v941 = vsub.f32 1.5, %v940
    %v942 = vmul.f32 %v937, %v941
    %vm943 = vweird.f32 %v912
    %vm944 = vweird.f32 %v937
    %vm945 = vmor %vm943, %vm944
    %v946 = vsel %vm945, %v937, %v942
    %v947 = vrsqrt.pop %v913
    %v948 = vmul.f32 %v947, %v913
    %v949 = vmul.f32 %v948, %v947
    %v950 = vmul.f32 0.5, %v949
    %v951 = vsub.f32 1.5, %v950
    %v952 = vmul.f32 %v947, %v951
    %vm953 = vweird.f32 %v913
    %vm954 = vweird.f32 %v947
    %vm955 = vmor %vm953, %vm954
    %v956 = vsel %vm955, %v947, %v952
    %v957 = vrsqrt.pop %v914
    %v958 = vmul.f32 %v957, %v914
    %v959 = vmul.f32 %v958, %v957
    %v960 = vmul.f32 0.5, %v959
    %v961 = vsub.f32 1.5, %v960
    %v962 = vmul.f32 %v957, %v961
    %vm963 = vweird.f32 %v914
    %vm964 = vweird.f32 %v957
    %vm965 = vmor %vm963, %vm964
    %v966 = vsel %vm965, %v957, %v962
    %v967 = vrsqrt.pop %v915
    %v968 = vmul.f32 %v967, %v915
    %v969 = vmul.f32 %v968, %v967
    %v970 = vmul.f32 0.5, %v969
    %v971 = vsub.f32 1.5, %v970
    %v972 = vmul.f32 %v967, %v971
    %vm973 = vweird.f32 %v915
    %vm974 = vweird.f32 %v967
    %vm975 = vmor %vm973, %vm974
    %v976 = vsel %vm975, %v967, %v972
    %v977 = vrsqrt.pop %v916
    %v978 = vmul.f32 %v977, %v916
    %v979 = vmul.f32 %v978, %v977
    %v980 = vmul.f32 0.5, %v979
    %v981 = vsub.f32 1.5, %v980
    %v982 = vmul.f32 %v977, %v981
    %vm983 = vweird.f32 %v916
    %vm984 = vweird.f32 %v977
    %vm985 = vmor %vm983, %vm984
    %v986 = vsel %vm985, %v977, %v982
    %v987 = vrsqrt.pop %v917
    %v988 = vmul.f32 %v987, %v917
    %v989 = vmul.f32 %v988, %v987
    %v990 = vmul.f32 0.5, %v989
    %v991 = vsub.f32 1.5, %v990
    %v992 = vmul.f32 %v987, %v991
    %vm993 = vweird.f32 %v917
    %vm994 = vweird.f32 %v987
    %vm995 = vmor %vm993, %vm994
    %v996 = vsel %vm995, %v987, %v992
    %v997 = vrsqrt.pop %v918
    %v998 = vmul.f32 %v997, %v918
    %v999 = vmul.f32 %v998, %v997
    %v1000 = vmul.f32 0.5, %v999
    %v1001 = vsub.f32 1.5, %v1000
    %v1002 = vmul.f32 %v997, %v1001
    %vm1003 = vweird.f32 %v918
    %vm1004 = vweird.f32 %v997
    %vm1005 = vmor %vm1003, %vm1004
    %v1006 = vsel %vm1005, %v997, %v1002
    %v1007 = vrsqrt.pop %v919
    %v1008 = vmul.f32 %v1007, %v919
    %v1009 = vmul.f32 %v1008, %v1007
    %v1010 = vmul.f32 0.5, %v1009
    %v1011 = vsub.f32 1.5, %v1010
    %v1012 = vmul.f32 %v1007, %v1011
    %vm1013 = vweird.f32 %v919
    %vm1014 = vweird.f32 %v1007
    %vm1015 = vmor %vm1013, %vm1014
    %v1016 = vsel %vm1015, %v1007, %v1012
    %v1017 = vrsqrt.pop %v920
    %v1018 = vmul.f32 %v1017, %v920
    %v1019 = vmul.f32 %v1018, %v1017
    %v1020 = vmul.f32 0.5, %v1019
    %v1021 = vsub.f32 1.5, %v1020
    %v1022 = vmul.f32 %v1017, %v1021
    %vm1023 = vweird.f32 %v920
    %vm1024 = vweird.f32 %v1017
    %vm1025 = vmor %vm1023, %vm1024
    %v1026 = vsel %vm1025, %v1017, %v1022
    %v1027 = vrsqrt.pop %v921
    %v1028 = vmul.f32 %v1027, %v921
    %v1029 = vmul.f32 %v1028, %v1027
    %v1030 = vmul.f32 0.5, %v1029
    %v1031 = vsub.f32 1.5, %v1030
    %v1032 = vmul.f32 %v1027, %v1031
    %vm1033 = vweird.f32 %v921
    %vm1034 = vweird.f32 %v1027
    %vm1035 = vmor %vm1033, %vm1034
    %v1036 = vsel %vm1035, %v1027, %v1032
    %v1037 = vrsqrt.pop %v922
    %v1038 = vmul.f32 %v1037, %v922
    %v1039 = vmul.f32 %v1038, %v1037
    %v1040 = vmul.f32 0.5, %v1039
    %v1041 = vsub.f32 1.5, %v1040
    %v1042 = vmul.f32 %v1037, %v1041
    %vm1043 = vweird.f32 %v922
    %vm1044 = vweird.f32 %v1037
    %vm1045 = vmor %vm1043, %vm1044
    %v1046 = vsel %vm1045, %v1037, %v1042
    %v1047 = vrsqrt.pop %v923
    %v1048 = vmul.f32 %v1047, %v923
    %v1049 = vmul.f32 %v1048, %v1047
    %v1050 = vmul.f32 0.5, %v1049
    %v1051 = vsub.f32 1.5, %v1050
    %v1052 = vmul.f32 %v1047, %v1051
    %vm1053 = vweird.f32 %v923
    %vm1054 = vweird.f32 %v1047
    %vm1055 = vmor %vm1053, %vm1054
    %v1056 = vsel %vm1055, %v1047, %v1052
    %v1057 = vrsqrt.pop %v924
    %v1058 = vmul.f32 %v1057, %v924
    %v1059 = vmul.f32 %v1058, %v1057
    %v1060 = vmul.f32 0.5, %v1059
    %v1061 = vsub.f32 1.5, %v1060
    %v1062 = vmul.f32 %v1057, %v1061
    %vm1063 = vweird.f32 %v924
    %vm1064 = vweird.f32 %v1057
    %vm1065 = vmor %vm1063, %vm1064
    %v1066 = vsel %vm1065, %v1057, %v1062
    %v1067 = vrsqrt.pop %v925
    %v1068 = vmul.f32 %v1067, %v925
    %v1069 = vmul.f32 %v1068, %v1067
    %v1070 = vmul.f32 0.5, %v1069
    %v1071 = vsub.f32 1.5, %v1070
    %v1072 = vmul.f32 %v1067, %v1071
    %vm1073 = vweird.f32 %v925
    %vm1074 = vweird.f32 %v1067
    %vm1075 = vmor %vm1073, %vm1074
    %v1076 = vsel %vm1075, %v1067, %v1072
    %v1077 = vrsqrt.pop %v926
    %v1078 = vmul.f32 %v1077, %v926
    %v1079 = vmul.f32 %v1078, %v1077
    %v1080 = vmul.f32 0.5, %v1079
    %v1081 = vsub.f32 1.5, %v1080
    %v1082 = vmul.f32 %v1077, %v1081
    %vm1083 = vweird.f32 %v926
    %vm1084 = vweird.f32 %v1077
    %vm1085 = vmor %vm1083, %vm1084
    %v1086 = vsel %vm1085, %v1077, %v1082
    %v1087 = vmul.f32 %v767, %v936
    %v1088 = vmul.f32 %v768, %v946
    %v1089 = vmul.f32 %v769, %v956
    %v1090 = vmul.f32 %v770, %v966
    %v1091 = vmul.f32 %v771, %v976
    %v1092 = vmul.f32 %v772, %v986
    %v1093 = vmul.f32 %v773, %v996
    %v1094 = vmul.f32 %v774, %v1006
    %v1095 = vmul.f32 %v775, %v1016
    %v1096 = vmul.f32 %v776, %v1026
    %v1097 = vmul.f32 %v777, %v1036
    %v1098 = vmul.f32 %v778, %v1046
    %v1099 = vmul.f32 %v779, %v1056
    %v1100 = vmul.f32 %v780, %v1066
    %v1101 = vmul.f32 %v781, %v1076
    %v1102 = vmul.f32 %v782, %v1086
    %v1103 = vperm.slane %v260, 1
    %v1104 = vperm.slane %v260, 5
    %v1105 = vperm.slane %v261, 1
    %v1106 = vperm.slane %v261, 5
    %v1107 = vperm.slane %v262, 1
    %v1108 = vperm.slane %v262, 5
    %v1109 = vperm.slane %v263, 1
    %v1110 = vperm.slane %v263, 5
    %v1111 = vperm.slane %v264, 1
    %v1112 = vperm.slane %v264, 5
    %v1113 = vperm.slane %v265, 1
    %v1114 = vperm.slane %v265, 5
    %v1115 = vperm.slane %v266, 1
    %v1116 = vperm.slane %v266, 5
    %v1117 = vperm.slane %v267, 1
    %v1118 = vperm.slane %v267, 5
    %v1135 = vperm.slane %v1103, 1
    %v1136 = vperm.slane %v1104, 1
    %v1137 = vperm.slane %v1105, 1
    %v1138 = vperm.slane %v1106, 1
    %v1139 = vperm.slane %v1107, 1
    %v1140 = vperm.slane %v1108, 1
    %v1141 = vperm.slane %v1109, 1
    %v1142 = vperm.slane %v1110, 1
    %v1143 = vperm.slane %v1111, 1
    %v1144 = vperm.slane %v1112, 1
    %v1145 = vperm.slane %v1113, 1
    %v1146 = vperm.slane %v1114, 1
    %v1147 = vperm.slane %v1115, 1
    %v1148 = vperm.slane %v1116, 1
    %v1149 = vperm.slane %v1117, 1
    %v1150 = vperm.slane %v1118, 1
    %v1151 = vmul.f32 %v1135, %v1087
    %v1152 = vmul.f32 %v1136, %v1088
    %v1153 = vmul.f32 %v1137, %v1089
    %v1154 = vmul.f32 %v1138, %v1090
    %v1155 = vmul.f32 %v1139, %v1091
    %v1156 = vmul.f32 %v1140, %v1092
    %v1157 = vmul.f32 %v1141, %v1093
    %v1158 = vmul.f32 %v1142, %v1094
    %v1159 = vmul.f32 %v1143, %v1095
    %v1160 = vmul.f32 %v1144, %v1096
    %v1161 = vmul.f32 %v1145, %v1097
    %v1162 = vmul.f32 %v1146, %v1098
    %v1163 = vmul.f32 %v1147, %v1099
    %v1164 = vmul.f32 %v1148, %v1100
    %v1165 = vmul.f32 %v1149, %v1101
    %v1166 = vmul.f32 %v1150, %v1102
    %v1167 = vperm.slane %v260, 2
    %v1168 = vperm.slane %v260, 6
    %v1169 = vperm.slane %v261, 2
    %v1170 = vperm.slane %v261, 6
    %v1171 = vperm.slane %v262, 2
    %v1172 = vperm.slane %v262, 6
    %v1173 = vperm.slane %v263, 2
    %v1174 = vperm.slane %v263, 6
    %v1175 = vperm.slane %v264, 2
    %v1176 = vperm.slane %v264, 6
    %v1177 = vperm.slane %v265, 2
    %v1178 = vperm.slane %v265, 6
    %v1179 = vperm.slane %v266, 2
    %v1180 = vperm.slane %v266, 6
    %v1181 = vperm.slane %v267, 2
    %v1182 = vperm.slane %v267, 6
    %v1199 = vperm.slane %v1167, 2
    %v1200 = vperm.slane %v1168, 2
    %v1201 = vperm.slane %v1169, 2
    %v1202 = vperm.slane %v1170, 2
    %v1203 = vperm.slane %v1171, 2
    %v1204 = vperm.slane %v1172, 2
    %v1205 = vperm.slane %v1173, 2
    %v1206 = vperm.slane %v1174, 2
    %v1207 = vperm.slane %v1175, 2
    %v1208 = vperm.slane %v1176, 2
    %v1209 = vperm.slane %v1177, 2
    %v1210 = vperm.slane %v1178, 2
    %v1211 = vperm.slane %v1179, 2
    %v1212 = vperm.slane %v1180, 2
    %v1213 = vperm.slane %v1181, 2
    %v1214 = vperm.slane %v1182, 2
    %v1215 = vadd.f32 %v1151, %v1199
    %v1216 = vadd.f32 %v1152, %v1200
    %v1217 = vadd.f32 %v1153, %v1201
    %v1218 = vadd.f32 %v1154, %v1202
    %v1219 = vadd.f32 %v1155, %v1203
    %v1220 = vadd.f32 %v1156, %v1204
    %v1221 = vadd.f32 %v1157, %v1205
    %v1222 = vadd.f32 %v1158, %v1206
    %v1223 = vadd.f32 %v1159, %v1207
    %v1224 = vadd.f32 %v1160, %v1208
    %v1225 = vadd.f32 %v1161, %v1209
    %v1226 = vadd.f32 %v1162, %v1210
    %v1227 = vadd.f32 %v1163, %v1211
    %v1228 = vadd.f32 %v1164, %v1212
    %v1229 = vadd.f32 %v1165, %v1213
    %v1230 = vadd.f32 %v1166, %v1214
    %v1231 = vmax.f32 %v1215, 0.0
    %v1232 = vmax.f32 %v1216, 0.0
    %v1233 = vmax.f32 %v1217, 0.0
    %v1234 = vmax.f32 %v1218, 0.0
    %v1235 = vmax.f32 %v1219, 0.0
    %v1236 = vmax.f32 %v1220, 0.0
    %v1237 = vmax.f32 %v1221, 0.0
    %v1238 = vmax.f32 %v1222, 0.0
    %v1239 = vmax.f32 %v1223, 0.0
    %v1240 = vmax.f32 %v1224, 0.0
    %v1241 = vmax.f32 %v1225, 0.0
    %v1242 = vmax.f32 %v1226, 0.0
    %v1243 = vmax.f32 %v1227, 0.0
    %v1244 = vmax.f32 %v1228, 0.0
    %v1245 = vmax.f32 %v1229, 0.0
    %v1246 = vmax.f32 %v1230, 0.0
    %v1247 = vld [vmem:[#allocation7] sm:$0xff]
    %v1248 = vld [vmem:[#allocation7 + $0x8] sm:$0xff]
    %v1249 = vld [vmem:[#allocation7 + $0x10] sm:$0xff]
    %v1250 = vld [vmem:[#allocation7 + $0x18] sm:$0xff]
    %v1251 = vld [vmem:[#allocation7 + $0x20] sm:$0xff]
    %v1252 = vld [vmem:[#allocation7 + $0x28] sm:$0xff]
    %v1253 = vld [vmem:[#allocation7 + $0x30] sm:$0xff]
    %v1254 = vld [vmem:[#allocation7 + $0x38] sm:$0xff]
    %v1255 = vld [vmem:[#allocation7 + $0x40] sm:$0xff]
    %v1256 = vld [vmem:[#allocation7 + $0x48] sm:$0xff]
    %v1257 = vld [vmem:[#allocation7 + $0x50] sm:$0xff]
    %v1258 = vld [vmem:[#allocation7 + $0x58] sm:$0xff]
    %v1259 = vld [vmem:[#allocation7 + $0x60] sm:$0xff]
    %v1260 = vld [vmem:[#allocation7 + $0x68] sm:$0xff]
    %v1261 = vld [vmem:[#allocation7 + $0x70] sm:$0xff]
    %v1262 = vld [vmem:[#allocation7 + $0x78] sm:$0xff]
    %v1263 = vld [vmem:[#allocation7 + $0x80] sm:$0xff]
    %v1264 = vld [vmem:[#allocation7 + $0x88] sm:$0xff]
    %v1265 = vld [vmem:[#allocation7 + $0x90] sm:$0xff]
    %v1266 = vld [vmem:[#allocation7 + $0x98] sm:$0xff]
    %v1267 = vld [vmem:[#allocation7 + $0xa0] sm:$0xff]
    %v1268 = vld [vmem:[#allocation7 + $0xa8] sm:$0xff]
    %v1269 = vld [vmem:[#allocation7 + $0xb0] sm:$0xff]
    %v1270 = vld [vmem:[#allocation7 + $0xb8] sm:$0xff]
    %v1271 = vld [vmem:[#allocation7 + $0xc0] sm:$0xff]
    %v1272 = vld [vmem:[#allocation7 + $0xc8] sm:$0xff]
    %v1273 = vld [vmem:[#allocation7 + $0xd0] sm:$0xff]
    %v1274 = vld [vmem:[#allocation7 + $0xd8] sm:$0xff]
    %v1275 = vld [vmem:[#allocation7 + $0xe0] sm:$0xff]
    %v1276 = vld [vmem:[#allocation7 + $0xe8] sm:$0xff]
    %v1277 = vld [vmem:[#allocation7 + $0xf0] sm:$0xff]
    %v1278 = vld [vmem:[#allocation7 + $0xf8] sm:$0xff]
    %v1279 = vld [vmem:[#allocation7 + $0x100] sm:$0xff]
    %v1280 = vld [vmem:[#allocation7 + $0x108] sm:$0xff]
    %v1281 = vld [vmem:[#allocation7 + $0x110] sm:$0xff]
    %v1282 = vld [vmem:[#allocation7 + $0x118] sm:$0xff]
    %v1283 = vld [vmem:[#allocation7 + $0x120] sm:$0xff]
    %v1284 = vld [vmem:[#allocation7 + $0x128] sm:$0xff]
    %v1285 = vld [vmem:[#allocation7 + $0x130] sm:$0xff]
    %v1286 = vld [vmem:[#allocation7 + $0x138] sm:$0xff]
    %v1287 = vld [vmem:[#allocation7 + $0x140] sm:$0xff]
    %v1288 = vld [vmem:[#allocation7 + $0x148] sm:$0xff]
    %v1289 = vld [vmem:[#allocation7 + $0x150] sm:$0xff]
    %v1290 = vld [vmem:[#allocation7 + $0x158] sm:$0xff]
    %v1291 = vld [vmem:[#allocation7 + $0x160] sm:$0xff]
    %v1292 = vld [vmem:[#allocation7 + $0x168] sm:$0xff]
    %v1293 = vld [vmem:[#allocation7 + $0x170] sm:$0xff]
    %v1294 = vld [vmem:[#allocation7 + $0x178] sm:$0xff]
    %v1295 = vld [vmem:[#allocation7 + $0x180] sm:$0xff]
    %v1296 = vld [vmem:[#allocation7 + $0x188] sm:$0xff]
    %v1297 = vld [vmem:[#allocation7 + $0x190] sm:$0xff]
    %v1298 = vld [vmem:[#allocation7 + $0x198] sm:$0xff]
    %v1299 = vld [vmem:[#allocation7 + $0x1a0] sm:$0xff]
    %v1300 = vld [vmem:[#allocation7 + $0x1a8] sm:$0xff]
    %v1301 = vld [vmem:[#allocation7 + $0x1b0] sm:$0xff]
    %v1302 = vld [vmem:[#allocation7 + $0x1b8] sm:$0xff]
    %v1303 = vld [vmem:[#allocation7 + $0x1c0] sm:$0xff]
    %v1304 = vld [vmem:[#allocation7 + $0x1c8] sm:$0xff]
    %v1305 = vld [vmem:[#allocation7 + $0x1d0] sm:$0xff]
    %v1306 = vld [vmem:[#allocation7 + $0x1d8] sm:$0xff]
    %v1307 = vld [vmem:[#allocation7 + $0x1e0] sm:$0xff]
    %v1308 = vld [vmem:[#allocation7 + $0x1e8] sm:$0xff]
    %v1309 = vld [vmem:[#allocation7 + $0x1f0] sm:$0xff]
    %v1310 = vld [vmem:[#allocation7 + $0x1f8] sm:$0xff]
    %v1311 = vld [vmem:[#allocation7 + $0x200] sm:$0xff]
    %v1312 = vld [vmem:[#allocation7 + $0x208] sm:$0xff]
    %v1313 = vld [vmem:[#allocation7 + $0x210] sm:$0xff]
    %v1314 = vld [vmem:[#allocation7 + $0x218] sm:$0xff]
    %v1315 = vld [vmem:[#allocation7 + $0x220] sm:$0xff]
    %v1316 = vld [vmem:[#allocation7 + $0x228] sm:$0xff]
    %v1317 = vld [vmem:[#allocation7 + $0x230] sm:$0xff]
    %v1318 = vld [vmem:[#allocation7 + $0x238] sm:$0xff]
    %v1319 = vld [vmem:[#allocation7 + $0x240] sm:$0xff]
    %v1320 = vld [vmem:[#allocation7 + $0x248] sm:$0xff]
    %v1321 = vld [vmem:[#allocation7 + $0x250] sm:$0xff]
    %v1322 = vld [vmem:[#allocation7 + $0x258] sm:$0xff]
    %v1323 = vld [vmem:[#allocation7 + $0x260] sm:$0xff]
    %v1324 = vld [vmem:[#allocation7 + $0x268] sm:$0xff]
    %v1325 = vld [vmem:[#allocation7 + $0x270] sm:$0xff]
    %v1326 = vld [vmem:[#allocation7 + $0x278] sm:$0xff]
    %v1327 = vld [vmem:[#allocation7 + $0x280] sm:$0xff]
    %v1328 = vld [vmem:[#allocation7 + $0x288] sm:$0xff]
    %v1329 = vld [vmem:[#allocation7 + $0x290] sm:$0xff]
    %v1330 = vld [vmem:[#allocation7 + $0x298] sm:$0xff]
    %v1331 = vld [vmem:[#allocation7 + $0x2a0] sm:$0xff]
    %v1332 = vld [vmem:[#allocation7 + $0x2a8] sm:$0xff]
    %v1333 = vld [vmem:[#allocation7 + $0x2b0] sm:$0xff]
    %v1334 = vld [vmem:[#allocation7 + $0x2b8] sm:$0xff]
    %v1335 = vld [vmem:[#allocation7 + $0x2c0] sm:$0xff]
    %v1336 = vld [vmem:[#allocation7 + $0x2c8] sm:$0xff]
    %v1337 = vld [vmem:[#allocation7 + $0x2d0] sm:$0xff]
    %v1338 = vld [vmem:[#allocation7 + $0x2d8] sm:$0xff]
    %v1339 = vld [vmem:[#allocation7 + $0x2e0] sm:$0xff]
    %v1340 = vld [vmem:[#allocation7 + $0x2e8] sm:$0xff]
    %v1341 = vld [vmem:[#allocation7 + $0x2f0] sm:$0xff]
    %v1342 = vld [vmem:[#allocation7 + $0x2f8] sm:$0xff]
    %v1343 = vld [vmem:[#allocation7 + $0x300] sm:$0xff]
    %v1344 = vld [vmem:[#allocation7 + $0x308] sm:$0xff]
    %v1345 = vld [vmem:[#allocation7 + $0x310] sm:$0xff]
    %v1346 = vld [vmem:[#allocation7 + $0x318] sm:$0xff]
    %v1347 = vld [vmem:[#allocation7 + $0x320] sm:$0xff]
    %v1348 = vld [vmem:[#allocation7 + $0x328] sm:$0xff]
    %v1349 = vld [vmem:[#allocation7 + $0x330] sm:$0xff]
    %v1350 = vld [vmem:[#allocation7 + $0x338] sm:$0xff]
    %v1351 = vld [vmem:[#allocation7 + $0x340] sm:$0xff]
    %v1352 = vld [vmem:[#allocation7 + $0x348] sm:$0xff]
    %v1353 = vld [vmem:[#allocation7 + $0x350] sm:$0xff]
    %v1354 = vld [vmem:[#allocation7 + $0x358] sm:$0xff]
    %v1355 = vld [vmem:[#allocation7 + $0x360] sm:$0xff]
    %v1356 = vld [vmem:[#allocation7 + $0x368] sm:$0xff]
    %v1357 = vld [vmem:[#allocation7 + $0x370] sm:$0xff]
    %v1358 = vld [vmem:[#allocation7 + $0x378] sm:$0xff]
    %v1359 = vld [vmem:[#allocation7 + $0x380] sm:$0xff]
    %v1360 = vld [vmem:[#allocation7 + $0x388] sm:$0xff]
    %v1361 = vld [vmem:[#allocation7 + $0x390] sm:$0xff]
    %v1362 = vld [vmem:[#allocation7 + $0x398] sm:$0xff]
    %v1363 = vld [vmem:[#allocation7 + $0x3a0] sm:$0xff]
    %v1364 = vld [vmem:[#allocation7 + $0x3a8] sm:$0xff]
    %v1365 = vld [vmem:[#allocation7 + $0x3b0] sm:$0xff]
    %v1366 = vld [vmem:[#allocation7 + $0x3b8] sm:$0xff]
    %v1367 = vld [vmem:[#allocation7 + $0x3c0] sm:$0xff]
    %v1368 = vld [vmem:[#allocation7 + $0x3c8] sm:$0xff]
    %v1369 = vld [vmem:[#allocation7 + $0x3d0] sm:$0xff]
    %v1370 = vld [vmem:[#allocation7 + $0x3d8] sm:$0xff]
    %v1371 = vld [vmem:[#allocation7 + $0x3e0] sm:$0xff]
    %v1372 = vld [vmem:[#allocation7 + $0x3e8] sm:$0xff]
    %v1373 = vld [vmem:[#allocation7 + $0x3f0] sm:$0xff]
    %v1374 = vld [vmem:[#allocation7 + $0x3f8] sm:$0xff]
    %v1375 = vld [vmem:[#allocation7 + $0x400] sm:$0xff]
    %v1376 = vld [vmem:[#allocation7 + $0x408] sm:$0xff]
    %v1377 = vld [vmem:[#allocation7 + $0x410] sm:$0xff]
    %v1378 = vld [vmem:[#allocation7 + $0x418] sm:$0xff]
    %v1379 = vld [vmem:[#allocation7 + $0x420] sm:$0xff]
    %v1380 = vld [vmem:[#allocation7 + $0x428] sm:$0xff]
    %v1381 = vld [vmem:[#allocation7 + $0x430] sm:$0xff]
    %v1382 = vld [vmem:[#allocation7 + $0x438] sm:$0xff]
    %v1383 = vld [vmem:[#allocation7 + $0x440] sm:$0xff]
    %v1384 = vld [vmem:[#allocation7 + $0x448] sm:$0xff]
    %v1385 = vld [vmem:[#allocation7 + $0x450] sm:$0xff]
    %v1386 = vld [vmem:[#allocation7 + $0x458] sm:$0xff]
    %v1387 = vld [vmem:[#allocation7 + $0x460] sm:$0xff]
    %v1388 = vld [vmem:[#allocation7 + $0x468] sm:$0xff]
    %v1389 = vld [vmem:[#allocation7 + $0x470] sm:$0xff]
    %v1390 = vld [vmem:[#allocation7 + $0x478] sm:$0xff]
    %v1391 = vld [vmem:[#allocation7 + $0x480] sm:$0xff]
    %v1392 = vld [vmem:[#allocation7 + $0x488] sm:$0xff]
    %v1393 = vld [vmem:[#allocation7 + $0x490] sm:$0xff]
    %v1394 = vld [vmem:[#allocation7 + $0x498] sm:$0xff]
    %v1395 = vld [vmem:[#allocation7 + $0x4a0] sm:$0xff]
    %v1396 = vld [vmem:[#allocation7 + $0x4a8] sm:$0xff]
    %v1397 = vld [vmem:[#allocation7 + $0x4b0] sm:$0xff]
    %v1398 = vld [vmem:[#allocation7 + $0x4b8] sm:$0xff]
    %v1399 = vld [vmem:[#allocation7 + $0x4c0] sm:$0xff]
    %v1400 = vld [vmem:[#allocation7 + $0x4c8] sm:$0xff]
    %v1401 = vld [vmem:[#allocation7 + $0x4d0] sm:$0xff]
    %v1402 = vld [vmem:[#allocation7 + $0x4d8] sm:$0xff]
    %v1403 = vld [vmem:[#allocation7 + $0x4e0] sm:$0xff]
    %v1404 = vld [vmem:[#allocation7 + $0x4e8] sm:$0xff]
    %v1405 = vld [vmem:[#allocation7 + $0x4f0] sm:$0xff]
    %v1406 = vld [vmem:[#allocation7 + $0x4f8] sm:$0xff]
    %v1407 = vld [vmem:[#allocation7 + $0x500] sm:$0xff]
    %v1408 = vld [vmem:[#allocation7 + $0x508] sm:$0xff]
    %v1409 = vld [vmem:[#allocation7 + $0x510] sm:$0xff]
    %v1410 = vld [vmem:[#allocation7 + $0x518] sm:$0xff]
    %v1411 = vld [vmem:[#allocation7 + $0x520] sm:$0xff]
    %v1412 = vld [vmem:[#allocation7 + $0x528] sm:$0xff]
    %v1413 = vld [vmem:[#allocation7 + $0x530] sm:$0xff]
    %v1414 = vld [vmem:[#allocation7 + $0x538] sm:$0xff]
    %v1415 = vld [vmem:[#allocation7 + $0x540] sm:$0xff]
    %v1416 = vld [vmem:[#allocation7 + $0x548] sm:$0xff]
    %v1417 = vld [vmem:[#allocation7 + $0x550] sm:$0xff]
    %v1418 = vld [vmem:[#allocation7 + $0x558] sm:$0xff]
    %v1419 = vld [vmem:[#allocation7 + $0x560] sm:$0xff]
    %v1420 = vld [vmem:[#allocation7 + $0x568] sm:$0xff]
    %v1421 = vld [vmem:[#allocation7 + $0x570] sm:$0xff]
    %v1422 = vld [vmem:[#allocation7 + $0x578] sm:$0xff]
    %v1423 = vld [vmem:[#allocation7 + $0x580] sm:$0xff]
    %v1424 = vld [vmem:[#allocation7 + $0x588] sm:$0xff]
    %v1425 = vld [vmem:[#allocation7 + $0x590] sm:$0xff]
    %v1426 = vld [vmem:[#allocation7 + $0x598] sm:$0xff]
    %v1427 = vld [vmem:[#allocation7 + $0x5a0] sm:$0xff]
    %v1428 = vld [vmem:[#allocation7 + $0x5a8] sm:$0xff]
    %v1429 = vld [vmem:[#allocation7 + $0x5b0] sm:$0xff]
    %v1430 = vld [vmem:[#allocation7 + $0x5b8] sm:$0xff]
    %v1431 = vld [vmem:[#allocation7 + $0x5c0] sm:$0xff]
    %v1432 = vld [vmem:[#allocation7 + $0x5c8] sm:$0xff]
    %v1433 = vld [vmem:[#allocation7 + $0x5d0] sm:$0xff]
    %v1434 = vld [vmem:[#allocation7 + $0x5d8] sm:$0xff]
    %v1435 = vld [vmem:[#allocation7 + $0x5e0] sm:$0xff]
    %v1436 = vld [vmem:[#allocation7 + $0x5e8] sm:$0xff]
    %v1437 = vld [vmem:[#allocation7 + $0x5f0] sm:$0xff]
    %v1438 = vld [vmem:[#allocation7 + $0x5f8] sm:$0xff]
    %v1439 = vld [vmem:[#allocation7 + $0x600] sm:$0xff]
    %v1440 = vld [vmem:[#allocation7 + $0x608] sm:$0xff]
    %v1441 = vld [vmem:[#allocation7 + $0x610] sm:$0xff]
    %v1442 = vld [vmem:[#allocation7 + $0x618] sm:$0xff]
    %v1443 = vld [vmem:[#allocation7 + $0x620] sm:$0xff]
    %v1444 = vld [vmem:[#allocation7 + $0x628] sm:$0xff]
    %v1445 = vld [vmem:[#allocation7 + $0x630] sm:$0xff]
    %v1446 = vld [vmem:[#allocation7 + $0x638] sm:$0xff]
    %v1447 = vld [vmem:[#allocation7 + $0x640] sm:$0xff]
    %v1448 = vld [vmem:[#allocation7 + $0x648] sm:$0xff]
    %v1449 = vld [vmem:[#allocation7 + $0x650] sm:$0xff]
    %v1450 = vld [vmem:[#allocation7 + $0x658] sm:$0xff]
    %v1451 = vld [vmem:[#allocation7 + $0x660] sm:$0xff]
    %v1452 = vld [vmem:[#allocation7 + $0x668] sm:$0xff]
    %v1453 = vld [vmem:[#allocation7 + $0x670] sm:$0xff]
    %v1454 = vld [vmem:[#allocation7 + $0x678] sm:$0xff]
    %v1455 = vld [vmem:[#allocation7 + $0x680] sm:$0xff]
    %v1456 = vld [vmem:[#allocation7 + $0x688] sm:$0xff]
    %v1457 = vld [vmem:[#allocation7 + $0x690] sm:$0xff]
    %v1458 = vld [vmem:[#allocation7 + $0x698] sm:$0xff]
    %v1459 = vld [vmem:[#allocation7 + $0x6a0] sm:$0xff]
    %v1460 = vld [vmem:[#allocation7 + $0x6a8] sm:$0xff]
    %v1461 = vld [vmem:[#allocation7 + $0x6b0] sm:$0xff]
    %v1462 = vld [vmem:[#allocation7 + $0x6b8] sm:$0xff]
    %v1463 = vld [vmem:[#allocation7 + $0x6c0] sm:$0xff]
    %v1464 = vld [vmem:[#allocation7 + $0x6c8] sm:$0xff]
    %v1465 = vld [vmem:[#allocation7 + $0x6d0] sm:$0xff]
    %v1466 = vld [vmem:[#allocation7 + $0x6d8] sm:$0xff]
    %v1467 = vld [vmem:[#allocation7 + $0x6e0] sm:$0xff]
    %v1468 = vld [vmem:[#allocation7 + $0x6e8] sm:$0xff]
    %v1469 = vld [vmem:[#allocation7 + $0x6f0] sm:$0xff]
    %v1470 = vld [vmem:[#allocation7 + $0x6f8] sm:$0xff]
    %v1471 = vld [vmem:[#allocation7 + $0x700] sm:$0xff]
    %v1472 = vld [vmem:[#allocation7 + $0x708] sm:$0xff]
    %v1473 = vld [vmem:[#allocation7 + $0x710] sm:$0xff]
    %v1474 = vld [vmem:[#allocation7 + $0x718] sm:$0xff]
    %v1475 = vld [vmem:[#allocation7 + $0x720] sm:$0xff]
    %v1476 = vld [vmem:[#allocation7 + $0x728] sm:$0xff]
    %v1477 = vld [vmem:[#allocation7 + $0x730] sm:$0xff]
    %v1478 = vld [vmem:[#allocation7 + $0x738] sm:$0xff]
    %v1479 = vld [vmem:[#allocation7 + $0x740] sm:$0xff]
    %v1480 = vld [vmem:[#allocation7 + $0x748] sm:$0xff]
    %v1481 = vld [vmem:[#allocation7 + $0x750] sm:$0xff]
    %v1482 = vld [vmem:[#allocation7 + $0x758] sm:$0xff]
    %v1483 = vld [vmem:[#allocation7 + $0x760] sm:$0xff]
    %v1484 = vld [vmem:[#allocation7 + $0x768] sm:$0xff]
    %v1485 = vld [vmem:[#allocation7 + $0x770] sm:$0xff]
    %v1486 = vld [vmem:[#allocation7 + $0x778] sm:$0xff]
    %v1487 = vld [vmem:[#allocation7 + $0x780] sm:$0xff]
    %v1488 = vld [vmem:[#allocation7 + $0x788] sm:$0xff]
    %v1489 = vld [vmem:[#allocation7 + $0x790] sm:$0xff]
    %v1490 = vld [vmem:[#allocation7 + $0x798] sm:$0xff]
    %v1491 = vld [vmem:[#allocation7 + $0x7a0] sm:$0xff]
    %v1492 = vld [vmem:[#allocation7 + $0x7a8] sm:$0xff]
    %v1493 = vld [vmem:[#allocation7 + $0x7b0] sm:$0xff]
    %v1494 = vld [vmem:[#allocation7 + $0x7b8] sm:$0xff]
    %v1495 = vld [vmem:[#allocation7 + $0x7c0] sm:$0xff]
    %v1496 = vld [vmem:[#allocation7 + $0x7c8] sm:$0xff]
    %v1497 = vld [vmem:[#allocation7 + $0x7d0] sm:$0xff]
    %v1498 = vld [vmem:[#allocation7 + $0x7d8] sm:$0xff]
    %v1499 = vld [vmem:[#allocation7 + $0x7e0] sm:$0xff]
    %v1500 = vld [vmem:[#allocation7 + $0x7e8] sm:$0xff]
    %v1501 = vld [vmem:[#allocation7 + $0x7f0] sm:$0xff]
    %v1502 = vld [vmem:[#allocation7 + $0x7f8] sm:$0xff]
    %v1503 = vld [vmem:[#allocation7 + $0x800] sm:$0xff]
    %v1504 = vld [vmem:[#allocation7 + $0x808] sm:$0xff]
    %v1505 = vld [vmem:[#allocation7 + $0x810] sm:$0xff]
    %v1506 = vld [vmem:[#allocation7 + $0x818] sm:$0xff]
    %v1507 = vld [vmem:[#allocation7 + $0x820] sm:$0xff]
    %v1508 = vld [vmem:[#allocation7 + $0x828] sm:$0xff]
    %v1509 = vld [vmem:[#allocation7 + $0x830] sm:$0xff]
    %v1510 = vld [vmem:[#allocation7 + $0x838] sm:$0xff]
    %v1511 = vld [vmem:[#allocation7 + $0x840] sm:$0xff]
    %v1512 = vld [vmem:[#allocation7 + $0x848] sm:$0xff]
    %v1513 = vld [vmem:[#allocation7 + $0x850] sm:$0xff]
    %v1514 = vld [vmem:[#allocation7 + $0x858] sm:$0xff]
    %v1515 = vld [vmem:[#allocation7 + $0x860] sm:$0xff]
    %v1516 = vld [vmem:[#allocation7 + $0x868] sm:$0xff]
    %v1517 = vld [vmem:[#allocation7 + $0x870] sm:$0xff]
    %v1518 = vld [vmem:[#allocation7 + $0x878] sm:$0xff]
    %v1519 = vld [vmem:[#allocation7 + $0x880] sm:$0xff]
    %v1520 = vld [vmem:[#allocation7 + $0x888] sm:$0xff]
    %v1521 = vld [vmem:[#allocation7 + $0x890] sm:$0xff]
    %v1522 = vld [vmem:[#allocation7 + $0x898] sm:$0xff]
    %v1523 = vld [vmem:[#allocation7 + $0x8a0] sm:$0xff]
    %v1524 = vld [vmem:[#allocation7 + $0x8a8] sm:$0xff]
    %v1525 = vld [vmem:[#allocation7 + $0x8b0] sm:$0xff]
    %v1526 = vld [vmem:[#allocation7 + $0x8b8] sm:$0xff]
    %v1527 = vld [vmem:[#allocation7 + $0x8c0] sm:$0xff]
    %v1528 = vld [vmem:[#allocation7 + $0x8c8] sm:$0xff]
    %v1529 = vld [vmem:[#allocation7 + $0x8d0] sm:$0xff]
    %v1530 = vld [vmem:[#allocation7 + $0x8d8] sm:$0xff]
    %v1531 = vld [vmem:[#allocation7 + $0x8e0] sm:$0xff]
    %v1532 = vld [vmem:[#allocation7 + $0x8e8] sm:$0xff]
    %v1533 = vld [vmem:[#allocation7 + $0x8f0] sm:$0xff]
    %v1534 = vld [vmem:[#allocation7 + $0x8f8] sm:$0xff]
    %v1535 = vld [vmem:[#allocation7 + $0x900] sm:$0xff]
    %v1536 = vld [vmem:[#allocation7 + $0x908] sm:$0xff]
    %v1537 = vld [vmem:[#allocation7 + $0x910] sm:$0xff]
    %v1538 = vld [vmem:[#allocation7 + $0x918] sm:$0xff]
    %v1539 = vld [vmem:[#allocation7 + $0x920] sm:$0xff]
    %v1540 = vld [vmem:[#allocation7 + $0x928] sm:$0xff]
    %v1541 = vld [vmem:[#allocation7 + $0x930] sm:$0xff]
    %v1542 = vld [vmem:[#allocation7 + $0x938] sm:$0xff]
    %v1543 = vld [vmem:[#allocation7 + $0x940] sm:$0xff]
    %v1544 = vld [vmem:[#allocation7 + $0x948] sm:$0xff]
    %v1545 = vld [vmem:[#allocation7 + $0x950] sm:$0xff]
    %v1546 = vld [vmem:[#allocation7 + $0x958] sm:$0xff]
    %v1547 = vld [vmem:[#allocation7 + $0x960] sm:$0xff]
    %v1548 = vld [vmem:[#allocation7 + $0x968] sm:$0xff]
    %v1549 = vld [vmem:[#allocation7 + $0x970] sm:$0xff]
    %v1550 = vld [vmem:[#allocation7 + $0x978] sm:$0xff]
    %v1551 = vld [vmem:[#allocation7 + $0x980] sm:$0xff]
    %v1552 = vld [vmem:[#allocation7 + $0x988] sm:$0xff]
    %v1553 = vld [vmem:[#allocation7 + $0x990] sm:$0xff]
    %v1554 = vld [vmem:[#allocation7 + $0x998] sm:$0xff]
    %v1555 = vld [vmem:[#allocation7 + $0x9a0] sm:$0xff]
    %v1556 = vld [vmem:[#allocation7 + $0x9a8] sm:$0xff]
    %v1557 = vld [vmem:[#allocation7 + $0x9b0] sm:$0xff]
    %v1558 = vld [vmem:[#allocation7 + $0x9b8] sm:$0xff]
    %v1559 = vld [vmem:[#allocation7 + $0x9c0] sm:$0xff]
    %v1560 = vld [vmem:[#allocation7 + $0x9c8] sm:$0xff]
    %v1561 = vld [vmem:[#allocation7 + $0x9d0] sm:$0xff]
    %v1562 = vld [vmem:[#allocation7 + $0x9d8] sm:$0xff]
    %v1563 = vld [vmem:[#allocation7 + $0x9e0] sm:$0xff]
    %v1564 = vld [vmem:[#allocation7 + $0x9e8] sm:$0xff]
    %v1565 = vld [vmem:[#allocation7 + $0x9f0] sm:$0xff]
    %v1566 = vld [vmem:[#allocation7 + $0x9f8] sm:$0xff]
    %v1567 = vld [vmem:[#allocation7 + $0xa00] sm:$0xff]
    %v1568 = vld [vmem:[#allocation7 + $0xa08] sm:$0xff]
    %v1569 = vld [vmem:[#allocation7 + $0xa10] sm:$0xff]
    %v1570 = vld [vmem:[#allocation7 + $0xa18] sm:$0xff]
    %v1571 = vld [vmem:[#allocation7 + $0xa20] sm:$0xff]
    %v1572 = vld [vmem:[#allocation7 + $0xa28] sm:$0xff]
    %v1573 = vld [vmem:[#allocation7 + $0xa30] sm:$0xff]
    %v1574 = vld [vmem:[#allocation7 + $0xa38] sm:$0xff]
    %v1575 = vld [vmem:[#allocation7 + $0xa40] sm:$0xff]
    %v1576 = vld [vmem:[#allocation7 + $0xa48] sm:$0xff]
    %v1577 = vld [vmem:[#allocation7 + $0xa50] sm:$0xff]
    %v1578 = vld [vmem:[#allocation7 + $0xa58] sm:$0xff]
    %v1579 = vld [vmem:[#allocation7 + $0xa60] sm:$0xff]
    %v1580 = vld [vmem:[#allocation7 + $0xa68] sm:$0xff]
    %v1581 = vld [vmem:[#allocation7 + $0xa70] sm:$0xff]
    %v1582 = vld [vmem:[#allocation7 + $0xa78] sm:$0xff]
    %v1583 = vld [vmem:[#allocation7 + $0xa80] sm:$0xff]
    %v1584 = vld [vmem:[#allocation7 + $0xa88] sm:$0xff]
    %v1585 = vld [vmem:[#allocation7 + $0xa90] sm:$0xff]
    %v1586 = vld [vmem:[#allocation7 + $0xa98] sm:$0xff]
    %v1587 = vld [vmem:[#allocation7 + $0xaa0] sm:$0xff]
    %v1588 = vld [vmem:[#allocation7 + $0xaa8] sm:$0xff]
    %v1589 = vld [vmem:[#allocation7 + $0xab0] sm:$0xff]
    %v1590 = vld [vmem:[#allocation7 + $0xab8] sm:$0xff]
    %v1591 = vld [vmem:[#allocation7 + $0xac0] sm:$0xff]
    %v1592 = vld [vmem:[#allocation7 + $0xac8] sm:$0xff]
    %v1593 = vld [vmem:[#allocation7 + $0xad0] sm:$0xff]
    %v1594 = vld [vmem:[#allocation7 + $0xad8] sm:$0xff]
    %v1595 = vld [vmem:[#allocation7 + $0xae0] sm:$0xff]
    %v1596 = vld [vmem:[#allocation7 + $0xae8] sm:$0xff]
    %v1597 = vld [vmem:[#allocation7 + $0xaf0] sm:$0xff]
    %v1598 = vld [vmem:[#allocation7 + $0xaf8] sm:$0xff]
    %v1599 = vld [vmem:[#allocation7 + $0xb00] sm:$0xff]
    %v1600 = vld [vmem:[#allocation7 + $0xb08] sm:$0xff]
    %v1601 = vld [vmem:[#allocation7 + $0xb10] sm:$0xff]
    %v1602 = vld [vmem:[#allocation7 + $0xb18] sm:$0xff]
    %v1603 = vld [vmem:[#allocation7 + $0xb20] sm:$0xff]
    %v1604 = vld [vmem:[#allocation7 + $0xb28] sm:$0xff]
    %v1605 = vld [vmem:[#allocation7 + $0xb30] sm:$0xff]
    %v1606 = vld [vmem:[#allocation7 + $0xb38] sm:$0xff]
    %v1607 = vld [vmem:[#allocation7 + $0xb40] sm:$0xff]
    %v1608 = vld [vmem:[#allocation7 + $0xb48] sm:$0xff]
    %v1609 = vld [vmem:[#allocation7 + $0xb50] sm:$0xff]
    %v1610 = vld [vmem:[#allocation7 + $0xb58] sm:$0xff]
    %v1611 = vld [vmem:[#allocation7 + $0xb60] sm:$0xff]
    %v1612 = vld [vmem:[#allocation7 + $0xb68] sm:$0xff]
    %v1613 = vld [vmem:[#allocation7 + $0xb70] sm:$0xff]
    %v1614 = vld [vmem:[#allocation7 + $0xb78] sm:$0xff]
    %v1615 = vld [vmem:[#allocation7 + $0xb80] sm:$0xff]
    %v1616 = vld [vmem:[#allocation7 + $0xb88] sm:$0xff]
    %v1617 = vld [vmem:[#allocation7 + $0xb90] sm:$0xff]
    %v1618 = vld [vmem:[#allocation7 + $0xb98] sm:$0xff]
    %v1619 = vld [vmem:[#allocation7 + $0xba0] sm:$0xff]
    %v1620 = vld [vmem:[#allocation7 + $0xba8] sm:$0xff]
    %v1621 = vld [vmem:[#allocation7 + $0xbb0] sm:$0xff]
    %v1622 = vld [vmem:[#allocation7 + $0xbb8] sm:$0xff]
    %v1623 = vld [vmem:[#allocation7 + $0xbc0] sm:$0xff]
    %v1624 = vld [vmem:[#allocation7 + $0xbc8] sm:$0xff]
    %v1625 = vld [vmem:[#allocation7 + $0xbd0] sm:$0xff]
    %v1626 = vld [vmem:[#allocation7 + $0xbd8] sm:$0xff]
    %v1627 = vld [vmem:[#allocation7 + $0xbe0] sm:$0xff]
    %v1628 = vld [vmem:[#allocation7 + $0xbe8] sm:$0xff]
    %v1629 = vld [vmem:[#allocation7 + $0xbf0] sm:$0xff]
    %v1630 = vld [vmem:[#allocation7 + $0xbf8] sm:$0xff]
    %v1631 = vld [vmem:[#allocation7 + $0xc00] sm:$0xff]
    %v1632 = vld [vmem:[#allocation7 + $0xc08] sm:$0xff]
    %v1633 = vld [vmem:[#allocation7 + $0xc10] sm:$0xff]
    %v1634 = vld [vmem:[#allocation7 + $0xc18] sm:$0xff]
    %v1635 = vld [vmem:[#allocation7 + $0xc20] sm:$0xff]
    %v1636 = vld [vmem:[#allocation7 + $0xc28] sm:$0xff]
    %v1637 = vld [vmem:[#allocation7 + $0xc30] sm:$0xff]
    %v1638 = vld [vmem:[#allocation7 + $0xc38] sm:$0xff]
    %v1639 = vld [vmem:[#allocation7 + $0xc40] sm:$0xff]
    %v1640 = vld [vmem:[#allocation7 + $0xc48] sm:$0xff]
    %v1641 = vld [vmem:[#allocation7 + $0xc50] sm:$0xff]
    %v1642 = vld [vmem:[#allocation7 + $0xc58] sm:$0xff]
    %v1643 = vld [vmem:[#allocation7 + $0xc60] sm:$0xff]
    %v1644 = vld [vmem:[#allocation7 + $0xc68] sm:$0xff]
    %v1645 = vld [vmem:[#allocation7 + $0xc70] sm:$0xff]
    %v1646 = vld [vmem:[#allocation7 + $0xc78] sm:$0xff]
    %v1647 = vld [vmem:[#allocation7 + $0xc80] sm:$0xff]
    %v1648 = vld [vmem:[#allocation7 + $0xc88] sm:$0xff]
    %v1649 = vld [vmem:[#allocation7 + $0xc90] sm:$0xff]
    %v1650 = vld [vmem:[#allocation7 + $0xc98] sm:$0xff]
    %v1651 = vld [vmem:[#allocation7 + $0xca0] sm:$0xff]
    %v1652 = vld [vmem:[#allocation7 + $0xca8] sm:$0xff]
    %v1653 = vld [vmem:[#allocation7 + $0xcb0] sm:$0xff]
    %v1654 = vld [vmem:[#allocation7 + $0xcb8] sm:$0xff]
    %v1655 = vld [vmem:[#allocation7 + $0xcc0] sm:$0xff]
    %v1656 = vld [vmem:[#allocation7 + $0xcc8] sm:$0xff]
    %v1657 = vld [vmem:[#allocation7 + $0xcd0] sm:$0xff]
    %v1658 = vld [vmem:[#allocation7 + $0xcd8] sm:$0xff]
    %v1659 = vld [vmem:[#allocation7 + $0xce0] sm:$0xff]
    %v1660 = vld [vmem:[#allocation7 + $0xce8] sm:$0xff]
    %v1661 = vld [vmem:[#allocation7 + $0xcf0] sm:$0xff]
    %v1662 = vld [vmem:[#allocation7 + $0xcf8] sm:$0xff]
    %v1663 = vld [vmem:[#allocation7 + $0xd00] sm:$0xff]
    %v1664 = vld [vmem:[#allocation7 + $0xd08] sm:$0xff]
    %v1665 = vld [vmem:[#allocation7 + $0xd10] sm:$0xff]
    %v1666 = vld [vmem:[#allocation7 + $0xd18] sm:$0xff]
    %v1667 = vld [vmem:[#allocation7 + $0xd20] sm:$0xff]
    %v1668 = vld [vmem:[#allocation7 + $0xd28] sm:$0xff]
    %v1669 = vld [vmem:[#allocation7 + $0xd30] sm:$0xff]
    %v1670 = vld [vmem:[#allocation7 + $0xd38] sm:$0xff]
    %v1671 = vld [vmem:[#allocation7 + $0xd40] sm:$0xff]
    %v1672 = vld [vmem:[#allocation7 + $0xd48] sm:$0xff]
    %v1673 = vld [vmem:[#allocation7 + $0xd50] sm:$0xff]
    %v1674 = vld [vmem:[#allocation7 + $0xd58] sm:$0xff]
    %v1675 = vld [vmem:[#allocation7 + $0xd60] sm:$0xff]
    %v1676 = vld [vmem:[#allocation7 + $0xd68] sm:$0xff]
    %v1677 = vld [vmem:[#allocation7 + $0xd70] sm:$0xff]
    %v1678 = vld [vmem:[#allocation7 + $0xd78] sm:$0xff]
    %v1679 = vld [vmem:[#allocation7 + $0xd80] sm:$0xff]
    %v1680 = vld [vmem:[#allocation7 + $0xd88] sm:$0xff]
    %v1681 = vld [vmem:[#allocation7 + $0xd90] sm:$0xff]
    %v1682 = vld [vmem:[#allocation7 + $0xd98] sm:$0xff]
    %v1683 = vld [vmem:[#allocation7 + $0xda0] sm:$0xff]
    %v1684 = vld [vmem:[#allocation7 + $0xda8] sm:$0xff]
    %v1685 = vld [vmem:[#allocation7 + $0xdb0] sm:$0xff]
    %v1686 = vld [vmem:[#allocation7 + $0xdb8] sm:$0xff]
    %v1687 = vld [vmem:[#allocation7 + $0xdc0] sm:$0xff]
    %v1688 = vld [vmem:[#allocation7 + $0xdc8] sm:$0xff]
    %v1689 = vld [vmem:[#allocation7 + $0xdd0] sm:$0xff]
    %v1690 = vld [vmem:[#allocation7 + $0xdd8] sm:$0xff]
    %v1691 = vld [vmem:[#allocation7 + $0xde0] sm:$0xff]
    %v1692 = vld [vmem:[#allocation7 + $0xde8] sm:$0xff]
    %v1693 = vld [vmem:[#allocation7 + $0xdf0] sm:$0xff]
    %v1694 = vld [vmem:[#allocation7 + $0xdf8] sm:$0xff]
    %v1695 = vld [vmem:[#allocation7 + $0xe00] sm:$0xff]
    %v1696 = vld [vmem:[#allocation7 + $0xe08] sm:$0xff]
    %v1697 = vld [vmem:[#allocation7 + $0xe10] sm:$0xff]
    %v1698 = vld [vmem:[#allocation7 + $0xe18] sm:$0xff]
    %v1699 = vld [vmem:[#allocation7 + $0xe20] sm:$0xff]
    %v1700 = vld [vmem:[#allocation7 + $0xe28] sm:$0xff]
    %v1701 = vld [vmem:[#allocation7 + $0xe30] sm:$0xff]
    %v1702 = vld [vmem:[#allocation7 + $0xe38] sm:$0xff]
    %v1703 = vld [vmem:[#allocation7 + $0xe40] sm:$0xff]
    %v1704 = vld [vmem:[#allocation7 + $0xe48] sm:$0xff]
    %v1705 = vld [vmem:[#allocation7 + $0xe50] sm:$0xff]
    %v1706 = vld [vmem:[#allocation7 + $0xe58] sm:$0xff]
    %v1707 = vld [vmem:[#allocation7 + $0xe60] sm:$0xff]
    %v1708 = vld [vmem:[#allocation7 + $0xe68] sm:$0xff]
    %v1709 = vld [vmem:[#allocation7 + $0xe70] sm:$0xff]
    %v1710 = vld [vmem:[#allocation7 + $0xe78] sm:$0xff]
    %v1711 = vld [vmem:[#allocation7 + $0xe80] sm:$0xff]
    %v1712 = vld [vmem:[#allocation7 + $0xe88] sm:$0xff]
    %v1713 = vld [vmem:[#allocation7 + $0xe90] sm:$0xff]
    %v1714 = vld [vmem:[#allocation7 + $0xe98] sm:$0xff]
    %v1715 = vld [vmem:[#allocation7 + $0xea0] sm:$0xff]
    %v1716 = vld [vmem:[#allocation7 + $0xea8] sm:$0xff]
    %v1717 = vld [vmem:[#allocation7 + $0xeb0] sm:$0xff]
    %v1718 = vld [vmem:[#allocation7 + $0xeb8] sm:$0xff]
    %v1719 = vld [vmem:[#allocation7 + $0xec0] sm:$0xff]
    %v1720 = vld [vmem:[#allocation7 + $0xec8] sm:$0xff]
    %v1721 = vld [vmem:[#allocation7 + $0xed0] sm:$0xff]
    %v1722 = vld [vmem:[#allocation7 + $0xed8] sm:$0xff]
    %v1723 = vld [vmem:[#allocation7 + $0xee0] sm:$0xff]
    %v1724 = vld [vmem:[#allocation7 + $0xee8] sm:$0xff]
    %v1725 = vld [vmem:[#allocation7 + $0xef0] sm:$0xff]
    %v1726 = vld [vmem:[#allocation7 + $0xef8] sm:$0xff]
    %v1727 = vld [vmem:[#allocation7 + $0xf00] sm:$0xff]
    %v1728 = vld [vmem:[#allocation7 + $0xf08] sm:$0xff]
    %v1729 = vld [vmem:[#allocation7 + $0xf10] sm:$0xff]
    %v1730 = vld [vmem:[#allocation7 + $0xf18] sm:$0xff]
    %v1731 = vld [vmem:[#allocation7 + $0xf20] sm:$0xff]
    %v1732 = vld [vmem:[#allocation7 + $0xf28] sm:$0xff]
    %v1733 = vld [vmem:[#allocation7 + $0xf30] sm:$0xff]
    %v1734 = vld [vmem:[#allocation7 + $0xf38] sm:$0xff]
    %v1735 = vld [vmem:[#allocation7 + $0xf40] sm:$0xff]
    %v1736 = vld [vmem:[#allocation7 + $0xf48] sm:$0xff]
    %v1737 = vld [vmem:[#allocation7 + $0xf50] sm:$0xff]
    %v1738 = vld [vmem:[#allocation7 + $0xf58] sm:$0xff]
    %v1739 = vld [vmem:[#allocation7 + $0xf60] sm:$0xff]
    %v1740 = vld [vmem:[#allocation7 + $0xf68] sm:$0xff]
    %v1741 = vld [vmem:[#allocation7 + $0xf70] sm:$0xff]
    %v1742 = vld [vmem:[#allocation7 + $0xf78] sm:$0xff]
    %v1743 = vld [vmem:[#allocation7 + $0xf80] sm:$0xff]
    %v1744 = vld [vmem:[#allocation7 + $0xf88] sm:$0xff]
    %v1745 = vld [vmem:[#allocation7 + $0xf90] sm:$0xff]
    %v1746 = vld [vmem:[#allocation7 + $0xf98] sm:$0xff]
    %v1747 = vld [vmem:[#allocation7 + $0xfa0] sm:$0xff]
    %v1748 = vld [vmem:[#allocation7 + $0xfa8] sm:$0xff]
    %v1749 = vld [vmem:[#allocation7 + $0xfb0] sm:$0xff]
    %v1750 = vld [vmem:[#allocation7 + $0xfb8] sm:$0xff]
    %v1751 = vld [vmem:[#allocation7 + $0xfc0] sm:$0xff]
    %v1752 = vld [vmem:[#allocation7 + $0xfc8] sm:$0xff]
    %v1753 = vld [vmem:[#allocation7 + $0xfd0] sm:$0xff]
    %v1754 = vld [vmem:[#allocation7 + $0xfd8] sm:$0xff]
    %v1755 = vld [vmem:[#allocation7 + $0xfe0] sm:$0xff]
    %v1756 = vld [vmem:[#allocation7 + $0xfe8] sm:$0xff]
    %v1757 = vld [vmem:[#allocation7 + $0xff0] sm:$0xff]
    %v1758 = vld [vmem:[#allocation7 + $0xff8] sm:$0xff]
    %v1759 = vld [vmem:[#allocation7 + $0x1000] sm:$0xff]
    %v1760 = vld [vmem:[#allocation7 + $0x1008] sm:$0xff]
    %v1761 = vld [vmem:[#allocation7 + $0x1010] sm:$0xff]
    %v1762 = vld [vmem:[#allocation7 + $0x1018] sm:$0xff]
    %v1763 = vld [vmem:[#allocation7 + $0x1020] sm:$0xff]
    %v1764 = vld [vmem:[#allocation7 + $0x1028] sm:$0xff]
    %v1765 = vld [vmem:[#allocation7 + $0x1030] sm:$0xff]
    %v1766 = vld [vmem:[#allocation7 + $0x1038] sm:$0xff]
    %v1767 = vld [vmem:[#allocation7 + $0x1040] sm:$0xff]
    %v1768 = vld [vmem:[#allocation7 + $0x1048] sm:$0xff]
    %v1769 = vld [vmem:[#allocation7 + $0x1050] sm:$0xff]
    %v1770 = vld [vmem:[#allocation7 + $0x1058] sm:$0xff]
    %v1771 = vld [vmem:[#allocation7 + $0x1060] sm:$0xff]
    %v1772 = vld [vmem:[#allocation7 + $0x1068] sm:$0xff]
    %v1773 = vld [vmem:[#allocation7 + $0x1070] sm:$0xff]
    %v1774 = vld [vmem:[#allocation7 + $0x1078] sm:$0xff]
    %v1775 = vld [vmem:[#allocation7 + $0x1080] sm:$0xff]
    %v1776 = vld [vmem:[#allocation7 + $0x1088] sm:$0xff]
    %v1777 = vld [vmem:[#allocation7 + $0x1090] sm:$0xff]
    %v1778 = vld [vmem:[#allocation7 + $0x1098] sm:$0xff]
    %v1779 = vld [vmem:[#allocation7 + $0x10a0] sm:$0xff]
    %v1780 = vld [vmem:[#allocation7 + $0x10a8] sm:$0xff]
    %v1781 = vld [vmem:[#allocation7 + $0x10b0] sm:$0xff]
    %v1782 = vld [vmem:[#allocation7 + $0x10b8] sm:$0xff]
    %v1783 = vld [vmem:[#allocation7 + $0x10c0] sm:$0xff]
    %v1784 = vld [vmem:[#allocation7 + $0x10c8] sm:$0xff]
    %v1785 = vld [vmem:[#allocation7 + $0x10d0] sm:$0xff]
    %v1786 = vld [vmem:[#allocation7 + $0x10d8] sm:$0xff]
    %v1787 = vld [vmem:[#allocation7 + $0x10e0] sm:$0xff]
    %v1788 = vld [vmem:[#allocation7 + $0x10e8] sm:$0xff]
    %v1789 = vld [vmem:[#allocation7 + $0x10f0] sm:$0xff]
    %v1790 = vld [vmem:[#allocation7 + $0x10f8] sm:$0xff]
    %v1791 = vld [vmem:[#allocation7 + $0x1100] sm:$0xff]
    %v1792 = vld [vmem:[#allocation7 + $0x1108] sm:$0xff]
    %v1793 = vld [vmem:[#allocation7 + $0x1110] sm:$0xff]
    %v1794 = vld [vmem:[#allocation7 + $0x1118] sm:$0xff]
    %v1795 = vld [vmem:[#allocation7 + $0x1120] sm:$0xff]
    %v1796 = vld [vmem:[#allocation7 + $0x1128] sm:$0xff]
    %v1797 = vld [vmem:[#allocation7 + $0x1130] sm:$0xff]
    %v1798 = vld [vmem:[#allocation7 + $0x1138] sm:$0xff]
    %v1799 = vld [vmem:[#allocation7 + $0x1140] sm:$0xff]
    %v1800 = vld [vmem:[#allocation7 + $0x1148] sm:$0xff]
    %v1801 = vld [vmem:[#allocation7 + $0x1150] sm:$0xff]
    %v1802 = vld [vmem:[#allocation7 + $0x1158] sm:$0xff]
    %v1803 = vld [vmem:[#allocation7 + $0x1160] sm:$0xff]
    %v1804 = vld [vmem:[#allocation7 + $0x1168] sm:$0xff]
    %v1805 = vld [vmem:[#allocation7 + $0x1170] sm:$0xff]
    %v1806 = vld [vmem:[#allocation7 + $0x1178] sm:$0xff]
    %v1807 = vld [vmem:[#allocation7 + $0x1180] sm:$0xff]
    %v1808 = vld [vmem:[#allocation7 + $0x1188] sm:$0xff]
    %v1809 = vld [vmem:[#allocation7 + $0x1190] sm:$0xff]
    %v1810 = vld [vmem:[#allocation7 + $0x1198] sm:$0xff]
    %v1811 = vld [vmem:[#allocation7 + $0x11a0] sm:$0xff]
    %v1812 = vld [vmem:[#allocation7 + $0x11a8] sm:$0xff]
    %v1813 = vld [vmem:[#allocation7 + $0x11b0] sm:$0xff]
    %v1814 = vld [vmem:[#allocation7 + $0x11b8] sm:$0xff]
    %v1815 = vld [vmem:[#allocation7 + $0x11c0] sm:$0xff]
    %v1816 = vld [vmem:[#allocation7 + $0x11c8] sm:$0xff]
    %v1817 = vld [vmem:[#allocation7 + $0x11d0] sm:$0xff]
    %v1818 = vld [vmem:[#allocation7 + $0x11d8] sm:$0xff]
    %v1819 = vld [vmem:[#allocation7 + $0x11e0] sm:$0xff]
    %v1820 = vld [vmem:[#allocation7 + $0x11e8] sm:$0xff]
    %v1821 = vld [vmem:[#allocation7 + $0x11f0] sm:$0xff]
    %v1822 = vld [vmem:[#allocation7 + $0x11f8] sm:$0xff]
    %v1823 = vld [vmem:[#allocation7 + $0x1200] sm:$0xff]
    %v1824 = vld [vmem:[#allocation7 + $0x1208] sm:$0xff]
    %v1825 = vld [vmem:[#allocation7 + $0x1210] sm:$0xff]
    %v1826 = vld [vmem:[#allocation7 + $0x1218] sm:$0xff]
    %v1827 = vld [vmem:[#allocation7 + $0x1220] sm:$0xff]
    %v1828 = vld [vmem:[#allocation7 + $0x1228] sm:$0xff]
    %v1829 = vld [vmem:[#allocation7 + $0x1230] sm:$0xff]
    %v1830 = vld [vmem:[#allocation7 + $0x1238] sm:$0xff]
    %v1831 = vld [vmem:[#allocation7 + $0x1240] sm:$0xff]
    %v1832 = vld [vmem:[#allocation7 + $0x1248] sm:$0xff]
    %v1833 = vld [vmem:[#allocation7 + $0x1250] sm:$0xff]
    %v1834 = vld [vmem:[#allocation7 + $0x1258] sm:$0xff]
    %v1835 = vld [vmem:[#allocation7 + $0x1260] sm:$0xff]
    %v1836 = vld [vmem:[#allocation7 + $0x1268] sm:$0xff]
    %v1837 = vld [vmem:[#allocation7 + $0x1270] sm:$0xff]
    %v1838 = vld [vmem:[#allocation7 + $0x1278] sm:$0xff]
    %v1839 = vld [vmem:[#allocation7 + $0x1280] sm:$0xff]
    %v1840 = vld [vmem:[#allocation7 + $0x1288] sm:$0xff]
    %v1841 = vld [vmem:[#allocation7 + $0x1290] sm:$0xff]
    %v1842 = vld [vmem:[#allocation7 + $0x1298] sm:$0xff]
    %v1843 = vld [vmem:[#allocation7 + $0x12a0] sm:$0xff]
    %v1844 = vld [vmem:[#allocation7 + $0x12a8] sm:$0xff]
    %v1845 = vld [vmem:[#allocation7 + $0x12b0] sm:$0xff]
    %v1846 = vld [vmem:[#allocation7 + $0x12b8] sm:$0xff]
    %v1847 = vld [vmem:[#allocation7 + $0x12c0] sm:$0xff]
    %v1848 = vld [vmem:[#allocation7 + $0x12c8] sm:$0xff]
    %v1849 = vld [vmem:[#allocation7 + $0x12d0] sm:$0xff]
    %v1850 = vld [vmem:[#allocation7 + $0x12d8] sm:$0xff]
    %v1851 = vld [vmem:[#allocation7 + $0x12e0] sm:$0xff]
    %v1852 = vld [vmem:[#allocation7 + $0x12e8] sm:$0xff]
    %v1853 = vld [vmem:[#allocation7 + $0x12f0] sm:$0xff]
    %v1854 = vld [vmem:[#allocation7 + $0x12f8] sm:$0xff]
    %v1855 = vld [vmem:[#allocation7 + $0x1300] sm:$0xff]
    %v1856 = vld [vmem:[#allocation7 + $0x1308] sm:$0xff]
    %v1857 = vld [vmem:[#allocation7 + $0x1310] sm:$0xff]
    %v1858 = vld [vmem:[#allocation7 + $0x1318] sm:$0xff]
    %v1859 = vld [vmem:[#allocation7 + $0x1320] sm:$0xff]
    %v1860 = vld [vmem:[#allocation7 + $0x1328] sm:$0xff]
    %v1861 = vld [vmem:[#allocation7 + $0x1330] sm:$0xff]
    %v1862 = vld [vmem:[#allocation7 + $0x1338] sm:$0xff]
    %v1863 = vld [vmem:[#allocation7 + $0x1340] sm:$0xff]
    %v1864 = vld [vmem:[#allocation7 + $0x1348] sm:$0xff]
    %v1865 = vld [vmem:[#allocation7 + $0x1350] sm:$0xff]
    %v1866 = vld [vmem:[#allocation7 + $0x1358] sm:$0xff]
    %v1867 = vld [vmem:[#allocation7 + $0x1360] sm:$0xff]
    %v1868 = vld [vmem:[#allocation7 + $0x1368] sm:$0xff]
    %v1869 = vld [vmem:[#allocation7 + $0x1370] sm:$0xff]
    %v1870 = vld [vmem:[#allocation7 + $0x1378] sm:$0xff]
    %v1871 = vld [vmem:[#allocation7 + $0x1380] sm:$0xff]
    %v1872 = vld [vmem:[#allocation7 + $0x1388] sm:$0xff]
    %v1873 = vld [vmem:[#allocation7 + $0x1390] sm:$0xff]
    %v1874 = vld [vmem:[#allocation7 + $0x1398] sm:$0xff]
    %v1875 = vld [vmem:[#allocation7 + $0x13a0] sm:$0xff]
    %v1876 = vld [vmem:[#allocation7 + $0x13a8] sm:$0xff]
    %v1877 = vld [vmem:[#allocation7 + $0x13b0] sm:$0xff]
    %v1878 = vld [vmem:[#allocation7 + $0x13b8] sm:$0xff]
    %v1879 = vld [vmem:[#allocation7 + $0x13c0] sm:$0xff]
    %v1880 = vld [vmem:[#allocation7 + $0x13c8] sm:$0xff]
    %v1881 = vld [vmem:[#allocation7 + $0x13d0] sm:$0xff]
    %v1882 = vld [vmem:[#allocation7 + $0x13d8] sm:$0xff]
    %v1883 = vld [vmem:[#allocation7 + $0x13e0] sm:$0xff]
    %v1884 = vld [vmem:[#allocation7 + $0x13e8] sm:$0xff]
    %v1885 = vld [vmem:[#allocation7 + $0x13f0] sm:$0xff]
    %v1886 = vld [vmem:[#allocation7 + $0x13f8] sm:$0xff]
    %v1887 = vld [vmem:[#allocation7 + $0x1400] sm:$0xff]
    %v1888 = vld [vmem:[#allocation7 + $0x1408] sm:$0xff]
    %v1889 = vld [vmem:[#allocation7 + $0x1410] sm:$0xff]
    %v1890 = vld [vmem:[#allocation7 + $0x1418] sm:$0xff]
    %v1891 = vld [vmem:[#allocation7 + $0x1420] sm:$0xff]
    %v1892 = vld [vmem:[#allocation7 + $0x1428] sm:$0xff]
    %v1893 = vld [vmem:[#allocation7 + $0x1430] sm:$0xff]
    %v1894 = vld [vmem:[#allocation7 + $0x1438] sm:$0xff]
    %v1895 = vld [vmem:[#allocation7 + $0x1440] sm:$0xff]
    %v1896 = vld [vmem:[#allocation7 + $0x1448] sm:$0xff]
    %v1897 = vld [vmem:[#allocation7 + $0x1450] sm:$0xff]
    %v1898 = vld [vmem:[#allocation7 + $0x1458] sm:$0xff]
    %v1899 = vld [vmem:[#allocation7 + $0x1460] sm:$0xff]
    %v1900 = vld [vmem:[#allocation7 + $0x1468] sm:$0xff]
    %v1901 = vld [vmem:[#allocation7 + $0x1470] sm:$0xff]
    %v1902 = vld [vmem:[#allocation7 + $0x1478] sm:$0xff]
    %v1903 = vld [vmem:[#allocation7 + $0x1480] sm:$0xff]
    %v1904 = vld [vmem:[#allocation7 + $0x1488] sm:$0xff]
    %v1905 = vld [vmem:[#allocation7 + $0x1490] sm:$0xff]
    %v1906 = vld [vmem:[#allocation7 + $0x1498] sm:$0xff]
    %v1907 = vld [vmem:[#allocation7 + $0x14a0] sm:$0xff]
    %v1908 = vld [vmem:[#allocation7 + $0x14a8] sm:$0xff]
    %v1909 = vld [vmem:[#allocation7 + $0x14b0] sm:$0xff]
    %v1910 = vld [vmem:[#allocation7 + $0x14b8] sm:$0xff]
    %v1911 = vld [vmem:[#allocation7 + $0x14c0] sm:$0xff]
    %v1912 = vld [vmem:[#allocation7 + $0x14c8] sm:$0xff]
    %v1913 = vld [vmem:[#allocation7 + $0x14d0] sm:$0xff]
    %v1914 = vld [vmem:[#allocation7 + $0x14d8] sm:$0xff]
    %v1915 = vld [vmem:[#allocation7 + $0x14e0] sm:$0xff]
    %v1916 = vld [vmem:[#allocation7 + $0x14e8] sm:$0xff]
    %v1917 = vld [vmem:[#allocation7 + $0x14f0] sm:$0xff]
    %v1918 = vld [vmem:[#allocation7 + $0x14f8] sm:$0xff]
    %v1919 = vld [vmem:[#allocation7 + $0x1500] sm:$0xff]
    %v1920 = vld [vmem:[#allocation7 + $0x1508] sm:$0xff]
    %v1921 = vld [vmem:[#allocation7 + $0x1510] sm:$0xff]
    %v1922 = vld [vmem:[#allocation7 + $0x1518] sm:$0xff]
    %v1923 = vld [vmem:[#allocation7 + $0x1520] sm:$0xff]
    %v1924 = vld [vmem:[#allocation7 + $0x1528] sm:$0xff]
    %v1925 = vld [vmem:[#allocation7 + $0x1530] sm:$0xff]
    %v1926 = vld [vmem:[#allocation7 + $0x1538] sm:$0xff]
    %v1927 = vld [vmem:[#allocation7 + $0x1540] sm:$0xff]
    %v1928 = vld [vmem:[#allocation7 + $0x1548] sm:$0xff]
    %v1929 = vld [vmem:[#allocation7 + $0x1550] sm:$0xff]
    %v1930 = vld [vmem:[#allocation7 + $0x1558] sm:$0xff]
    %v1931 = vld [vmem:[#allocation7 + $0x1560] sm:$0xff]
    %v1932 = vld [vmem:[#allocation7 + $0x1568] sm:$0xff]
    %v1933 = vld [vmem:[#allocation7 + $0x1570] sm:$0xff]
    %v1934 = vld [vmem:[#allocation7 + $0x1578] sm:$0xff]
    %v1935 = vld [vmem:[#allocation7 + $0x1580] sm:$0xff]
    %v1936 = vld [vmem:[#allocation7 + $0x1588] sm:$0xff]
    %v1937 = vld [vmem:[#allocation7 + $0x1590] sm:$0xff]
    %v1938 = vld [vmem:[#allocation7 + $0x1598] sm:$0xff]
    %v1939 = vld [vmem:[#allocation7 + $0x15a0] sm:$0xff]
    %v1940 = vld [vmem:[#allocation7 + $0x15a8] sm:$0xff]
    %v1941 = vld [vmem:[#allocation7 + $0x15b0] sm:$0xff]
    %v1942 = vld [vmem:[#allocation7 + $0x15b8] sm:$0xff]
    %v1943 = vld [vmem:[#allocation7 + $0x15c0] sm:$0xff]
    %v1944 = vld [vmem:[#allocation7 + $0x15c8] sm:$0xff]
    %v1945 = vld [vmem:[#allocation7 + $0x15d0] sm:$0xff]
    %v1946 = vld [vmem:[#allocation7 + $0x15d8] sm:$0xff]
    %v1947 = vld [vmem:[#allocation7 + $0x15e0] sm:$0xff]
    %v1948 = vld [vmem:[#allocation7 + $0x15e8] sm:$0xff]
    %v1949 = vld [vmem:[#allocation7 + $0x15f0] sm:$0xff]
    %v1950 = vld [vmem:[#allocation7 + $0x15f8] sm:$0xff]
    %v1951 = vld [vmem:[#allocation7 + $0x1600] sm:$0xff]
    %v1952 = vld [vmem:[#allocation7 + $0x1608] sm:$0xff]
    %v1953 = vld [vmem:[#allocation7 + $0x1610] sm:$0xff]
    %v1954 = vld [vmem:[#allocation7 + $0x1618] sm:$0xff]
    %v1955 = vld [vmem:[#allocation7 + $0x1620] sm:$0xff]
    %v1956 = vld [vmem:[#allocation7 + $0x1628] sm:$0xff]
    %v1957 = vld [vmem:[#allocation7 + $0x1630] sm:$0xff]
    %v1958 = vld [vmem:[#allocation7 + $0x1638] sm:$0xff]
    %v1959 = vld [vmem:[#allocation7 + $0x1640] sm:$0xff]
    %v1960 = vld [vmem:[#allocation7 + $0x1648] sm:$0xff]
    %v1961 = vld [vmem:[#allocation7 + $0x1650] sm:$0xff]
    %v1962 = vld [vmem:[#allocation7 + $0x1658] sm:$0xff]
    %v1963 = vld [vmem:[#allocation7 + $0x1660] sm:$0xff]
    %v1964 = vld [vmem:[#allocation7 + $0x1668] sm:$0xff]
    %v1965 = vld [vmem:[#allocation7 + $0x1670] sm:$0xff]
    %v1966 = vld [vmem:[#allocation7 + $0x1678] sm:$0xff]
    %v1967 = vld [vmem:[#allocation7 + $0x1680] sm:$0xff]
    %v1968 = vld [vmem:[#allocation7 + $0x1688] sm:$0xff]
    %v1969 = vld [vmem:[#allocation7 + $0x1690] sm:$0xff]
    %v1970 = vld [vmem:[#allocation7 + $0x1698] sm:$0xff]
    %v1971 = vld [vmem:[#allocation7 + $0x16a0] sm:$0xff]
    %v1972 = vld [vmem:[#allocation7 + $0x16a8] sm:$0xff]
    %v1973 = vld [vmem:[#allocation7 + $0x16b0] sm:$0xff]
    %v1974 = vld [vmem:[#allocation7 + $0x16b8] sm:$0xff]
    %v1975 = vld [vmem:[#allocation7 + $0x16c0] sm:$0xff]
    %v1976 = vld [vmem:[#allocation7 + $0x16c8] sm:$0xff]
    %v1977 = vld [vmem:[#allocation7 + $0x16d0] sm:$0xff]
    %v1978 = vld [vmem:[#allocation7 + $0x16d8] sm:$0xff]
    %v1979 = vld [vmem:[#allocation7 + $0x16e0] sm:$0xff]
    %v1980 = vld [vmem:[#allocation7 + $0x16e8] sm:$0xff]
    %v1981 = vld [vmem:[#allocation7 + $0x16f0] sm:$0xff]
    %v1982 = vld [vmem:[#allocation7 + $0x16f8] sm:$0xff]
    %v1983 = vld [vmem:[#allocation7 + $0x1700] sm:$0xff]
    %v1984 = vld [vmem:[#allocation7 + $0x1708] sm:$0xff]
    %v1985 = vld [vmem:[#allocation7 + $0x1710] sm:$0xff]
    %v1986 = vld [vmem:[#allocation7 + $0x1718] sm:$0xff]
    %v1987 = vld [vmem:[#allocation7 + $0x1720] sm:$0xff]
    %v1988 = vld [vmem:[#allocation7 + $0x1728] sm:$0xff]
    %v1989 = vld [vmem:[#allocation7 + $0x1730] sm:$0xff]
    %v1990 = vld [vmem:[#allocation7 + $0x1738] sm:$0xff]
    %v1991 = vld [vmem:[#allocation7 + $0x1740] sm:$0xff]
    %v1992 = vld [vmem:[#allocation7 + $0x1748] sm:$0xff]
    %v1993 = vld [vmem:[#allocation7 + $0x1750] sm:$0xff]
    %v1994 = vld [vmem:[#allocation7 + $0x1758] sm:$0xff]
    %v1995 = vld [vmem:[#allocation7 + $0x1760] sm:$0xff]
    %v1996 = vld [vmem:[#allocation7 + $0x1768] sm:$0xff]
    %v1997 = vld [vmem:[#allocation7 + $0x1770] sm:$0xff]
    %v1998 = vld [vmem:[#allocation7 + $0x1778] sm:$0xff]
    %v1999 = vld [vmem:[#allocation7 + $0x1780] sm:$0xff]
    %v2000 = vld [vmem:[#allocation7 + $0x1788] sm:$0xff]
    %v2001 = vld [vmem:[#allocation7 + $0x1790] sm:$0xff]
    %v2002 = vld [vmem:[#allocation7 + $0x1798] sm:$0xff]
    %v2003 = vld [vmem:[#allocation7 + $0x17a0] sm:$0xff]
    %v2004 = vld [vmem:[#allocation7 + $0x17a8] sm:$0xff]
    %v2005 = vld [vmem:[#allocation7 + $0x17b0] sm:$0xff]
    %v2006 = vld [vmem:[#allocation7 + $0x17b8] sm:$0xff]
    %v2007 = vld [vmem:[#allocation7 + $0x17c0] sm:$0xff]
    %v2008 = vld [vmem:[#allocation7 + $0x17c8] sm:$0xff]
    %v2009 = vld [vmem:[#allocation7 + $0x17d0] sm:$0xff]
    %v2010 = vld [vmem:[#allocation7 + $0x17d8] sm:$0xff]
    %v2011 = vld [vmem:[#allocation7 + $0x17e0] sm:$0xff]
    %v2012 = vld [vmem:[#allocation7 + $0x17e8] sm:$0xff]
    %v2013 = vld [vmem:[#allocation7 + $0x17f0] sm:$0xff]
    %v2014 = vld [vmem:[#allocation7 + $0x17f8] sm:$0xff]
    %v2015 = vld [vmem:[#allocation7 + $0x1800] sm:$0xff]
    %v2016 = vld [vmem:[#allocation7 + $0x1808] sm:$0xff]
    %v2017 = vld [vmem:[#allocation7 + $0x1810] sm:$0xff]
    %v2018 = vld [vmem:[#allocation7 + $0x1818] sm:$0xff]
    %v2019 = vld [vmem:[#allocation7 + $0x1820] sm:$0xff]
    %v2020 = vld [vmem:[#allocation7 + $0x1828] sm:$0xff]
    %v2021 = vld [vmem:[#allocation7 + $0x1830] sm:$0xff]
    %v2022 = vld [vmem:[#allocation7 + $0x1838] sm:$0xff]
    %v2023 = vld [vmem:[#allocation7 + $0x1840] sm:$0xff]
    %v2024 = vld [vmem:[#allocation7 + $0x1848] sm:$0xff]
    %v2025 = vld [vmem:[#allocation7 + $0x1850] sm:$0xff]
    %v2026 = vld [vmem:[#allocation7 + $0x1858] sm:$0xff]
    %v2027 = vld [vmem:[#allocation7 + $0x1860] sm:$0xff]
    %v2028 = vld [vmem:[#allocation7 + $0x1868] sm:$0xff]
    %v2029 = vld [vmem:[#allocation7 + $0x1870] sm:$0xff]
    %v2030 = vld [vmem:[#allocation7 + $0x1878] sm:$0xff]
    %v2031 = vld [vmem:[#allocation7 + $0x1880] sm:$0xff]
    %v2032 = vld [vmem:[#allocation7 + $0x1888] sm:$0xff]
    %v2033 = vld [vmem:[#allocation7 + $0x1890] sm:$0xff]
    %v2034 = vld [vmem:[#allocation7 + $0x1898] sm:$0xff]
    %v2035 = vld [vmem:[#allocation7 + $0x18a0] sm:$0xff]
    %v2036 = vld [vmem:[#allocation7 + $0x18a8] sm:$0xff]
    %v2037 = vld [vmem:[#allocation7 + $0x18b0] sm:$0xff]
    %v2038 = vld [vmem:[#allocation7 + $0x18b8] sm:$0xff]
    %v2039 = vld [vmem:[#allocation7 + $0x18c0] sm:$0xff]
    %v2040 = vld [vmem:[#allocation7 + $0x18c8] sm:$0xff]
    %v2041 = vld [vmem:[#allocation7 + $0x18d0] sm:$0xff]
    %v2042 = vld [vmem:[#allocation7 + $0x18d8] sm:$0xff]
    %v2043 = vld [vmem:[#allocation7 + $0x18e0] sm:$0xff]
    %v2044 = vld [vmem:[#allocation7 + $0x18e8] sm:$0xff]
    %v2045 = vld [vmem:[#allocation7 + $0x18f0] sm:$0xff]
    %v2046 = vld [vmem:[#allocation7 + $0x18f8] sm:$0xff]
    %v2047 = vld [vmem:[#allocation7 + $0x1900] sm:$0xff]
    %v2048 = vld [vmem:[#allocation7 + $0x1908] sm:$0xff]
    %v2049 = vld [vmem:[#allocation7 + $0x1910] sm:$0xff]
    %v2050 = vld [vmem:[#allocation7 + $0x1918] sm:$0xff]
    %v2051 = vld [vmem:[#allocation7 + $0x1920] sm:$0xff]
    %v2052 = vld [vmem:[#allocation7 + $0x1928] sm:$0xff]
    %v2053 = vld [vmem:[#allocation7 + $0x1930] sm:$0xff]
    %v2054 = vld [vmem:[#allocation7 + $0x1938] sm:$0xff]
    %v2055 = vld [vmem:[#allocation7 + $0x1940] sm:$0xff]
    %v2056 = vld [vmem:[#allocation7 + $0x1948] sm:$0xff]
    %v2057 = vld [vmem:[#allocation7 + $0x1950] sm:$0xff]
    %v2058 = vld [vmem:[#allocation7 + $0x1958] sm:$0xff]
    %v2059 = vld [vmem:[#allocation7 + $0x1960] sm:$0xff]
    %v2060 = vld [vmem:[#allocation7 + $0x1968] sm:$0xff]
    %v2061 = vld [vmem:[#allocation7 + $0x1970] sm:$0xff]
    %v2062 = vld [vmem:[#allocation7 + $0x1978] sm:$0xff]
    %v2063 = vld [vmem:[#allocation7 + $0x1980] sm:$0xff]
    %v2064 = vld [vmem:[#allocation7 + $0x1988] sm:$0xff]
    %v2065 = vld [vmem:[#allocation7 + $0x1990] sm:$0xff]
    %v2066 = vld [vmem:[#allocation7 + $0x1998] sm:$0xff]
    %v2067 = vld [vmem:[#allocation7 + $0x19a0] sm:$0xff]
    %v2068 = vld [vmem:[#allocation7 + $0x19a8] sm:$0xff]
    %v2069 = vld [vmem:[#allocation7 + $0x19b0] sm:$0xff]
    %v2070 = vld [vmem:[#allocation7 + $0x19b8] sm:$0xff]
    %v2071 = vld [vmem:[#allocation7 + $0x19c0] sm:$0xff]
    %v2072 = vld [vmem:[#allocation7 + $0x19c8] sm:$0xff]
    %v2073 = vld [vmem:[#allocation7 + $0x19d0] sm:$0xff]
    %v2074 = vld [vmem:[#allocation7 + $0x19d8] sm:$0xff]
    %v2075 = vld [vmem:[#allocation7 + $0x19e0] sm:$0xff]
    %v2076 = vld [vmem:[#allocation7 + $0x19e8] sm:$0xff]
    %v2077 = vld [vmem:[#allocation7 + $0x19f0] sm:$0xff]
    %v2078 = vld [vmem:[#allocation7 + $0x19f8] sm:$0xff]
    %v2079 = vld [vmem:[#allocation7 + $0x1a00] sm:$0xff]
    %v2080 = vld [vmem:[#allocation7 + $0x1a08] sm:$0xff]
    %v2081 = vld [vmem:[#allocation7 + $0x1a10] sm:$0xff]
    %v2082 = vld [vmem:[#allocation7 + $0x1a18] sm:$0xff]
    %v2083 = vld [vmem:[#allocation7 + $0x1a20] sm:$0xff]
    %v2084 = vld [vmem:[#allocation7 + $0x1a28] sm:$0xff]
    %v2085 = vld [vmem:[#allocation7 + $0x1a30] sm:$0xff]
    %v2086 = vld [vmem:[#allocation7 + $0x1a38] sm:$0xff]
    %v2087 = vld [vmem:[#allocation7 + $0x1a40] sm:$0xff]
    %v2088 = vld [vmem:[#allocation7 + $0x1a48] sm:$0xff]
    %v2089 = vld [vmem:[#allocation7 + $0x1a50] sm:$0xff]
    %v2090 = vld [vmem:[#allocation7 + $0x1a58] sm:$0xff]
    %v2091 = vld [vmem:[#allocation7 + $0x1a60] sm:$0xff]
    %v2092 = vld [vmem:[#allocation7 + $0x1a68] sm:$0xff]
    %v2093 = vld [vmem:[#allocation7 + $0x1a70] sm:$0xff]
    %v2094 = vld [vmem:[#allocation7 + $0x1a78] sm:$0xff]
    %v2095 = vld [vmem:[#allocation7 + $0x1a80] sm:$0xff]
    %v2096 = vld [vmem:[#allocation7 + $0x1a88] sm:$0xff]
    %v2097 = vld [vmem:[#allocation7 + $0x1a90] sm:$0xff]
    %v2098 = vld [vmem:[#allocation7 + $0x1a98] sm:$0xff]
    %v2099 = vld [vmem:[#allocation7 + $0x1aa0] sm:$0xff]
    %v2100 = vld [vmem:[#allocation7 + $0x1aa8] sm:$0xff]
    %v2101 = vld [vmem:[#allocation7 + $0x1ab0] sm:$0xff]
    %v2102 = vld [vmem:[#allocation7 + $0x1ab8] sm:$0xff]
    %v2103 = vld [vmem:[#allocation7 + $0x1ac0] sm:$0xff]
    %v2104 = vld [vmem:[#allocation7 + $0x1ac8] sm:$0xff]
    %v2105 = vld [vmem:[#allocation7 + $0x1ad0] sm:$0xff]
    %v2106 = vld [vmem:[#allocation7 + $0x1ad8] sm:$0xff]
    %v2107 = vld [vmem:[#allocation7 + $0x1ae0] sm:$0xff]
    %v2108 = vld [vmem:[#allocation7 + $0x1ae8] sm:$0xff]
    %v2109 = vld [vmem:[#allocation7 + $0x1af0] sm:$0xff]
    %v2110 = vld [vmem:[#allocation7 + $0x1af8] sm:$0xff]
    %v2111 = vld [vmem:[#allocation7 + $0x1b00] sm:$0xff]
    %v2112 = vld [vmem:[#allocation7 + $0x1b08] sm:$0xff]
    %v2113 = vld [vmem:[#allocation7 + $0x1b10] sm:$0xff]
    %v2114 = vld [vmem:[#allocation7 + $0x1b18] sm:$0xff]
    %v2115 = vld [vmem:[#allocation7 + $0x1b20] sm:$0xff]
    %v2116 = vld [vmem:[#allocation7 + $0x1b28] sm:$0xff]
    %v2117 = vld [vmem:[#allocation7 + $0x1b30] sm:$0xff]
    %v2118 = vld [vmem:[#allocation7 + $0x1b38] sm:$0xff]
    %v2119 = vld [vmem:[#allocation7 + $0x1b40] sm:$0xff]
    %v2120 = vld [vmem:[#allocation7 + $0x1b48] sm:$0xff]
    %v2121 = vld [vmem:[#allocation7 + $0x1b50] sm:$0xff]
    %v2122 = vld [vmem:[#allocation7 + $0x1b58] sm:$0xff]
    %v2123 = vld [vmem:[#allocation7 + $0x1b60] sm:$0xff]
    %v2124 = vld [vmem:[#allocation7 + $0x1b68] sm:$0xff]
    %v2125 = vld [vmem:[#allocation7 + $0x1b70] sm:$0xff]
    %v2126 = vld [vmem:[#allocation7 + $0x1b78] sm:$0xff]
    %v2127 = vld [vmem:[#allocation7 + $0x1b80] sm:$0xff]
    %v2128 = vld [vmem:[#allocation7 + $0x1b88] sm:$0xff]
    %v2129 = vld [vmem:[#allocation7 + $0x1b90] sm:$0xff]
    %v2130 = vld [vmem:[#allocation7 + $0x1b98] sm:$0xff]
    %v2131 = vld [vmem:[#allocation7 + $0x1ba0] sm:$0xff]
    %v2132 = vld [vmem:[#allocation7 + $0x1ba8] sm:$0xff]
    %v2133 = vld [vmem:[#allocation7 + $0x1bb0] sm:$0xff]
    %v2134 = vld [vmem:[#allocation7 + $0x1bb8] sm:$0xff]
    %v2135 = vld [vmem:[#allocation7 + $0x1bc0] sm:$0xff]
    %v2136 = vld [vmem:[#allocation7 + $0x1bc8] sm:$0xff]
    %v2137 = vld [vmem:[#allocation7 + $0x1bd0] sm:$0xff]
    %v2138 = vld [vmem:[#allocation7 + $0x1bd8] sm:$0xff]
    %v2139 = vld [vmem:[#allocation7 + $0x1be0] sm:$0xff]
    %v2140 = vld [vmem:[#allocation7 + $0x1be8] sm:$0xff]
    %v2141 = vld [vmem:[#allocation7 + $0x1bf0] sm:$0xff]
    %v2142 = vld [vmem:[#allocation7 + $0x1bf8] sm:$0xff]
    %v2143 = vld [vmem:[#allocation7 + $0x1c00] sm:$0xff]
    %v2144 = vld [vmem:[#allocation7 + $0x1c08] sm:$0xff]
    %v2145 = vld [vmem:[#allocation7 + $0x1c10] sm:$0xff]
    %v2146 = vld [vmem:[#allocation7 + $0x1c18] sm:$0xff]
    %v2147 = vld [vmem:[#allocation7 + $0x1c20] sm:$0xff]
    %v2148 = vld [vmem:[#allocation7 + $0x1c28] sm:$0xff]
    %v2149 = vld [vmem:[#allocation7 + $0x1c30] sm:$0xff]
    %v2150 = vld [vmem:[#allocation7 + $0x1c38] sm:$0xff]
    %v2151 = vld [vmem:[#allocation7 + $0x1c40] sm:$0xff]
    %v2152 = vld [vmem:[#allocation7 + $0x1c48] sm:$0xff]
    %v2153 = vld [vmem:[#allocation7 + $0x1c50] sm:$0xff]
    %v2154 = vld [vmem:[#allocation7 + $0x1c58] sm:$0xff]
    %v2155 = vld [vmem:[#allocation7 + $0x1c60] sm:$0xff]
    %v2156 = vld [vmem:[#allocation7 + $0x1c68] sm:$0xff]
    %v2157 = vld [vmem:[#allocation7 + $0x1c70] sm:$0xff]
    %v2158 = vld [vmem:[#allocation7 + $0x1c78] sm:$0xff]
    %v2159 = vld [vmem:[#allocation7 + $0x1c80] sm:$0xff]
    %v2160 = vld [vmem:[#allocation7 + $0x1c88] sm:$0xff]
    %v2161 = vld [vmem:[#allocation7 + $0x1c90] sm:$0xff]
    %v2162 = vld [vmem:[#allocation7 + $0x1c98] sm:$0xff]
    %v2163 = vld [vmem:[#allocation7 + $0x1ca0] sm:$0xff]
    %v2164 = vld [vmem:[#allocation7 + $0x1ca8] sm:$0xff]
    %v2165 = vld [vmem:[#allocation7 + $0x1cb0] sm:$0xff]
    %v2166 = vld [vmem:[#allocation7 + $0x1cb8] sm:$0xff]
    %v2167 = vld [vmem:[#allocation7 + $0x1cc0] sm:$0xff]
    %v2168 = vld [vmem:[#allocation7 + $0x1cc8] sm:$0xff]
    %v2169 = vld [vmem:[#allocation7 + $0x1cd0] sm:$0xff]
    %v2170 = vld [vmem:[#allocation7 + $0x1cd8] sm:$0xff]
    %v2171 = vld [vmem:[#allocation7 + $0x1ce0] sm:$0xff]
    %v2172 = vld [vmem:[#allocation7 + $0x1ce8] sm:$0xff]
    %v2173 = vld [vmem:[#allocation7 + $0x1cf0] sm:$0xff]
    %v2174 = vld [vmem:[#allocation7 + $0x1cf8] sm:$0xff]
    %v2175 = vld [vmem:[#allocation7 + $0x1d00] sm:$0xff]
    %v2176 = vld [vmem:[#allocation7 + $0x1d08] sm:$0xff]
    %v2177 = vld [vmem:[#allocation7 + $0x1d10] sm:$0xff]
    %v2178 = vld [vmem:[#allocation7 + $0x1d18] sm:$0xff]
    %v2179 = vld [vmem:[#allocation7 + $0x1d20] sm:$0xff]
    %v2180 = vld [vmem:[#allocation7 + $0x1d28] sm:$0xff]
    %v2181 = vld [vmem:[#allocation7 + $0x1d30] sm:$0xff]
    %v2182 = vld [vmem:[#allocation7 + $0x1d38] sm:$0xff]
    %v2183 = vld [vmem:[#allocation7 + $0x1d40] sm:$0xff]
    %v2184 = vld [vmem:[#allocation7 + $0x1d48] sm:$0xff]
    %v2185 = vld [vmem:[#allocation7 + $0x1d50] sm:$0xff]
    %v2186 = vld [vmem:[#allocation7 + $0x1d58] sm:$0xff]
    %v2187 = vld [vmem:[#allocation7 + $0x1d60] sm:$0xff]
    %v2188 = vld [vmem:[#allocation7 + $0x1d68] sm:$0xff]
    %v2189 = vld [vmem:[#allocation7 + $0x1d70] sm:$0xff]
    %v2190 = vld [vmem:[#allocation7 + $0x1d78] sm:$0xff]
    %v2191 = vld [vmem:[#allocation7 + $0x1d80] sm:$0xff]
    %v2192 = vld [vmem:[#allocation7 + $0x1d88] sm:$0xff]
    %v2193 = vld [vmem:[#allocation7 + $0x1d90] sm:$0xff]
    %v2194 = vld [vmem:[#allocation7 + $0x1d98] sm:$0xff]
    %v2195 = vld [vmem:[#allocation7 + $0x1da0] sm:$0xff]
    %v2196 = vld [vmem:[#allocation7 + $0x1da8] sm:$0xff]
    %v2197 = vld [vmem:[#allocation7 + $0x1db0] sm:$0xff]
    %v2198 = vld [vmem:[#allocation7 + $0x1db8] sm:$0xff]
    %v2199 = vld [vmem:[#allocation7 + $0x1dc0] sm:$0xff]
    %v2200 = vld [vmem:[#allocation7 + $0x1dc8] sm:$0xff]
    %v2201 = vld [vmem:[#allocation7 + $0x1dd0] sm:$0xff]
    %v2202 = vld [vmem:[#allocation7 + $0x1dd8] sm:$0xff]
    %v2203 = vld [vmem:[#allocation7 + $0x1de0] sm:$0xff]
    %v2204 = vld [vmem:[#allocation7 + $0x1de8] sm:$0xff]
    %v2205 = vld [vmem:[#allocation7 + $0x1df0] sm:$0xff]
    %v2206 = vld [vmem:[#allocation7 + $0x1df8] sm:$0xff]
    %v2207 = vld [vmem:[#allocation7 + $0x1e00] sm:$0xff]
    %v2208 = vld [vmem:[#allocation7 + $0x1e08] sm:$0xff]
    %v2209 = vld [vmem:[#allocation7 + $0x1e10] sm:$0xff]
    %v2210 = vld [vmem:[#allocation7 + $0x1e18] sm:$0xff]
    %v2211 = vld [vmem:[#allocation7 + $0x1e20] sm:$0xff]
    %v2212 = vld [vmem:[#allocation7 + $0x1e28] sm:$0xff]
    %v2213 = vld [vmem:[#allocation7 + $0x1e30] sm:$0xff]
    %v2214 = vld [vmem:[#allocation7 + $0x1e38] sm:$0xff]
    %v2215 = vld [vmem:[#allocation7 + $0x1e40] sm:$0xff]
    %v2216 = vld [vmem:[#allocation7 + $0x1e48] sm:$0xff]
    %v2217 = vld [vmem:[#allocation7 + $0x1e50] sm:$0xff]
    %v2218 = vld [vmem:[#allocation7 + $0x1e58] sm:$0xff]
    %v2219 = vld [vmem:[#allocation7 + $0x1e60] sm:$0xff]
    %v2220 = vld [vmem:[#allocation7 + $0x1e68] sm:$0xff]
    %v2221 = vld [vmem:[#allocation7 + $0x1e70] sm:$0xff]
    %v2222 = vld [vmem:[#allocation7 + $0x1e78] sm:$0xff]
    %v2223 = vld [vmem:[#allocation7 + $0x1e80] sm:$0xff]
    %v2224 = vld [vmem:[#allocation7 + $0x1e88] sm:$0xff]
    %v2225 = vld [vmem:[#allocation7 + $0x1e90] sm:$0xff]
    %v2226 = vld [vmem:[#allocation7 + $0x1e98] sm:$0xff]
    %v2227 = vld [vmem:[#allocation7 + $0x1ea0] sm:$0xff]
    %v2228 = vld [vmem:[#allocation7 + $0x1ea8] sm:$0xff]
    %v2229 = vld [vmem:[#allocation7 + $0x1eb0] sm:$0xff]
    %v2230 = vld [vmem:[#allocation7 + $0x1eb8] sm:$0xff]
    %v2231 = vld [vmem:[#allocation7 + $0x1ec0] sm:$0xff]
    %v2232 = vld [vmem:[#allocation7 + $0x1ec8] sm:$0xff]
    %v2233 = vld [vmem:[#allocation7 + $0x1ed0] sm:$0xff]
    %v2234 = vld [vmem:[#allocation7 + $0x1ed8] sm:$0xff]
    %v2235 = vld [vmem:[#allocation7 + $0x1ee0] sm:$0xff]
    %v2236 = vld [vmem:[#allocation7 + $0x1ee8] sm:$0xff]
    %v2237 = vld [vmem:[#allocation7 + $0x1ef0] sm:$0xff]
    %v2238 = vld [vmem:[#allocation7 + $0x1ef8] sm:$0xff]
    %v2239 = vld [vmem:[#allocation7 + $0x1f00] sm:$0xff]
    %v2240 = vld [vmem:[#allocation7 + $0x1f08] sm:$0xff]
    %v2241 = vld [vmem:[#allocation7 + $0x1f10] sm:$0xff]
    %v2242 = vld [vmem:[#allocation7 + $0x1f18] sm:$0xff]
    %v2243 = vld [vmem:[#allocation7 + $0x1f20] sm:$0xff]
    %v2244 = vld [vmem:[#allocation7 + $0x1f28] sm:$0xff]
    %v2245 = vld [vmem:[#allocation7 + $0x1f30] sm:$0xff]
    %v2246 = vld [vmem:[#allocation7 + $0x1f38] sm:$0xff]
    %v2247 = vld [vmem:[#allocation7 + $0x1f40] sm:$0xff]
    %v2248 = vld [vmem:[#allocation7 + $0x1f48] sm:$0xff]
    %v2249 = vld [vmem:[#allocation7 + $0x1f50] sm:$0xff]
    %v2250 = vld [vmem:[#allocation7 + $0x1f58] sm:$0xff]
    %v2251 = vld [vmem:[#allocation7 + $0x1f60] sm:$0xff]
    %v2252 = vld [vmem:[#allocation7 + $0x1f68] sm:$0xff]
    %v2253 = vld [vmem:[#allocation7 + $0x1f70] sm:$0xff]
    %v2254 = vld [vmem:[#allocation7 + $0x1f78] sm:$0xff]
    %v2255 = vld [vmem:[#allocation7 + $0x1f80] sm:$0xff]
    %v2256 = vld [vmem:[#allocation7 + $0x1f88] sm:$0xff]
    %v2257 = vld [vmem:[#allocation7 + $0x1f90] sm:$0xff]
    %v2258 = vld [vmem:[#allocation7 + $0x1f98] sm:$0xff]
    %v2259 = vld [vmem:[#allocation7 + $0x1fa0] sm:$0xff]
    %v2260 = vld [vmem:[#allocation7 + $0x1fa8] sm:$0xff]
    %v2261 = vld [vmem:[#allocation7 + $0x1fb0] sm:$0xff]
    %v2262 = vld [vmem:[#allocation7 + $0x1fb8] sm:$0xff]
    %v2263 = vld [vmem:[#allocation7 + $0x1fc0] sm:$0xff]
    %v2264 = vld [vmem:[#allocation7 + $0x1fc8] sm:$0xff]
    %v2265 = vld [vmem:[#allocation7 + $0x1fd0] sm:$0xff]
    %v2266 = vld [vmem:[#allocation7 + $0x1fd8] sm:$0xff]
    %v2267 = vld [vmem:[#allocation7 + $0x1fe0] sm:$0xff]
    %v2268 = vld [vmem:[#allocation7 + $0x1fe8] sm:$0xff]
    %v2269 = vld [vmem:[#allocation7 + $0x1ff0] sm:$0xff]
    %v2270 = vld [vmem:[#allocation7 + $0x1ff8] sm:$0xff]
    %v2271 = vld [vmem:[#allocation7 + $0x2000] sm:$0xff]
    %v2272 = vld [vmem:[#allocation7 + $0x2008] sm:$0xff]
    %v2273 = vld [vmem:[#allocation7 + $0x2010] sm:$0xff]
    %v2274 = vld [vmem:[#allocation7 + $0x2018] sm:$0xff]
    %v2275 = vld [vmem:[#allocation7 + $0x2020] sm:$0xff]
    %v2276 = vld [vmem:[#allocation7 + $0x2028] sm:$0xff]
    %v2277 = vld [vmem:[#allocation7 + $0x2030] sm:$0xff]
    %v2278 = vld [vmem:[#allocation7 + $0x2038] sm:$0xff]
    %v2279 = vld [vmem:[#allocation7 + $0x2040] sm:$0xff]
    %v2280 = vld [vmem:[#allocation7 + $0x2048] sm:$0xff]
    %v2281 = vld [vmem:[#allocation7 + $0x2050] sm:$0xff]
    %v2282 = vld [vmem:[#allocation7 + $0x2058] sm:$0xff]
    %v2283 = vld [vmem:[#allocation7 + $0x2060] sm:$0xff]
    %v2284 = vld [vmem:[#allocation7 + $0x2068] sm:$0xff]
    %v2285 = vld [vmem:[#allocation7 + $0x2070] sm:$0xff]
    %v2286 = vld [vmem:[#allocation7 + $0x2078] sm:$0xff]
    %v2287 = vld [vmem:[#allocation7 + $0x2080] sm:$0xff]
    %v2288 = vld [vmem:[#allocation7 + $0x2088] sm:$0xff]
    %v2289 = vld [vmem:[#allocation7 + $0x2090] sm:$0xff]
    %v2290 = vld [vmem:[#allocation7 + $0x2098] sm:$0xff]
    %v2291 = vld [vmem:[#allocation7 + $0x20a0] sm:$0xff]
    %v2292 = vld [vmem:[#allocation7 + $0x20a8] sm:$0xff]
    %v2293 = vld [vmem:[#allocation7 + $0x20b0] sm:$0xff]
    %v2294 = vld [vmem:[#allocation7 + $0x20b8] sm:$0xff]
    %v2295 = vld [vmem:[#allocation7 + $0x20c0] sm:$0xff]
    %v2296 = vld [vmem:[#allocation7 + $0x20c8] sm:$0xff]
    %v2297 = vld [vmem:[#allocation7 + $0x20d0] sm:$0xff]
    %v2298 = vld [vmem:[#allocation7 + $0x20d8] sm:$0xff]
    %v2299 = vld [vmem:[#allocation7 + $0x20e0] sm:$0xff]
    %v2300 = vld [vmem:[#allocation7 + $0x20e8] sm:$0xff]
    %v2301 = vld [vmem:[#allocation7 + $0x20f0] sm:$0xff]
    %v2302 = vld [vmem:[#allocation7 + $0x20f8] sm:$0xff]
    %v2303 = vld [vmem:[#allocation7 + $0x2100] sm:$0xff]
    %v2304 = vld [vmem:[#allocation7 + $0x2108] sm:$0xff]
    %v2305 = vld [vmem:[#allocation7 + $0x2110] sm:$0xff]
    %v2306 = vld [vmem:[#allocation7 + $0x2118] sm:$0xff]
    %v2307 = vld [vmem:[#allocation7 + $0x2120] sm:$0xff]
    %v2308 = vld [vmem:[#allocation7 + $0x2128] sm:$0xff]
    %v2309 = vld [vmem:[#allocation7 + $0x2130] sm:$0xff]
    %v2310 = vld [vmem:[#allocation7 + $0x2138] sm:$0xff]
    %v2311 = vld [vmem:[#allocation7 + $0x2140] sm:$0xff]
    %v2312 = vld [vmem:[#allocation7 + $0x2148] sm:$0xff]
    %v2313 = vld [vmem:[#allocation7 + $0x2150] sm:$0xff]
    %v2314 = vld [vmem:[#allocation7 + $0x2158] sm:$0xff]
    %v2315 = vld [vmem:[#allocation7 + $0x2160] sm:$0xff]
    %v2316 = vld [vmem:[#allocation7 + $0x2168] sm:$0xff]
    %v2317 = vld [vmem:[#allocation7 + $0x2170] sm:$0xff]
    %v2318 = vld [vmem:[#allocation7 + $0x2178] sm:$0xff]
    %v2319 = vld [vmem:[#allocation7 + $0x2180] sm:$0xff]
    %v2320 = vld [vmem:[#allocation7 + $0x2188] sm:$0xff]
    %v2321 = vld [vmem:[#allocation7 + $0x2190] sm:$0xff]
    %v2322 = vld [vmem:[#allocation7 + $0x2198] sm:$0xff]
    %v2323 = vld [vmem:[#allocation7 + $0x21a0] sm:$0xff]
    %v2324 = vld [vmem:[#allocation7 + $0x21a8] sm:$0xff]
    %v2325 = vld [vmem:[#allocation7 + $0x21b0] sm:$0xff]
    %v2326 = vld [vmem:[#allocation7 + $0x21b8] sm:$0xff]
    %v2327 = vld [vmem:[#allocation7 + $0x21c0] sm:$0xff]
    %v2328 = vld [vmem:[#allocation7 + $0x21c8] sm:$0xff]
    %v2329 = vld [vmem:[#allocation7 + $0x21d0] sm:$0xff]
    %v2330 = vld [vmem:[#allocation7 + $0x21d8] sm:$0xff]
    %v2331 = vld [vmem:[#allocation7 + $0x21e0] sm:$0xff]
    %v2332 = vld [vmem:[#allocation7 + $0x21e8] sm:$0xff]
    %v2333 = vld [vmem:[#allocation7 + $0x21f0] sm:$0xff]
    %v2334 = vld [vmem:[#allocation7 + $0x21f8] sm:$0xff]
    %v2335 = vld [vmem:[#allocation7 + $0x2200] sm:$0xff]
    %v2336 = vld [vmem:[#allocation7 + $0x2208] sm:$0xff]
    %v2337 = vld [vmem:[#allocation7 + $0x2210] sm:$0xff]
    %v2338 = vld [vmem:[#allocation7 + $0x2218] sm:$0xff]
    %v2339 = vld [vmem:[#allocation7 + $0x2220] sm:$0xff]
    %v2340 = vld [vmem:[#allocation7 + $0x2228] sm:$0xff]
    %v2341 = vld [vmem:[#allocation7 + $0x2230] sm:$0xff]
    %v2342 = vld [vmem:[#allocation7 + $0x2238] sm:$0xff]
    %v2343 = vld [vmem:[#allocation7 + $0x2240] sm:$0xff]
    %v2344 = vld [vmem:[#allocation7 + $0x2248] sm:$0xff]
    %v2345 = vld [vmem:[#allocation7 + $0x2250] sm:$0xff]
    %v2346 = vld [vmem:[#allocation7 + $0x2258] sm:$0xff]
    %v2347 = vld [vmem:[#allocation7 + $0x2260] sm:$0xff]
    %v2348 = vld [vmem:[#allocation7 + $0x2268] sm:$0xff]
    %v2349 = vld [vmem:[#allocation7 + $0x2270] sm:$0xff]
    %v2350 = vld [vmem:[#allocation7 + $0x2278] sm:$0xff]
    %v2351 = vld [vmem:[#allocation7 + $0x2280] sm:$0xff]
    %v2352 = vld [vmem:[#allocation7 + $0x2288] sm:$0xff]
    %v2353 = vld [vmem:[#allocation7 + $0x2290] sm:$0xff]
    %v2354 = vld [vmem:[#allocation7 + $0x2298] sm:$0xff]
    %v2355 = vld [vmem:[#allocation7 + $0x22a0] sm:$0xff]
    %v2356 = vld [vmem:[#allocation7 + $0x22a8] sm:$0xff]
    %v2357 = vld [vmem:[#allocation7 + $0x22b0] sm:$0xff]
    %v2358 = vld [vmem:[#allocation7 + $0x22b8] sm:$0xff]
    %v2359 = vld [vmem:[#allocation7 + $0x22c0] sm:$0xff]
    %v2360 = vld [vmem:[#allocation7 + $0x22c8] sm:$0xff]
    %v2361 = vld [vmem:[#allocation7 + $0x22d0] sm:$0xff]
    %v2362 = vld [vmem:[#allocation7 + $0x22d8] sm:$0xff]
    %v2363 = vld [vmem:[#allocation7 + $0x22e0] sm:$0xff]
    %v2364 = vld [vmem:[#allocation7 + $0x22e8] sm:$0xff]
    %v2365 = vld [vmem:[#allocation7 + $0x22f0] sm:$0xff]
    %v2366 = vld [vmem:[#allocation7 + $0x22f8] sm:$0xff]
    %v2367 = vld [vmem:[#allocation7 + $0x2300] sm:$0xff]
    %v2368 = vld [vmem:[#allocation7 + $0x2308] sm:$0xff]
    %v2369 = vld [vmem:[#allocation7 + $0x2310] sm:$0xff]
    %v2370 = vld [vmem:[#allocation7 + $0x2318] sm:$0xff]
    %v2371 = vld [vmem:[#allocation7 + $0x2320] sm:$0xff]
    %v2372 = vld [vmem:[#allocation7 + $0x2328] sm:$0xff]
    %v2373 = vld [vmem:[#allocation7 + $0x2330] sm:$0xff]
    %v2374 = vld [vmem:[#allocation7 + $0x2338] sm:$0xff]
    %v2375 = vld [vmem:[#allocation7 + $0x2340] sm:$0xff]
    %v2376 = vld [vmem:[#allocation7 + $0x2348] sm:$0xff]
    %v2377 = vld [vmem:[#allocation7 + $0x2350] sm:$0xff]
    %v2378 = vld [vmem:[#allocation7 + $0x2358] sm:$0xff]
    %v2379 = vld [vmem:[#allocation7 + $0x2360] sm:$0xff]
    %v2380 = vld [vmem:[#allocation7 + $0x2368] sm:$0xff]
    %v2381 = vld [vmem:[#allocation7 + $0x2370] sm:$0xff]
    %v2382 = vld [vmem:[#allocation7 + $0x2378] sm:$0xff]
    %v2383 = vld [vmem:[#allocation7 + $0x2380] sm:$0xff]
    %v2384 = vld [vmem:[#allocation7 + $0x2388] sm:$0xff]
    %v2385 = vld [vmem:[#allocation7 + $0x2390] sm:$0xff]
    %v2386 = vld [vmem:[#allocation7 + $0x2398] sm:$0xff]
    %v2387 = vld [vmem:[#allocation7 + $0x23a0] sm:$0xff]
    %v2388 = vld [vmem:[#allocation7 + $0x23a8] sm:$0xff]
    %v2389 = vld [vmem:[#allocation7 + $0x23b0] sm:$0xff]
    %v2390 = vld [vmem:[#allocation7 + $0x23b8] sm:$0xff]
    %v2391 = vld [vmem:[#allocation7 + $0x23c0] sm:$0xff]
    %v2392 = vld [vmem:[#allocation7 + $0x23c8] sm:$0xff]
    %v2393 = vld [vmem:[#allocation7 + $0x23d0] sm:$0xff]
    %v2394 = vld [vmem:[#allocation7 + $0x23d8] sm:$0xff]
    %v2395 = vld [vmem:[#allocation7 + $0x23e0] sm:$0xff]
    %v2396 = vld [vmem:[#allocation7 + $0x23e8] sm:$0xff]
    %v2397 = vld [vmem:[#allocation7 + $0x23f0] sm:$0xff]
    %v2398 = vld [vmem:[#allocation7 + $0x23f8] sm:$0xff]
    %v2399 = vld [vmem:[#allocation7 + $0x2400] sm:$0xff]
    %v2400 = vld [vmem:[#allocation7 + $0x2408] sm:$0xff]
    %v2401 = vld [vmem:[#allocation7 + $0x2410] sm:$0xff]
    %v2402 = vld [vmem:[#allocation7 + $0x2418] sm:$0xff]
    %v2403 = vld [vmem:[#allocation7 + $0x2420] sm:$0xff]
    %v2404 = vld [vmem:[#allocation7 + $0x2428] sm:$0xff]
    %v2405 = vld [vmem:[#allocation7 + $0x2430] sm:$0xff]
    %v2406 = vld [vmem:[#allocation7 + $0x2438] sm:$0xff]
    %v2407 = vld [vmem:[#allocation7 + $0x2440] sm:$0xff]
    %v2408 = vld [vmem:[#allocation7 + $0x2448] sm:$0xff]
    %v2409 = vld [vmem:[#allocation7 + $0x2450] sm:$0xff]
    %v2410 = vld [vmem:[#allocation7 + $0x2458] sm:$0xff]
    %v2411 = vld [vmem:[#allocation7 + $0x2460] sm:$0xff]
    %v2412 = vld [vmem:[#allocation7 + $0x2468] sm:$0xff]
    %v2413 = vld [vmem:[#allocation7 + $0x2470] sm:$0xff]
    %v2414 = vld [vmem:[#allocation7 + $0x2478] sm:$0xff]
    %v2415 = vld [vmem:[#allocation7 + $0x2480] sm:$0xff]
    %v2416 = vld [vmem:[#allocation7 + $0x2488] sm:$0xff]
    %v2417 = vld [vmem:[#allocation7 + $0x2490] sm:$0xff]
    %v2418 = vld [vmem:[#allocation7 + $0x2498] sm:$0xff]
    %v2419 = vld [vmem:[#allocation7 + $0x24a0] sm:$0xff]
    %v2420 = vld [vmem:[#allocation7 + $0x24a8] sm:$0xff]
    %v2421 = vld [vmem:[#allocation7 + $0x24b0] sm:$0xff]
    %v2422 = vld [vmem:[#allocation7 + $0x24b8] sm:$0xff]
    %v2423 = vld [vmem:[#allocation7 + $0x24c0] sm:$0xff]
    %v2424 = vld [vmem:[#allocation7 + $0x24c8] sm:$0xff]
    %v2425 = vld [vmem:[#allocation7 + $0x24d0] sm:$0xff]
    %v2426 = vld [vmem:[#allocation7 + $0x24d8] sm:$0xff]
    %v2427 = vld [vmem:[#allocation7 + $0x24e0] sm:$0xff]
    %v2428 = vld [vmem:[#allocation7 + $0x24e8] sm:$0xff]
    %v2429 = vld [vmem:[#allocation7 + $0x24f0] sm:$0xff]
    %v2430 = vld [vmem:[#allocation7 + $0x24f8] sm:$0xff]
    %v2431 = vld [vmem:[#allocation7 + $0x2500] sm:$0xff]
    %v2432 = vld [vmem:[#allocation7 + $0x2508] sm:$0xff]
    %v2433 = vld [vmem:[#allocation7 + $0x2510] sm:$0xff]
    %v2434 = vld [vmem:[#allocation7 + $0x2518] sm:$0xff]
    %v2435 = vld [vmem:[#allocation7 + $0x2520] sm:$0xff]
    %v2436 = vld [vmem:[#allocation7 + $0x2528] sm:$0xff]
    %v2437 = vld [vmem:[#allocation7 + $0x2530] sm:$0xff]
    %v2438 = vld [vmem:[#allocation7 + $0x2538] sm:$0xff]
    %v2439 = vld [vmem:[#allocation7 + $0x2540] sm:$0xff]
    %v2440 = vld [vmem:[#allocation7 + $0x2548] sm:$0xff]
    %v2441 = vld [vmem:[#allocation7 + $0x2550] sm:$0xff]
    %v2442 = vld [vmem:[#allocation7 + $0x2558] sm:$0xff]
    %v2443 = vld [vmem:[#allocation7 + $0x2560] sm:$0xff]
    %v2444 = vld [vmem:[#allocation7 + $0x2568] sm:$0xff]
    %v2445 = vld [vmem:[#allocation7 + $0x2570] sm:$0xff]
    %v2446 = vld [vmem:[#allocation7 + $0x2578] sm:$0xff]
    %v2447 = vld [vmem:[#allocation7 + $0x2580] sm:$0xff]
    %v2448 = vld [vmem:[#allocation7 + $0x2588] sm:$0xff]
    %v2449 = vld [vmem:[#allocation7 + $0x2590] sm:$0xff]
    %v2450 = vld [vmem:[#allocation7 + $0x2598] sm:$0xff]
    %v2451 = vld [vmem:[#allocation7 + $0x25a0] sm:$0xff]
    %v2452 = vld [vmem:[#allocation7 + $0x25a8] sm:$0xff]
    %v2453 = vld [vmem:[#allocation7 + $0x25b0] sm:$0xff]
    %v2454 = vld [vmem:[#allocation7 + $0x25b8] sm:$0xff]
    %v2455 = vld [vmem:[#allocation7 + $0x25c0] sm:$0xff]
    %v2456 = vld [vmem:[#allocation7 + $0x25c8] sm:$0xff]
    %v2457 = vld [vmem:[#allocation7 + $0x25d0] sm:$0xff]
    %v2458 = vld [vmem:[#allocation7 + $0x25d8] sm:$0xff]
    %v2459 = vld [vmem:[#allocation7 + $0x25e0] sm:$0xff]
    %v2460 = vld [vmem:[#allocation7 + $0x25e8] sm:$0xff]
    %v2461 = vld [vmem:[#allocation7 + $0x25f0] sm:$0xff]
    %v2462 = vld [vmem:[#allocation7 + $0x25f8] sm:$0xff]
    %v2463 = vld [vmem:[#allocation7 + $0x2600] sm:$0xff]
    %v2464 = vld [vmem:[#allocation7 + $0x2608] sm:$0xff]
    %v2465 = vld [vmem:[#allocation7 + $0x2610] sm:$0xff]
    %v2466 = vld [vmem:[#allocation7 + $0x2618] sm:$0xff]
    %v2467 = vld [vmem:[#allocation7 + $0x2620] sm:$0xff]
    %v2468 = vld [vmem:[#allocation7 + $0x2628] sm:$0xff]
    %v2469 = vld [vmem:[#allocation7 + $0x2630] sm:$0xff]
    %v2470 = vld [vmem:[#allocation7 + $0x2638] sm:$0xff]
    %v2471 = vld [vmem:[#allocation7 + $0x2640] sm:$0xff]
    %v2472 = vld [vmem:[#allocation7 + $0x2648] sm:$0xff]
    %v2473 = vld [vmem:[#allocation7 + $0x2650] sm:$0xff]
    %v2474 = vld [vmem:[#allocation7 + $0x2658] sm:$0xff]
    %v2475 = vld [vmem:[#allocation7 + $0x2660] sm:$0xff]
    %v2476 = vld [vmem:[#allocation7 + $0x2668] sm:$0xff]
    %v2477 = vld [vmem:[#allocation7 + $0x2670] sm:$0xff]
    %v2478 = vld [vmem:[#allocation7 + $0x2678] sm:$0xff]
    %v2479 = vld [vmem:[#allocation7 + $0x2680] sm:$0xff]
    %v2480 = vld [vmem:[#allocation7 + $0x2688] sm:$0xff]
    %v2481 = vld [vmem:[#allocation7 + $0x2690] sm:$0xff]
    %v2482 = vld [vmem:[#allocation7 + $0x2698] sm:$0xff]
    %v2483 = vld [vmem:[#allocation7 + $0x26a0] sm:$0xff]
    %v2484 = vld [vmem:[#allocation7 + $0x26a8] sm:$0xff]
    %v2485 = vld [vmem:[#allocation7 + $0x26b0] sm:$0xff]
    %v2486 = vld [vmem:[#allocation7 + $0x26b8] sm:$0xff]
    %v2487 = vld [vmem:[#allocation7 + $0x26c0] sm:$0xff]
    %v2488 = vld [vmem:[#allocation7 + $0x26c8] sm:$0xff]
    %v2489 = vld [vmem:[#allocation7 + $0x26d0] sm:$0xff]
    %v2490 = vld [vmem:[#allocation7 + $0x26d8] sm:$0xff]
    %v2491 = vld [vmem:[#allocation7 + $0x26e0] sm:$0xff]
    %v2492 = vld [vmem:[#allocation7 + $0x26e8] sm:$0xff]
    %v2493 = vld [vmem:[#allocation7 + $0x26f0] sm:$0xff]
    %v2494 = vld [vmem:[#allocation7 + $0x26f8] sm:$0xff]
    %v2495 = vld [vmem:[#allocation7 + $0x2700] sm:$0xff]
    %v2496 = vld [vmem:[#allocation7 + $0x2708] sm:$0xff]
    %v2497 = vld [vmem:[#allocation7 + $0x2710] sm:$0xff]
    %v2498 = vld [vmem:[#allocation7 + $0x2718] sm:$0xff]
    %v2499 = vld [vmem:[#allocation7 + $0x2720] sm:$0xff]
    %v2500 = vld [vmem:[#allocation7 + $0x2728] sm:$0xff]
    %v2501 = vld [vmem:[#allocation7 + $0x2730] sm:$0xff]
    %v2502 = vld [vmem:[#allocation7 + $0x2738] sm:$0xff]
    %v2503 = vld [vmem:[#allocation7 + $0x2740] sm:$0xff]
    %v2504 = vld [vmem:[#allocation7 + $0x2748] sm:$0xff]
    %v2505 = vld [vmem:[#allocation7 + $0x2750] sm:$0xff]
    %v2506 = vld [vmem:[#allocation7 + $0x2758] sm:$0xff]
    %v2507 = vld [vmem:[#allocation7 + $0x2760] sm:$0xff]
    %v2508 = vld [vmem:[#allocation7 + $0x2768] sm:$0xff]
    %v2509 = vld [vmem:[#allocation7 + $0x2770] sm:$0xff]
    %v2510 = vld [vmem:[#allocation7 + $0x2778] sm:$0xff]
    %v2511 = vld [vmem:[#allocation7 + $0x2780] sm:$0xff]
    %v2512 = vld [vmem:[#allocation7 + $0x2788] sm:$0xff]
    %v2513 = vld [vmem:[#allocation7 + $0x2790] sm:$0xff]
    %v2514 = vld [vmem:[#allocation7 + $0x2798] sm:$0xff]
    %v2515 = vld [vmem:[#allocation7 + $0x27a0] sm:$0xff]
    %v2516 = vld [vmem:[#allocation7 + $0x27a8] sm:$0xff]
    %v2517 = vld [vmem:[#allocation7 + $0x27b0] sm:$0xff]
    %v2518 = vld [vmem:[#allocation7 + $0x27b8] sm:$0xff]
    %v2519 = vld [vmem:[#allocation7 + $0x27c0] sm:$0xff]
    %v2520 = vld [vmem:[#allocation7 + $0x27c8] sm:$0xff]
    %v2521 = vld [vmem:[#allocation7 + $0x27d0] sm:$0xff]
    %v2522 = vld [vmem:[#allocation7 + $0x27d8] sm:$0xff]
    %v2523 = vld [vmem:[#allocation7 + $0x27e0] sm:$0xff]
    %v2524 = vld [vmem:[#allocation7 + $0x27e8] sm:$0xff]
    %v2525 = vld [vmem:[#allocation7 + $0x27f0] sm:$0xff]
    %v2526 = vld [vmem:[#allocation7 + $0x27f8] sm:$0xff]
    %v2527 = vld [vmem:[#allocation7 + $0x2800] sm:$0xff]
    %v2528 = vld [vmem:[#allocation7 + $0x2808] sm:$0xff]
    %v2529 = vld [vmem:[#allocation7 + $0x2810] sm:$0xff]
    %v2530 = vld [vmem:[#allocation7 + $0x2818] sm:$0xff]
    %v2531 = vld [vmem:[#allocation7 + $0x2820] sm:$0xff]
    %v2532 = vld [vmem:[#allocation7 + $0x2828] sm:$0xff]
    %v2533 = vld [vmem:[#allocation7 + $0x2830] sm:$0xff]
    %v2534 = vld [vmem:[#allocation7 + $0x2838] sm:$0xff]
    %v2535 = vld [vmem:[#allocation7 + $0x2840] sm:$0xff]
    %v2536 = vld [vmem:[#allocation7 + $0x2848] sm:$0xff]
    %v2537 = vld [vmem:[#allocation7 + $0x2850] sm:$0xff]
    %v2538 = vld [vmem:[#allocation7 + $0x2858] sm:$0xff]
    %v2539 = vld [vmem:[#allocation7 + $0x2860] sm:$0xff]
    %v2540 = vld [vmem:[#allocation7 + $0x2868] sm:$0xff]
    %v2541 = vld [vmem:[#allocation7 + $0x2870] sm:$0xff]
    %v2542 = vld [vmem:[#allocation7 + $0x2878] sm:$0xff]
    %v2543 = vld [vmem:[#allocation7 + $0x2880] sm:$0xff]
    %v2544 = vld [vmem:[#allocation7 + $0x2888] sm:$0xff]
    %v2545 = vld [vmem:[#allocation7 + $0x2890] sm:$0xff]
    %v2546 = vld [vmem:[#allocation7 + $0x2898] sm:$0xff]
    %v2547 = vld [vmem:[#allocation7 + $0x28a0] sm:$0xff]
    %v2548 = vld [vmem:[#allocation7 + $0x28a8] sm:$0xff]
    %v2549 = vld [vmem:[#allocation7 + $0x28b0] sm:$0xff]
    %v2550 = vld [vmem:[#allocation7 + $0x28b8] sm:$0xff]
    %v2551 = vld [vmem:[#allocation7 + $0x28c0] sm:$0xff]
    %v2552 = vld [vmem:[#allocation7 + $0x28c8] sm:$0xff]
    %v2553 = vld [vmem:[#allocation7 + $0x28d0] sm:$0xff]
    %v2554 = vld [vmem:[#allocation7 + $0x28d8] sm:$0xff]
    %v2555 = vld [vmem:[#allocation7 + $0x28e0] sm:$0xff]
    %v2556 = vld [vmem:[#allocation7 + $0x28e8] sm:$0xff]
    %v2557 = vld [vmem:[#allocation7 + $0x28f0] sm:$0xff]
    %v2558 = vld [vmem:[#allocation7 + $0x28f8] sm:$0xff]
    %v2559 = vld [vmem:[#allocation7 + $0x2900] sm:$0xff]
    %v2560 = vld [vmem:[#allocation7 + $0x2908] sm:$0xff]
    %v2561 = vld [vmem:[#allocation7 + $0x2910] sm:$0xff]
    %v2562 = vld [vmem:[#allocation7 + $0x2918] sm:$0xff]
    %v2563 = vld [vmem:[#allocation7 + $0x2920] sm:$0xff]
    %v2564 = vld [vmem:[#allocation7 + $0x2928] sm:$0xff]
    %v2565 = vld [vmem:[#allocation7 + $0x2930] sm:$0xff]
    %v2566 = vld [vmem:[#allocation7 + $0x2938] sm:$0xff]
    %v2567 = vld [vmem:[#allocation7 + $0x2940] sm:$0xff]
    %v2568 = vld [vmem:[#allocation7 + $0x2948] sm:$0xff]
    %v2569 = vld [vmem:[#allocation7 + $0x2950] sm:$0xff]
    %v2570 = vld [vmem:[#allocation7 + $0x2958] sm:$0xff]
    %v2571 = vld [vmem:[#allocation7 + $0x2960] sm:$0xff]
    %v2572 = vld [vmem:[#allocation7 + $0x2968] sm:$0xff]
    %v2573 = vld [vmem:[#allocation7 + $0x2970] sm:$0xff]
    %v2574 = vld [vmem:[#allocation7 + $0x2978] sm:$0xff]
    %v2575 = vld [vmem:[#allocation7 + $0x2980] sm:$0xff]
    %v2576 = vld [vmem:[#allocation7 + $0x2988] sm:$0xff]
    %v2577 = vld [vmem:[#allocation7 + $0x2990] sm:$0xff]
    %v2578 = vld [vmem:[#allocation7 + $0x2998] sm:$0xff]
    %v2579 = vld [vmem:[#allocation7 + $0x29a0] sm:$0xff]
    %v2580 = vld [vmem:[#allocation7 + $0x29a8] sm:$0xff]
    %v2581 = vld [vmem:[#allocation7 + $0x29b0] sm:$0xff]
    %v2582 = vld [vmem:[#allocation7 + $0x29b8] sm:$0xff]
    %v2583 = vld [vmem:[#allocation7 + $0x29c0] sm:$0xff]
    %v2584 = vld [vmem:[#allocation7 + $0x29c8] sm:$0xff]
    %v2585 = vld [vmem:[#allocation7 + $0x29d0] sm:$0xff]
    %v2586 = vld [vmem:[#allocation7 + $0x29d8] sm:$0xff]
    %v2587 = vld [vmem:[#allocation7 + $0x29e0] sm:$0xff]
    %v2588 = vld [vmem:[#allocation7 + $0x29e8] sm:$0xff]
    %v2589 = vld [vmem:[#allocation7 + $0x29f0] sm:$0xff]
    %v2590 = vld [vmem:[#allocation7 + $0x29f8] sm:$0xff]
    %v2591 = vld [vmem:[#allocation7 + $0x2a00] sm:$0xff]
    %v2592 = vld [vmem:[#allocation7 + $0x2a08] sm:$0xff]
    %v2593 = vld [vmem:[#allocation7 + $0x2a10] sm:$0xff]
    %v2594 = vld [vmem:[#allocation7 + $0x2a18] sm:$0xff]
    %v2595 = vld [vmem:[#allocation7 + $0x2a20] sm:$0xff]
    %v2596 = vld [vmem:[#allocation7 + $0x2a28] sm:$0xff]
    %v2597 = vld [vmem:[#allocation7 + $0x2a30] sm:$0xff]
    %v2598 = vld [vmem:[#allocation7 + $0x2a38] sm:$0xff]
    %v2599 = vld [vmem:[#allocation7 + $0x2a40] sm:$0xff]
    %v2600 = vld [vmem:[#allocation7 + $0x2a48] sm:$0xff]
    %v2601 = vld [vmem:[#allocation7 + $0x2a50] sm:$0xff]
    %v2602 = vld [vmem:[#allocation7 + $0x2a58] sm:$0xff]
    %v2603 = vld [vmem:[#allocation7 + $0x2a60] sm:$0xff]
    %v2604 = vld [vmem:[#allocation7 + $0x2a68] sm:$0xff]
    %v2605 = vld [vmem:[#allocation7 + $0x2a70] sm:$0xff]
    %v2606 = vld [vmem:[#allocation7 + $0x2a78] sm:$0xff]
    %v2607 = vld [vmem:[#allocation7 + $0x2a80] sm:$0xff]
    %v2608 = vld [vmem:[#allocation7 + $0x2a88] sm:$0xff]
    %v2609 = vld [vmem:[#allocation7 + $0x2a90] sm:$0xff]
    %v2610 = vld [vmem:[#allocation7 + $0x2a98] sm:$0xff]
    %v2611 = vld [vmem:[#allocation7 + $0x2aa0] sm:$0xff]
    %v2612 = vld [vmem:[#allocation7 + $0x2aa8] sm:$0xff]
    %v2613 = vld [vmem:[#allocation7 + $0x2ab0] sm:$0xff]
    %v2614 = vld [vmem:[#allocation7 + $0x2ab8] sm:$0xff]
    %v2615 = vld [vmem:[#allocation7 + $0x2ac0] sm:$0xff]
    %v2616 = vld [vmem:[#allocation7 + $0x2ac8] sm:$0xff]
    %v2617 = vld [vmem:[#allocation7 + $0x2ad0] sm:$0xff]
    %v2618 = vld [vmem:[#allocation7 + $0x2ad8] sm:$0xff]
    %v2619 = vld [vmem:[#allocation7 + $0x2ae0] sm:$0xff]
    %v2620 = vld [vmem:[#allocation7 + $0x2ae8] sm:$0xff]
    %v2621 = vld [vmem:[#allocation7 + $0x2af0] sm:$0xff]
    %v2622 = vld [vmem:[#allocation7 + $0x2af8] sm:$0xff]
    %v2623 = vld [vmem:[#allocation7 + $0x2b00] sm:$0xff]
    %v2624 = vld [vmem:[#allocation7 + $0x2b08] sm:$0xff]
    %v2625 = vld [vmem:[#allocation7 + $0x2b10] sm:$0xff]
    %v2626 = vld [vmem:[#allocation7 + $0x2b18] sm:$0xff]
    %v2627 = vld [vmem:[#allocation7 + $0x2b20] sm:$0xff]
    %v2628 = vld [vmem:[#allocation7 + $0x2b28] sm:$0xff]
    %v2629 = vld [vmem:[#allocation7 + $0x2b30] sm:$0xff]
    %v2630 = vld [vmem:[#allocation7 + $0x2b38] sm:$0xff]
    %v2631 = vld [vmem:[#allocation7 + $0x2b40] sm:$0xff]
    %v2632 = vld [vmem:[#allocation7 + $0x2b48] sm:$0xff]
    %v2633 = vld [vmem:[#allocation7 + $0x2b50] sm:$0xff]
    %v2634 = vld [vmem:[#allocation7 + $0x2b58] sm:$0xff]
    %v2635 = vld [vmem:[#allocation7 + $0x2b60] sm:$0xff]
    %v2636 = vld [vmem:[#allocation7 + $0x2b68] sm:$0xff]
    %v2637 = vld [vmem:[#allocation7 + $0x2b70] sm:$0xff]
    %v2638 = vld [vmem:[#allocation7 + $0x2b78] sm:$0xff]
    %v2639 = vld [vmem:[#allocation7 + $0x2b80] sm:$0xff]
    %v2640 = vld [vmem:[#allocation7 + $0x2b88] sm:$0xff]
    %v2641 = vld [vmem:[#allocation7 + $0x2b90] sm:$0xff]
    %v2642 = vld [vmem:[#allocation7 + $0x2b98] sm:$0xff]
    %v2643 = vld [vmem:[#allocation7 + $0x2ba0] sm:$0xff]
    %v2644 = vld [vmem:[#allocation7 + $0x2ba8] sm:$0xff]
    %v2645 = vld [vmem:[#allocation7 + $0x2bb0] sm:$0xff]
    %v2646 = vld [vmem:[#allocation7 + $0x2bb8] sm:$0xff]
    %v2647 = vld [vmem:[#allocation7 + $0x2bc0] sm:$0xff]
    %v2648 = vld [vmem:[#allocation7 + $0x2bc8] sm:$0xff]
    %v2649 = vld [vmem:[#allocation7 + $0x2bd0] sm:$0xff]
    %v2650 = vld [vmem:[#allocation7 + $0x2bd8] sm:$0xff]
    %v2651 = vld [vmem:[#allocation7 + $0x2be0] sm:$0xff]
    %v2652 = vld [vmem:[#allocation7 + $0x2be8] sm:$0xff]
    %v2653 = vld [vmem:[#allocation7 + $0x2bf0] sm:$0xff]
    %v2654 = vld [vmem:[#allocation7 + $0x2bf8] sm:$0xff]
    %v2655 = vld [vmem:[#allocation7 + $0x2c00] sm:$0xff]
    %v2656 = vld [vmem:[#allocation7 + $0x2c08] sm:$0xff]
    %v2657 = vld [vmem:[#allocation7 + $0x2c10] sm:$0xff]
    %v2658 = vld [vmem:[#allocation7 + $0x2c18] sm:$0xff]
    %v2659 = vld [vmem:[#allocation7 + $0x2c20] sm:$0xff]
    %v2660 = vld [vmem:[#allocation7 + $0x2c28] sm:$0xff]
    %v2661 = vld [vmem:[#allocation7 + $0x2c30] sm:$0xff]
    %v2662 = vld [vmem:[#allocation7 + $0x2c38] sm:$0xff]
    %v2663 = vld [vmem:[#allocation7 + $0x2c40] sm:$0xff]
    %v2664 = vld [vmem:[#allocation7 + $0x2c48] sm:$0xff]
    %v2665 = vld [vmem:[#allocation7 + $0x2c50] sm:$0xff]
    %v2666 = vld [vmem:[#allocation7 + $0x2c58] sm:$0xff]
    %v2667 = vld [vmem:[#allocation7 + $0x2c60] sm:$0xff]
    %v2668 = vld [vmem:[#allocation7 + $0x2c68] sm:$0xff]
    %v2669 = vld [vmem:[#allocation7 + $0x2c70] sm:$0xff]
    %v2670 = vld [vmem:[#allocation7 + $0x2c78] sm:$0xff]
    %v2671 = vld [vmem:[#allocation7 + $0x2c80] sm:$0xff]
    %v2672 = vld [vmem:[#allocation7 + $0x2c88] sm:$0xff]
    %v2673 = vld [vmem:[#allocation7 + $0x2c90] sm:$0xff]
    %v2674 = vld [vmem:[#allocation7 + $0x2c98] sm:$0xff]
    %v2675 = vld [vmem:[#allocation7 + $0x2ca0] sm:$0xff]
    %v2676 = vld [vmem:[#allocation7 + $0x2ca8] sm:$0xff]
    %v2677 = vld [vmem:[#allocation7 + $0x2cb0] sm:$0xff]
    %v2678 = vld [vmem:[#allocation7 + $0x2cb8] sm:$0xff]
    %v2679 = vld [vmem:[#allocation7 + $0x2cc0] sm:$0xff]
    %v2680 = vld [vmem:[#allocation7 + $0x2cc8] sm:$0xff]
    %v2681 = vld [vmem:[#allocation7 + $0x2cd0] sm:$0xff]
    %v2682 = vld [vmem:[#allocation7 + $0x2cd8] sm:$0xff]
    %v2683 = vld [vmem:[#allocation7 + $0x2ce0] sm:$0xff]
    %v2684 = vld [vmem:[#allocation7 + $0x2ce8] sm:$0xff]
    %v2685 = vld [vmem:[#allocation7 + $0x2cf0] sm:$0xff]
    %v2686 = vld [vmem:[#allocation7 + $0x2cf8] sm:$0xff]
    %v2687 = vld [vmem:[#allocation7 + $0x2d00] sm:$0xff]
    %v2688 = vld [vmem:[#allocation7 + $0x2d08] sm:$0xff]
    %v2689 = vld [vmem:[#allocation7 + $0x2d10] sm:$0xff]
    %v2690 = vld [vmem:[#allocation7 + $0x2d18] sm:$0xff]
    %v2691 = vld [vmem:[#allocation7 + $0x2d20] sm:$0xff]
    %v2692 = vld [vmem:[#allocation7 + $0x2d28] sm:$0xff]
    %v2693 = vld [vmem:[#allocation7 + $0x2d30] sm:$0xff]
    %v2694 = vld [vmem:[#allocation7 + $0x2d38] sm:$0xff]
    %v2695 = vld [vmem:[#allocation7 + $0x2d40] sm:$0xff]
    %v2696 = vld [vmem:[#allocation7 + $0x2d48] sm:$0xff]
    %v2697 = vld [vmem:[#allocation7 + $0x2d50] sm:$0xff]
    %v2698 = vld [vmem:[#allocation7 + $0x2d58] sm:$0xff]
    %v2699 = vld [vmem:[#allocation7 + $0x2d60] sm:$0xff]
    %v2700 = vld [vmem:[#allocation7 + $0x2d68] sm:$0xff]
    %v2701 = vld [vmem:[#allocation7 + $0x2d70] sm:$0xff]
    %v2702 = vld [vmem:[#allocation7 + $0x2d78] sm:$0xff]
    %v2703 = vld [vmem:[#allocation7 + $0x2d80] sm:$0xff]
    %v2704 = vld [vmem:[#allocation7 + $0x2d88] sm:$0xff]
    %v2705 = vld [vmem:[#allocation7 + $0x2d90] sm:$0xff]
    %v2706 = vld [vmem:[#allocation7 + $0x2d98] sm:$0xff]
    %v2707 = vld [vmem:[#allocation7 + $0x2da0] sm:$0xff]
    %v2708 = vld [vmem:[#allocation7 + $0x2da8] sm:$0xff]
    %v2709 = vld [vmem:[#allocation7 + $0x2db0] sm:$0xff]
    %v2710 = vld [vmem:[#allocation7 + $0x2db8] sm:$0xff]
    %v2711 = vld [vmem:[#allocation7 + $0x2dc0] sm:$0xff]
    %v2712 = vld [vmem:[#allocation7 + $0x2dc8] sm:$0xff]
    %v2713 = vld [vmem:[#allocation7 + $0x2dd0] sm:$0xff]
    %v2714 = vld [vmem:[#allocation7 + $0x2dd8] sm:$0xff]
    %v2715 = vld [vmem:[#allocation7 + $0x2de0] sm:$0xff]
    %v2716 = vld [vmem:[#allocation7 + $0x2de8] sm:$0xff]
    %v2717 = vld [vmem:[#allocation7 + $0x2df0] sm:$0xff]
    %v2718 = vld [vmem:[#allocation7 + $0x2df8] sm:$0xff]
    %v2719 = vld [vmem:[#allocation7 + $0x2e00] sm:$0xff]
    %v2720 = vld [vmem:[#allocation7 + $0x2e08] sm:$0xff]
    %v2721 = vld [vmem:[#allocation7 + $0x2e10] sm:$0xff]
    %v2722 = vld [vmem:[#allocation7 + $0x2e18] sm:$0xff]
    %v2723 = vld [vmem:[#allocation7 + $0x2e20] sm:$0xff]
    %v2724 = vld [vmem:[#allocation7 + $0x2e28] sm:$0xff]
    %v2725 = vld [vmem:[#allocation7 + $0x2e30] sm:$0xff]
    %v2726 = vld [vmem:[#allocation7 + $0x2e38] sm:$0xff]
    %v2727 = vld [vmem:[#allocation7 + $0x2e40] sm:$0xff]
    %v2728 = vld [vmem:[#allocation7 + $0x2e48] sm:$0xff]
    %v2729 = vld [vmem:[#allocation7 + $0x2e50] sm:$0xff]
    %v2730 = vld [vmem:[#allocation7 + $0x2e58] sm:$0xff]
    %v2731 = vld [vmem:[#allocation7 + $0x2e60] sm:$0xff]
    %v2732 = vld [vmem:[#allocation7 + $0x2e68] sm:$0xff]
    %v2733 = vld [vmem:[#allocation7 + $0x2e70] sm:$0xff]
    %v2734 = vld [vmem:[#allocation7 + $0x2e78] sm:$0xff]
    %v2735 = vld [vmem:[#allocation7 + $0x2e80] sm:$0xff]
    %v2736 = vld [vmem:[#allocation7 + $0x2e88] sm:$0xff]
    %v2737 = vld [vmem:[#allocation7 + $0x2e90] sm:$0xff]
    %v2738 = vld [vmem:[#allocation7 + $0x2e98] sm:$0xff]
    %v2739 = vld [vmem:[#allocation7 + $0x2ea0] sm:$0xff]
    %v2740 = vld [vmem:[#allocation7 + $0x2ea8] sm:$0xff]
    %v2741 = vld [vmem:[#allocation7 + $0x2eb0] sm:$0xff]
    %v2742 = vld [vmem:[#allocation7 + $0x2eb8] sm:$0xff]
    %v2743 = vld [vmem:[#allocation7 + $0x2ec0] sm:$0xff]
    %v2744 = vld [vmem:[#allocation7 + $0x2ec8] sm:$0xff]
    %v2745 = vld [vmem:[#allocation7 + $0x2ed0] sm:$0xff]
    %v2746 = vld [vmem:[#allocation7 + $0x2ed8] sm:$0xff]
    %v2747 = vld [vmem:[#allocation7 + $0x2ee0] sm:$0xff]
    %v2748 = vld [vmem:[#allocation7 + $0x2ee8] sm:$0xff]
    %v2749 = vld [vmem:[#allocation7 + $0x2ef0] sm:$0xff]
    %v2750 = vld [vmem:[#allocation7 + $0x2ef8] sm:$0xff]
    %v2751 = vld [vmem:[#allocation7 + $0x2f00] sm:$0xff]
    %v2752 = vld [vmem:[#allocation7 + $0x2f08] sm:$0xff]
    %v2753 = vld [vmem:[#allocation7 + $0x2f10] sm:$0xff]
    %v2754 = vld [vmem:[#allocation7 + $0x2f18] sm:$0xff]
    %v2755 = vld [vmem:[#allocation7 + $0x2f20] sm:$0xff]
    %v2756 = vld [vmem:[#allocation7 + $0x2f28] sm:$0xff]
    %v2757 = vld [vmem:[#allocation7 + $0x2f30] sm:$0xff]
    %v2758 = vld [vmem:[#allocation7 + $0x2f38] sm:$0xff]
    %v2759 = vld [vmem:[#allocation7 + $0x2f40] sm:$0xff]
    %v2760 = vld [vmem:[#allocation7 + $0x2f48] sm:$0xff]
    %v2761 = vld [vmem:[#allocation7 + $0x2f50] sm:$0xff]
    %v2762 = vld [vmem:[#allocation7 + $0x2f58] sm:$0xff]
    %v2763 = vld [vmem:[#allocation7 + $0x2f60] sm:$0xff]
    %v2764 = vld [vmem:[#allocation7 + $0x2f68] sm:$0xff]
    %v2765 = vld [vmem:[#allocation7 + $0x2f70] sm:$0xff]
    %v2766 = vld [vmem:[#allocation7 + $0x2f78] sm:$0xff]
    %v2767 = vld [vmem:[#allocation7 + $0x2f80] sm:$0xff]
    %v2768 = vld [vmem:[#allocation7 + $0x2f88] sm:$0xff]
    %v2769 = vld [vmem:[#allocation7 + $0x2f90] sm:$0xff]
    %v2770 = vld [vmem:[#allocation7 + $0x2f98] sm:$0xff]
    %v2771 = vld [vmem:[#allocation7 + $0x2fa0] sm:$0xff]
    %v2772 = vld [vmem:[#allocation7 + $0x2fa8] sm:$0xff]
    %v2773 = vld [vmem:[#allocation7 + $0x2fb0] sm:$0xff]
    %v2774 = vld [vmem:[#allocation7 + $0x2fb8] sm:$0xff]
    %v2775 = vld [vmem:[#allocation7 + $0x2fc0] sm:$0xff]
    %v2776 = vld [vmem:[#allocation7 + $0x2fc8] sm:$0xff]
    %v2777 = vld [vmem:[#allocation7 + $0x2fd0] sm:$0xff]
    %v2778 = vld [vmem:[#allocation7 + $0x2fd8] sm:$0xff]
    %v2779 = vld [vmem:[#allocation7 + $0x2fe0] sm:$0xff]
    %v2780 = vld [vmem:[#allocation7 + $0x2fe8] sm:$0xff]
    %v2781 = vld [vmem:[#allocation7 + $0x2ff0] sm:$0xff]
    %v2782 = vld [vmem:[#allocation7 + $0x2ff8] sm:$0xff]
    %v2783 = vld [vmem:[#allocation7 + $0x3000] sm:$0xff]
    %v2784 = vld [vmem:[#allocation7 + $0x3008] sm:$0xff]
    %v2785 = vld [vmem:[#allocation7 + $0x3010] sm:$0xff]
    %v2786 = vld [vmem:[#allocation7 + $0x3018] sm:$0xff]
    %v2787 = vld [vmem:[#allocation7 + $0x3020] sm:$0xff]
    %v2788 = vld [vmem:[#allocation7 + $0x3028] sm:$0xff]
    %v2789 = vld [vmem:[#allocation7 + $0x3030] sm:$0xff]
    %v2790 = vld [vmem:[#allocation7 + $0x3038] sm:$0xff]
    %v2791 = vld [vmem:[#allocation7 + $0x3040] sm:$0xff]
    %v2792 = vld [vmem:[#allocation7 + $0x3048] sm:$0xff]
    %v2793 = vld [vmem:[#allocation7 + $0x3050] sm:$0xff]
    %v2794 = vld [vmem:[#allocation7 + $0x3058] sm:$0xff]
    %v2795 = vld [vmem:[#allocation7 + $0x3060] sm:$0xff]
    %v2796 = vld [vmem:[#allocation7 + $0x3068] sm:$0xff]
    %v2797 = vld [vmem:[#allocation7 + $0x3070] sm:$0xff]
    %v2798 = vld [vmem:[#allocation7 + $0x3078] sm:$0xff]
    %v2799 = vld [vmem:[#allocation7 + $0x3080] sm:$0xff]
    %v2800 = vld [vmem:[#allocation7 + $0x3088] sm:$0xff]
    %v2801 = vld [vmem:[#allocation7 + $0x3090] sm:$0xff]
    %v2802 = vld [vmem:[#allocation7 + $0x3098] sm:$0xff]
    %v2803 = vld [vmem:[#allocation7 + $0x30a0] sm:$0xff]
    %v2804 = vld [vmem:[#allocation7 + $0x30a8] sm:$0xff]
    %v2805 = vld [vmem:[#allocation7 + $0x30b0] sm:$0xff]
    %v2806 = vld [vmem:[#allocation7 + $0x30b8] sm:$0xff]
    %v2807 = vld [vmem:[#allocation7 + $0x30c0] sm:$0xff]
    %v2808 = vld [vmem:[#allocation7 + $0x30c8] sm:$0xff]
    %v2809 = vld [vmem:[#allocation7 + $0x30d0] sm:$0xff]
    %v2810 = vld [vmem:[#allocation7 + $0x30d8] sm:$0xff]
    %v2811 = vld [vmem:[#allocation7 + $0x30e0] sm:$0xff]
    %v2812 = vld [vmem:[#allocation7 + $0x30e8] sm:$0xff]
    %v2813 = vld [vmem:[#allocation7 + $0x30f0] sm:$0xff]
    %v2814 = vld [vmem:[#allocation7 + $0x30f8] sm:$0xff]
    %v2815 = vld [vmem:[#allocation7 + $0x3100] sm:$0xff]
    %v2816 = vld [vmem:[#allocation7 + $0x3108] sm:$0xff]
    %v2817 = vld [vmem:[#allocation7 + $0x3110] sm:$0xff]
    %v2818 = vld [vmem:[#allocation7 + $0x3118] sm:$0xff]
    %v2819 = vld [vmem:[#allocation7 + $0x3120] sm:$0xff]
    %v2820 = vld [vmem:[#allocation7 + $0x3128] sm:$0xff]
    %v2821 = vld [vmem:[#allocation7 + $0x3130] sm:$0xff]
    %v2822 = vld [vmem:[#allocation7 + $0x3138] sm:$0xff]
    %v2823 = vld [vmem:[#allocation7 + $0x3140] sm:$0xff]
    %v2824 = vld [vmem:[#allocation7 + $0x3148] sm:$0xff]
    %v2825 = vld [vmem:[#allocation7 + $0x3150] sm:$0xff]
    %v2826 = vld [vmem:[#allocation7 + $0x3158] sm:$0xff]
    %v2827 = vld [vmem:[#allocation7 + $0x3160] sm:$0xff]
    %v2828 = vld [vmem:[#allocation7 + $0x3168] sm:$0xff]
    %v2829 = vld [vmem:[#allocation7 + $0x3170] sm:$0xff]
    %v2830 = vld [vmem:[#allocation7 + $0x3178] sm:$0xff]
    %v2831 = vld [vmem:[#allocation7 + $0x3180] sm:$0xff]
    %v2832 = vld [vmem:[#allocation7 + $0x3188] sm:$0xff]
    %v2833 = vld [vmem:[#allocation7 + $0x3190] sm:$0xff]
    %v2834 = vld [vmem:[#allocation7 + $0x3198] sm:$0xff]
    %v2835 = vld [vmem:[#allocation7 + $0x31a0] sm:$0xff]
    %v2836 = vld [vmem:[#allocation7 + $0x31a8] sm:$0xff]
    %v2837 = vld [vmem:[#allocation7 + $0x31b0] sm:$0xff]
    %v2838 = vld [vmem:[#allocation7 + $0x31b8] sm:$0xff]
    %v2839 = vld [vmem:[#allocation7 + $0x31c0] sm:$0xff]
    %v2840 = vld [vmem:[#allocation7 + $0x31c8] sm:$0xff]
    %v2841 = vld [vmem:[#allocation7 + $0x31d0] sm:$0xff]
    %v2842 = vld [vmem:[#allocation7 + $0x31d8] sm:$0xff]
    %v2843 = vld [vmem:[#allocation7 + $0x31e0] sm:$0xff]
    %v2844 = vld [vmem:[#allocation7 + $0x31e8] sm:$0xff]
    %v2845 = vld [vmem:[#allocation7 + $0x31f0] sm:$0xff]
    %v2846 = vld [vmem:[#allocation7 + $0x31f8] sm:$0xff]
    %v2847 = vld [vmem:[#allocation7 + $0x3200] sm:$0xff]
    %v2848 = vld [vmem:[#allocation7 + $0x3208] sm:$0xff]
    %v2849 = vld [vmem:[#allocation7 + $0x3210] sm:$0xff]
    %v2850 = vld [vmem:[#allocation7 + $0x3218] sm:$0xff]
    %v2851 = vld [vmem:[#allocation7 + $0x3220] sm:$0xff]
    %v2852 = vld [vmem:[#allocation7 + $0x3228] sm:$0xff]
    %v2853 = vld [vmem:[#allocation7 + $0x3230] sm:$0xff]
    %v2854 = vld [vmem:[#allocation7 + $0x3238] sm:$0xff]
    %v2855 = vld [vmem:[#allocation7 + $0x3240] sm:$0xff]
    %v2856 = vld [vmem:[#allocation7 + $0x3248] sm:$0xff]
    %v2857 = vld [vmem:[#allocation7 + $0x3250] sm:$0xff]
    %v2858 = vld [vmem:[#allocation7 + $0x3258] sm:$0xff]
    %v2859 = vld [vmem:[#allocation7 + $0x3260] sm:$0xff]
    %v2860 = vld [vmem:[#allocation7 + $0x3268] sm:$0xff]
    %v2861 = vld [vmem:[#allocation7 + $0x3270] sm:$0xff]
    %v2862 = vld [vmem:[#allocation7 + $0x3278] sm:$0xff]
    %v2863 = vld [vmem:[#allocation7 + $0x3280] sm:$0xff]
    %v2864 = vld [vmem:[#allocation7 + $0x3288] sm:$0xff]
    %v2865 = vld [vmem:[#allocation7 + $0x3290] sm:$0xff]
    %v2866 = vld [vmem:[#allocation7 + $0x3298] sm:$0xff]
    %v2867 = vld [vmem:[#allocation7 + $0x32a0] sm:$0xff]
    %v2868 = vld [vmem:[#allocation7 + $0x32a8] sm:$0xff]
    %v2869 = vld [vmem:[#allocation7 + $0x32b0] sm:$0xff]
    %v2870 = vld [vmem:[#allocation7 + $0x32b8] sm:$0xff]
    %v2871 = vld [vmem:[#allocation7 + $0x32c0] sm:$0xff]
    %v2872 = vld [vmem:[#allocation7 + $0x32c8] sm:$0xff]
    %v2873 = vld [vmem:[#allocation7 + $0x32d0] sm:$0xff]
    %v2874 = vld [vmem:[#allocation7 + $0x32d8] sm:$0xff]
    %v2875 = vld [vmem:[#allocation7 + $0x32e0] sm:$0xff]
    %v2876 = vld [vmem:[#allocation7 + $0x32e8] sm:$0xff]
    %v2877 = vld [vmem:[#allocation7 + $0x32f0] sm:$0xff]
    %v2878 = vld [vmem:[#allocation7 + $0x32f8] sm:$0xff]
    %v2879 = vld [vmem:[#allocation7 + $0x3300] sm:$0xff]
    %v2880 = vld [vmem:[#allocation7 + $0x3308] sm:$0xff]
    %v2881 = vld [vmem:[#allocation7 + $0x3310] sm:$0xff]
    %v2882 = vld [vmem:[#allocation7 + $0x3318] sm:$0xff]
    %v2883 = vld [vmem:[#allocation7 + $0x3320] sm:$0xff]
    %v2884 = vld [vmem:[#allocation7 + $0x3328] sm:$0xff]
    %v2885 = vld [vmem:[#allocation7 + $0x3330] sm:$0xff]
    %v2886 = vld [vmem:[#allocation7 + $0x3338] sm:$0xff]
    %v2887 = vld [vmem:[#allocation7 + $0x3340] sm:$0xff]
    %v2888 = vld [vmem:[#allocation7 + $0x3348] sm:$0xff]
    %v2889 = vld [vmem:[#allocation7 + $0x3350] sm:$0xff]
    %v2890 = vld [vmem:[#allocation7 + $0x3358] sm:$0xff]
    %v2891 = vld [vmem:[#allocation7 + $0x3360] sm:$0xff]
    %v2892 = vld [vmem:[#allocation7 + $0x3368] sm:$0xff]
    %v2893 = vld [vmem:[#allocation7 + $0x3370] sm:$0xff]
    %v2894 = vld [vmem:[#allocation7 + $0x3378] sm:$0xff]
    %v2895 = vld [vmem:[#allocation7 + $0x3380] sm:$0xff]
    %v2896 = vld [vmem:[#allocation7 + $0x3388] sm:$0xff]
    %v2897 = vld [vmem:[#allocation7 + $0x3390] sm:$0xff]
    %v2898 = vld [vmem:[#allocation7 + $0x3398] sm:$0xff]
    %v2899 = vld [vmem:[#allocation7 + $0x33a0] sm:$0xff]
    %v2900 = vld [vmem:[#allocation7 + $0x33a8] sm:$0xff]
    %v2901 = vld [vmem:[#allocation7 + $0x33b0] sm:$0xff]
    %v2902 = vld [vmem:[#allocation7 + $0x33b8] sm:$0xff]
    %v2903 = vld [vmem:[#allocation7 + $0x33c0] sm:$0xff]
    %v2904 = vld [vmem:[#allocation7 + $0x33c8] sm:$0xff]
    %v2905 = vld [vmem:[#allocation7 + $0x33d0] sm:$0xff]
    %v2906 = vld [vmem:[#allocation7 + $0x33d8] sm:$0xff]
    %v2907 = vld [vmem:[#allocation7 + $0x33e0] sm:$0xff]
    %v2908 = vld [vmem:[#allocation7 + $0x33e8] sm:$0xff]
    %v2909 = vld [vmem:[#allocation7 + $0x33f0] sm:$0xff]
    %v2910 = vld [vmem:[#allocation7 + $0x33f8] sm:$0xff]
    %v2911 = vld [vmem:[#allocation7 + $0x3400] sm:$0xff]
    %v2912 = vld [vmem:[#allocation7 + $0x3408] sm:$0xff]
    %v2913 = vld [vmem:[#allocation7 + $0x3410] sm:$0xff]
    %v2914 = vld [vmem:[#allocation7 + $0x3418] sm:$0xff]
    %v2915 = vld [vmem:[#allocation7 + $0x3420] sm:$0xff]
    %v2916 = vld [vmem:[#allocation7 + $0x3428] sm:$0xff]
    %v2917 = vld [vmem:[#allocation7 + $0x3430] sm:$0xff]
    %v2918 = vld [vmem:[#allocation7 + $0x3438] sm:$0xff]
    %v2919 = vld [vmem:[#allocation7 + $0x3440] sm:$0xff]
    %v2920 = vld [vmem:[#allocation7 + $0x3448] sm:$0xff]
    %v2921 = vld [vmem:[#allocation7 + $0x3450] sm:$0xff]
    %v2922 = vld [vmem:[#allocation7 + $0x3458] sm:$0xff]
    %v2923 = vld [vmem:[#allocation7 + $0x3460] sm:$0xff]
    %v2924 = vld [vmem:[#allocation7 + $0x3468] sm:$0xff]
    %v2925 = vld [vmem:[#allocation7 + $0x3470] sm:$0xff]
    %v2926 = vld [vmem:[#allocation7 + $0x3478] sm:$0xff]
    %v2927 = vld [vmem:[#allocation7 + $0x3480] sm:$0xff]
    %v2928 = vld [vmem:[#allocation7 + $0x3488] sm:$0xff]
    %v2929 = vld [vmem:[#allocation7 + $0x3490] sm:$0xff]
    %v2930 = vld [vmem:[#allocation7 + $0x3498] sm:$0xff]
    %v2931 = vld [vmem:[#allocation7 + $0x34a0] sm:$0xff]
    %v2932 = vld [vmem:[#allocation7 + $0x34a8] sm:$0xff]
    %v2933 = vld [vmem:[#allocation7 + $0x34b0] sm:$0xff]
    %v2934 = vld [vmem:[#allocation7 + $0x34b8] sm:$0xff]
    %v2935 = vld [vmem:[#allocation7 + $0x34c0] sm:$0xff]
    %v2936 = vld [vmem:[#allocation7 + $0x34c8] sm:$0xff]
    %v2937 = vld [vmem:[#allocation7 + $0x34d0] sm:$0xff]
    %v2938 = vld [vmem:[#allocation7 + $0x34d8] sm:$0xff]
    %v2939 = vld [vmem:[#allocation7 + $0x34e0] sm:$0xff]
    %v2940 = vld [vmem:[#allocation7 + $0x34e8] sm:$0xff]
    %v2941 = vld [vmem:[#allocation7 + $0x34f0] sm:$0xff]
    %v2942 = vld [vmem:[#allocation7 + $0x34f8] sm:$0xff]
    %v2943 = vld [vmem:[#allocation7 + $0x3500] sm:$0xff]
    %v2944 = vld [vmem:[#allocation7 + $0x3508] sm:$0xff]
    %v2945 = vld [vmem:[#allocation7 + $0x3510] sm:$0xff]
    %v2946 = vld [vmem:[#allocation7 + $0x3518] sm:$0xff]
    %v2947 = vld [vmem:[#allocation7 + $0x3520] sm:$0xff]
    %v2948 = vld [vmem:[#allocation7 + $0x3528] sm:$0xff]
    %v2949 = vld [vmem:[#allocation7 + $0x3530] sm:$0xff]
    %v2950 = vld [vmem:[#allocation7 + $0x3538] sm:$0xff]
    %v2951 = vld [vmem:[#allocation7 + $0x3540] sm:$0xff]
    %v2952 = vld [vmem:[#allocation7 + $0x3548] sm:$0xff]
    %v2953 = vld [vmem:[#allocation7 + $0x3550] sm:$0xff]
    %v2954 = vld [vmem:[#allocation7 + $0x3558] sm:$0xff]
    %v2955 = vld [vmem:[#allocation7 + $0x3560] sm:$0xff]
    %v2956 = vld [vmem:[#allocation7 + $0x3568] sm:$0xff]
    %v2957 = vld [vmem:[#allocation7 + $0x3570] sm:$0xff]
    %v2958 = vld [vmem:[#allocation7 + $0x3578] sm:$0xff]
    %v2959 = vld [vmem:[#allocation7 + $0x3580] sm:$0xff]
    %v2960 = vld [vmem:[#allocation7 + $0x3588] sm:$0xff]
    %v2961 = vld [vmem:[#allocation7 + $0x3590] sm:$0xff]
    %v2962 = vld [vmem:[#allocation7 + $0x3598] sm:$0xff]
    %v2963 = vld [vmem:[#allocation7 + $0x35a0] sm:$0xff]
    %v2964 = vld [vmem:[#allocation7 + $0x35a8] sm:$0xff]
    %v2965 = vld [vmem:[#allocation7 + $0x35b0] sm:$0xff]
    %v2966 = vld [vmem:[#allocation7 + $0x35b8] sm:$0xff]
    %v2967 = vld [vmem:[#allocation7 + $0x35c0] sm:$0xff]
    %v2968 = vld [vmem:[#allocation7 + $0x35c8] sm:$0xff]
    %v2969 = vld [vmem:[#allocation7 + $0x35d0] sm:$0xff]
    %v2970 = vld [vmem:[#allocation7 + $0x35d8] sm:$0xff]
    %v2971 = vld [vmem:[#allocation7 + $0x35e0] sm:$0xff]
    %v2972 = vld [vmem:[#allocation7 + $0x35e8] sm:$0xff]
    %v2973 = vld [vmem:[#allocation7 + $0x35f0] sm:$0xff]
    %v2974 = vld [vmem:[#allocation7 + $0x35f8] sm:$0xff]
    %v2975 = vld [vmem:[#allocation7 + $0x3600] sm:$0xff]
    %v2976 = vld [vmem:[#allocation7 + $0x3608] sm:$0xff]
    %v2977 = vld [vmem:[#allocation7 + $0x3610] sm:$0xff]
    %v2978 = vld [vmem:[#allocation7 + $0x3618] sm:$0xff]
    %v2979 = vld [vmem:[#allocation7 + $0x3620] sm:$0xff]
    %v2980 = vld [vmem:[#allocation7 + $0x3628] sm:$0xff]
    %v2981 = vld [vmem:[#allocation7 + $0x3630] sm:$0xff]
    %v2982 = vld [vmem:[#allocation7 + $0x3638] sm:$0xff]
    %v2983 = vld [vmem:[#allocation7 + $0x3640] sm:$0xff]
    %v2984 = vld [vmem:[#allocation7 + $0x3648] sm:$0xff]
    %v2985 = vld [vmem:[#allocation7 + $0x3650] sm:$0xff]
    %v2986 = vld [vmem:[#allocation7 + $0x3658] sm:$0xff]
    %v2987 = vld [vmem:[#allocation7 + $0x3660] sm:$0xff]
    %v2988 = vld [vmem:[#allocation7 + $0x3668] sm:$0xff]
    %v2989 = vld [vmem:[#allocation7 + $0x3670] sm:$0xff]
    %v2990 = vld [vmem:[#allocation7 + $0x3678] sm:$0xff]
    %v2991 = vld [vmem:[#allocation7 + $0x3680] sm:$0xff]
    %v2992 = vld [vmem:[#allocation7 + $0x3688] sm:$0xff]
    %v2993 = vld [vmem:[#allocation7 + $0x3690] sm:$0xff]
    %v2994 = vld [vmem:[#allocation7 + $0x3698] sm:$0xff]
    %v2995 = vld [vmem:[#allocation7 + $0x36a0] sm:$0xff]
    %v2996 = vld [vmem:[#allocation7 + $0x36a8] sm:$0xff]
    %v2997 = vld [vmem:[#allocation7 + $0x36b0] sm:$0xff]
    %v2998 = vld [vmem:[#allocation7 + $0x36b8] sm:$0xff]
    %v2999 = vld [vmem:[#allocation7 + $0x36c0] sm:$0xff]
    %v3000 = vld [vmem:[#allocation7 + $0x36c8] sm:$0xff]
    %v3001 = vld [vmem:[#allocation7 + $0x36d0] sm:$0xff]
    %v3002 = vld [vmem:[#allocation7 + $0x36d8] sm:$0xff]
    %v3003 = vld [vmem:[#allocation7 + $0x36e0] sm:$0xff]
    %v3004 = vld [vmem:[#allocation7 + $0x36e8] sm:$0xff]
    %v3005 = vld [vmem:[#allocation7 + $0x36f0] sm:$0xff]
    %v3006 = vld [vmem:[#allocation7 + $0x36f8] sm:$0xff]
    %v3007 = vld [vmem:[#allocation7 + $0x3700] sm:$0xff]
    %v3008 = vld [vmem:[#allocation7 + $0x3708] sm:$0xff]
    %v3009 = vld [vmem:[#allocation7 + $0x3710] sm:$0xff]
    %v3010 = vld [vmem:[#allocation7 + $0x3718] sm:$0xff]
    %v3011 = vld [vmem:[#allocation7 + $0x3720] sm:$0xff]
    %v3012 = vld [vmem:[#allocation7 + $0x3728] sm:$0xff]
    %v3013 = vld [vmem:[#allocation7 + $0x3730] sm:$0xff]
    %v3014 = vld [vmem:[#allocation7 + $0x3738] sm:$0xff]
    %v3015 = vld [vmem:[#allocation7 + $0x3740] sm:$0xff]
    %v3016 = vld [vmem:[#allocation7 + $0x3748] sm:$0xff]
    %v3017 = vld [vmem:[#allocation7 + $0x3750] sm:$0xff]
    %v3018 = vld [vmem:[#allocation7 + $0x3758] sm:$0xff]
    %v3019 = vld [vmem:[#allocation7 + $0x3760] sm:$0xff]
    %v3020 = vld [vmem:[#allocation7 + $0x3768] sm:$0xff]
    %v3021 = vld [vmem:[#allocation7 + $0x3770] sm:$0xff]
    %v3022 = vld [vmem:[#allocation7 + $0x3778] sm:$0xff]
    %v3023 = vld [vmem:[#allocation7 + $0x3780] sm:$0xff]
    %v3024 = vld [vmem:[#allocation7 + $0x3788] sm:$0xff]
    %v3025 = vld [vmem:[#allocation7 + $0x3790] sm:$0xff]
    %v3026 = vld [vmem:[#allocation7 + $0x3798] sm:$0xff]
    %v3027 = vld [vmem:[#allocation7 + $0x37a0] sm:$0xff]
    %v3028 = vld [vmem:[#allocation7 + $0x37a8] sm:$0xff]
    %v3029 = vld [vmem:[#allocation7 + $0x37b0] sm:$0xff]
    %v3030 = vld [vmem:[#allocation7 + $0x37b8] sm:$0xff]
    %v3031 = vld [vmem:[#allocation7 + $0x37c0] sm:$0xff]
    %v3032 = vld [vmem:[#allocation7 + $0x37c8] sm:$0xff]
    %v3033 = vld [vmem:[#allocation7 + $0x37d0] sm:$0xff]
    %v3034 = vld [vmem:[#allocation7 + $0x37d8] sm:$0xff]
    %v3035 = vld [vmem:[#allocation7 + $0x37e0] sm:$0xff]
    %v3036 = vld [vmem:[#allocation7 + $0x37e8] sm:$0xff]
    %v3037 = vld [vmem:[#allocation7 + $0x37f0] sm:$0xff]
    %v3038 = vld [vmem:[#allocation7 + $0x37f8] sm:$0xff]
    %v3039 = vld [vmem:[#allocation7 + $0x3800] sm:$0xff]
    %v3040 = vld [vmem:[#allocation7 + $0x3808] sm:$0xff]
    %v3041 = vld [vmem:[#allocation7 + $0x3810] sm:$0xff]
    %v3042 = vld [vmem:[#allocation7 + $0x3818] sm:$0xff]
    %v3043 = vld [vmem:[#allocation7 + $0x3820] sm:$0xff]
    %v3044 = vld [vmem:[#allocation7 + $0x3828] sm:$0xff]
    %v3045 = vld [vmem:[#allocation7 + $0x3830] sm:$0xff]
    %v3046 = vld [vmem:[#allocation7 + $0x3838] sm:$0xff]
    %v3047 = vld [vmem:[#allocation7 + $0x3840] sm:$0xff]
    %v3048 = vld [vmem:[#allocation7 + $0x3848] sm:$0xff]
    %v3049 = vld [vmem:[#allocation7 + $0x3850] sm:$0xff]
    %v3050 = vld [vmem:[#allocation7 + $0x3858] sm:$0xff]
    %v3051 = vld [vmem:[#allocation7 + $0x3860] sm:$0xff]
    %v3052 = vld [vmem:[#allocation7 + $0x3868] sm:$0xff]
    %v3053 = vld [vmem:[#allocation7 + $0x3870] sm:$0xff]
    %v3054 = vld [vmem:[#allocation7 + $0x3878] sm:$0xff]
    %v3055 = vld [vmem:[#allocation7 + $0x3880] sm:$0xff]
    %v3056 = vld [vmem:[#allocation7 + $0x3888] sm:$0xff]
    %v3057 = vld [vmem:[#allocation7 + $0x3890] sm:$0xff]
    %v3058 = vld [vmem:[#allocation7 + $0x3898] sm:$0xff]
    %v3059 = vld [vmem:[#allocation7 + $0x38a0] sm:$0xff]
    %v3060 = vld [vmem:[#allocation7 + $0x38a8] sm:$0xff]
    %v3061 = vld [vmem:[#allocation7 + $0x38b0] sm:$0xff]
    %v3062 = vld [vmem:[#allocation7 + $0x38b8] sm:$0xff]
    %v3063 = vld [vmem:[#allocation7 + $0x38c0] sm:$0xff]
    %v3064 = vld [vmem:[#allocation7 + $0x38c8] sm:$0xff]
    %v3065 = vld [vmem:[#allocation7 + $0x38d0] sm:$0xff]
    %v3066 = vld [vmem:[#allocation7 + $0x38d8] sm:$0xff]
    %v3067 = vld [vmem:[#allocation7 + $0x38e0] sm:$0xff]
    %v3068 = vld [vmem:[#allocation7 + $0x38e8] sm:$0xff]
    %v3069 = vld [vmem:[#allocation7 + $0x38f0] sm:$0xff]
    %v3070 = vld [vmem:[#allocation7 + $0x38f8] sm:$0xff]
    %v3071 = vld [vmem:[#allocation7 + $0x3900] sm:$0xff]
    %v3072 = vld [vmem:[#allocation7 + $0x3908] sm:$0xff]
    %v3073 = vld [vmem:[#allocation7 + $0x3910] sm:$0xff]
    %v3074 = vld [vmem:[#allocation7 + $0x3918] sm:$0xff]
    %v3075 = vld [vmem:[#allocation7 + $0x3920] sm:$0xff]
    %v3076 = vld [vmem:[#allocation7 + $0x3928] sm:$0xff]
    %v3077 = vld [vmem:[#allocation7 + $0x3930] sm:$0xff]
    %v3078 = vld [vmem:[#allocation7 + $0x3938] sm:$0xff]
    %v3079 = vld [vmem:[#allocation7 + $0x3940] sm:$0xff]
    %v3080 = vld [vmem:[#allocation7 + $0x3948] sm:$0xff]
    %v3081 = vld [vmem:[#allocation7 + $0x3950] sm:$0xff]
    %v3082 = vld [vmem:[#allocation7 + $0x3958] sm:$0xff]
    %v3083 = vld [vmem:[#allocation7 + $0x3960] sm:$0xff]
    %v3084 = vld [vmem:[#allocation7 + $0x3968] sm:$0xff]
    %v3085 = vld [vmem:[#allocation7 + $0x3970] sm:$0xff]
    %v3086 = vld [vmem:[#allocation7 + $0x3978] sm:$0xff]
    %v3087 = vld [vmem:[#allocation7 + $0x3980] sm:$0xff]
    %v3088 = vld [vmem:[#allocation7 + $0x3988] sm:$0xff]
    %v3089 = vld [vmem:[#allocation7 + $0x3990] sm:$0xff]
    %v3090 = vld [vmem:[#allocation7 + $0x3998] sm:$0xff]
    %v3091 = vld [vmem:[#allocation7 + $0x39a0] sm:$0xff]
    %v3092 = vld [vmem:[#allocation7 + $0x39a8] sm:$0xff]
    %v3093 = vld [vmem:[#allocation7 + $0x39b0] sm:$0xff]
    %v3094 = vld [vmem:[#allocation7 + $0x39b8] sm:$0xff]
    %v3095 = vld [vmem:[#allocation7 + $0x39c0] sm:$0xff]
    %v3096 = vld [vmem:[#allocation7 + $0x39c8] sm:$0xff]
    %v3097 = vld [vmem:[#allocation7 + $0x39d0] sm:$0xff]
    %v3098 = vld [vmem:[#allocation7 + $0x39d8] sm:$0xff]
    %v3099 = vld [vmem:[#allocation7 + $0x39e0] sm:$0xff]
    %v3100 = vld [vmem:[#allocation7 + $0x39e8] sm:$0xff]
    %v3101 = vld [vmem:[#allocation7 + $0x39f0] sm:$0xff]
    %v3102 = vld [vmem:[#allocation7 + $0x39f8] sm:$0xff]
    %v3103 = vld [vmem:[#allocation7 + $0x3a00] sm:$0xff]
    %v3104 = vld [vmem:[#allocation7 + $0x3a08] sm:$0xff]
    %v3105 = vld [vmem:[#allocation7 + $0x3a10] sm:$0xff]
    %v3106 = vld [vmem:[#allocation7 + $0x3a18] sm:$0xff]
    %v3107 = vld [vmem:[#allocation7 + $0x3a20] sm:$0xff]
    %v3108 = vld [vmem:[#allocation7 + $0x3a28] sm:$0xff]
    %v3109 = vld [vmem:[#allocation7 + $0x3a30] sm:$0xff]
    %v3110 = vld [vmem:[#allocation7 + $0x3a38] sm:$0xff]
    %v3111 = vld [vmem:[#allocation7 + $0x3a40] sm:$0xff]
    %v3112 = vld [vmem:[#allocation7 + $0x3a48] sm:$0xff]
    %v3113 = vld [vmem:[#allocation7 + $0x3a50] sm:$0xff]
    %v3114 = vld [vmem:[#allocation7 + $0x3a58] sm:$0xff]
    %v3115 = vld [vmem:[#allocation7 + $0x3a60] sm:$0xff]
    %v3116 = vld [vmem:[#allocation7 + $0x3a68] sm:$0xff]
    %v3117 = vld [vmem:[#allocation7 + $0x3a70] sm:$0xff]
    %v3118 = vld [vmem:[#allocation7 + $0x3a78] sm:$0xff]
    %v3119 = vld [vmem:[#allocation7 + $0x3a80] sm:$0xff]
    %v3120 = vld [vmem:[#allocation7 + $0x3a88] sm:$0xff]
    %v3121 = vld [vmem:[#allocation7 + $0x3a90] sm:$0xff]
    %v3122 = vld [vmem:[#allocation7 + $0x3a98] sm:$0xff]
    %v3123 = vld [vmem:[#allocation7 + $0x3aa0] sm:$0xff]
    %v3124 = vld [vmem:[#allocation7 + $0x3aa8] sm:$0xff]
    %v3125 = vld [vmem:[#allocation7 + $0x3ab0] sm:$0xff]
    %v3126 = vld [vmem:[#allocation7 + $0x3ab8] sm:$0xff]
    %v3127 = vld [vmem:[#allocation7 + $0x3ac0] sm:$0xff]
    %v3128 = vld [vmem:[#allocation7 + $0x3ac8] sm:$0xff]
    %v3129 = vld [vmem:[#allocation7 + $0x3ad0] sm:$0xff]
    %v3130 = vld [vmem:[#allocation7 + $0x3ad8] sm:$0xff]
    %v3131 = vld [vmem:[#allocation7 + $0x3ae0] sm:$0xff]
    %v3132 = vld [vmem:[#allocation7 + $0x3ae8] sm:$0xff]
    %v3133 = vld [vmem:[#allocation7 + $0x3af0] sm:$0xff]
    %v3134 = vld [vmem:[#allocation7 + $0x3af8] sm:$0xff]
    %v3135 = vld [vmem:[#allocation7 + $0x3b00] sm:$0xff]
    %v3136 = vld [vmem:[#allocation7 + $0x3b08] sm:$0xff]
    %v3137 = vld [vmem:[#allocation7 + $0x3b10] sm:$0xff]
    %v3138 = vld [vmem:[#allocation7 + $0x3b18] sm:$0xff]
    %v3139 = vld [vmem:[#allocation7 + $0x3b20] sm:$0xff]
    %v3140 = vld [vmem:[#allocation7 + $0x3b28] sm:$0xff]
    %v3141 = vld [vmem:[#allocation7 + $0x3b30] sm:$0xff]
    %v3142 = vld [vmem:[#allocation7 + $0x3b38] sm:$0xff]
    %v3143 = vld [vmem:[#allocation7 + $0x3b40] sm:$0xff]
    %v3144 = vld [vmem:[#allocation7 + $0x3b48] sm:$0xff]
    %v3145 = vld [vmem:[#allocation7 + $0x3b50] sm:$0xff]
    %v3146 = vld [vmem:[#allocation7 + $0x3b58] sm:$0xff]
    %v3147 = vld [vmem:[#allocation7 + $0x3b60] sm:$0xff]
    %v3148 = vld [vmem:[#allocation7 + $0x3b68] sm:$0xff]
    %v3149 = vld [vmem:[#allocation7 + $0x3b70] sm:$0xff]
    %v3150 = vld [vmem:[#allocation7 + $0x3b78] sm:$0xff]
    %v3151 = vld [vmem:[#allocation7 + $0x3b80] sm:$0xff]
    %v3152 = vld [vmem:[#allocation7 + $0x3b88] sm:$0xff]
    %v3153 = vld [vmem:[#allocation7 + $0x3b90] sm:$0xff]
    %v3154 = vld [vmem:[#allocation7 + $0x3b98] sm:$0xff]
    %v3155 = vld [vmem:[#allocation7 + $0x3ba0] sm:$0xff]
    %v3156 = vld [vmem:[#allocation7 + $0x3ba8] sm:$0xff]
    %v3157 = vld [vmem:[#allocation7 + $0x3bb0] sm:$0xff]
    %v3158 = vld [vmem:[#allocation7 + $0x3bb8] sm:$0xff]
    %v3159 = vld [vmem:[#allocation7 + $0x3bc0] sm:$0xff]
    %v3160 = vld [vmem:[#allocation7 + $0x3bc8] sm:$0xff]
    %v3161 = vld [vmem:[#allocation7 + $0x3bd0] sm:$0xff]
    %v3162 = vld [vmem:[#allocation7 + $0x3bd8] sm:$0xff]
    %v3163 = vld [vmem:[#allocation7 + $0x3be0] sm:$0xff]
    %v3164 = vld [vmem:[#allocation7 + $0x3be8] sm:$0xff]
    %v3165 = vld [vmem:[#allocation7 + $0x3bf0] sm:$0xff]
    %v3166 = vld [vmem:[#allocation7 + $0x3bf8] sm:$0xff]
    %v3167 = vld [vmem:[#allocation7 + $0x3c00] sm:$0xff]
    %v3168 = vld [vmem:[#allocation7 + $0x3c08] sm:$0xff]
    %v3169 = vld [vmem:[#allocation7 + $0x3c10] sm:$0xff]
    %v3170 = vld [vmem:[#allocation7 + $0x3c18] sm:$0xff]
    %v3171 = vld [vmem:[#allocation7 + $0x3c20] sm:$0xff]
    %v3172 = vld [vmem:[#allocation7 + $0x3c28] sm:$0xff]
    %v3173 = vld [vmem:[#allocation7 + $0x3c30] sm:$0xff]
    %v3174 = vld [vmem:[#allocation7 + $0x3c38] sm:$0xff]
    %v3175 = vld [vmem:[#allocation7 + $0x3c40] sm:$0xff]
    %v3176 = vld [vmem:[#allocation7 + $0x3c48] sm:$0xff]
    %v3177 = vld [vmem:[#allocation7 + $0x3c50] sm:$0xff]
    %v3178 = vld [vmem:[#allocation7 + $0x3c58] sm:$0xff]
    %v3179 = vld [vmem:[#allocation7 + $0x3c60] sm:$0xff]
    %v3180 = vld [vmem:[#allocation7 + $0x3c68] sm:$0xff]
    %v3181 = vld [vmem:[#allocation7 + $0x3c70] sm:$0xff]
    %v3182 = vld [vmem:[#allocation7 + $0x3c78] sm:$0xff]
    %v3183 = vld [vmem:[#allocation7 + $0x3c80] sm:$0xff]
    %v3184 = vld [vmem:[#allocation7 + $0x3c88] sm:$0xff]
    %v3185 = vld [vmem:[#allocation7 + $0x3c90] sm:$0xff]
    %v3186 = vld [vmem:[#allocation7 + $0x3c98] sm:$0xff]
    %v3187 = vld [vmem:[#allocation7 + $0x3ca0] sm:$0xff]
    %v3188 = vld [vmem:[#allocation7 + $0x3ca8] sm:$0xff]
    %v3189 = vld [vmem:[#allocation7 + $0x3cb0] sm:$0xff]
    %v3190 = vld [vmem:[#allocation7 + $0x3cb8] sm:$0xff]
    %v3191 = vld [vmem:[#allocation7 + $0x3cc0] sm:$0xff]
    %v3192 = vld [vmem:[#allocation7 + $0x3cc8] sm:$0xff]
    %v3193 = vld [vmem:[#allocation7 + $0x3cd0] sm:$0xff]
    %v3194 = vld [vmem:[#allocation7 + $0x3cd8] sm:$0xff]
    %v3195 = vld [vmem:[#allocation7 + $0x3ce0] sm:$0xff]
    %v3196 = vld [vmem:[#allocation7 + $0x3ce8] sm:$0xff]
    %v3197 = vld [vmem:[#allocation7 + $0x3cf0] sm:$0xff]
    %v3198 = vld [vmem:[#allocation7 + $0x3cf8] sm:$0xff]
    %v3199 = vld [vmem:[#allocation7 + $0x3d00] sm:$0xff]
    %v3200 = vld [vmem:[#allocation7 + $0x3d08] sm:$0xff]
    %v3201 = vld [vmem:[#allocation7 + $0x3d10] sm:$0xff]
    %v3202 = vld [vmem:[#allocation7 + $0x3d18] sm:$0xff]
    %v3203 = vld [vmem:[#allocation7 + $0x3d20] sm:$0xff]
    %v3204 = vld [vmem:[#allocation7 + $0x3d28] sm:$0xff]
    %v3205 = vld [vmem:[#allocation7 + $0x3d30] sm:$0xff]
    %v3206 = vld [vmem:[#allocation7 + $0x3d38] sm:$0xff]
    %v3207 = vld [vmem:[#allocation7 + $0x3d40] sm:$0xff]
    %v3208 = vld [vmem:[#allocation7 + $0x3d48] sm:$0xff]
    %v3209 = vld [vmem:[#allocation7 + $0x3d50] sm:$0xff]
    %v3210 = vld [vmem:[#allocation7 + $0x3d58] sm:$0xff]
    %v3211 = vld [vmem:[#allocation7 + $0x3d60] sm:$0xff]
    %v3212 = vld [vmem:[#allocation7 + $0x3d68] sm:$0xff]
    %v3213 = vld [vmem:[#allocation7 + $0x3d70] sm:$0xff]
    %v3214 = vld [vmem:[#allocation7 + $0x3d78] sm:$0xff]
    %v3215 = vld [vmem:[#allocation7 + $0x3d80] sm:$0xff]
    %v3216 = vld [vmem:[#allocation7 + $0x3d88] sm:$0xff]
    %v3217 = vld [vmem:[#allocation7 + $0x3d90] sm:$0xff]
    %v3218 = vld [vmem:[#allocation7 + $0x3d98] sm:$0xff]
    %v3219 = vld [vmem:[#allocation7 + $0x3da0] sm:$0xff]
    %v3220 = vld [vmem:[#allocation7 + $0x3da8] sm:$0xff]
    %v3221 = vld [vmem:[#allocation7 + $0x3db0] sm:$0xff]
    %v3222 = vld [vmem:[#allocation7 + $0x3db8] sm:$0xff]
    %v3223 = vld [vmem:[#allocation7 + $0x3dc0] sm:$0xff]
    %v3224 = vld [vmem:[#allocation7 + $0x3dc8] sm:$0xff]
    %v3225 = vld [vmem:[#allocation7 + $0x3dd0] sm:$0xff]
    %v3226 = vld [vmem:[#allocation7 + $0x3dd8] sm:$0xff]
    %v3227 = vld [vmem:[#allocation7 + $0x3de0] sm:$0xff]
    %v3228 = vld [vmem:[#allocation7 + $0x3de8] sm:$0xff]
    %v3229 = vld [vmem:[#allocation7 + $0x3df0] sm:$0xff]
    %v3230 = vld [vmem:[#allocation7 + $0x3df8] sm:$0xff]
    %v3231 = vld [vmem:[#allocation7 + $0x3e00] sm:$0xff]
    %v3232 = vld [vmem:[#allocation7 + $0x3e08] sm:$0xff]
    %v3233 = vld [vmem:[#allocation7 + $0x3e10] sm:$0xff]
    %v3234 = vld [vmem:[#allocation7 + $0x3e18] sm:$0xff]
    %v3235 = vld [vmem:[#allocation7 + $0x3e20] sm:$0xff]
    %v3236 = vld [vmem:[#allocation7 + $0x3e28] sm:$0xff]
    %v3237 = vld [vmem:[#allocation7 + $0x3e30] sm:$0xff]
    %v3238 = vld [vmem:[#allocation7 + $0x3e38] sm:$0xff]
    %v3239 = vld [vmem:[#allocation7 + $0x3e40] sm:$0xff]
    %v3240 = vld [vmem:[#allocation7 + $0x3e48] sm:$0xff]
    %v3241 = vld [vmem:[#allocation7 + $0x3e50] sm:$0xff]
    %v3242 = vld [vmem:[#allocation7 + $0x3e58] sm:$0xff]
    %v3243 = vld [vmem:[#allocation7 + $0x3e60] sm:$0xff]
    %v3244 = vld [vmem:[#allocation7 + $0x3e68] sm:$0xff]
    %v3245 = vld [vmem:[#allocation7 + $0x3e70] sm:$0xff]
    %v3246 = vld [vmem:[#allocation7 + $0x3e78] sm:$0xff]
    %v3247 = vld [vmem:[#allocation7 + $0x3e80] sm:$0xff]
    %v3248 = vld [vmem:[#allocation7 + $0x3e88] sm:$0xff]
    %v3249 = vld [vmem:[#allocation7 + $0x3e90] sm:$0xff]
    %v3250 = vld [vmem:[#allocation7 + $0x3e98] sm:$0xff]
    %v3251 = vld [vmem:[#allocation7 + $0x3ea0] sm:$0xff]
    %v3252 = vld [vmem:[#allocation7 + $0x3ea8] sm:$0xff]
    %v3253 = vld [vmem:[#allocation7 + $0x3eb0] sm:$0xff]
    %v3254 = vld [vmem:[#allocation7 + $0x3eb8] sm:$0xff]
    %v3255 = vld [vmem:[#allocation7 + $0x3ec0] sm:$0xff]
    %v3256 = vld [vmem:[#allocation7 + $0x3ec8] sm:$0xff]
    %v3257 = vld [vmem:[#allocation7 + $0x3ed0] sm:$0xff]
    %v3258 = vld [vmem:[#allocation7 + $0x3ed8] sm:$0xff]
    %v3259 = vld [vmem:[#allocation7 + $0x3ee0] sm:$0xff]
    %v3260 = vld [vmem:[#allocation7 + $0x3ee8] sm:$0xff]
    %v3261 = vld [vmem:[#allocation7 + $0x3ef0] sm:$0xff]
    %v3262 = vld [vmem:[#allocation7 + $0x3ef8] sm:$0xff]
    %v3263 = vld [vmem:[#allocation7 + $0x3f00] sm:$0xff]
    %v3264 = vld [vmem:[#allocation7 + $0x3f08] sm:$0xff]
    %v3265 = vld [vmem:[#allocation7 + $0x3f10] sm:$0xff]
    %v3266 = vld [vmem:[#allocation7 + $0x3f18] sm:$0xff]
    %v3267 = vld [vmem:[#allocation7 + $0x3f20] sm:$0xff]
    %v3268 = vld [vmem:[#allocation7 + $0x3f28] sm:$0xff]
    %v3269 = vld [vmem:[#allocation7 + $0x3f30] sm:$0xff]
    %v3270 = vld [vmem:[#allocation7 + $0x3f38] sm:$0xff]
    %v3271 = vld [vmem:[#allocation7 + $0x3f40] sm:$0xff]
    %v3272 = vld [vmem:[#allocation7 + $0x3f48] sm:$0xff]
    %v3273 = vld [vmem:[#allocation7 + $0x3f50] sm:$0xff]
    %v3274 = vld [vmem:[#allocation7 + $0x3f58] sm:$0xff]
    %v3275 = vld [vmem:[#allocation7 + $0x3f60] sm:$0xff]
    %v3276 = vld [vmem:[#allocation7 + $0x3f68] sm:$0xff]
    %v3277 = vld [vmem:[#allocation7 + $0x3f70] sm:$0xff]
    %v3278 = vld [vmem:[#allocation7 + $0x3f78] sm:$0xff]
    %v3279 = vld [vmem:[#allocation7 + $0x3f80] sm:$0xff]
    %v3280 = vld [vmem:[#allocation7 + $0x3f88] sm:$0xff]
    %v3281 = vld [vmem:[#allocation7 + $0x3f90] sm:$0xff]
    %v3282 = vld [vmem:[#allocation7 + $0x3f98] sm:$0xff]
    %v3283 = vld [vmem:[#allocation7 + $0x3fa0] sm:$0xff]
    %v3284 = vld [vmem:[#allocation7 + $0x3fa8] sm:$0xff]
    %v3285 = vld [vmem:[#allocation7 + $0x3fb0] sm:$0xff]
    %v3286 = vld [vmem:[#allocation7 + $0x3fb8] sm:$0xff]
    %v3287 = vld [vmem:[#allocation7 + $0x3fc0] sm:$0xff]
    %v3288 = vld [vmem:[#allocation7 + $0x3fc8] sm:$0xff]
    %v3289 = vld [vmem:[#allocation7 + $0x3fd0] sm:$0xff]
    %v3290 = vld [vmem:[#allocation7 + $0x3fd8] sm:$0xff]
    %v3291 = vld [vmem:[#allocation7 + $0x3fe0] sm:$0xff]
    %v3292 = vld [vmem:[#allocation7 + $0x3fe8] sm:$0xff]
    %v3293 = vld [vmem:[#allocation7 + $0x3ff0] sm:$0xff]
    %v3294 = vld [vmem:[#allocation7 + $0x3ff8] sm:$0xff]
    %v3295 = vld [vmem:[%s4] sm:$0x77]
    %v3296 = vld [vmem:[%s4 + $0x8] sm:$0x77]
    %v3297 = vld [vmem:[%s4 + $0x10] sm:$0x77]
    %v3298 = vld [vmem:[%s4 + $0x18] sm:$0x77]
    %v3303 = vperm.slane %v3295, 0
    %v3304 = vperm.slane %v3295, 4
    %v3305 = vperm.slane %v3296, 0
    %v3306 = vperm.slane %v3296, 4
    %v3307 = vperm.slane %v3297, 0
    %v3308 = vperm.slane %v3297, 4
    %v3309 = vperm.slane %v3298, 0
    %v3310 = vperm.slane %v3298, 4
    %v3319 = vperm.slane %v3303, 0
    %v3320 = vperm.slane %v3304, 0
    %v3321 = vperm.slane %v3305, 0
    %v3322 = vperm.slane %v3306, 0
    %v3323 = vperm.slane %v3307, 0
    %v3324 = vperm.slane %v3308, 0
    %v3325 = vperm.slane %v3309, 0
    %v3326 = vperm.slane %v3310, 0
    %3327 = vmatpush.msra.mxu0 %v1367
    %3328 = vmatpush.msra.mxu0 %v1359
    %3329 = vmatpush.msra.mxu0 %v1351
    %3330 = vmatpush.msra.mxu0 %v1343
    %3331 = vmatpush.msra.mxu0 %v1335
    %3332 = vmatpush.msra.mxu0 %v1327
    %3333 = vmatpush.msra.mxu0 %v1319
    %3334 = vmatpush.msra.mxu0 %v1311
    %3335 = vmatpush.msra.mxu0 %v1303
    %3336 = vmatpush.msra.mxu0 %v1295
    %3337 = vmatpush.msra.mxu0 %v1287
    %3338 = vmatpush.msra.mxu0 %v1279
    %3339 = vmatpush.msra.mxu0 %v1271
    %3340 = vmatpush.msra.mxu0 %v1263
    %3341 = vmatpush.msra.mxu0 %v1255
    %3342 = vmatpush.msra.mxu0 %v1247
    %3343 = vmatmul.f32.gmra.mxu0 %v1231
    %v3344 = vpop.f32.mrf.mxu0
    %v3345 = vadd.f32 %v3319, %v3344
    %3346 = vdwg.mxu0
    %3347 = vmatpush.msra.mxu0 %v1495
    %3348 = vmatpush.msra.mxu0 %v1487
    %3349 = vmatpush.msra.mxu0 %v1479
    %3350 = vmatpush.msra.mxu0 %v1471
    %3351 = vmatpush.msra.mxu0 %v1463
    %3352 = vmatpush.msra.mxu0 %v1455
    %3353 = vmatpush.msra.mxu0 %v1447
    %3354 = vmatpush.msra.mxu0 %v1439
    %3355 = vmatpush.msra.mxu0 %v1431
    %3356 = vmatpush.msra.mxu0 %v1423
    %3357 = vmatpush.msra.mxu0 %v1415
    %3358 = vmatpush.msra.mxu0 %v1407
    %3359 = vmatpush.msra.mxu0 %v1399
    %3360 = vmatpush.msra.mxu0 %v1391
    %3361 = vmatpush.msra.mxu0 %v1383
    %3362 = vmatpush.msra.mxu0 %v1375
    %3363 = vmatmul.f32.gmra.mxu0 %v1232
    %v3364 = vpop.f32.mrf.mxu0
    %v3365 = vadd.f32 %v3345, %v3364
    %3366 = vdwg.mxu0
    %3367 = vmatpush.msra.mxu0 %v1623
    %3368 = vmatpush.msra.mxu0 %v1615
    %3369 = vmatpush.msra.mxu0 %v1607
    %3370 = vmatpush.msra.mxu0 %v1599
    %3371 = vmatpush.msra.mxu0 %v1591
    %3372 = vmatpush.msra.mxu0 %v1583
    %3373 = vmatpush.msra.mxu0 %v1575
    %3374 = vmatpush.msra.mxu0 %v1567
    %3375 = vmatpush.msra.mxu0 %v1559
    %3376 = vmatpush.msra.mxu0 %v1551
    %3377 = vmatpush.msra.mxu0 %v1543
    %3378 = vmatpush.msra.mxu0 %v1535
    %3379 = vmatpush.msra.mxu0 %v1527
    %3380 = vmatpush.msra.mxu0 %v1519
    %3381 = vmatpush.msra.mxu0 %v1511
    %3382 = vmatpush.msra.mxu0 %v1503
    %3383 = vmatmul.f32.gmra.mxu0 %v1233
    %v3384 = vpop.f32.mrf.mxu0
    %v3385 = vadd.f32 %v3365, %v3384
    %3386 = vdwg.mxu0
    %3387 = vmatpush.msra.mxu0 %v1751
    %3388 = vmatpush.msra.mxu0 %v1743
    %3389 = vmatpush.msra.mxu0 %v1735
    %3390 = vmatpush.msra.mxu0 %v1727
    %3391 = vmatpush.msra.mxu0 %v1719
    %3392 = vmatpush.msra.mxu0 %v1711
    %3393 = vmatpush.msra.mxu0 %v1703
    %3394 = vmatpush.msra.mxu0 %v1695
    %3395 = vmatpush.msra.mxu0 %v1687
    %3396 = vmatpush.msra.mxu0 %v1679
    %3397 = vmatpush.msra.mxu0 %v1671
    %3398 = vmatpush.msra.mxu0 %v1663
    %3399 = vmatpush.msra.mxu0 %v1655
    %3400 = vmatpush.msra.mxu0 %v1647
    %3401 = vmatpush.msra.mxu0 %v1639
    %3402 = vmatpush.msra.mxu0 %v1631
    %3403 = vmatmul.f32.gmra.mxu0 %v1234
    %v3404 = vpop.f32.mrf.mxu0
    %v3405 = vadd.f32 %v3385, %v3404
    %3406 = vdwg.mxu0
    %3407 = vmatpush.msra.mxu0 %v1879
    %3408 = vmatpush.msra.mxu0 %v1871
    %3409 = vmatpush.msra.mxu0 %v1863
    %3410 = vmatpush.msra.mxu0 %v1855
    %3411 = vmatpush.msra.mxu0 %v1847
    %3412 = vmatpush.msra.mxu0 %v1839
    %3413 = vmatpush.msra.mxu0 %v1831
    %3414 = vmatpush.msra.mxu0 %v1823
    %3415 = vmatpush.msra.mxu0 %v1815
    %3416 = vmatpush.msra.mxu0 %v1807
    %3417 = vmatpush.msra.mxu0 %v1799
    %3418 = vmatpush.msra.mxu0 %v1791
    %3419 = vmatpush.msra.mxu0 %v1783
    %3420 = vmatpush.msra.mxu0 %v1775
    %3421 = vmatpush.msra.mxu0 %v1767
    %3422 = vmatpush.msra.mxu0 %v1759
    %3423 = vmatmul.f32.gmra.mxu0 %v1235
    %v3424 = vpop.f32.mrf.mxu0
    %v3425 = vadd.f32 %v3405, %v3424
    %3426 = vdwg.mxu0
    %3427 = vmatpush.msra.mxu0 %v2007
    %3428 = vmatpush.msra.mxu0 %v1999
    %3429 = vmatpush.msra.mxu0 %v1991
    %3430 = vmatpush.msra.mxu0 %v1983
    %3431 = vmatpush.msra.mxu0 %v1975
    %3432 = vmatpush.msra.mxu0 %v1967
    %3433 = vmatpush.msra.mxu0 %v1959
    %3434 = vmatpush.msra.mxu0 %v1951
    %3435 = vmatpush.msra.mxu0 %v1943
    %3436 = vmatpush.msra.mxu0 %v1935
    %3437 = vmatpush.msra.mxu0 %v1927
    %3438 = vmatpush.msra.mxu0 %v1919
    %3439 = vmatpush.msra.mxu0 %v1911
    %3440 = vmatpush.msra.mxu0 %v1903
    %3441 = vmatpush.msra.mxu0 %v1895
    %3442 = vmatpush.msra.mxu0 %v1887
    %3443 = vmatmul.f32.gmra.mxu0 %v1236
    %v3444 = vpop.f32.mrf.mxu0
    %v3445 = vadd.f32 %v3425, %v3444
    %3446 = vdwg.mxu0
    %3447 = vmatpush.msra.mxu0 %v2135
    %3448 = vmatpush.msra.mxu0 %v2127
    %3449 = vmatpush.msra.mxu0 %v2119
    %3450 = vmatpush.msra.mxu0 %v2111
    %3451 = vmatpush.msra.mxu0 %v2103
    %3452 = vmatpush.msra.mxu0 %v2095
    %3453 = vmatpush.msra.mxu0 %v2087
    %3454 = vmatpush.msra.mxu0 %v2079
    %3455 = vmatpush.msra.mxu0 %v2071
    %3456 = vmatpush.msra.mxu0 %v2063
    %3457 = vmatpush.msra.mxu0 %v2055
    %3458 = vmatpush.msra.mxu0 %v2047
    %3459 = vmatpush.msra.mxu0 %v2039
    %3460 = vmatpush.msra.mxu0 %v2031
    %3461 = vmatpush.msra.mxu0 %v2023
    %3462 = vmatpush.msra.mxu0 %v2015
    %3463 = vmatmul.f32.gmra.mxu0 %v1237
    %v3464 = vpop.f32.mrf.mxu0
    %v3465 = vadd.f32 %v3445, %v3464
    %3466 = vdwg.mxu0
    %3467 = vmatpush.msra.mxu0 %v2263
    %3468 = vmatpush.msra.mxu0 %v2255
    %3469 = vmatpush.msra.mxu0 %v2247
    %3470 = vmatpush.msra.mxu0 %v2239
    %3471 = vmatpush.msra.mxu0 %v2231
    %3472 = vmatpush.msra.mxu0 %v2223
    %3473 = vmatpush.msra.mxu0 %v2215
    %3474 = vmatpush.msra.mxu0 %v2207
    %3475 = vmatpush.msra.mxu0 %v2199
    %3476 = vmatpush.msra.mxu0 %v2191
    %3477 = vmatpush.msra.mxu0 %v2183
    %3478 = vmatpush.msra.mxu0 %v2175
    %3479 = vmatpush.msra.mxu0 %v2167
    %3480 = vmatpush.msra.mxu0 %v2159
    %3481 = vmatpush.msra.mxu0 %v2151
    %3482 = vmatpush.msra.mxu0 %v2143
    %3483 = vmatmul.f32.gmra.mxu0 %v1238
    %v3484 = vpop.f32.mrf.mxu0
    %v3485 = vadd.f32 %v3465, %v3484
    %3486 = vdwg.mxu0
    %3487 = vmatpush.msra.mxu0 %v2391
    %3488 = vmatpush.msra.mxu0 %v2383
    %3489 = vmatpush.msra.mxu0 %v2375
    %3490 = vmatpush.msra.mxu0 %v2367
    %3491 = vmatpush.msra.mxu0 %v2359
    %3492 = vmatpush.msra.mxu0 %v2351
    %3493 = vmatpush.msra.mxu0 %v2343
    %3494 = vmatpush.msra.mxu0 %v2335
    %3495 = vmatpush.msra.mxu0 %v2327
    %3496 = vmatpush.msra.mxu0 %v2319
    %3497 = vmatpush.msra.mxu0 %v2311
    %3498 = vmatpush.msra.mxu0 %v2303
    %3499 = vmatpush.msra.mxu0 %v2295
    %3500 = vmatpush.msra.mxu0 %v2287
    %3501 = vmatpush.msra.mxu0 %v2279
    %3502 = vmatpush.msra.mxu0 %v2271
    %3503 = vmatmul.f32.gmra.mxu0 %v1239
    %v3504 = vpop.f32.mrf.mxu0
    %v3505 = vadd.f32 %v3485, %v3504
    %3506 = vdwg.mxu0
    %3507 = vmatpush.msra.mxu0 %v2519
    %3508 = vmatpush.msra.mxu0 %v2511
    %3509 = vmatpush.msra.mxu0 %v2503
    %3510 = vmatpush.msra.mxu0 %v2495
    %3511 = vmatpush.msra.mxu0 %v2487
    %3512 = vmatpush.msra.mxu0 %v2479
    %3513 = vmatpush.msra.mxu0 %v2471
    %3514 = vmatpush.msra.mxu0 %v2463
    %3515 = vmatpush.msra.mxu0 %v2455
    %3516 = vmatpush.msra.mxu0 %v2447
    %3517 = vmatpush.msra.mxu0 %v2439
    %3518 = vmatpush.msra.mxu0 %v2431
    %3519 = vmatpush.msra.mxu0 %v2423
    %3520 = vmatpush.msra.mxu0 %v2415
    %3521 = vmatpush.msra.mxu0 %v2407
    %3522 = vmatpush.msra.mxu0 %v2399
    %3523 = vmatmul.f32.gmra.mxu0 %v1240
    %v3524 = vpop.f32.mrf.mxu0
    %v3525 = vadd.f32 %v3505, %v3524
    %3526 = vdwg.mxu0
    %3527 = vmatpush.msra.mxu0 %v2647
    %3528 = vmatpush.msra.mxu0 %v2639
    %3529 = vmatpush.msra.mxu0 %v2631
    %3530 = vmatpush.msra.mxu0 %v2623
    %3531 = vmatpush.msra.mxu0 %v2615
    %3532 = vmatpush.msra.mxu0 %v2607
    %3533 = vmatpush.msra.mxu0 %v2599
    %3534 = vmatpush.msra.mxu0 %v2591
    %3535 = vmatpush.msra.mxu0 %v2583
    %3536 = vmatpush.msra.mxu0 %v2575
    %3537 = vmatpush.msra.mxu0 %v2567
    %3538 = vmatpush.msra.mxu0 %v2559
    %3539 = vmatpush.msra.mxu0 %v2551
    %3540 = vmatpush.msra.mxu0 %v2543
    %3541 = vmatpush.msra.mxu0 %v2535
    %3542 = vmatpush.msra.mxu0 %v2527
    %3543 = vmatmul.f32.gmra.mxu0 %v1241
    %v3544 = vpop.f32.mrf.mxu0
    %v3545 = vadd.f32 %v3525, %v3544
    %3546 = vdwg.mxu0
    %3547 = vmatpush.msra.mxu0 %v2775
    %3548 = vmatpush.msra.mxu0 %v2767
    %3549 = vmatpush.msra.mxu0 %v2759
    %3550 = vmatpush.msra.mxu0 %v2751
    %3551 = vmatpush.msra.mxu0 %v2743
    %3552 = vmatpush.msra.mxu0 %v2735
    %3553 = vmatpush.msra.mxu0 %v2727
    %3554 = vmatpush.msra.mxu0 %v2719
    %3555 = vmatpush.msra.mxu0 %v2711
    %3556 = vmatpush.msra.mxu0 %v2703
    %3557 = vmatpush.msra.mxu0 %v2695
    %3558 = vmatpush.msra.mxu0 %v2687
    %3559 = vmatpush.msra.mxu0 %v2679
    %3560 = vmatpush.msra.mxu0 %v2671
    %3561 = vmatpush.msra.mxu0 %v2663
    %3562 = vmatpush.msra.mxu0 %v2655
    %3563 = vmatmul.f32.gmra.mxu0 %v1242
    %v3564 = vpop.f32.mrf.mxu0
    %v3565 = vadd.f32 %v3545, %v3564
    %3566 = vdwg.mxu0
    %3567 = vmatpush.msra.mxu0 %v2903
    %3568 = vmatpush.msra.mxu0 %v2895
    %3569 = vmatpush.msra.mxu0 %v2887
    %3570 = vmatpush.msra.mxu0 %v2879
    %3571 = vmatpush.msra.mxu0 %v2871
    %3572 = vmatpush.msra.mxu0 %v2863
    %3573 = vmatpush.msra.mxu0 %v2855
    %3574 = vmatpush.msra.mxu0 %v2847
    %3575 = vmatpush.msra.mxu0 %v2839
    %3576 = vmatpush.msra.mxu0 %v2831
    %3577 = vmatpush.msra.mxu0 %v2823
    %3578 = vmatpush.msra.mxu0 %v2815
    %3579 = vmatpush.msra.mxu0 %v2807
    %3580 = vmatpush.msra.mxu0 %v2799
    %3581 = vmatpush.msra.mxu0 %v2791
    %3582 = vmatpush.msra.mxu0 %v2783
    %3583 = vmatmul.f32.gmra.mxu0 %v1243
    %v3584 = vpop.f32.mrf.mxu0
    %v3585 = vadd.f32 %v3565, %v3584
    %3586 = vdwg.mxu0
    %3587 = vmatpush.msra.mxu0 %v3031
    %3588 = vmatpush.msra.mxu0 %v3023
    %3589 = vmatpush.msra.mxu0 %v3015
    %3590 = vmatpush.msra.mxu0 %v3007
    %3591 = vmatpush.msra.mxu0 %v2999
    %3592 = vmatpush.msra.mxu0 %v2991
    %3593 = vmatpush.msra.mxu0 %v2983
    %3594 = vmatpush.msra.mxu0 %v2975
    %3595 = vmatpush.msra.mxu0 %v2967
    %3596 = vmatpush.msra.mxu0 %v2959
    %3597 = vmatpush.msra.mxu0 %v2951
    %3598 = vmatpush.msra.mxu0 %v2943
    %3599 = vmatpush.msra.mxu0 %v2935
    %3600 = vmatpush.msra.mxu0 %v2927
    %3601 = vmatpush.msra.mxu0 %v2919
    %3602 = vmatpush.msra.mxu0 %v2911
    %3603 = vmatmul.f32.gmra.mxu0 %v1244
    %v3604 = vpop.f32.mrf.mxu0
    %v3605 = vadd.f32 %v3585, %v3604
    %3606 = vdwg.mxu0
    %3607 = vmatpush.msra.mxu0 %v3159
    %3608 = vmatpush.msra.mxu0 %v3151
    %3609 = vmatpush.msra.mxu0 %v3143
    %3610 = vmatpush.msra.mxu0 %v3135
    %3611 = vmatpush.msra.mxu0 %v3127
    %3612 = vmatpush.msra.mxu0 %v3119
    %3613 = vmatpush.msra.mxu0 %v3111
    %3614 = vmatpush.msra.mxu0 %v3103
    %3615 = vmatpush.msra.mxu0 %v3095
    %3616 = vmatpush.msra.mxu0 %v3087
    %3617 = vmatpush.msra.mxu0 %v3079
    %3618 = vmatpush.msra.mxu0 %v3071
    %3619 = vmatpush.msra.mxu0 %v3063
    %3620 = vmatpush.msra.mxu0 %v3055
    %3621 = vmatpush.msra.mxu0 %v3047
    %3622 = vmatpush.msra.mxu0 %v3039
    %3623 = vmatmul.f32.gmra.mxu0 %v1245
    %v3624 = vpop.f32.mrf.mxu0
    %v3625 = vadd.f32 %v3605, %v3624
    %3626 = vdwg.mxu0
    %3627 = vmatpush.msra.mxu0 %v3287
    %3628 = vmatpush.msra.mxu0 %v3279
    %3629 = vmatpush.msra.mxu0 %v3271
    %3630 = vmatpush.msra.mxu0 %v3263
    %3631 = vmatpush.msra.mxu0 %v3255
    %3632 = vmatpush.msra.mxu0 %v3247
    %3633 = vmatpush.msra.mxu0 %v3239
    %3634 = vmatpush.msra.mxu0 %v3231
    %3635 = vmatpush.msra.mxu0 %v3223
    %3636 = vmatpush.msra.mxu0 %v3215
    %3637 = vmatpush.msra.mxu0 %v3207
    %3638 = vmatpush.msra.mxu0 %v3199
    %3639 = vmatpush.msra.mxu0 %v3191
    %3640 = vmatpush.msra.mxu0 %v3183
    %3641 = vmatpush.msra.mxu0 %v3175
    %3642 = vmatpush.msra.mxu0 %v3167
    %3643 = vmatmul.f32.gmra.mxu0 %v1246
    %v3644 = vpop.f32.mrf.mxu0
    %v3645 = vadd.f32 %v3625, %v3644
    %3646 = vdwg.mxu0
    %3647 = vmatpush.msra.mxu0 %v1368
    %3648 = vmatpush.msra.mxu0 %v1360
    %3649 = vmatpush.msra.mxu0 %v1352
    %3650 = vmatpush.msra.mxu0 %v1344
    %3651 = vmatpush.msra.mxu0 %v1336
    %3652 = vmatpush.msra.mxu0 %v1328
    %3653 = vmatpush.msra.mxu0 %v1320
    %3654 = vmatpush.msra.mxu0 %v1312
    %3655 = vmatpush.msra.mxu0 %v1304
    %3656 = vmatpush.msra.mxu0 %v1296
    %3657 = vmatpush.msra.mxu0 %v1288
    %3658 = vmatpush.msra.mxu0 %v1280
    %3659 = vmatpush.msra.mxu0 %v1272
    %3660 = vmatpush.msra.mxu0 %v1264
    %3661 = vmatpush.msra.mxu0 %v1256
    %3662 = vmatpush.msra.mxu0 %v1248
    %3663 = vmatmul.f32.gmra.mxu0 %v1231
    %v3664 = vpop.f32.mrf.mxu0
    %v3665 = vadd.f32 %v3320, %v3664
    %3666 = vdwg.mxu0
    %3667 = vmatpush.msra.mxu0 %v1496
    %3668 = vmatpush.msra.mxu0 %v1488
    %3669 = vmatpush.msra.mxu0 %v1480
    %3670 = vmatpush.msra.mxu0 %v1472
    %3671 = vmatpush.msra.mxu0 %v1464
    %3672 = vmatpush.msra.mxu0 %v1456
    %3673 = vmatpush.msra.mxu0 %v1448
    %3674 = vmatpush.msra.mxu0 %v1440
    %3675 = vmatpush.msra.mxu0 %v1432
    %3676 = vmatpush.msra.mxu0 %v1424
    %3677 = vmatpush.msra.mxu0 %v1416
    %3678 = vmatpush.msra.mxu0 %v1408
    %3679 = vmatpush.msra.mxu0 %v1400
    %3680 = vmatpush.msra.mxu0 %v1392
    %3681 = vmatpush.msra.mxu0 %v1384
    %3682 = vmatpush.msra.mxu0 %v1376
    %3683 = vmatmul.f32.gmra.mxu0 %v1232
    %v3684 = vpop.f32.mrf.mxu0
    %v3685 = vadd.f32 %v3665, %v3684
    %3686 = vdwg.mxu0
    %3687 = vmatpush.msra.mxu0 %v1624
    %3688 = vmatpush.msra.mxu0 %v1616
    %3689 = vmatpush.msra.mxu0 %v1608
    %3690 = vmatpush.msra.mxu0 %v1600
    %3691 = vmatpush.msra.mxu0 %v1592
    %3692 = vmatpush.msra.mxu0 %v1584
    %3693 = vmatpush.msra.mxu0 %v1576
    %3694 = vmatpush.msra.mxu0 %v1568
    %3695 = vmatpush.msra.mxu0 %v1560
    %3696 = vmatpush.msra.mxu0 %v1552
    %3697 = vmatpush.msra.mxu0 %v1544
    %3698 = vmatpush.msra.mxu0 %v1536
    %3699 = vmatpush.msra.mxu0 %v1528
    %3700 = vmatpush.msra.mxu0 %v1520
    %3701 = vmatpush.msra.mxu0 %v1512
    %3702 = vmatpush.msra.mxu0 %v1504
    %3703 = vmatmul.f32.gmra.mxu0 %v1233
    %v3704 = vpop.f32.mrf.mxu0
    %v3705 = vadd.f32 %v3685, %v3704
    %3706 = vdwg.mxu0
    %3707 = vmatpush.msra.mxu0 %v1752
    %3708 = vmatpush.msra.mxu0 %v1744
    %3709 = vmatpush.msra.mxu0 %v1736
    %3710 = vmatpush.msra.mxu0 %v1728
    %3711 = vmatpush.msra.mxu0 %v1720
    %3712 = vmatpush.msra.mxu0 %v1712
    %3713 = vmatpush.msra.mxu0 %v1704
    %3714 = vmatpush.msra.mxu0 %v1696
    %3715 = vmatpush.msra.mxu0 %v1688
    %3716 = vmatpush.msra.mxu0 %v1680
    %3717 = vmatpush.msra.mxu0 %v1672
    %3718 = vmatpush.msra.mxu0 %v1664
    %3719 = vmatpush.msra.mxu0 %v1656
    %3720 = vmatpush.msra.mxu0 %v1648
    %3721 = vmatpush.msra.mxu0 %v1640
    %3722 = vmatpush.msra.mxu0 %v1632
    %3723 = vmatmul.f32.gmra.mxu0 %v1234
    %v3724 = vpop.f32.mrf.mxu0
    %v3725 = vadd.f32 %v3705, %v3724
    %3726 = vdwg.mxu0
    %3727 = vmatpush.msra.mxu0 %v1880
    %3728 = vmatpush.msra.mxu0 %v1872
    %3729 = vmatpush.msra.mxu0 %v1864
    %3730 = vmatpush.msra.mxu0 %v1856
    %3731 = vmatpush.msra.mxu0 %v1848
    %3732 = vmatpush.msra.mxu0 %v1840
    %3733 = vmatpush.msra.mxu0 %v1832
    %3734 = vmatpush.msra.mxu0 %v1824
    %3735 = vmatpush.msra.mxu0 %v1816
    %3736 = vmatpush.msra.mxu0 %v1808
    %3737 = vmatpush.msra.mxu0 %v1800
    %3738 = vmatpush.msra.mxu0 %v1792
    %3739 = vmatpush.msra.mxu0 %v1784
    %3740 = vmatpush.msra.mxu0 %v1776
    %3741 = vmatpush.msra.mxu0 %v1768
    %3742 = vmatpush.msra.mxu0 %v1760
    %3743 = vmatmul.f32.gmra.mxu0 %v1235
    %v3744 = vpop.f32.mrf.mxu0
    %v3745 = vadd.f32 %v3725, %v3744
    %3746 = vdwg.mxu0
    %3747 = vmatpush.msra.mxu0 %v2008
    %3748 = vmatpush.msra.mxu0 %v2000
    %3749 = vmatpush.msra.mxu0 %v1992
    %3750 = vmatpush.msra.mxu0 %v1984
    %3751 = vmatpush.msra.mxu0 %v1976
    %3752 = vmatpush.msra.mxu0 %v1968
    %3753 = vmatpush.msra.mxu0 %v1960
    %3754 = vmatpush.msra.mxu0 %v1952
    %3755 = vmatpush.msra.mxu0 %v1944
    %3756 = vmatpush.msra.mxu0 %v1936
    %3757 = vmatpush.msra.mxu0 %v1928
    %3758 = vmatpush.msra.mxu0 %v1920
    %3759 = vmatpush.msra.mxu0 %v1912
    %3760 = vmatpush.msra.mxu0 %v1904
    %3761 = vmatpush.msra.mxu0 %v1896
    %3762 = vmatpush.msra.mxu0 %v1888
    %3763 = vmatmul.f32.gmra.mxu0 %v1236
    %v3764 = vpop.f32.mrf.mxu0
    %v3765 = vadd.f32 %v3745, %v3764
    %3766 = vdwg.mxu0
    %3767 = vmatpush.msra.mxu0 %v2136
    %3768 = vmatpush.msra.mxu0 %v2128
    %3769 = vmatpush.msra.mxu0 %v2120
    %3770 = vmatpush.msra.mxu0 %v2112
    %3771 = vmatpush.msra.mxu0 %v2104
    %3772 = vmatpush.msra.mxu0 %v2096
    %3773 = vmatpush.msra.mxu0 %v2088
    %3774 = vmatpush.msra.mxu0 %v2080
    %3775 = vmatpush.msra.mxu0 %v2072
    %3776 = vmatpush.msra.mxu0 %v2064
    %3777 = vmatpush.msra.mxu0 %v2056
    %3778 = vmatpush.msra.mxu0 %v2048
    %3779 = vmatpush.msra.mxu0 %v2040
    %3780 = vmatpush.msra.mxu0 %v2032
    %3781 = vmatpush.msra.mxu0 %v2024
    %3782 = vmatpush.msra.mxu0 %v2016
    %3783 = vmatmul.f32.gmra.mxu0 %v1237
    %v3784 = vpop.f32.mrf.mxu0
    %v3785 = vadd.f32 %v3765, %v3784
    %3786 = vdwg.mxu0
    %3787 = vmatpush.msra.mxu0 %v2264
    %3788 = vmatpush.msra.mxu0 %v2256
    %3789 = vmatpush.msra.mxu0 %v2248
    %3790 = vmatpush.msra.mxu0 %v2240
    %3791 = vmatpush.msra.mxu0 %v2232
    %3792 = vmatpush.msra.mxu0 %v2224
    %3793 = vmatpush.msra.mxu0 %v2216
    %3794 = vmatpush.msra.mxu0 %v2208
    %3795 = vmatpush.msra.mxu0 %v2200
    %3796 = vmatpush.msra.mxu0 %v2192
    %3797 = vmatpush.msra.mxu0 %v2184
    %3798 = vmatpush.msra.mxu0 %v2176
    %3799 = vmatpush.msra.mxu0 %v2168
    %3800 = vmatpush.msra.mxu0 %v2160
    %3801 = vmatpush.msra.mxu0 %v2152
    %3802 = vmatpush.msra.mxu0 %v2144
    %3803 = vmatmul.f32.gmra.mxu0 %v1238
    %v3804 = vpop.f32.mrf.mxu0
    %v3805 = vadd.f32 %v3785, %v3804
    %3806 = vdwg.mxu0
    %3807 = vmatpush.msra.mxu0 %v2392
    %3808 = vmatpush.msra.mxu0 %v2384
    %3809 = vmatpush.msra.mxu0 %v2376
    %3810 = vmatpush.msra.mxu0 %v2368
    %3811 = vmatpush.msra.mxu0 %v2360
    %3812 = vmatpush.msra.mxu0 %v2352
    %3813 = vmatpush.msra.mxu0 %v2344
    %3814 = vmatpush.msra.mxu0 %v2336
    %3815 = vmatpush.msra.mxu0 %v2328
    %3816 = vmatpush.msra.mxu0 %v2320
    %3817 = vmatpush.msra.mxu0 %v2312
    %3818 = vmatpush.msra.mxu0 %v2304
    %3819 = vmatpush.msra.mxu0 %v2296
    %3820 = vmatpush.msra.mxu0 %v2288
    %3821 = vmatpush.msra.mxu0 %v2280
    %3822 = vmatpush.msra.mxu0 %v2272
    %3823 = vmatmul.f32.gmra.mxu0 %v1239
    %v3824 = vpop.f32.mrf.mxu0
    %v3825 = vadd.f32 %v3805, %v3824
    %3826 = vdwg.mxu0
    %3827 = vmatpush.msra.mxu0 %v2520
    %3828 = vmatpush.msra.mxu0 %v2512
    %3829 = vmatpush.msra.mxu0 %v2504
    %3830 = vmatpush.msra.mxu0 %v2496
    %3831 = vmatpush.msra.mxu0 %v2488
    %3832 = vmatpush.msra.mxu0 %v2480
    %3833 = vmatpush.msra.mxu0 %v2472
    %3834 = vmatpush.msra.mxu0 %v2464
    %3835 = vmatpush.msra.mxu0 %v2456
    %3836 = vmatpush.msra.mxu0 %v2448
    %3837 = vmatpush.msra.mxu0 %v2440
    %3838 = vmatpush.msra.mxu0 %v2432
    %3839 = vmatpush.msra.mxu0 %v2424
    %3840 = vmatpush.msra.mxu0 %v2416
    %3841 = vmatpush.msra.mxu0 %v2408
    %3842 = vmatpush.msra.mxu0 %v2400
    %3843 = vmatmul.f32.gmra.mxu0 %v1240
    %v3844 = vpop.f32.mrf.mxu0
    %v3845 = vadd.f32 %v3825, %v3844
    %3846 = vdwg.mxu0
    %3847 = vmatpush.msra.mxu0 %v2648
    %3848 = vmatpush.msra.mxu0 %v2640
    %3849 = vmatpush.msra.mxu0 %v2632
    %3850 = vmatpush.msra.mxu0 %v2624
    %3851 = vmatpush.msra.mxu0 %v2616
    %3852 = vmatpush.msra.mxu0 %v2608
    %3853 = vmatpush.msra.mxu0 %v2600
    %3854 = vmatpush.msra.mxu0 %v2592
    %3855 = vmatpush.msra.mxu0 %v2584
    %3856 = vmatpush.msra.mxu0 %v2576
    %3857 = vmatpush.msra.mxu0 %v2568
    %3858 = vmatpush.msra.mxu0 %v2560
    %3859 = vmatpush.msra.mxu0 %v2552
    %3860 = vmatpush.msra.mxu0 %v2544
    %3861 = vmatpush.msra.mxu0 %v2536
    %3862 = vmatpush.msra.mxu0 %v2528
    %3863 = vmatmul.f32.gmra.mxu0 %v1241
    %v3864 = vpop.f32.mrf.mxu0
    %v3865 = vadd.f32 %v3845, %v3864
    %3866 = vdwg.mxu0
    %3867 = vmatpush.msra.mxu0 %v2776
    %3868 = vmatpush.msra.mxu0 %v2768
    %3869 = vmatpush.msra.mxu0 %v2760
    %3870 = vmatpush.msra.mxu0 %v2752
    %3871 = vmatpush.msra.mxu0 %v2744
    %3872 = vmatpush.msra.mxu0 %v2736
    %3873 = vmatpush.msra.mxu0 %v2728
    %3874 = vmatpush.msra.mxu0 %v2720
    %3875 = vmatpush.msra.mxu0 %v2712
    %3876 = vmatpush.msra.mxu0 %v2704
    %3877 = vmatpush.msra.mxu0 %v2696
    %3878 = vmatpush.msra.mxu0 %v2688
    %3879 = vmatpush.msra.mxu0 %v2680
    %3880 = vmatpush.msra.mxu0 %v2672
    %3881 = vmatpush.msra.mxu0 %v2664
    %3882 = vmatpush.msra.mxu0 %v2656
    %3883 = vmatmul.f32.gmra.mxu0 %v1242
    %v3884 = vpop.f32.mrf.mxu0
    %v3885 = vadd.f32 %v3865, %v3884
    %3886 = vdwg.mxu0
    %3887 = vmatpush.msra.mxu0 %v2904
    %3888 = vmatpush.msra.mxu0 %v2896
    %3889 = vmatpush.msra.mxu0 %v2888
    %3890 = vmatpush.msra.mxu0 %v2880
    %3891 = vmatpush.msra.mxu0 %v2872
    %3892 = vmatpush.msra.mxu0 %v2864
    %3893 = vmatpush.msra.mxu0 %v2856
    %3894 = vmatpush.msra.mxu0 %v2848
    %3895 = vmatpush.msra.mxu0 %v2840
    %3896 = vmatpush.msra.mxu0 %v2832
    %3897 = vmatpush.msra.mxu0 %v2824
    %3898 = vmatpush.msra.mxu0 %v2816
    %3899 = vmatpush.msra.mxu0 %v2808
    %3900 = vmatpush.msra.mxu0 %v2800
    %3901 = vmatpush.msra.mxu0 %v2792
    %3902 = vmatpush.msra.mxu0 %v2784
    %3903 = vmatmul.f32.gmra.mxu0 %v1243
    %v3904 = vpop.f32.mrf.mxu0
    %v3905 = vadd.f32 %v3885, %v3904
    %3906 = vdwg.mxu0
    %3907 = vmatpush.msra.mxu0 %v3032
    %3908 = vmatpush.msra.mxu0 %v3024
    %3909 = vmatpush.msra.mxu0 %v3016
    %3910 = vmatpush.msra.mxu0 %v3008
    %3911 = vmatpush.msra.mxu0 %v3000
    %3912 = vmatpush.msra.mxu0 %v2992
    %3913 = vmatpush.msra.mxu0 %v2984
    %3914 = vmatpush.msra.mxu0 %v2976
    %3915 = vmatpush.msra.mxu0 %v2968
    %3916 = vmatpush.msra.mxu0 %v2960
    %3917 = vmatpush.msra.mxu0 %v2952
    %3918 = vmatpush.msra.mxu0 %v2944
    %3919 = vmatpush.msra.mxu0 %v2936
    %3920 = vmatpush.msra.mxu0 %v2928
    %3921 = vmatpush.msra.mxu0 %v2920
    %3922 = vmatpush.msra.mxu0 %v2912
    %3923 = vmatmul.f32.gmra.mxu0 %v1244
    %v3924 = vpop.f32.mrf.mxu0
    %v3925 = vadd.f32 %v3905, %v3924
    %3926 = vdwg.mxu0
    %3927 = vmatpush.msra.mxu0 %v3160
    %3928 = vmatpush.msra.mxu0 %v3152
    %3929 = vmatpush.msra.mxu0 %v3144
    %3930 = vmatpush.msra.mxu0 %v3136
    %3931 = vmatpush.msra.mxu0 %v3128
    %3932 = vmatpush.msra.mxu0 %v3120
    %3933 = vmatpush.msra.mxu0 %v3112
    %3934 = vmatpush.msra.mxu0 %v3104
    %3935 = vmatpush.msra.mxu0 %v3096
    %3936 = vmatpush.msra.mxu0 %v3088
    %3937 = vmatpush.msra.mxu0 %v3080
    %3938 = vmatpush.msra.mxu0 %v3072
    %3939 = vmatpush.msra.mxu0 %v3064
    %3940 = vmatpush.msra.mxu0 %v3056
    %3941 = vmatpush.msra.mxu0 %v3048
    %3942 = vmatpush.msra.mxu0 %v3040
    %3943 = vmatmul.f32.gmra.mxu0 %v1245
    %v3944 = vpop.f32.mrf.mxu0
    %v3945 = vadd.f32 %v3925, %v3944
    %3946 = vdwg.mxu0
    %3947 = vmatpush.msra.mxu0 %v3288
    %3948 = vmatpush.msra.mxu0 %v3280
    %3949 = vmatpush.msra.mxu0 %v3272
    %3950 = vmatpush.msra.mxu0 %v3264
    %3951 = vmatpush.msra.mxu0 %v3256
    %3952 = vmatpush.msra.mxu0 %v3248
    %3953 = vmatpush.msra.mxu0 %v3240
    %3954 = vmatpush.msra.mxu0 %v3232
    %3955 = vmatpush.msra.mxu0 %v3224
    %3956 = vmatpush.msra.mxu0 %v3216
    %3957 = vmatpush.msra.mxu0 %v3208
    %3958 = vmatpush.msra.mxu0 %v3200
    %3959 = vmatpush.msra.mxu0 %v3192
    %3960 = vmatpush.msra.mxu0 %v3184
    %3961 = vmatpush.msra.mxu0 %v3176
    %3962 = vmatpush.msra.mxu0 %v3168
    %3963 = vmatmul.f32.gmra.mxu0 %v1246
    %v3964 = vpop.f32.mrf.mxu0
    %v3965 = vadd.f32 %v3945, %v3964
    %3966 = vdwg.mxu0
    %3967 = vmatpush.msra.mxu0 %v1369
    %3968 = vmatpush.msra.mxu0 %v1361
    %3969 = vmatpush.msra.mxu0 %v1353
    %3970 = vmatpush.msra.mxu0 %v1345
    %3971 = vmatpush.msra.mxu0 %v1337
    %3972 = vmatpush.msra.mxu0 %v1329
    %3973 = vmatpush.msra.mxu0 %v1321
    %3974 = vmatpush.msra.mxu0 %v1313
    %3975 = vmatpush.msra.mxu0 %v1305
    %3976 = vmatpush.msra.mxu0 %v1297
    %3977 = vmatpush.msra.mxu0 %v1289
    %3978 = vmatpush.msra.mxu0 %v1281
    %3979 = vmatpush.msra.mxu0 %v1273
    %3980 = vmatpush.msra.mxu0 %v1265
    %3981 = vmatpush.msra.mxu0 %v1257
    %3982 = vmatpush.msra.mxu0 %v1249
    %3983 = vmatmul.f32.gmra.mxu0 %v1231
    %v3984 = vpop.f32.mrf.mxu0
    %v3985 = vadd.f32 %v3321, %v3984
    %3986 = vdwg.mxu0
    %3987 = vmatpush.msra.mxu0 %v1497
    %3988 = vmatpush.msra.mxu0 %v1489
    %3989 = vmatpush.msra.mxu0 %v1481
    %3990 = vmatpush.msra.mxu0 %v1473
    %3991 = vmatpush.msra.mxu0 %v1465
    %3992 = vmatpush.msra.mxu0 %v1457
    %3993 = vmatpush.msra.mxu0 %v1449
    %3994 = vmatpush.msra.mxu0 %v1441
    %3995 = vmatpush.msra.mxu0 %v1433
    %3996 = vmatpush.msra.mxu0 %v1425
    %3997 = vmatpush.msra.mxu0 %v1417
    %3998 = vmatpush.msra.mxu0 %v1409
    %3999 = vmatpush.msra.mxu0 %v1401
    %4000 = vmatpush.msra.mxu0 %v1393
    %4001 = vmatpush.msra.mxu0 %v1385
    %4002 = vmatpush.msra.mxu0 %v1377
    %4003 = vmatmul.f32.gmra.mxu0 %v1232
    %v4004 = vpop.f32.mrf.mxu0
    %v4005 = vadd.f32 %v3985, %v4004
    %4006 = vdwg.mxu0
    %4007 = vmatpush.msra.mxu0 %v1625
    %4008 = vmatpush.msra.mxu0 %v1617
    %4009 = vmatpush.msra.mxu0 %v1609
    %4010 = vmatpush.msra.mxu0 %v1601
    %4011 = vmatpush.msra.mxu0 %v1593
    %4012 = vmatpush.msra.mxu0 %v1585
    %4013 = vmatpush.msra.mxu0 %v1577
    %4014 = vmatpush.msra.mxu0 %v1569
    %4015 = vmatpush.msra.mxu0 %v1561
    %4016 = vmatpush.msra.mxu0 %v1553
    %4017 = vmatpush.msra.mxu0 %v1545
    %4018 = vmatpush.msra.mxu0 %v1537
    %4019 = vmatpush.msra.mxu0 %v1529
    %4020 = vmatpush.msra.mxu0 %v1521
    %4021 = vmatpush.msra.mxu0 %v1513
    %4022 = vmatpush.msra.mxu0 %v1505
    %4023 = vmatmul.f32.gmra.mxu0 %v1233
    %v4024 = vpop.f32.mrf.mxu0
    %v4025 = vadd.f32 %v4005, %v4024
    %4026 = vdwg.mxu0
    %4027 = vmatpush.msra.mxu0 %v1753
    %4028 = vmatpush.msra.mxu0 %v1745
    %4029 = vmatpush.msra.mxu0 %v1737
    %4030 = vmatpush.msra.mxu0 %v1729
    %4031 = vmatpush.msra.mxu0 %v1721
    %4032 = vmatpush.msra.mxu0 %v1713
    %4033 = vmatpush.msra.mxu0 %v1705
    %4034 = vmatpush.msra.mxu0 %v1697
    %4035 = vmatpush.msra.mxu0 %v1689
    %4036 = vmatpush.msra.mxu0 %v1681
    %4037 = vmatpush.msra.mxu0 %v1673
    %4038 = vmatpush.msra.mxu0 %v1665
    %4039 = vmatpush.msra.mxu0 %v1657
    %4040 = vmatpush.msra.mxu0 %v1649
    %4041 = vmatpush.msra.mxu0 %v1641
    %4042 = vmatpush.msra.mxu0 %v1633
    %4043 = vmatmul.f32.gmra.mxu0 %v1234
    %v4044 = vpop.f32.mrf.mxu0
    %v4045 = vadd.f32 %v4025, %v4044
    %4046 = vdwg.mxu0
    %4047 = vmatpush.msra.mxu0 %v1881
    %4048 = vmatpush.msra.mxu0 %v1873
    %4049 = vmatpush.msra.mxu0 %v1865
    %4050 = vmatpush.msra.mxu0 %v1857
    %4051 = vmatpush.msra.mxu0 %v1849
    %4052 = vmatpush.msra.mxu0 %v1841
    %4053 = vmatpush.msra.mxu0 %v1833
    %4054 = vmatpush.msra.mxu0 %v1825
    %4055 = vmatpush.msra.mxu0 %v1817
    %4056 = vmatpush.msra.mxu0 %v1809
    %4057 = vmatpush.msra.mxu0 %v1801
    %4058 = vmatpush.msra.mxu0 %v1793
    %4059 = vmatpush.msra.mxu0 %v1785
    %4060 = vmatpush.msra.mxu0 %v1777
    %4061 = vmatpush.msra.mxu0 %v1769
    %4062 = vmatpush.msra.mxu0 %v1761
    %4063 = vmatmul.f32.gmra.mxu0 %v1235
    %v4064 = vpop.f32.mrf.mxu0
    %v4065 = vadd.f32 %v4045, %v4064
    %4066 = vdwg.mxu0
    %4067 = vmatpush.msra.mxu0 %v2009
    %4068 = vmatpush.msra.mxu0 %v2001
    %4069 = vmatpush.msra.mxu0 %v1993
    %4070 = vmatpush.msra.mxu0 %v1985
    %4071 = vmatpush.msra.mxu0 %v1977
    %4072 = vmatpush.msra.mxu0 %v1969
    %4073 = vmatpush.msra.mxu0 %v1961
    %4074 = vmatpush.msra.mxu0 %v1953
    %4075 = vmatpush.msra.mxu0 %v1945
    %4076 = vmatpush.msra.mxu0 %v1937
    %4077 = vmatpush.msra.mxu0 %v1929
    %4078 = vmatpush.msra.mxu0 %v1921
    %4079 = vmatpush.msra.mxu0 %v1913
    %4080 = vmatpush.msra.mxu0 %v1905
    %4081 = vmatpush.msra.mxu0 %v1897
    %4082 = vmatpush.msra.mxu0 %v1889
    %4083 = vmatmul.f32.gmra.mxu0 %v1236
    %v4084 = vpop.f32.mrf.mxu0
    %v4085 = vadd.f32 %v4065, %v4084
    %4086 = vdwg.mxu0
    %4087 = vmatpush.msra.mxu0 %v2137
    %4088 = vmatpush.msra.mxu0 %v2129
    %4089 = vmatpush.msra.mxu0 %v2121
    %4090 = vmatpush.msra.mxu0 %v2113
    %4091 = vmatpush.msra.mxu0 %v2105
    %4092 = vmatpush.msra.mxu0 %v2097
    %4093 = vmatpush.msra.mxu0 %v2089
    %4094 = vmatpush.msra.mxu0 %v2081
    %4095 = vmatpush.msra.mxu0 %v2073
    %4096 = vmatpush.msra.mxu0 %v2065
    %4097 = vmatpush.msra.mxu0 %v2057
    %4098 = vmatpush.msra.mxu0 %v2049
    %4099 = vmatpush.msra.mxu0 %v2041
    %4100 = vmatpush.msra.mxu0 %v2033
    %4101 = vmatpush.msra.mxu0 %v2025
    %4102 = vmatpush.msra.mxu0 %v2017
    %4103 = vmatmul.f32.gmra.mxu0 %v1237
    %v4104 = vpop.f32.mrf.mxu0
    %v4105 = vadd.f32 %v4085, %v4104
    %4106 = vdwg.mxu0
    %4107 = vmatpush.msra.mxu0 %v2265
    %4108 = vmatpush.msra.mxu0 %v2257
    %4109 = vmatpush.msra.mxu0 %v2249
    %4110 = vmatpush.msra.mxu0 %v2241
    %4111 = vmatpush.msra.mxu0 %v2233
    %4112 = vmatpush.msra.mxu0 %v2225
    %4113 = vmatpush.msra.mxu0 %v2217
    %4114 = vmatpush.msra.mxu0 %v2209
    %4115 = vmatpush.msra.mxu0 %v2201
    %4116 = vmatpush.msra.mxu0 %v2193
    %4117 = vmatpush.msra.mxu0 %v2185
    %4118 = vmatpush.msra.mxu0 %v2177
    %4119 = vmatpush.msra.mxu0 %v2169
    %4120 = vmatpush.msra.mxu0 %v2161
    %4121 = vmatpush.msra.mxu0 %v2153
    %4122 = vmatpush.msra.mxu0 %v2145
    %4123 = vmatmul.f32.gmra.mxu0 %v1238
    %v4124 = vpop.f32.mrf.mxu0
    %v4125 = vadd.f32 %v4105, %v4124
    %4126 = vdwg.mxu0
    %4127 = vmatpush.msra.mxu0 %v2393
    %4128 = vmatpush.msra.mxu0 %v2385
    %4129 = vmatpush.msra.mxu0 %v2377
    %4130 = vmatpush.msra.mxu0 %v2369
    %4131 = vmatpush.msra.mxu0 %v2361
    %4132 = vmatpush.msra.mxu0 %v2353
    %4133 = vmatpush.msra.mxu0 %v2345
    %4134 = vmatpush.msra.mxu0 %v2337
    %4135 = vmatpush.msra.mxu0 %v2329
    %4136 = vmatpush.msra.mxu0 %v2321
    %4137 = vmatpush.msra.mxu0 %v2313
    %4138 = vmatpush.msra.mxu0 %v2305
    %4139 = vmatpush.msra.mxu0 %v2297
    %4140 = vmatpush.msra.mxu0 %v2289
    %4141 = vmatpush.msra.mxu0 %v2281
    %4142 = vmatpush.msra.mxu0 %v2273
    %4143 = vmatmul.f32.gmra.mxu0 %v1239
    %v4144 = vpop.f32.mrf.mxu0
    %v4145 = vadd.f32 %v4125, %v4144
    %4146 = vdwg.mxu0
    %4147 = vmatpush.msra.mxu0 %v2521
    %4148 = vmatpush.msra.mxu0 %v2513
    %4149 = vmatpush.msra.mxu0 %v2505
    %4150 = vmatpush.msra.mxu0 %v2497
    %4151 = vmatpush.msra.mxu0 %v2489
    %4152 = vmatpush.msra.mxu0 %v2481
    %4153 = vmatpush.msra.mxu0 %v2473
    %4154 = vmatpush.msra.mxu0 %v2465
    %4155 = vmatpush.msra.mxu0 %v2457
    %4156 = vmatpush.msra.mxu0 %v2449
    %4157 = vmatpush.msra.mxu0 %v2441
    %4158 = vmatpush.msra.mxu0 %v2433
    %4159 = vmatpush.msra.mxu0 %v2425
    %4160 = vmatpush.msra.mxu0 %v2417
    %4161 = vmatpush.msra.mxu0 %v2409
    %4162 = vmatpush.msra.mxu0 %v2401
    %4163 = vmatmul.f32.gmra.mxu0 %v1240
    %v4164 = vpop.f32.mrf.mxu0
    %v4165 = vadd.f32 %v4145, %v4164
    %4166 = vdwg.mxu0
    %4167 = vmatpush.msra.mxu0 %v2649
    %4168 = vmatpush.msra.mxu0 %v2641
    %4169 = vmatpush.msra.mxu0 %v2633
    %4170 = vmatpush.msra.mxu0 %v2625
    %4171 = vmatpush.msra.mxu0 %v2617
    %4172 = vmatpush.msra.mxu0 %v2609
    %4173 = vmatpush.msra.mxu0 %v2601
    %4174 = vmatpush.msra.mxu0 %v2593
    %4175 = vmatpush.msra.mxu0 %v2585
    %4176 = vmatpush.msra.mxu0 %v2577
    %4177 = vmatpush.msra.mxu0 %v2569
    %4178 = vmatpush.msra.mxu0 %v2561
    %4179 = vmatpush.msra.mxu0 %v2553
    %4180 = vmatpush.msra.mxu0 %v2545
    %4181 = vmatpush.msra.mxu0 %v2537
    %4182 = vmatpush.msra.mxu0 %v2529
    %4183 = vmatmul.f32.gmra.mxu0 %v1241
    %v4184 = vpop.f32.mrf.mxu0
    %v4185 = vadd.f32 %v4165, %v4184
    %4186 = vdwg.mxu0
    %4187 = vmatpush.msra.mxu0 %v2777
    %4188 = vmatpush.msra.mxu0 %v2769
    %4189 = vmatpush.msra.mxu0 %v2761
    %4190 = vmatpush.msra.mxu0 %v2753
    %4191 = vmatpush.msra.mxu0 %v2745
    %4192 = vmatpush.msra.mxu0 %v2737
    %4193 = vmatpush.msra.mxu0 %v2729
    %4194 = vmatpush.msra.mxu0 %v2721
    %4195 = vmatpush.msra.mxu0 %v2713
    %4196 = vmatpush.msra.mxu0 %v2705
    %4197 = vmatpush.msra.mxu0 %v2697
    %4198 = vmatpush.msra.mxu0 %v2689
    %4199 = vmatpush.msra.mxu0 %v2681
    %4200 = vmatpush.msra.mxu0 %v2673
    %4201 = vmatpush.msra.mxu0 %v2665
    %4202 = vmatpush.msra.mxu0 %v2657
    %4203 = vmatmul.f32.gmra.mxu0 %v1242
    %v4204 = vpop.f32.mrf.mxu0
    %v4205 = vadd.f32 %v4185, %v4204
    %4206 = vdwg.mxu0
    %4207 = vmatpush.msra.mxu0 %v2905
    %4208 = vmatpush.msra.mxu0 %v2897
    %4209 = vmatpush.msra.mxu0 %v2889
    %4210 = vmatpush.msra.mxu0 %v2881
    %4211 = vmatpush.msra.mxu0 %v2873
    %4212 = vmatpush.msra.mxu0 %v2865
    %4213 = vmatpush.msra.mxu0 %v2857
    %4214 = vmatpush.msra.mxu0 %v2849
    %4215 = vmatpush.msra.mxu0 %v2841
    %4216 = vmatpush.msra.mxu0 %v2833
    %4217 = vmatpush.msra.mxu0 %v2825
    %4218 = vmatpush.msra.mxu0 %v2817
    %4219 = vmatpush.msra.mxu0 %v2809
    %4220 = vmatpush.msra.mxu0 %v2801
    %4221 = vmatpush.msra.mxu0 %v2793
    %4222 = vmatpush.msra.mxu0 %v2785
    %4223 = vmatmul.f32.gmra.mxu0 %v1243
    %v4224 = vpop.f32.mrf.mxu0
    %v4225 = vadd.f32 %v4205, %v4224
    %4226 = vdwg.mxu0
    %4227 = vmatpush.msra.mxu0 %v3033
    %4228 = vmatpush.msra.mxu0 %v3025
    %4229 = vmatpush.msra.mxu0 %v3017
    %4230 = vmatpush.msra.mxu0 %v3009
    %4231 = vmatpush.msra.mxu0 %v3001
    %4232 = vmatpush.msra.mxu0 %v2993
    %4233 = vmatpush.msra.mxu0 %v2985
    %4234 = vmatpush.msra.mxu0 %v2977
    %4235 = vmatpush.msra.mxu0 %v2969
    %4236 = vmatpush.msra.mxu0 %v2961
    %4237 = vmatpush.msra.mxu0 %v2953
    %4238 = vmatpush.msra.mxu0 %v2945
    %4239 = vmatpush.msra.mxu0 %v2937
    %4240 = vmatpush.msra.mxu0 %v2929
    %4241 = vmatpush.msra.mxu0 %v2921
    %4242 = vmatpush.msra.mxu0 %v2913
    %4243 = vmatmul.f32.gmra.mxu0 %v1244
    %v4244 = vpop.f32.mrf.mxu0
    %v4245 = vadd.f32 %v4225, %v4244
    %4246 = vdwg.mxu0
    %4247 = vmatpush.msra.mxu0 %v3161
    %4248 = vmatpush.msra.mxu0 %v3153
    %4249 = vmatpush.msra.mxu0 %v3145
    %4250 = vmatpush.msra.mxu0 %v3137
    %4251 = vmatpush.msra.mxu0 %v3129
    %4252 = vmatpush.msra.mxu0 %v3121
    %4253 = vmatpush.msra.mxu0 %v3113
    %4254 = vmatpush.msra.mxu0 %v3105
    %4255 = vmatpush.msra.mxu0 %v3097
    %4256 = vmatpush.msra.mxu0 %v3089
    %4257 = vmatpush.msra.mxu0 %v3081
    %4258 = vmatpush.msra.mxu0 %v3073
    %4259 = vmatpush.msra.mxu0 %v3065
    %4260 = vmatpush.msra.mxu0 %v3057
    %4261 = vmatpush.msra.mxu0 %v3049
    %4262 = vmatpush.msra.mxu0 %v3041
    %4263 = vmatmul.f32.gmra.mxu0 %v1245
    %v4264 = vpop.f32.mrf.mxu0
    %v4265 = vadd.f32 %v4245, %v4264
    %4266 = vdwg.mxu0
    %4267 = vmatpush.msra.mxu0 %v3289
    %4268 = vmatpush.msra.mxu0 %v3281
    %4269 = vmatpush.msra.mxu0 %v3273
    %4270 = vmatpush.msra.mxu0 %v3265
    %4271 = vmatpush.msra.mxu0 %v3257
    %4272 = vmatpush.msra.mxu0 %v3249
    %4273 = vmatpush.msra.mxu0 %v3241
    %4274 = vmatpush.msra.mxu0 %v3233
    %4275 = vmatpush.msra.mxu0 %v3225
    %4276 = vmatpush.msra.mxu0 %v3217
    %4277 = vmatpush.msra.mxu0 %v3209
    %4278 = vmatpush.msra.mxu0 %v3201
    %4279 = vmatpush.msra.mxu0 %v3193
    %4280 = vmatpush.msra.mxu0 %v3185
    %4281 = vmatpush.msra.mxu0 %v3177
    %4282 = vmatpush.msra.mxu0 %v3169
    %4283 = vmatmul.f32.gmra.mxu0 %v1246
    %v4284 = vpop.f32.mrf.mxu0
    %v4285 = vadd.f32 %v4265, %v4284
    %4286 = vdwg.mxu0
    %4287 = vmatpush.msra.mxu0 %v1370
    %4288 = vmatpush.msra.mxu0 %v1362
    %4289 = vmatpush.msra.mxu0 %v1354
    %4290 = vmatpush.msra.mxu0 %v1346
    %4291 = vmatpush.msra.mxu0 %v1338
    %4292 = vmatpush.msra.mxu0 %v1330
    %4293 = vmatpush.msra.mxu0 %v1322
    %4294 = vmatpush.msra.mxu0 %v1314
    %4295 = vmatpush.msra.mxu0 %v1306
    %4296 = vmatpush.msra.mxu0 %v1298
    %4297 = vmatpush.msra.mxu0 %v1290
    %4298 = vmatpush.msra.mxu0 %v1282
    %4299 = vmatpush.msra.mxu0 %v1274
    %4300 = vmatpush.msra.mxu0 %v1266
    %4301 = vmatpush.msra.mxu0 %v1258
    %4302 = vmatpush.msra.mxu0 %v1250
    %4303 = vmatmul.f32.gmra.mxu0 %v1231
    %v4304 = vpop.f32.mrf.mxu0
    %v4305 = vadd.f32 %v3322, %v4304
    %4306 = vdwg.mxu0
    %4307 = vmatpush.msra.mxu0 %v1498
    %4308 = vmatpush.msra.mxu0 %v1490
    %4309 = vmatpush.msra.mxu0 %v1482
    %4310 = vmatpush.msra.mxu0 %v1474
    %4311 = vmatpush.msra.mxu0 %v1466
    %4312 = vmatpush.msra.mxu0 %v1458
    %4313 = vmatpush.msra.mxu0 %v1450
    %4314 = vmatpush.msra.mxu0 %v1442
    %4315 = vmatpush.msra.mxu0 %v1434
    %4316 = vmatpush.msra.mxu0 %v1426
    %4317 = vmatpush.msra.mxu0 %v1418
    %4318 = vmatpush.msra.mxu0 %v1410
    %4319 = vmatpush.msra.mxu0 %v1402
    %4320 = vmatpush.msra.mxu0 %v1394
    %4321 = vmatpush.msra.mxu0 %v1386
    %4322 = vmatpush.msra.mxu0 %v1378
    %4323 = vmatmul.f32.gmra.mxu0 %v1232
    %v4324 = vpop.f32.mrf.mxu0
    %v4325 = vadd.f32 %v4305, %v4324
    %4326 = vdwg.mxu0
    %4327 = vmatpush.msra.mxu0 %v1626
    %4328 = vmatpush.msra.mxu0 %v1618
    %4329 = vmatpush.msra.mxu0 %v1610
    %4330 = vmatpush.msra.mxu0 %v1602
    %4331 = vmatpush.msra.mxu0 %v1594
    %4332 = vmatpush.msra.mxu0 %v1586
    %4333 = vmatpush.msra.mxu0 %v1578
    %4334 = vmatpush.msra.mxu0 %v1570
    %4335 = vmatpush.msra.mxu0 %v1562
    %4336 = vmatpush.msra.mxu0 %v1554
    %4337 = vmatpush.msra.mxu0 %v1546
    %4338 = vmatpush.msra.mxu0 %v1538
    %4339 = vmatpush.msra.mxu0 %v1530
    %4340 = vmatpush.msra.mxu0 %v1522
    %4341 = vmatpush.msra.mxu0 %v1514
    %4342 = vmatpush.msra.mxu0 %v1506
    %4343 = vmatmul.f32.gmra.mxu0 %v1233
    %v4344 = vpop.f32.mrf.mxu0
    %v4345 = vadd.f32 %v4325, %v4344
    %4346 = vdwg.mxu0
    %4347 = vmatpush.msra.mxu0 %v1754
    %4348 = vmatpush.msra.mxu0 %v1746
    %4349 = vmatpush.msra.mxu0 %v1738
    %4350 = vmatpush.msra.mxu0 %v1730
    %4351 = vmatpush.msra.mxu0 %v1722
    %4352 = vmatpush.msra.mxu0 %v1714
    %4353 = vmatpush.msra.mxu0 %v1706
    %4354 = vmatpush.msra.mxu0 %v1698
    %4355 = vmatpush.msra.mxu0 %v1690
    %4356 = vmatpush.msra.mxu0 %v1682
    %4357 = vmatpush.msra.mxu0 %v1674
    %4358 = vmatpush.msra.mxu0 %v1666
    %4359 = vmatpush.msra.mxu0 %v1658
    %4360 = vmatpush.msra.mxu0 %v1650
    %4361 = vmatpush.msra.mxu0 %v1642
    %4362 = vmatpush.msra.mxu0 %v1634
    %4363 = vmatmul.f32.gmra.mxu0 %v1234
    %v4364 = vpop.f32.mrf.mxu0
    %v4365 = vadd.f32 %v4345, %v4364
    %4366 = vdwg.mxu0
    %4367 = vmatpush.msra.mxu0 %v1882
    %4368 = vmatpush.msra.mxu0 %v1874
    %4369 = vmatpush.msra.mxu0 %v1866
    %4370 = vmatpush.msra.mxu0 %v1858
    %4371 = vmatpush.msra.mxu0 %v1850
    %4372 = vmatpush.msra.mxu0 %v1842
    %4373 = vmatpush.msra.mxu0 %v1834
    %4374 = vmatpush.msra.mxu0 %v1826
    %4375 = vmatpush.msra.mxu0 %v1818
    %4376 = vmatpush.msra.mxu0 %v1810
    %4377 = vmatpush.msra.mxu0 %v1802
    %4378 = vmatpush.msra.mxu0 %v1794
    %4379 = vmatpush.msra.mxu0 %v1786
    %4380 = vmatpush.msra.mxu0 %v1778
    %4381 = vmatpush.msra.mxu0 %v1770
    %4382 = vmatpush.msra.mxu0 %v1762
    %4383 = vmatmul.f32.gmra.mxu0 %v1235
    %v4384 = vpop.f32.mrf.mxu0
    %v4385 = vadd.f32 %v4365, %v4384
    %4386 = vdwg.mxu0
    %4387 = vmatpush.msra.mxu0 %v2010
    %4388 = vmatpush.msra.mxu0 %v2002
    %4389 = vmatpush.msra.mxu0 %v1994
    %4390 = vmatpush.msra.mxu0 %v1986
    %4391 = vmatpush.msra.mxu0 %v1978
    %4392 = vmatpush.msra.mxu0 %v1970
    %4393 = vmatpush.msra.mxu0 %v1962
    %4394 = vmatpush.msra.mxu0 %v1954
    %4395 = vmatpush.msra.mxu0 %v1946
    %4396 = vmatpush.msra.mxu0 %v1938
    %4397 = vmatpush.msra.mxu0 %v1930
    %4398 = vmatpush.msra.mxu0 %v1922
    %4399 = vmatpush.msra.mxu0 %v1914
    %4400 = vmatpush.msra.mxu0 %v1906
    %4401 = vmatpush.msra.mxu0 %v1898
    %4402 = vmatpush.msra.mxu0 %v1890
    %4403 = vmatmul.f32.gmra.mxu0 %v1236
    %v4404 = vpop.f32.mrf.mxu0
    %v4405 = vadd.f32 %v4385, %v4404
    %4406 = vdwg.mxu0
    %4407 = vmatpush.msra.mxu0 %v2138
    %4408 = vmatpush.msra.mxu0 %v2130
    %4409 = vmatpush.msra.mxu0 %v2122
    %4410 = vmatpush.msra.mxu0 %v2114
    %4411 = vmatpush.msra.mxu0 %v2106
    %4412 = vmatpush.msra.mxu0 %v2098
    %4413 = vmatpush.msra.mxu0 %v2090
    %4414 = vmatpush.msra.mxu0 %v2082
    %4415 = vmatpush.msra.mxu0 %v2074
    %4416 = vmatpush.msra.mxu0 %v2066
    %4417 = vmatpush.msra.mxu0 %v2058
    %4418 = vmatpush.msra.mxu0 %v2050
    %4419 = vmatpush.msra.mxu0 %v2042
    %4420 = vmatpush.msra.mxu0 %v2034
    %4421 = vmatpush.msra.mxu0 %v2026
    %4422 = vmatpush.msra.mxu0 %v2018
    %4423 = vmatmul.f32.gmra.mxu0 %v1237
    %v4424 = vpop.f32.mrf.mxu0
    %v4425 = vadd.f32 %v4405, %v4424
    %4426 = vdwg.mxu0
    %4427 = vmatpush.msra.mxu0 %v2266
    %4428 = vmatpush.msra.mxu0 %v2258
    %4429 = vmatpush.msra.mxu0 %v2250
    %4430 = vmatpush.msra.mxu0 %v2242
    %4431 = vmatpush.msra.mxu0 %v2234
    %4432 = vmatpush.msra.mxu0 %v2226
    %4433 = vmatpush.msra.mxu0 %v2218
    %4434 = vmatpush.msra.mxu0 %v2210
    %4435 = vmatpush.msra.mxu0 %v2202
    %4436 = vmatpush.msra.mxu0 %v2194
    %4437 = vmatpush.msra.mxu0 %v2186
    %4438 = vmatpush.msra.mxu0 %v2178
    %4439 = vmatpush.msra.mxu0 %v2170
    %4440 = vmatpush.msra.mxu0 %v2162
    %4441 = vmatpush.msra.mxu0 %v2154
    %4442 = vmatpush.msra.mxu0 %v2146
    %4443 = vmatmul.f32.gmra.mxu0 %v1238
    %v4444 = vpop.f32.mrf.mxu0
    %v4445 = vadd.f32 %v4425, %v4444
    %4446 = vdwg.mxu0
    %4447 = vmatpush.msra.mxu0 %v2394
    %4448 = vmatpush.msra.mxu0 %v2386
    %4449 = vmatpush.msra.mxu0 %v2378
    %4450 = vmatpush.msra.mxu0 %v2370
    %4451 = vmatpush.msra.mxu0 %v2362
    %4452 = vmatpush.msra.mxu0 %v2354
    %4453 = vmatpush.msra.mxu0 %v2346
    %4454 = vmatpush.msra.mxu0 %v2338
    %4455 = vmatpush.msra.mxu0 %v2330
    %4456 = vmatpush.msra.mxu0 %v2322
    %4457 = vmatpush.msra.mxu0 %v2314
    %4458 = vmatpush.msra.mxu0 %v2306
    %4459 = vmatpush.msra.mxu0 %v2298
    %4460 = vmatpush.msra.mxu0 %v2290
    %4461 = vmatpush.msra.mxu0 %v2282
    %4462 = vmatpush.msra.mxu0 %v2274
    %4463 = vmatmul.f32.gmra.mxu0 %v1239
    %v4464 = vpop.f32.mrf.mxu0
    %v4465 = vadd.f32 %v4445, %v4464
    %4466 = vdwg.mxu0
    %4467 = vmatpush.msra.mxu0 %v2522
    %4468 = vmatpush.msra.mxu0 %v2514
    %4469 = vmatpush.msra.mxu0 %v2506
    %4470 = vmatpush.msra.mxu0 %v2498
    %4471 = vmatpush.msra.mxu0 %v2490
    %4472 = vmatpush.msra.mxu0 %v2482
    %4473 = vmatpush.msra.mxu0 %v2474
    %4474 = vmatpush.msra.mxu0 %v2466
    %4475 = vmatpush.msra.mxu0 %v2458
    %4476 = vmatpush.msra.mxu0 %v2450
    %4477 = vmatpush.msra.mxu0 %v2442
    %4478 = vmatpush.msra.mxu0 %v2434
    %4479 = vmatpush.msra.mxu0 %v2426
    %4480 = vmatpush.msra.mxu0 %v2418
    %4481 = vmatpush.msra.mxu0 %v2410
    %4482 = vmatpush.msra.mxu0 %v2402
    %4483 = vmatmul.f32.gmra.mxu0 %v1240
    %v4484 = vpop.f32.mrf.mxu0
    %v4485 = vadd.f32 %v4465, %v4484
    %4486 = vdwg.mxu0
    %4487 = vmatpush.msra.mxu0 %v2650
    %4488 = vmatpush.msra.mxu0 %v2642
    %4489 = vmatpush.msra.mxu0 %v2634
    %4490 = vmatpush.msra.mxu0 %v2626
    %4491 = vmatpush.msra.mxu0 %v2618
    %4492 = vmatpush.msra.mxu0 %v2610
    %4493 = vmatpush.msra.mxu0 %v2602
    %4494 = vmatpush.msra.mxu0 %v2594
    %4495 = vmatpush.msra.mxu0 %v2586
    %4496 = vmatpush.msra.mxu0 %v2578
    %4497 = vmatpush.msra.mxu0 %v2570
    %4498 = vmatpush.msra.mxu0 %v2562
    %4499 = vmatpush.msra.mxu0 %v2554
    %4500 = vmatpush.msra.mxu0 %v2546
    %4501 = vmatpush.msra.mxu0 %v2538
    %4502 = vmatpush.msra.mxu0 %v2530
    %4503 = vmatmul.f32.gmra.mxu0 %v1241
    %v4504 = vpop.f32.mrf.mxu0
    %v4505 = vadd.f32 %v4485, %v4504
    %4506 = vdwg.mxu0
    %4507 = vmatpush.msra.mxu0 %v2778
    %4508 = vmatpush.msra.mxu0 %v2770
    %4509 = vmatpush.msra.mxu0 %v2762
    %4510 = vmatpush.msra.mxu0 %v2754
    %4511 = vmatpush.msra.mxu0 %v2746
    %4512 = vmatpush.msra.mxu0 %v2738
    %4513 = vmatpush.msra.mxu0 %v2730
    %4514 = vmatpush.msra.mxu0 %v2722
    %4515 = vmatpush.msra.mxu0 %v2714
    %4516 = vmatpush.msra.mxu0 %v2706
    %4517 = vmatpush.msra.mxu0 %v2698
    %4518 = vmatpush.msra.mxu0 %v2690
    %4519 = vmatpush.msra.mxu0 %v2682
    %4520 = vmatpush.msra.mxu0 %v2674
    %4521 = vmatpush.msra.mxu0 %v2666
    %4522 = vmatpush.msra.mxu0 %v2658
    %4523 = vmatmul.f32.gmra.mxu0 %v1242
    %v4524 = vpop.f32.mrf.mxu0
    %v4525 = vadd.f32 %v4505, %v4524
    %4526 = vdwg.mxu0
    %4527 = vmatpush.msra.mxu0 %v2906
    %4528 = vmatpush.msra.mxu0 %v2898
    %4529 = vmatpush.msra.mxu0 %v2890
    %4530 = vmatpush.msra.mxu0 %v2882
    %4531 = vmatpush.msra.mxu0 %v2874
    %4532 = vmatpush.msra.mxu0 %v2866
    %4533 = vmatpush.msra.mxu0 %v2858
    %4534 = vmatpush.msra.mxu0 %v2850
    %4535 = vmatpush.msra.mxu0 %v2842
    %4536 = vmatpush.msra.mxu0 %v2834
    %4537 = vmatpush.msra.mxu0 %v2826
    %4538 = vmatpush.msra.mxu0 %v2818
    %4539 = vmatpush.msra.mxu0 %v2810
    %4540 = vmatpush.msra.mxu0 %v2802
    %4541 = vmatpush.msra.mxu0 %v2794
    %4542 = vmatpush.msra.mxu0 %v2786
    %4543 = vmatmul.f32.gmra.mxu0 %v1243
    %v4544 = vpop.f32.mrf.mxu0
    %v4545 = vadd.f32 %v4525, %v4544
    %4546 = vdwg.mxu0
    %4547 = vmatpush.msra.mxu0 %v3034
    %4548 = vmatpush.msra.mxu0 %v3026
    %4549 = vmatpush.msra.mxu0 %v3018
    %4550 = vmatpush.msra.mxu0 %v3010
    %4551 = vmatpush.msra.mxu0 %v3002
    %4552 = vmatpush.msra.mxu0 %v2994
    %4553 = vmatpush.msra.mxu0 %v2986
    %4554 = vmatpush.msra.mxu0 %v2978
    %4555 = vmatpush.msra.mxu0 %v2970
    %4556 = vmatpush.msra.mxu0 %v2962
    %4557 = vmatpush.msra.mxu0 %v2954
    %4558 = vmatpush.msra.mxu0 %v2946
    %4559 = vmatpush.msra.mxu0 %v2938
    %4560 = vmatpush.msra.mxu0 %v2930
    %4561 = vmatpush.msra.mxu0 %v2922
    %4562 = vmatpush.msra.mxu0 %v2914
    %4563 = vmatmul.f32.gmra.mxu0 %v1244
    %v4564 = vpop.f32.mrf.mxu0
    %v4565 = vadd.f32 %v4545, %v4564
    %4566 = vdwg.mxu0
    %4567 = vmatpush.msra.mxu0 %v3162
    %4568 = vmatpush.msra.mxu0 %v3154
    %4569 = vmatpush.msra.mxu0 %v3146
    %4570 = vmatpush.msra.mxu0 %v3138
    %4571 = vmatpush.msra.mxu0 %v3130
    %4572 = vmatpush.msra.mxu0 %v3122
    %4573 = vmatpush.msra.mxu0 %v3114
    %4574 = vmatpush.msra.mxu0 %v3106
    %4575 = vmatpush.msra.mxu0 %v3098
    %4576 = vmatpush.msra.mxu0 %v3090
    %4577 = vmatpush.msra.mxu0 %v3082
    %4578 = vmatpush.msra.mxu0 %v3074
    %4579 = vmatpush.msra.mxu0 %v3066
    %4580 = vmatpush.msra.mxu0 %v3058
    %4581 = vmatpush.msra.mxu0 %v3050
    %4582 = vmatpush.msra.mxu0 %v3042
    %4583 = vmatmul.f32.gmra.mxu0 %v1245
    %v4584 = vpop.f32.mrf.mxu0
    %v4585 = vadd.f32 %v4565, %v4584
    %4586 = vdwg.mxu0
    %4587 = vmatpush.msra.mxu0 %v3290
    %4588 = vmatpush.msra.mxu0 %v3282
    %4589 = vmatpush.msra.mxu0 %v3274
    %4590 = vmatpush.msra.mxu0 %v3266
    %4591 = vmatpush.msra.mxu0 %v3258
    %4592 = vmatpush.msra.mxu0 %v3250
    %4593 = vmatpush.msra.mxu0 %v3242
    %4594 = vmatpush.msra.mxu0 %v3234
    %4595 = vmatpush.msra.mxu0 %v3226
    %4596 = vmatpush.msra.mxu0 %v3218
    %4597 = vmatpush.msra.mxu0 %v3210
    %4598 = vmatpush.msra.mxu0 %v3202
    %4599 = vmatpush.msra.mxu0 %v3194
    %4600 = vmatpush.msra.mxu0 %v3186
    %4601 = vmatpush.msra.mxu0 %v3178
    %4602 = vmatpush.msra.mxu0 %v3170
    %4603 = vmatmul.f32.gmra.mxu0 %v1246
    %v4604 = vpop.f32.mrf.mxu0
    %v4605 = vadd.f32 %v4585, %v4604
    %4606 = vdwg.mxu0
    %4607 = vmatpush.msra.mxu0 %v1371
    %4608 = vmatpush.msra.mxu0 %v1363
    %4609 = vmatpush.msra.mxu0 %v1355
    %4610 = vmatpush.msra.mxu0 %v1347
    %4611 = vmatpush.msra.mxu0 %v1339
    %4612 = vmatpush.msra.mxu0 %v1331
    %4613 = vmatpush.msra.mxu0 %v1323
    %4614 = vmatpush.msra.mxu0 %v1315
    %4615 = vmatpush.msra.mxu0 %v1307
    %4616 = vmatpush.msra.mxu0 %v1299
    %4617 = vmatpush.msra.mxu0 %v1291
    %4618 = vmatpush.msra.mxu0 %v1283
    %4619 = vmatpush.msra.mxu0 %v1275
    %4620 = vmatpush.msra.mxu0 %v1267
    %4621 = vmatpush.msra.mxu0 %v1259
    %4622 = vmatpush.msra.mxu0 %v1251
    %4623 = vmatmul.f32.gmra.mxu0 %v1231
    %v4624 = vpop.f32.mrf.mxu0
    %v4625 = vadd.f32 %v3323, %v4624
    %4626 = vdwg.mxu0
    %4627 = vmatpush.msra.mxu0 %v1499
    %4628 = vmatpush.msra.mxu0 %v1491
    %4629 = vmatpush.msra.mxu0 %v1483
    %4630 = vmatpush.msra.mxu0 %v1475
    %4631 = vmatpush.msra.mxu0 %v1467
    %4632 = vmatpush.msra.mxu0 %v1459
    %4633 = vmatpush.msra.mxu0 %v1451
    %4634 = vmatpush.msra.mxu0 %v1443
    %4635 = vmatpush.msra.mxu0 %v1435
    %4636 = vmatpush.msra.mxu0 %v1427
    %4637 = vmatpush.msra.mxu0 %v1419
    %4638 = vmatpush.msra.mxu0 %v1411
    %4639 = vmatpush.msra.mxu0 %v1403
    %4640 = vmatpush.msra.mxu0 %v1395
    %4641 = vmatpush.msra.mxu0 %v1387
    %4642 = vmatpush.msra.mxu0 %v1379
    %4643 = vmatmul.f32.gmra.mxu0 %v1232
    %v4644 = vpop.f32.mrf.mxu0
    %v4645 = vadd.f32 %v4625, %v4644
    %4646 = vdwg.mxu0
    %4647 = vmatpush.msra.mxu0 %v1627
    %4648 = vmatpush.msra.mxu0 %v1619
    %4649 = vmatpush.msra.mxu0 %v1611
    %4650 = vmatpush.msra.mxu0 %v1603
    %4651 = vmatpush.msra.mxu0 %v1595
    %4652 = vmatpush.msra.mxu0 %v1587
    %4653 = vmatpush.msra.mxu0 %v1579
    %4654 = vmatpush.msra.mxu0 %v1571
    %4655 = vmatpush.msra.mxu0 %v1563
    %4656 = vmatpush.msra.mxu0 %v1555
    %4657 = vmatpush.msra.mxu0 %v1547
    %4658 = vmatpush.msra.mxu0 %v1539
    %4659 = vmatpush.msra.mxu0 %v1531
    %4660 = vmatpush.msra.mxu0 %v1523
    %4661 = vmatpush.msra.mxu0 %v1515
    %4662 = vmatpush.msra.mxu0 %v1507
    %4663 = vmatmul.f32.gmra.mxu0 %v1233
    %v4664 = vpop.f32.mrf.mxu0
    %v4665 = vadd.f32 %v4645, %v4664
    %4666 = vdwg.mxu0
    %4667 = vmatpush.msra.mxu0 %v1755
    %4668 = vmatpush.msra.mxu0 %v1747
    %4669 = vmatpush.msra.mxu0 %v1739
    %4670 = vmatpush.msra.mxu0 %v1731
    %4671 = vmatpush.msra.mxu0 %v1723
    %4672 = vmatpush.msra.mxu0 %v1715
    %4673 = vmatpush.msra.mxu0 %v1707
    %4674 = vmatpush.msra.mxu0 %v1699
    %4675 = vmatpush.msra.mxu0 %v1691
    %4676 = vmatpush.msra.mxu0 %v1683
    %4677 = vmatpush.msra.mxu0 %v1675
    %4678 = vmatpush.msra.mxu0 %v1667
    %4679 = vmatpush.msra.mxu0 %v1659
    %4680 = vmatpush.msra.mxu0 %v1651
    %4681 = vmatpush.msra.mxu0 %v1643
    %4682 = vmatpush.msra.mxu0 %v1635
    %4683 = vmatmul.f32.gmra.mxu0 %v1234
    %v4684 = vpop.f32.mrf.mxu0
    %v4685 = vadd.f32 %v4665, %v4684
    %4686 = vdwg.mxu0
    %4687 = vmatpush.msra.mxu0 %v1883
    %4688 = vmatpush.msra.mxu0 %v1875
    %4689 = vmatpush.msra.mxu0 %v1867
    %4690 = vmatpush.msra.mxu0 %v1859
    %4691 = vmatpush.msra.mxu0 %v1851
    %4692 = vmatpush.msra.mxu0 %v1843
    %4693 = vmatpush.msra.mxu0 %v1835
    %4694 = vmatpush.msra.mxu0 %v1827
    %4695 = vmatpush.msra.mxu0 %v1819
    %4696 = vmatpush.msra.mxu0 %v1811
    %4697 = vmatpush.msra.mxu0 %v1803
    %4698 = vmatpush.msra.mxu0 %v1795
    %4699 = vmatpush.msra.mxu0 %v1787
    %4700 = vmatpush.msra.mxu0 %v1779
    %4701 = vmatpush.msra.mxu0 %v1771
    %4702 = vmatpush.msra.mxu0 %v1763
    %4703 = vmatmul.f32.gmra.mxu0 %v1235
    %v4704 = vpop.f32.mrf.mxu0
    %v4705 = vadd.f32 %v4685, %v4704
    %4706 = vdwg.mxu0
    %4707 = vmatpush.msra.mxu0 %v2011
    %4708 = vmatpush.msra.mxu0 %v2003
    %4709 = vmatpush.msra.mxu0 %v1995
    %4710 = vmatpush.msra.mxu0 %v1987
    %4711 = vmatpush.msra.mxu0 %v1979
    %4712 = vmatpush.msra.mxu0 %v1971
    %4713 = vmatpush.msra.mxu0 %v1963
    %4714 = vmatpush.msra.mxu0 %v1955
    %4715 = vmatpush.msra.mxu0 %v1947
    %4716 = vmatpush.msra.mxu0 %v1939
    %4717 = vmatpush.msra.mxu0 %v1931
    %4718 = vmatpush.msra.mxu0 %v1923
    %4719 = vmatpush.msra.mxu0 %v1915
    %4720 = vmatpush.msra.mxu0 %v1907
    %4721 = vmatpush.msra.mxu0 %v1899
    %4722 = vmatpush.msra.mxu0 %v1891
    %4723 = vmatmul.f32.gmra.mxu0 %v1236
    %v4724 = vpop.f32.mrf.mxu0
    %v4725 = vadd.f32 %v4705, %v4724
    %4726 = vdwg.mxu0
    %4727 = vmatpush.msra.mxu0 %v2139
    %4728 = vmatpush.msra.mxu0 %v2131
    %4729 = vmatpush.msra.mxu0 %v2123
    %4730 = vmatpush.msra.mxu0 %v2115
    %4731 = vmatpush.msra.mxu0 %v2107
    %4732 = vmatpush.msra.mxu0 %v2099
    %4733 = vmatpush.msra.mxu0 %v2091
    %4734 = vmatpush.msra.mxu0 %v2083
    %4735 = vmatpush.msra.mxu0 %v2075
    %4736 = vmatpush.msra.mxu0 %v2067
    %4737 = vmatpush.msra.mxu0 %v2059
    %4738 = vmatpush.msra.mxu0 %v2051
    %4739 = vmatpush.msra.mxu0 %v2043
    %4740 = vmatpush.msra.mxu0 %v2035
    %4741 = vmatpush.msra.mxu0 %v2027
    %4742 = vmatpush.msra.mxu0 %v2019
    %4743 = vmatmul.f32.gmra.mxu0 %v1237
    %v4744 = vpop.f32.mrf.mxu0
    %v4745 = vadd.f32 %v4725, %v4744
    %4746 = vdwg.mxu0
    %4747 = vmatpush.msra.mxu0 %v2267
    %4748 = vmatpush.msra.mxu0 %v2259
    %4749 = vmatpush.msra.mxu0 %v2251
    %4750 = vmatpush.msra.mxu0 %v2243
    %4751 = vmatpush.msra.mxu0 %v2235
    %4752 = vmatpush.msra.mxu0 %v2227
    %4753 = vmatpush.msra.mxu0 %v2219
    %4754 = vmatpush.msra.mxu0 %v2211
    %4755 = vmatpush.msra.mxu0 %v2203
    %4756 = vmatpush.msra.mxu0 %v2195
    %4757 = vmatpush.msra.mxu0 %v2187
    %4758 = vmatpush.msra.mxu0 %v2179
    %4759 = vmatpush.msra.mxu0 %v2171
    %4760 = vmatpush.msra.mxu0 %v2163
    %4761 = vmatpush.msra.mxu0 %v2155
    %4762 = vmatpush.msra.mxu0 %v2147
    %4763 = vmatmul.f32.gmra.mxu0 %v1238
    %v4764 = vpop.f32.mrf.mxu0
    %v4765 = vadd.f32 %v4745, %v4764
    %4766 = vdwg.mxu0
    %4767 = vmatpush.msra.mxu0 %v2395
    %4768 = vmatpush.msra.mxu0 %v2387
    %4769 = vmatpush.msra.mxu0 %v2379
    %4770 = vmatpush.msra.mxu0 %v2371
    %4771 = vmatpush.msra.mxu0 %v2363
    %4772 = vmatpush.msra.mxu0 %v2355
    %4773 = vmatpush.msra.mxu0 %v2347
    %4774 = vmatpush.msra.mxu0 %v2339
    %4775 = vmatpush.msra.mxu0 %v2331
    %4776 = vmatpush.msra.mxu0 %v2323
    %4777 = vmatpush.msra.mxu0 %v2315
    %4778 = vmatpush.msra.mxu0 %v2307
    %4779 = vmatpush.msra.mxu0 %v2299
    %4780 = vmatpush.msra.mxu0 %v2291
    %4781 = vmatpush.msra.mxu0 %v2283
    %4782 = vmatpush.msra.mxu0 %v2275
    %4783 = vmatmul.f32.gmra.mxu0 %v1239
    %v4784 = vpop.f32.mrf.mxu0
    %v4785 = vadd.f32 %v4765, %v4784
    %4786 = vdwg.mxu0
    %4787 = vmatpush.msra.mxu0 %v2523
    %4788 = vmatpush.msra.mxu0 %v2515
    %4789 = vmatpush.msra.mxu0 %v2507
    %4790 = vmatpush.msra.mxu0 %v2499
    %4791 = vmatpush.msra.mxu0 %v2491
    %4792 = vmatpush.msra.mxu0 %v2483
    %4793 = vmatpush.msra.mxu0 %v2475
    %4794 = vmatpush.msra.mxu0 %v2467
    %4795 = vmatpush.msra.mxu0 %v2459
    %4796 = vmatpush.msra.mxu0 %v2451
    %4797 = vmatpush.msra.mxu0 %v2443
    %4798 = vmatpush.msra.mxu0 %v2435
    %4799 = vmatpush.msra.mxu0 %v2427
    %4800 = vmatpush.msra.mxu0 %v2419
    %4801 = vmatpush.msra.mxu0 %v2411
    %4802 = vmatpush.msra.mxu0 %v2403
    %4803 = vmatmul.f32.gmra.mxu0 %v1240
    %v4804 = vpop.f32.mrf.mxu0
    %v4805 = vadd.f32 %v4785, %v4804
    %4806 = vdwg.mxu0
    %4807 = vmatpush.msra.mxu0 %v2651
    %4808 = vmatpush.msra.mxu0 %v2643
    %4809 = vmatpush.msra.mxu0 %v2635
    %4810 = vmatpush.msra.mxu0 %v2627
    %4811 = vmatpush.msra.mxu0 %v2619
    %4812 = vmatpush.msra.mxu0 %v2611
    %4813 = vmatpush.msra.mxu0 %v2603
    %4814 = vmatpush.msra.mxu0 %v2595
    %4815 = vmatpush.msra.mxu0 %v2587
    %4816 = vmatpush.msra.mxu0 %v2579
    %4817 = vmatpush.msra.mxu0 %v2571
    %4818 = vmatpush.msra.mxu0 %v2563
    %4819 = vmatpush.msra.mxu0 %v2555
    %4820 = vmatpush.msra.mxu0 %v2547
    %4821 = vmatpush.msra.mxu0 %v2539
    %4822 = vmatpush.msra.mxu0 %v2531
    %4823 = vmatmul.f32.gmra.mxu0 %v1241
    %v4824 = vpop.f32.mrf.mxu0
    %v4825 = vadd.f32 %v4805, %v4824
    %4826 = vdwg.mxu0
    %4827 = vmatpush.msra.mxu0 %v2779
    %4828 = vmatpush.msra.mxu0 %v2771
    %4829 = vmatpush.msra.mxu0 %v2763
    %4830 = vmatpush.msra.mxu0 %v2755
    %4831 = vmatpush.msra.mxu0 %v2747
    %4832 = vmatpush.msra.mxu0 %v2739
    %4833 = vmatpush.msra.mxu0 %v2731
    %4834 = vmatpush.msra.mxu0 %v2723
    %4835 = vmatpush.msra.mxu0 %v2715
    %4836 = vmatpush.msra.mxu0 %v2707
    %4837 = vmatpush.msra.mxu0 %v2699
    %4838 = vmatpush.msra.mxu0 %v2691
    %4839 = vmatpush.msra.mxu0 %v2683
    %4840 = vmatpush.msra.mxu0 %v2675
    %4841 = vmatpush.msra.mxu0 %v2667
    %4842 = vmatpush.msra.mxu0 %v2659
    %4843 = vmatmul.f32.gmra.mxu0 %v1242
    %v4844 = vpop.f32.mrf.mxu0
    %v4845 = vadd.f32 %v4825, %v4844
    %4846 = vdwg.mxu0
    %4847 = vmatpush.msra.mxu0 %v2907
    %4848 = vmatpush.msra.mxu0 %v2899
    %4849 = vmatpush.msra.mxu0 %v2891
    %4850 = vmatpush.msra.mxu0 %v2883
    %4851 = vmatpush.msra.mxu0 %v2875
    %4852 = vmatpush.msra.mxu0 %v2867
    %4853 = vmatpush.msra.mxu0 %v2859
    %4854 = vmatpush.msra.mxu0 %v2851
    %4855 = vmatpush.msra.mxu0 %v2843
    %4856 = vmatpush.msra.mxu0 %v2835
    %4857 = vmatpush.msra.mxu0 %v2827
    %4858 = vmatpush.msra.mxu0 %v2819
    %4859 = vmatpush.msra.mxu0 %v2811
    %4860 = vmatpush.msra.mxu0 %v2803
    %4861 = vmatpush.msra.mxu0 %v2795
    %4862 = vmatpush.msra.mxu0 %v2787
    %4863 = vmatmul.f32.gmra.mxu0 %v1243
    %v4864 = vpop.f32.mrf.mxu0
    %v4865 = vadd.f32 %v4845, %v4864
    %4866 = vdwg.mxu0
    %4867 = vmatpush.msra.mxu0 %v3035
    %4868 = vmatpush.msra.mxu0 %v3027
    %4869 = vmatpush.msra.mxu0 %v3019
    %4870 = vmatpush.msra.mxu0 %v3011
    %4871 = vmatpush.msra.mxu0 %v3003
    %4872 = vmatpush.msra.mxu0 %v2995
    %4873 = vmatpush.msra.mxu0 %v2987
    %4874 = vmatpush.msra.mxu0 %v2979
    %4875 = vmatpush.msra.mxu0 %v2971
    %4876 = vmatpush.msra.mxu0 %v2963
    %4877 = vmatpush.msra.mxu0 %v2955
    %4878 = vmatpush.msra.mxu0 %v2947
    %4879 = vmatpush.msra.mxu0 %v2939
    %4880 = vmatpush.msra.mxu0 %v2931
    %4881 = vmatpush.msra.mxu0 %v2923
    %4882 = vmatpush.msra.mxu0 %v2915
    %4883 = vmatmul.f32.gmra.mxu0 %v1244
    %v4884 = vpop.f32.mrf.mxu0
    %v4885 = vadd.f32 %v4865, %v4884
    %4886 = vdwg.mxu0
    %4887 = vmatpush.msra.mxu0 %v3163
    %4888 = vmatpush.msra.mxu0 %v3155
    %4889 = vmatpush.msra.mxu0 %v3147
    %4890 = vmatpush.msra.mxu0 %v3139
    %4891 = vmatpush.msra.mxu0 %v3131
    %4892 = vmatpush.msra.mxu0 %v3123
    %4893 = vmatpush.msra.mxu0 %v3115
    %4894 = vmatpush.msra.mxu0 %v3107
    %4895 = vmatpush.msra.mxu0 %v3099
    %4896 = vmatpush.msra.mxu0 %v3091
    %4897 = vmatpush.msra.mxu0 %v3083
    %4898 = vmatpush.msra.mxu0 %v3075
    %4899 = vmatpush.msra.mxu0 %v3067
    %4900 = vmatpush.msra.mxu0 %v3059
    %4901 = vmatpush.msra.mxu0 %v3051
    %4902 = vmatpush.msra.mxu0 %v3043
    %4903 = vmatmul.f32.gmra.mxu0 %v1245
    %v4904 = vpop.f32.mrf.mxu0
    %v4905 = vadd.f32 %v4885, %v4904
    %4906 = vdwg.mxu0
    %4907 = vmatpush.msra.mxu0 %v3291
    %4908 = vmatpush.msra.mxu0 %v3283
    %4909 = vmatpush.msra.mxu0 %v3275
    %4910 = vmatpush.msra.mxu0 %v3267
    %4911 = vmatpush.msra.mxu0 %v3259
    %4912 = vmatpush.msra.mxu0 %v3251
    %4913 = vmatpush.msra.mxu0 %v3243
    %4914 = vmatpush.msra.mxu0 %v3235
    %4915 = vmatpush.msra.mxu0 %v3227
    %4916 = vmatpush.msra.mxu0 %v3219
    %4917 = vmatpush.msra.mxu0 %v3211
    %4918 = vmatpush.msra.mxu0 %v3203
    %4919 = vmatpush.msra.mxu0 %v3195
    %4920 = vmatpush.msra.mxu0 %v3187
    %4921 = vmatpush.msra.mxu0 %v3179
    %4922 = vmatpush.msra.mxu0 %v3171
    %4923 = vmatmul.f32.gmra.mxu0 %v1246
    %v4924 = vpop.f32.mrf.mxu0
    %v4925 = vadd.f32 %v4905, %v4924
    %4926 = vdwg.mxu0
    %4927 = vmatpush.msra.mxu0 %v1372
    %4928 = vmatpush.msra.mxu0 %v1364
    %4929 = vmatpush.msra.mxu0 %v1356
    %4930 = vmatpush.msra.mxu0 %v1348
    %4931 = vmatpush.msra.mxu0 %v1340
    %4932 = vmatpush.msra.mxu0 %v1332
    %4933 = vmatpush.msra.mxu0 %v1324
    %4934 = vmatpush.msra.mxu0 %v1316
    %4935 = vmatpush.msra.mxu0 %v1308
    %4936 = vmatpush.msra.mxu0 %v1300
    %4937 = vmatpush.msra.mxu0 %v1292
    %4938 = vmatpush.msra.mxu0 %v1284
    %4939 = vmatpush.msra.mxu0 %v1276
    %4940 = vmatpush.msra.mxu0 %v1268
    %4941 = vmatpush.msra.mxu0 %v1260
    %4942 = vmatpush.msra.mxu0 %v1252
    %4943 = vmatmul.f32.gmra.mxu0 %v1231
    %v4944 = vpop.f32.mrf.mxu0
    %v4945 = vadd.f32 %v3324, %v4944
    %4946 = vdwg.mxu0
    %4947 = vmatpush.msra.mxu0 %v1500
    %4948 = vmatpush.msra.mxu0 %v1492
    %4949 = vmatpush.msra.mxu0 %v1484
    %4950 = vmatpush.msra.mxu0 %v1476
    %4951 = vmatpush.msra.mxu0 %v1468
    %4952 = vmatpush.msra.mxu0 %v1460
    %4953 = vmatpush.msra.mxu0 %v1452
    %4954 = vmatpush.msra.mxu0 %v1444
    %4955 = vmatpush.msra.mxu0 %v1436
    %4956 = vmatpush.msra.mxu0 %v1428
    %4957 = vmatpush.msra.mxu0 %v1420
    %4958 = vmatpush.msra.mxu0 %v1412
    %4959 = vmatpush.msra.mxu0 %v1404
    %4960 = vmatpush.msra.mxu0 %v1396
    %4961 = vmatpush.msra.mxu0 %v1388
    %4962 = vmatpush.msra.mxu0 %v1380
    %4963 = vmatmul.f32.gmra.mxu0 %v1232
    %v4964 = vpop.f32.mrf.mxu0
    %v4965 = vadd.f32 %v4945, %v4964
    %4966 = vdwg.mxu0
    %4967 = vmatpush.msra.mxu0 %v1628
    %4968 = vmatpush.msra.mxu0 %v1620
    %4969 = vmatpush.msra.mxu0 %v1612
    %4970 = vmatpush.msra.mxu0 %v1604
    %4971 = vmatpush.msra.mxu0 %v1596
    %4972 = vmatpush.msra.mxu0 %v1588
    %4973 = vmatpush.msra.mxu0 %v1580
    %4974 = vmatpush.msra.mxu0 %v1572
    %4975 = vmatpush.msra.mxu0 %v1564
    %4976 = vmatpush.msra.mxu0 %v1556
    %4977 = vmatpush.msra.mxu0 %v1548
    %4978 = vmatpush.msra.mxu0 %v1540
    %4979 = vmatpush.msra.mxu0 %v1532
    %4980 = vmatpush.msra.mxu0 %v1524
    %4981 = vmatpush.msra.mxu0 %v1516
    %4982 = vmatpush.msra.mxu0 %v1508
    %4983 = vmatmul.f32.gmra.mxu0 %v1233
    %v4984 = vpop.f32.mrf.mxu0
    %v4985 = vadd.f32 %v4965, %v4984
    %4986 = vdwg.mxu0
    %4987 = vmatpush.msra.mxu0 %v1756
    %4988 = vmatpush.msra.mxu0 %v1748
    %4989 = vmatpush.msra.mxu0 %v1740
    %4990 = vmatpush.msra.mxu0 %v1732
    %4991 = vmatpush.msra.mxu0 %v1724
    %4992 = vmatpush.msra.mxu0 %v1716
    %4993 = vmatpush.msra.mxu0 %v1708
    %4994 = vmatpush.msra.mxu0 %v1700
    %4995 = vmatpush.msra.mxu0 %v1692
    %4996 = vmatpush.msra.mxu0 %v1684
    %4997 = vmatpush.msra.mxu0 %v1676
    %4998 = vmatpush.msra.mxu0 %v1668
    %4999 = vmatpush.msra.mxu0 %v1660
    %5000 = vmatpush.msra.mxu0 %v1652
    %5001 = vmatpush.msra.mxu0 %v1644
    %5002 = vmatpush.msra.mxu0 %v1636
    %5003 = vmatmul.f32.gmra.mxu0 %v1234
    %v5004 = vpop.f32.mrf.mxu0
    %v5005 = vadd.f32 %v4985, %v5004
    %5006 = vdwg.mxu0
    %5007 = vmatpush.msra.mxu0 %v1884
    %5008 = vmatpush.msra.mxu0 %v1876
    %5009 = vmatpush.msra.mxu0 %v1868
    %5010 = vmatpush.msra.mxu0 %v1860
    %5011 = vmatpush.msra.mxu0 %v1852
    %5012 = vmatpush.msra.mxu0 %v1844
    %5013 = vmatpush.msra.mxu0 %v1836
    %5014 = vmatpush.msra.mxu0 %v1828
    %5015 = vmatpush.msra.mxu0 %v1820
    %5016 = vmatpush.msra.mxu0 %v1812
    %5017 = vmatpush.msra.mxu0 %v1804
    %5018 = vmatpush.msra.mxu0 %v1796
    %5019 = vmatpush.msra.mxu0 %v1788
    %5020 = vmatpush.msra.mxu0 %v1780
    %5021 = vmatpush.msra.mxu0 %v1772
    %5022 = vmatpush.msra.mxu0 %v1764
    %5023 = vmatmul.f32.gmra.mxu0 %v1235
    %v5024 = vpop.f32.mrf.mxu0
    %v5025 = vadd.f32 %v5005, %v5024
    %5026 = vdwg.mxu0
    %5027 = vmatpush.msra.mxu0 %v2012
    %5028 = vmatpush.msra.mxu0 %v2004
    %5029 = vmatpush.msra.mxu0 %v1996
    %5030 = vmatpush.msra.mxu0 %v1988
    %5031 = vmatpush.msra.mxu0 %v1980
    %5032 = vmatpush.msra.mxu0 %v1972
    %5033 = vmatpush.msra.mxu0 %v1964
    %5034 = vmatpush.msra.mxu0 %v1956
    %5035 = vmatpush.msra.mxu0 %v1948
    %5036 = vmatpush.msra.mxu0 %v1940
    %5037 = vmatpush.msra.mxu0 %v1932
    %5038 = vmatpush.msra.mxu0 %v1924
    %5039 = vmatpush.msra.mxu0 %v1916
    %5040 = vmatpush.msra.mxu0 %v1908
    %5041 = vmatpush.msra.mxu0 %v1900
    %5042 = vmatpush.msra.mxu0 %v1892
    %5043 = vmatmul.f32.gmra.mxu0 %v1236
    %v5044 = vpop.f32.mrf.mxu0
    %v5045 = vadd.f32 %v5025, %v5044
    %5046 = vdwg.mxu0
    %5047 = vmatpush.msra.mxu0 %v2140
    %5048 = vmatpush.msra.mxu0 %v2132
    %5049 = vmatpush.msra.mxu0 %v2124
    %5050 = vmatpush.msra.mxu0 %v2116
    %5051 = vmatpush.msra.mxu0 %v2108
    %5052 = vmatpush.msra.mxu0 %v2100
    %5053 = vmatpush.msra.mxu0 %v2092
    %5054 = vmatpush.msra.mxu0 %v2084
    %5055 = vmatpush.msra.mxu0 %v2076
    %5056 = vmatpush.msra.mxu0 %v2068
    %5057 = vmatpush.msra.mxu0 %v2060
    %5058 = vmatpush.msra.mxu0 %v2052
    %5059 = vmatpush.msra.mxu0 %v2044
    %5060 = vmatpush.msra.mxu0 %v2036
    %5061 = vmatpush.msra.mxu0 %v2028
    %5062 = vmatpush.msra.mxu0 %v2020
    %5063 = vmatmul.f32.gmra.mxu0 %v1237
    %v5064 = vpop.f32.mrf.mxu0
    %v5065 = vadd.f32 %v5045, %v5064
    %5066 = vdwg.mxu0
    %5067 = vmatpush.msra.mxu0 %v2268
    %5068 = vmatpush.msra.mxu0 %v2260
    %5069 = vmatpush.msra.mxu0 %v2252
    %5070 = vmatpush.msra.mxu0 %v2244
    %5071 = vmatpush.msra.mxu0 %v2236
    %5072 = vmatpush.msra.mxu0 %v2228
    %5073 = vmatpush.msra.mxu0 %v2220
    %5074 = vmatpush.msra.mxu0 %v2212
    %5075 = vmatpush.msra.mxu0 %v2204
    %5076 = vmatpush.msra.mxu0 %v2196
    %5077 = vmatpush.msra.mxu0 %v2188
    %5078 = vmatpush.msra.mxu0 %v2180
    %5079 = vmatpush.msra.mxu0 %v2172
    %5080 = vmatpush.msra.mxu0 %v2164
    %5081 = vmatpush.msra.mxu0 %v2156
    %5082 = vmatpush.msra.mxu0 %v2148
    %5083 = vmatmul.f32.gmra.mxu0 %v1238
    %v5084 = vpop.f32.mrf.mxu0
    %v5085 = vadd.f32 %v5065, %v5084
    %5086 = vdwg.mxu0
    %5087 = vmatpush.msra.mxu0 %v2396
    %5088 = vmatpush.msra.mxu0 %v2388
    %5089 = vmatpush.msra.mxu0 %v2380
    %5090 = vmatpush.msra.mxu0 %v2372
    %5091 = vmatpush.msra.mxu0 %v2364
    %5092 = vmatpush.msra.mxu0 %v2356
    %5093 = vmatpush.msra.mxu0 %v2348
    %5094 = vmatpush.msra.mxu0 %v2340
    %5095 = vmatpush.msra.mxu0 %v2332
    %5096 = vmatpush.msra.mxu0 %v2324
    %5097 = vmatpush.msra.mxu0 %v2316
    %5098 = vmatpush.msra.mxu0 %v2308
    %5099 = vmatpush.msra.mxu0 %v2300
    %5100 = vmatpush.msra.mxu0 %v2292
    %5101 = vmatpush.msra.mxu0 %v2284
    %5102 = vmatpush.msra.mxu0 %v2276
    %5103 = vmatmul.f32.gmra.mxu0 %v1239
    %v5104 = vpop.f32.mrf.mxu0
    %v5105 = vadd.f32 %v5085, %v5104
    %5106 = vdwg.mxu0
    %5107 = vmatpush.msra.mxu0 %v2524
    %5108 = vmatpush.msra.mxu0 %v2516
    %5109 = vmatpush.msra.mxu0 %v2508
    %5110 = vmatpush.msra.mxu0 %v2500
    %5111 = vmatpush.msra.mxu0 %v2492
    %5112 = vmatpush.msra.mxu0 %v2484
    %5113 = vmatpush.msra.mxu0 %v2476
    %5114 = vmatpush.msra.mxu0 %v2468
    %5115 = vmatpush.msra.mxu0 %v2460
    %5116 = vmatpush.msra.mxu0 %v2452
    %5117 = vmatpush.msra.mxu0 %v2444
    %5118 = vmatpush.msra.mxu0 %v2436
    %5119 = vmatpush.msra.mxu0 %v2428
    %5120 = vmatpush.msra.mxu0 %v2420
    %5121 = vmatpush.msra.mxu0 %v2412
    %5122 = vmatpush.msra.mxu0 %v2404
    %5123 = vmatmul.f32.gmra.mxu0 %v1240
    %v5124 = vpop.f32.mrf.mxu0
    %v5125 = vadd.f32 %v5105, %v5124
    %5126 = vdwg.mxu0
    %5127 = vmatpush.msra.mxu0 %v2652
    %5128 = vmatpush.msra.mxu0 %v2644
    %5129 = vmatpush.msra.mxu0 %v2636
    %5130 = vmatpush.msra.mxu0 %v2628
    %5131 = vmatpush.msra.mxu0 %v2620
    %5132 = vmatpush.msra.mxu0 %v2612
    %5133 = vmatpush.msra.mxu0 %v2604
    %5134 = vmatpush.msra.mxu0 %v2596
    %5135 = vmatpush.msra.mxu0 %v2588
    %5136 = vmatpush.msra.mxu0 %v2580
    %5137 = vmatpush.msra.mxu0 %v2572
    %5138 = vmatpush.msra.mxu0 %v2564
    %5139 = vmatpush.msra.mxu0 %v2556
    %5140 = vmatpush.msra.mxu0 %v2548
    %5141 = vmatpush.msra.mxu0 %v2540
    %5142 = vmatpush.msra.mxu0 %v2532
    %5143 = vmatmul.f32.gmra.mxu0 %v1241
    %v5144 = vpop.f32.mrf.mxu0
    %v5145 = vadd.f32 %v5125, %v5144
    %5146 = vdwg.mxu0
    %5147 = vmatpush.msra.mxu0 %v2780
    %5148 = vmatpush.msra.mxu0 %v2772
    %5149 = vmatpush.msra.mxu0 %v2764
    %5150 = vmatpush.msra.mxu0 %v2756
    %5151 = vmatpush.msra.mxu0 %v2748
    %5152 = vmatpush.msra.mxu0 %v2740
    %5153 = vmatpush.msra.mxu0 %v2732
    %5154 = vmatpush.msra.mxu0 %v2724
    %5155 = vmatpush.msra.mxu0 %v2716
    %5156 = vmatpush.msra.mxu0 %v2708
    %5157 = vmatpush.msra.mxu0 %v2700
    %5158 = vmatpush.msra.mxu0 %v2692
    %5159 = vmatpush.msra.mxu0 %v2684
    %5160 = vmatpush.msra.mxu0 %v2676
    %5161 = vmatpush.msra.mxu0 %v2668
    %5162 = vmatpush.msra.mxu0 %v2660
    %5163 = vmatmul.f32.gmra.mxu0 %v1242
    %v5164 = vpop.f32.mrf.mxu0
    %v5165 = vadd.f32 %v5145, %v5164
    %5166 = vdwg.mxu0
    %5167 = vmatpush.msra.mxu0 %v2908
    %5168 = vmatpush.msra.mxu0 %v2900
    %5169 = vmatpush.msra.mxu0 %v2892
    %5170 = vmatpush.msra.mxu0 %v2884
    %5171 = vmatpush.msra.mxu0 %v2876
    %5172 = vmatpush.msra.mxu0 %v2868
    %5173 = vmatpush.msra.mxu0 %v2860
    %5174 = vmatpush.msra.mxu0 %v2852
    %5175 = vmatpush.msra.mxu0 %v2844
    %5176 = vmatpush.msra.mxu0 %v2836
    %5177 = vmatpush.msra.mxu0 %v2828
    %5178 = vmatpush.msra.mxu0 %v2820
    %5179 = vmatpush.msra.mxu0 %v2812
    %5180 = vmatpush.msra.mxu0 %v2804
    %5181 = vmatpush.msra.mxu0 %v2796
    %5182 = vmatpush.msra.mxu0 %v2788
    %5183 = vmatmul.f32.gmra.mxu0 %v1243
    %v5184 = vpop.f32.mrf.mxu0
    %v5185 = vadd.f32 %v5165, %v5184
    %5186 = vdwg.mxu0
    %5187 = vmatpush.msra.mxu0 %v3036
    %5188 = vmatpush.msra.mxu0 %v3028
    %5189 = vmatpush.msra.mxu0 %v3020
    %5190 = vmatpush.msra.mxu0 %v3012
    %5191 = vmatpush.msra.mxu0 %v3004
    %5192 = vmatpush.msra.mxu0 %v2996
    %5193 = vmatpush.msra.mxu0 %v2988
    %5194 = vmatpush.msra.mxu0 %v2980
    %5195 = vmatpush.msra.mxu0 %v2972
    %5196 = vmatpush.msra.mxu0 %v2964
    %5197 = vmatpush.msra.mxu0 %v2956
    %5198 = vmatpush.msra.mxu0 %v2948
    %5199 = vmatpush.msra.mxu0 %v2940
    %5200 = vmatpush.msra.mxu0 %v2932
    %5201 = vmatpush.msra.mxu0 %v2924
    %5202 = vmatpush.msra.mxu0 %v2916
    %5203 = vmatmul.f32.gmra.mxu0 %v1244
    %v5204 = vpop.f32.mrf.mxu0
    %v5205 = vadd.f32 %v5185, %v5204
    %5206 = vdwg.mxu0
    %5207 = vmatpush.msra.mxu0 %v3164
    %5208 = vmatpush.msra.mxu0 %v3156
    %5209 = vmatpush.msra.mxu0 %v3148
    %5210 = vmatpush.msra.mxu0 %v3140
    %5211 = vmatpush.msra.mxu0 %v3132
    %5212 = vmatpush.msra.mxu0 %v3124
    %5213 = vmatpush.msra.mxu0 %v3116
    %5214 = vmatpush.msra.mxu0 %v3108
    %5215 = vmatpush.msra.mxu0 %v3100
    %5216 = vmatpush.msra.mxu0 %v3092
    %5217 = vmatpush.msra.mxu0 %v3084
    %5218 = vmatpush.msra.mxu0 %v3076
    %5219 = vmatpush.msra.mxu0 %v3068
    %5220 = vmatpush.msra.mxu0 %v3060
    %5221 = vmatpush.msra.mxu0 %v3052
    %5222 = vmatpush.msra.mxu0 %v3044
    %5223 = vmatmul.f32.gmra.mxu0 %v1245
    %v5224 = vpop.f32.mrf.mxu0
    %v5225 = vadd.f32 %v5205, %v5224
    %5226 = vdwg.mxu0
    %5227 = vmatpush.msra.mxu0 %v3292
    %5228 = vmatpush.msra.mxu0 %v3284
    %5229 = vmatpush.msra.mxu0 %v3276
    %5230 = vmatpush.msra.mxu0 %v3268
    %5231 = vmatpush.msra.mxu0 %v3260
    %5232 = vmatpush.msra.mxu0 %v3252
    %5233 = vmatpush.msra.mxu0 %v3244
    %5234 = vmatpush.msra.mxu0 %v3236
    %5235 = vmatpush.msra.mxu0 %v3228
    %5236 = vmatpush.msra.mxu0 %v3220
    %5237 = vmatpush.msra.mxu0 %v3212
    %5238 = vmatpush.msra.mxu0 %v3204
    %5239 = vmatpush.msra.mxu0 %v3196
    %5240 = vmatpush.msra.mxu0 %v3188
    %5241 = vmatpush.msra.mxu0 %v3180
    %5242 = vmatpush.msra.mxu0 %v3172
    %5243 = vmatmul.f32.gmra.mxu0 %v1246
    %v5244 = vpop.f32.mrf.mxu0
    %v5245 = vadd.f32 %v5225, %v5244
    %5246 = vdwg.mxu0
    %5247 = vmatpush.msra.mxu0 %v1373
    %5248 = vmatpush.msra.mxu0 %v1365
    %5249 = vmatpush.msra.mxu0 %v1357
    %5250 = vmatpush.msra.mxu0 %v1349
    %5251 = vmatpush.msra.mxu0 %v1341
    %5252 = vmatpush.msra.mxu0 %v1333
    %5253 = vmatpush.msra.mxu0 %v1325
    %5254 = vmatpush.msra.mxu0 %v1317
    %5255 = vmatpush.msra.mxu0 %v1309
    %5256 = vmatpush.msra.mxu0 %v1301
    %5257 = vmatpush.msra.mxu0 %v1293
    %5258 = vmatpush.msra.mxu0 %v1285
    %5259 = vmatpush.msra.mxu0 %v1277
    %5260 = vmatpush.msra.mxu0 %v1269
    %5261 = vmatpush.msra.mxu0 %v1261
    %5262 = vmatpush.msra.mxu0 %v1253
    %5263 = vmatmul.f32.gmra.mxu0 %v1231
    %v5264 = vpop.f32.mrf.mxu0
    %v5265 = vadd.f32 %v3325, %v5264
    %5266 = vdwg.mxu0
    %5267 = vmatpush.msra.mxu0 %v1501
    %5268 = vmatpush.msra.mxu0 %v1493
    %5269 = vmatpush.msra.mxu0 %v1485
    %5270 = vmatpush.msra.mxu0 %v1477
    %5271 = vmatpush.msra.mxu0 %v1469
    %5272 = vmatpush.msra.mxu0 %v1461
    %5273 = vmatpush.msra.mxu0 %v1453
    %5274 = vmatpush.msra.mxu0 %v1445
    %5275 = vmatpush.msra.mxu0 %v1437
    %5276 = vmatpush.msra.mxu0 %v1429
    %5277 = vmatpush.msra.mxu0 %v1421
    %5278 = vmatpush.msra.mxu0 %v1413
    %5279 = vmatpush.msra.mxu0 %v1405
    %5280 = vmatpush.msra.mxu0 %v1397
    %5281 = vmatpush.msra.mxu0 %v1389
    %5282 = vmatpush.msra.mxu0 %v1381
    %5283 = vmatmul.f32.gmra.mxu0 %v1232
    %v5284 = vpop.f32.mrf.mxu0
    %v5285 = vadd.f32 %v5265, %v5284
    %5286 = vdwg.mxu0
    %5287 = vmatpush.msra.mxu0 %v1629
    %5288 = vmatpush.msra.mxu0 %v1621
    %5289 = vmatpush.msra.mxu0 %v1613
    %5290 = vmatpush.msra.mxu0 %v1605
    %5291 = vmatpush.msra.mxu0 %v1597
    %5292 = vmatpush.msra.mxu0 %v1589
    %5293 = vmatpush.msra.mxu0 %v1581
    %5294 = vmatpush.msra.mxu0 %v1573
    %5295 = vmatpush.msra.mxu0 %v1565
    %5296 = vmatpush.msra.mxu0 %v1557
    %5297 = vmatpush.msra.mxu0 %v1549
    %5298 = vmatpush.msra.mxu0 %v1541
    %5299 = vmatpush.msra.mxu0 %v1533
    %5300 = vmatpush.msra.mxu0 %v1525
    %5301 = vmatpush.msra.mxu0 %v1517
    %5302 = vmatpush.msra.mxu0 %v1509
    %5303 = vmatmul.f32.gmra.mxu0 %v1233
    %v5304 = vpop.f32.mrf.mxu0
    %v5305 = vadd.f32 %v5285, %v5304
    %5306 = vdwg.mxu0
    %5307 = vmatpush.msra.mxu0 %v1757
    %5308 = vmatpush.msra.mxu0 %v1749
    %5309 = vmatpush.msra.mxu0 %v1741
    %5310 = vmatpush.msra.mxu0 %v1733
    %5311 = vmatpush.msra.mxu0 %v1725
    %5312 = vmatpush.msra.mxu0 %v1717
    %5313 = vmatpush.msra.mxu0 %v1709
    %5314 = vmatpush.msra.mxu0 %v1701
    %5315 = vmatpush.msra.mxu0 %v1693
    %5316 = vmatpush.msra.mxu0 %v1685
    %5317 = vmatpush.msra.mxu0 %v1677
    %5318 = vmatpush.msra.mxu0 %v1669
    %5319 = vmatpush.msra.mxu0 %v1661
    %5320 = vmatpush.msra.mxu0 %v1653
    %5321 = vmatpush.msra.mxu0 %v1645
    %5322 = vmatpush.msra.mxu0 %v1637
    %5323 = vmatmul.f32.gmra.mxu0 %v1234
    %v5324 = vpop.f32.mrf.mxu0
    %v5325 = vadd.f32 %v5305, %v5324
    %5326 = vdwg.mxu0
    %5327 = vmatpush.msra.mxu0 %v1885
    %5328 = vmatpush.msra.mxu0 %v1877
    %5329 = vmatpush.msra.mxu0 %v1869
    %5330 = vmatpush.msra.mxu0 %v1861
    %5331 = vmatpush.msra.mxu0 %v1853
    %5332 = vmatpush.msra.mxu0 %v1845
    %5333 = vmatpush.msra.mxu0 %v1837
    %5334 = vmatpush.msra.mxu0 %v1829
    %5335 = vmatpush.msra.mxu0 %v1821
    %5336 = vmatpush.msra.mxu0 %v1813
    %5337 = vmatpush.msra.mxu0 %v1805
    %5338 = vmatpush.msra.mxu0 %v1797
    %5339 = vmatpush.msra.mxu0 %v1789
    %5340 = vmatpush.msra.mxu0 %v1781
    %5341 = vmatpush.msra.mxu0 %v1773
    %5342 = vmatpush.msra.mxu0 %v1765
    %5343 = vmatmul.f32.gmra.mxu0 %v1235
    %v5344 = vpop.f32.mrf.mxu0
    %v5345 = vadd.f32 %v5325, %v5344
    %5346 = vdwg.mxu0
    %5347 = vmatpush.msra.mxu0 %v2013
    %5348 = vmatpush.msra.mxu0 %v2005
    %5349 = vmatpush.msra.mxu0 %v1997
    %5350 = vmatpush.msra.mxu0 %v1989
    %5351 = vmatpush.msra.mxu0 %v1981
    %5352 = vmatpush.msra.mxu0 %v1973
    %5353 = vmatpush.msra.mxu0 %v1965
    %5354 = vmatpush.msra.mxu0 %v1957
    %5355 = vmatpush.msra.mxu0 %v1949
    %5356 = vmatpush.msra.mxu0 %v1941
    %5357 = vmatpush.msra.mxu0 %v1933
    %5358 = vmatpush.msra.mxu0 %v1925
    %5359 = vmatpush.msra.mxu0 %v1917
    %5360 = vmatpush.msra.mxu0 %v1909
    %5361 = vmatpush.msra.mxu0 %v1901
    %5362 = vmatpush.msra.mxu0 %v1893
    %5363 = vmatmul.f32.gmra.mxu0 %v1236
    %v5364 = vpop.f32.mrf.mxu0
    %v5365 = vadd.f32 %v5345, %v5364
    %5366 = vdwg.mxu0
    %5367 = vmatpush.msra.mxu0 %v2141
    %5368 = vmatpush.msra.mxu0 %v2133
    %5369 = vmatpush.msra.mxu0 %v2125
    %5370 = vmatpush.msra.mxu0 %v2117
    %5371 = vmatpush.msra.mxu0 %v2109
    %5372 = vmatpush.msra.mxu0 %v2101
    %5373 = vmatpush.msra.mxu0 %v2093
    %5374 = vmatpush.msra.mxu0 %v2085
    %5375 = vmatpush.msra.mxu0 %v2077
    %5376 = vmatpush.msra.mxu0 %v2069
    %5377 = vmatpush.msra.mxu0 %v2061
    %5378 = vmatpush.msra.mxu0 %v2053
    %5379 = vmatpush.msra.mxu0 %v2045
    %5380 = vmatpush.msra.mxu0 %v2037
    %5381 = vmatpush.msra.mxu0 %v2029
    %5382 = vmatpush.msra.mxu0 %v2021
    %5383 = vmatmul.f32.gmra.mxu0 %v1237
    %v5384 = vpop.f32.mrf.mxu0
    %v5385 = vadd.f32 %v5365, %v5384
    %5386 = vdwg.mxu0
    %5387 = vmatpush.msra.mxu0 %v2269
    %5388 = vmatpush.msra.mxu0 %v2261
    %5389 = vmatpush.msra.mxu0 %v2253
    %5390 = vmatpush.msra.mxu0 %v2245
    %5391 = vmatpush.msra.mxu0 %v2237
    %5392 = vmatpush.msra.mxu0 %v2229
    %5393 = vmatpush.msra.mxu0 %v2221
    %5394 = vmatpush.msra.mxu0 %v2213
    %5395 = vmatpush.msra.mxu0 %v2205
    %5396 = vmatpush.msra.mxu0 %v2197
    %5397 = vmatpush.msra.mxu0 %v2189
    %5398 = vmatpush.msra.mxu0 %v2181
    %5399 = vmatpush.msra.mxu0 %v2173
    %5400 = vmatpush.msra.mxu0 %v2165
    %5401 = vmatpush.msra.mxu0 %v2157
    %5402 = vmatpush.msra.mxu0 %v2149
    %5403 = vmatmul.f32.gmra.mxu0 %v1238
    %v5404 = vpop.f32.mrf.mxu0
    %v5405 = vadd.f32 %v5385, %v5404
    %5406 = vdwg.mxu0
    %5407 = vmatpush.msra.mxu0 %v2397
    %5408 = vmatpush.msra.mxu0 %v2389
    %5409 = vmatpush.msra.mxu0 %v2381
    %5410 = vmatpush.msra.mxu0 %v2373
    %5411 = vmatpush.msra.mxu0 %v2365
    %5412 = vmatpush.msra.mxu0 %v2357
    %5413 = vmatpush.msra.mxu0 %v2349
    %5414 = vmatpush.msra.mxu0 %v2341
    %5415 = vmatpush.msra.mxu0 %v2333
    %5416 = vmatpush.msra.mxu0 %v2325
    %5417 = vmatpush.msra.mxu0 %v2317
    %5418 = vmatpush.msra.mxu0 %v2309
    %5419 = vmatpush.msra.mxu0 %v2301
    %5420 = vmatpush.msra.mxu0 %v2293
    %5421 = vmatpush.msra.mxu0 %v2285
    %5422 = vmatpush.msra.mxu0 %v2277
    %5423 = vmatmul.f32.gmra.mxu0 %v1239
    %v5424 = vpop.f32.mrf.mxu0
    %v5425 = vadd.f32 %v5405, %v5424
    %5426 = vdwg.mxu0
    %5427 = vmatpush.msra.mxu0 %v2525
    %5428 = vmatpush.msra.mxu0 %v2517
    %5429 = vmatpush.msra.mxu0 %v2509
    %5430 = vmatpush.msra.mxu0 %v2501
    %5431 = vmatpush.msra.mxu0 %v2493
    %5432 = vmatpush.msra.mxu0 %v2485
    %5433 = vmatpush.msra.mxu0 %v2477
    %5434 = vmatpush.msra.mxu0 %v2469
    %5435 = vmatpush.msra.mxu0 %v2461
    %5436 = vmatpush.msra.mxu0 %v2453
    %5437 = vmatpush.msra.mxu0 %v2445
    %5438 = vmatpush.msra.mxu0 %v2437
    %5439 = vmatpush.msra.mxu0 %v2429
    %5440 = vmatpush.msra.mxu0 %v2421
    %5441 = vmatpush.msra.mxu0 %v2413
    %5442 = vmatpush.msra.mxu0 %v2405
    %5443 = vmatmul.f32.gmra.mxu0 %v1240
    %v5444 = vpop.f32.mrf.mxu0
    %v5445 = vadd.f32 %v5425, %v5444
    %5446 = vdwg.mxu0
    %5447 = vmatpush.msra.mxu0 %v2653
    %5448 = vmatpush.msra.mxu0 %v2645
    %5449 = vmatpush.msra.mxu0 %v2637
    %5450 = vmatpush.msra.mxu0 %v2629
    %5451 = vmatpush.msra.mxu0 %v2621
    %5452 = vmatpush.msra.mxu0 %v2613
    %5453 = vmatpush.msra.mxu0 %v2605
    %5454 = vmatpush.msra.mxu0 %v2597
    %5455 = vmatpush.msra.mxu0 %v2589
    %5456 = vmatpush.msra.mxu0 %v2581
    %5457 = vmatpush.msra.mxu0 %v2573
    %5458 = vmatpush.msra.mxu0 %v2565
    %5459 = vmatpush.msra.mxu0 %v2557
    %5460 = vmatpush.msra.mxu0 %v2549
    %5461 = vmatpush.msra.mxu0 %v2541
    %5462 = vmatpush.msra.mxu0 %v2533
    %5463 = vmatmul.f32.gmra.mxu0 %v1241
    %v5464 = vpop.f32.mrf.mxu0
    %v5465 = vadd.f32 %v5445, %v5464
    %5466 = vdwg.mxu0
    %5467 = vmatpush.msra.mxu0 %v2781
    %5468 = vmatpush.msra.mxu0 %v2773
    %5469 = vmatpush.msra.mxu0 %v2765
    %5470 = vmatpush.msra.mxu0 %v2757
    %5471 = vmatpush.msra.mxu0 %v2749
    %5472 = vmatpush.msra.mxu0 %v2741
    %5473 = vmatpush.msra.mxu0 %v2733
    %5474 = vmatpush.msra.mxu0 %v2725
    %5475 = vmatpush.msra.mxu0 %v2717
    %5476 = vmatpush.msra.mxu0 %v2709
    %5477 = vmatpush.msra.mxu0 %v2701
    %5478 = vmatpush.msra.mxu0 %v2693
    %5479 = vmatpush.msra.mxu0 %v2685
    %5480 = vmatpush.msra.mxu0 %v2677
    %5481 = vmatpush.msra.mxu0 %v2669
    %5482 = vmatpush.msra.mxu0 %v2661
    %5483 = vmatmul.f32.gmra.mxu0 %v1242
    %v5484 = vpop.f32.mrf.mxu0
    %v5485 = vadd.f32 %v5465, %v5484
    %5486 = vdwg.mxu0
    %5487 = vmatpush.msra.mxu0 %v2909
    %5488 = vmatpush.msra.mxu0 %v2901
    %5489 = vmatpush.msra.mxu0 %v2893
    %5490 = vmatpush.msra.mxu0 %v2885
    %5491 = vmatpush.msra.mxu0 %v2877
    %5492 = vmatpush.msra.mxu0 %v2869
    %5493 = vmatpush.msra.mxu0 %v2861
    %5494 = vmatpush.msra.mxu0 %v2853
    %5495 = vmatpush.msra.mxu0 %v2845
    %5496 = vmatpush.msra.mxu0 %v2837
    %5497 = vmatpush.msra.mxu0 %v2829
    %5498 = vmatpush.msra.mxu0 %v2821
    %5499 = vmatpush.msra.mxu0 %v2813
    %5500 = vmatpush.msra.mxu0 %v2805
    %5501 = vmatpush.msra.mxu0 %v2797
    %5502 = vmatpush.msra.mxu0 %v2789
    %5503 = vmatmul.f32.gmra.mxu0 %v1243
    %v5504 = vpop.f32.mrf.mxu0
    %v5505 = vadd.f32 %v5485, %v5504
    %5506 = vdwg.mxu0
    %5507 = vmatpush.msra.mxu0 %v3037
    %5508 = vmatpush.msra.mxu0 %v3029
    %5509 = vmatpush.msra.mxu0 %v3021
    %5510 = vmatpush.msra.mxu0 %v3013
    %5511 = vmatpush.msra.mxu0 %v3005
    %5512 = vmatpush.msra.mxu0 %v2997
    %5513 = vmatpush.msra.mxu0 %v2989
    %5514 = vmatpush.msra.mxu0 %v2981
    %5515 = vmatpush.msra.mxu0 %v2973
    %5516 = vmatpush.msra.mxu0 %v2965
    %5517 = vmatpush.msra.mxu0 %v2957
    %5518 = vmatpush.msra.mxu0 %v2949
    %5519 = vmatpush.msra.mxu0 %v2941
    %5520 = vmatpush.msra.mxu0 %v2933
    %5521 = vmatpush.msra.mxu0 %v2925
    %5522 = vmatpush.msra.mxu0 %v2917
    %5523 = vmatmul.f32.gmra.mxu0 %v1244
    %v5524 = vpop.f32.mrf.mxu0
    %v5525 = vadd.f32 %v5505, %v5524
    %5526 = vdwg.mxu0
    %5527 = vmatpush.msra.mxu0 %v3165
    %5528 = vmatpush.msra.mxu0 %v3157
    %5529 = vmatpush.msra.mxu0 %v3149
    %5530 = vmatpush.msra.mxu0 %v3141
    %5531 = vmatpush.msra.mxu0 %v3133
    %5532 = vmatpush.msra.mxu0 %v3125
    %5533 = vmatpush.msra.mxu0 %v3117
    %5534 = vmatpush.msra.mxu0 %v3109
    %5535 = vmatpush.msra.mxu0 %v3101
    %5536 = vmatpush.msra.mxu0 %v3093
    %5537 = vmatpush.msra.mxu0 %v3085
    %5538 = vmatpush.msra.mxu0 %v3077
    %5539 = vmatpush.msra.mxu0 %v3069
    %5540 = vmatpush.msra.mxu0 %v3061
    %5541 = vmatpush.msra.mxu0 %v3053
    %5542 = vmatpush.msra.mxu0 %v3045
    %5543 = vmatmul.f32.gmra.mxu0 %v1245
    %v5544 = vpop.f32.mrf.mxu0
    %v5545 = vadd.f32 %v5525, %v5544
    %5546 = vdwg.mxu0
    %5547 = vmatpush.msra.mxu0 %v3293
    %5548 = vmatpush.msra.mxu0 %v3285
    %5549 = vmatpush.msra.mxu0 %v3277
    %5550 = vmatpush.msra.mxu0 %v3269
    %5551 = vmatpush.msra.mxu0 %v3261
    %5552 = vmatpush.msra.mxu0 %v3253
    %5553 = vmatpush.msra.mxu0 %v3245
    %5554 = vmatpush.msra.mxu0 %v3237
    %5555 = vmatpush.msra.mxu0 %v3229
    %5556 = vmatpush.msra.mxu0 %v3221
    %5557 = vmatpush.msra.mxu0 %v3213
    %5558 = vmatpush.msra.mxu0 %v3205
    %5559 = vmatpush.msra.mxu0 %v3197
    %5560 = vmatpush.msra.mxu0 %v3189
    %5561 = vmatpush.msra.mxu0 %v3181
    %5562 = vmatpush.msra.mxu0 %v3173
    %5563 = vmatmul.f32.gmra.mxu0 %v1246
    %v5564 = vpop.f32.mrf.mxu0
    %v5565 = vadd.f32 %v5545, %v5564
    %5566 = vdwg.mxu0
    %5567 = vmatpush.msra.mxu0 %v1374
    %5568 = vmatpush.msra.mxu0 %v1366
    %5569 = vmatpush.msra.mxu0 %v1358
    %5570 = vmatpush.msra.mxu0 %v1350
    %5571 = vmatpush.msra.mxu0 %v1342
    %5572 = vmatpush.msra.mxu0 %v1334
    %5573 = vmatpush.msra.mxu0 %v1326
    %5574 = vmatpush.msra.mxu0 %v1318
    %5575 = vmatpush.msra.mxu0 %v1310
    %5576 = vmatpush.msra.mxu0 %v1302
    %5577 = vmatpush.msra.mxu0 %v1294
    %5578 = vmatpush.msra.mxu0 %v1286
    %5579 = vmatpush.msra.mxu0 %v1278
    %5580 = vmatpush.msra.mxu0 %v1270
    %5581 = vmatpush.msra.mxu0 %v1262
    %5582 = vmatpush.msra.mxu0 %v1254
    %5583 = vmatmul.f32.gmra.mxu0 %v1231
    %v5584 = vpop.f32.mrf.mxu0
    %v5585 = vadd.f32 %v3326, %v5584
    %5586 = vdwg.mxu0
    %5587 = vmatpush.msra.mxu0 %v1502
    %5588 = vmatpush.msra.mxu0 %v1494
    %5589 = vmatpush.msra.mxu0 %v1486
    %5590 = vmatpush.msra.mxu0 %v1478
    %5591 = vmatpush.msra.mxu0 %v1470
    %5592 = vmatpush.msra.mxu0 %v1462
    %5593 = vmatpush.msra.mxu0 %v1454
    %5594 = vmatpush.msra.mxu0 %v1446
    %5595 = vmatpush.msra.mxu0 %v1438
    %5596 = vmatpush.msra.mxu0 %v1430
    %5597 = vmatpush.msra.mxu0 %v1422
    %5598 = vmatpush.msra.mxu0 %v1414
    %5599 = vmatpush.msra.mxu0 %v1406
    %5600 = vmatpush.msra.mxu0 %v1398
    %5601 = vmatpush.msra.mxu0 %v1390
    %5602 = vmatpush.msra.mxu0 %v1382
    %5603 = vmatmul.f32.gmra.mxu0 %v1232
    %v5604 = vpop.f32.mrf.mxu0
    %v5605 = vadd.f32 %v5585, %v5604
    %5606 = vdwg.mxu0
    %5607 = vmatpush.msra.mxu0 %v1630
    %5608 = vmatpush.msra.mxu0 %v1622
    %5609 = vmatpush.msra.mxu0 %v1614
    %5610 = vmatpush.msra.mxu0 %v1606
    %5611 = vmatpush.msra.mxu0 %v1598
    %5612 = vmatpush.msra.mxu0 %v1590
    %5613 = vmatpush.msra.mxu0 %v1582
    %5614 = vmatpush.msra.mxu0 %v1574
    %5615 = vmatpush.msra.mxu0 %v1566
    %5616 = vmatpush.msra.mxu0 %v1558
    %5617 = vmatpush.msra.mxu0 %v1550
    %5618 = vmatpush.msra.mxu0 %v1542
    %5619 = vmatpush.msra.mxu0 %v1534
    %5620 = vmatpush.msra.mxu0 %v1526
    %5621 = vmatpush.msra.mxu0 %v1518
    %5622 = vmatpush.msra.mxu0 %v1510
    %5623 = vmatmul.f32.gmra.mxu0 %v1233
    %v5624 = vpop.f32.mrf.mxu0
    %v5625 = vadd.f32 %v5605, %v5624
    %5626 = vdwg.mxu0
    %5627 = vmatpush.msra.mxu0 %v1758
    %5628 = vmatpush.msra.mxu0 %v1750
    %5629 = vmatpush.msra.mxu0 %v1742
    %5630 = vmatpush.msra.mxu0 %v1734
    %5631 = vmatpush.msra.mxu0 %v1726
    %5632 = vmatpush.msra.mxu0 %v1718
    %5633 = vmatpush.msra.mxu0 %v1710
    %5634 = vmatpush.msra.mxu0 %v1702
    %5635 = vmatpush.msra.mxu0 %v1694
    %5636 = vmatpush.msra.mxu0 %v1686
    %5637 = vmatpush.msra.mxu0 %v1678
    %5638 = vmatpush.msra.mxu0 %v1670
    %5639 = vmatpush.msra.mxu0 %v1662
    %5640 = vmatpush.msra.mxu0 %v1654
    %5641 = vmatpush.msra.mxu0 %v1646
    %5642 = vmatpush.msra.mxu0 %v1638
    %5643 = vmatmul.f32.gmra.mxu0 %v1234
    %v5644 = vpop.f32.mrf.mxu0
    %v5645 = vadd.f32 %v5625, %v5644
    %5646 = vdwg.mxu0
    %5647 = vmatpush.msra.mxu0 %v1886
    %5648 = vmatpush.msra.mxu0 %v1878
    %5649 = vmatpush.msra.mxu0 %v1870
    %5650 = vmatpush.msra.mxu0 %v1862
    %5651 = vmatpush.msra.mxu0 %v1854
    %5652 = vmatpush.msra.mxu0 %v1846
    %5653 = vmatpush.msra.mxu0 %v1838
    %5654 = vmatpush.msra.mxu0 %v1830
    %5655 = vmatpush.msra.mxu0 %v1822
    %5656 = vmatpush.msra.mxu0 %v1814
    %5657 = vmatpush.msra.mxu0 %v1806
    %5658 = vmatpush.msra.mxu0 %v1798
    %5659 = vmatpush.msra.mxu0 %v1790
    %5660 = vmatpush.msra.mxu0 %v1782
    %5661 = vmatpush.msra.mxu0 %v1774
    %5662 = vmatpush.msra.mxu0 %v1766
    %5663 = vmatmul.f32.gmra.mxu0 %v1235
    %v5664 = vpop.f32.mrf.mxu0
    %v5665 = vadd.f32 %v5645, %v5664
    %5666 = vdwg.mxu0
    %5667 = vmatpush.msra.mxu0 %v2014
    %5668 = vmatpush.msra.mxu0 %v2006
    %5669 = vmatpush.msra.mxu0 %v1998
    %5670 = vmatpush.msra.mxu0 %v1990
    %5671 = vmatpush.msra.mxu0 %v1982
    %5672 = vmatpush.msra.mxu0 %v1974
    %5673 = vmatpush.msra.mxu0 %v1966
    %5674 = vmatpush.msra.mxu0 %v1958
    %5675 = vmatpush.msra.mxu0 %v1950
    %5676 = vmatpush.msra.mxu0 %v1942
    %5677 = vmatpush.msra.mxu0 %v1934
    %5678 = vmatpush.msra.mxu0 %v1926
    %5679 = vmatpush.msra.mxu0 %v1918
    %5680 = vmatpush.msra.mxu0 %v1910
    %5681 = vmatpush.msra.mxu0 %v1902
    %5682 = vmatpush.msra.mxu0 %v1894
    %5683 = vmatmul.f32.gmra.mxu0 %v1236
    %v5684 = vpop.f32.mrf.mxu0
    %v5685 = vadd.f32 %v5665, %v5684
    %5686 = vdwg.mxu0
    %5687 = vmatpush.msra.mxu0 %v2142
    %5688 = vmatpush.msra.mxu0 %v2134
    %5689 = vmatpush.msra.mxu0 %v2126
    %5690 = vmatpush.msra.mxu0 %v2118
    %5691 = vmatpush.msra.mxu0 %v2110
    %5692 = vmatpush.msra.mxu0 %v2102
    %5693 = vmatpush.msra.mxu0 %v2094
    %5694 = vmatpush.msra.mxu0 %v2086
    %5695 = vmatpush.msra.mxu0 %v2078
    %5696 = vmatpush.msra.mxu0 %v2070
    %5697 = vmatpush.msra.mxu0 %v2062
    %5698 = vmatpush.msra.mxu0 %v2054
    %5699 = vmatpush.msra.mxu0 %v2046
    %5700 = vmatpush.msra.mxu0 %v2038
    %5701 = vmatpush.msra.mxu0 %v2030
    %5702 = vmatpush.msra.mxu0 %v2022
    %5703 = vmatmul.f32.gmra.mxu0 %v1237
    %v5704 = vpop.f32.mrf.mxu0
    %v5705 = vadd.f32 %v5685, %v5704
    %5706 = vdwg.mxu0
    %5707 = vmatpush.msra.mxu0 %v2270
    %5708 = vmatpush.msra.mxu0 %v2262
    %5709 = vmatpush.msra.mxu0 %v2254
    %5710 = vmatpush.msra.mxu0 %v2246
    %5711 = vmatpush.msra.mxu0 %v2238
    %5712 = vmatpush.msra.mxu0 %v2230
    %5713 = vmatpush.msra.mxu0 %v2222
    %5714 = vmatpush.msra.mxu0 %v2214
    %5715 = vmatpush.msra.mxu0 %v2206
    %5716 = vmatpush.msra.mxu0 %v2198
    %5717 = vmatpush.msra.mxu0 %v2190
    %5718 = vmatpush.msra.mxu0 %v2182
    %5719 = vmatpush.msra.mxu0 %v2174
    %5720 = vmatpush.msra.mxu0 %v2166
    %5721 = vmatpush.msra.mxu0 %v2158
    %5722 = vmatpush.msra.mxu0 %v2150
    %5723 = vmatmul.f32.gmra.mxu0 %v1238
    %v5724 = vpop.f32.mrf.mxu0
    %v5725 = vadd.f32 %v5705, %v5724
    %5726 = vdwg.mxu0
    %5727 = vmatpush.msra.mxu0 %v2398
    %5728 = vmatpush.msra.mxu0 %v2390
    %5729 = vmatpush.msra.mxu0 %v2382
    %5730 = vmatpush.msra.mxu0 %v2374
    %5731 = vmatpush.msra.mxu0 %v2366
    %5732 = vmatpush.msra.mxu0 %v2358
    %5733 = vmatpush.msra.mxu0 %v2350
    %5734 = vmatpush.msra.mxu0 %v2342
    %5735 = vmatpush.msra.mxu0 %v2334
    %5736 = vmatpush.msra.mxu0 %v2326
    %5737 = vmatpush.msra.mxu0 %v2318
    %5738 = vmatpush.msra.mxu0 %v2310
    %5739 = vmatpush.msra.mxu0 %v2302
    %5740 = vmatpush.msra.mxu0 %v2294
    %5741 = vmatpush.msra.mxu0 %v2286
    %5742 = vmatpush.msra.mxu0 %v2278
    %5743 = vmatmul.f32.gmra.mxu0 %v1239
    %v5744 = vpop.f32.mrf.mxu0
    %v5745 = vadd.f32 %v5725, %v5744
    %5746 = vdwg.mxu0
    %5747 = vmatpush.msra.mxu0 %v2526
    %5748 = vmatpush.msra.mxu0 %v2518
    %5749 = vmatpush.msra.mxu0 %v2510
    %5750 = vmatpush.msra.mxu0 %v2502
    %5751 = vmatpush.msra.mxu0 %v2494
    %5752 = vmatpush.msra.mxu0 %v2486
    %5753 = vmatpush.msra.mxu0 %v2478
    %5754 = vmatpush.msra.mxu0 %v2470
    %5755 = vmatpush.msra.mxu0 %v2462
    %5756 = vmatpush.msra.mxu0 %v2454
    %5757 = vmatpush.msra.mxu0 %v2446
    %5758 = vmatpush.msra.mxu0 %v2438
    %5759 = vmatpush.msra.mxu0 %v2430
    %5760 = vmatpush.msra.mxu0 %v2422
    %5761 = vmatpush.msra.mxu0 %v2414
    %5762 = vmatpush.msra.mxu0 %v2406
    %5763 = vmatmul.f32.gmra.mxu0 %v1240
    %v5764 = vpop.f32.mrf.mxu0
    %v5765 = vadd.f32 %v5745, %v5764
    %5766 = vdwg.mxu0
    %5767 = vmatpush.msra.mxu0 %v2654
    %5768 = vmatpush.msra.mxu0 %v2646
    %5769 = vmatpush.msra.mxu0 %v2638
    %5770 = vmatpush.msra.mxu0 %v2630
    %5771 = vmatpush.msra.mxu0 %v2622
    %5772 = vmatpush.msra.mxu0 %v2614
    %5773 = vmatpush.msra.mxu0 %v2606
    %5774 = vmatpush.msra.mxu0 %v2598
    %5775 = vmatpush.msra.mxu0 %v2590
    %5776 = vmatpush.msra.mxu0 %v2582
    %5777 = vmatpush.msra.mxu0 %v2574
    %5778 = vmatpush.msra.mxu0 %v2566
    %5779 = vmatpush.msra.mxu0 %v2558
    %5780 = vmatpush.msra.mxu0 %v2550
    %5781 = vmatpush.msra.mxu0 %v2542
    %5782 = vmatpush.msra.mxu0 %v2534
    %5783 = vmatmul.f32.gmra.mxu0 %v1241
    %v5784 = vpop.f32.mrf.mxu0
    %v5785 = vadd.f32 %v5765, %v5784
    %5786 = vdwg.mxu0
    %5787 = vmatpush.msra.mxu0 %v2782
    %5788 = vmatpush.msra.mxu0 %v2774
    %5789 = vmatpush.msra.mxu0 %v2766
    %5790 = vmatpush.msra.mxu0 %v2758
    %5791 = vmatpush.msra.mxu0 %v2750
    %5792 = vmatpush.msra.mxu0 %v2742
    %5793 = vmatpush.msra.mxu0 %v2734
    %5794 = vmatpush.msra.mxu0 %v2726
    %5795 = vmatpush.msra.mxu0 %v2718
    %5796 = vmatpush.msra.mxu0 %v2710
    %5797 = vmatpush.msra.mxu0 %v2702
    %5798 = vmatpush.msra.mxu0 %v2694
    %5799 = vmatpush.msra.mxu0 %v2686
    %5800 = vmatpush.msra.mxu0 %v2678
    %5801 = vmatpush.msra.mxu0 %v2670
    %5802 = vmatpush.msra.mxu0 %v2662
    %5803 = vmatmul.f32.gmra.mxu0 %v1242
    %v5804 = vpop.f32.mrf.mxu0
    %v5805 = vadd.f32 %v5785, %v5804
    %5806 = vdwg.mxu0
    %5807 = vmatpush.msra.mxu0 %v2910
    %5808 = vmatpush.msra.mxu0 %v2902
    %5809 = vmatpush.msra.mxu0 %v2894
    %5810 = vmatpush.msra.mxu0 %v2886
    %5811 = vmatpush.msra.mxu0 %v2878
    %5812 = vmatpush.msra.mxu0 %v2870
    %5813 = vmatpush.msra.mxu0 %v2862
    %5814 = vmatpush.msra.mxu0 %v2854
    %5815 = vmatpush.msra.mxu0 %v2846
    %5816 = vmatpush.msra.mxu0 %v2838
    %5817 = vmatpush.msra.mxu0 %v2830
    %5818 = vmatpush.msra.mxu0 %v2822
    %5819 = vmatpush.msra.mxu0 %v2814
    %5820 = vmatpush.msra.mxu0 %v2806
    %5821 = vmatpush.msra.mxu0 %v2798
    %5822 = vmatpush.msra.mxu0 %v2790
    %5823 = vmatmul.f32.gmra.mxu0 %v1243
    %v5824 = vpop.f32.mrf.mxu0
    %v5825 = vadd.f32 %v5805, %v5824
    %5826 = vdwg.mxu0
    %5827 = vmatpush.msra.mxu0 %v3038
    %5828 = vmatpush.msra.mxu0 %v3030
    %5829 = vmatpush.msra.mxu0 %v3022
    %5830 = vmatpush.msra.mxu0 %v3014
    %5831 = vmatpush.msra.mxu0 %v3006
    %5832 = vmatpush.msra.mxu0 %v2998
    %5833 = vmatpush.msra.mxu0 %v2990
    %5834 = vmatpush.msra.mxu0 %v2982
    %5835 = vmatpush.msra.mxu0 %v2974
    %5836 = vmatpush.msra.mxu0 %v2966
    %5837 = vmatpush.msra.mxu0 %v2958
    %5838 = vmatpush.msra.mxu0 %v2950
    %5839 = vmatpush.msra.mxu0 %v2942
    %5840 = vmatpush.msra.mxu0 %v2934
    %5841 = vmatpush.msra.mxu0 %v2926
    %5842 = vmatpush.msra.mxu0 %v2918
    %5843 = vmatmul.f32.gmra.mxu0 %v1244
    %v5844 = vpop.f32.mrf.mxu0
    %v5845 = vadd.f32 %v5825, %v5844
    %5846 = vdwg.mxu0
    %5847 = vmatpush.msra.mxu0 %v3166
    %5848 = vmatpush.msra.mxu0 %v3158
    %5849 = vmatpush.msra.mxu0 %v3150
    %5850 = vmatpush.msra.mxu0 %v3142
    %5851 = vmatpush.msra.mxu0 %v3134
    %5852 = vmatpush.msra.mxu0 %v3126
    %5853 = vmatpush.msra.mxu0 %v3118
    %5854 = vmatpush.msra.mxu0 %v3110
    %5855 = vmatpush.msra.mxu0 %v3102
    %5856 = vmatpush.msra.mxu0 %v3094
    %5857 = vmatpush.msra.mxu0 %v3086
    %5858 = vmatpush.msra.mxu0 %v3078
    %5859 = vmatpush.msra.mxu0 %v3070
    %5860 = vmatpush.msra.mxu0 %v3062
    %5861 = vmatpush.msra.mxu0 %v3054
    %5862 = vmatpush.msra.mxu0 %v3046
    %5863 = vmatmul.f32.gmra.mxu0 %v1245
    %v5864 = vpop.f32.mrf.mxu0
    %v5865 = vadd.f32 %v5845, %v5864
    %5866 = vdwg.mxu0
    %5867 = vmatpush.msra.mxu0 %v3294
    %5868 = vmatpush.msra.mxu0 %v3286
    %5869 = vmatpush.msra.mxu0 %v3278
    %5870 = vmatpush.msra.mxu0 %v3270
    %5871 = vmatpush.msra.mxu0 %v3262
    %5872 = vmatpush.msra.mxu0 %v3254
    %5873 = vmatpush.msra.mxu0 %v3246
    %5874 = vmatpush.msra.mxu0 %v3238
    %5875 = vmatpush.msra.mxu0 %v3230
    %5876 = vmatpush.msra.mxu0 %v3222
    %5877 = vmatpush.msra.mxu0 %v3214
    %5878 = vmatpush.msra.mxu0 %v3206
    %5879 = vmatpush.msra.mxu0 %v3198
    %5880 = vmatpush.msra.mxu0 %v3190
    %5881 = vmatpush.msra.mxu0 %v3182
    %5882 = vmatpush.msra.mxu0 %v3174
    %5883 = vmatmul.f32.gmra.mxu0 %v1246
    %v5884 = vpop.f32.mrf.mxu0
    %v5885 = vadd.f32 %v5865, %v5884
    %5886 = vdwg.mxu0
    %v5887 = vrot.slane %v3645, 4
    %v5888 = vadd.f32 %v3645, %v5887
    %v5889 = vrot.slane %v5888, 2
    %v5890 = vadd.f32 %v5888, %v5889
    %v5891 = vrot.slane %v5890, 1
    %v5892 = vadd.f32 %v5890, %v5891
    %v5893 = vrot.slane %v3965, 4
    %v5894 = vadd.f32 %v3965, %v5893
    %v5895 = vrot.slane %v5894, 2
    %v5896 = vadd.f32 %v5894, %v5895
    %v5897 = vrot.slane %v5896, 1
    %v5898 = vadd.f32 %v5896, %v5897
    %v5899 = vrot.slane %v4285, 4
    %v5900 = vadd.f32 %v4285, %v5899
    %v5901 = vrot.slane %v5900, 2
    %v5902 = vadd.f32 %v5900, %v5901
    %v5903 = vrot.slane %v5902, 1
    %v5904 = vadd.f32 %v5902, %v5903
    %v5905 = vrot.slane %v4605, 4
    %v5906 = vadd.f32 %v4605, %v5905
    %v5907 = vrot.slane %v5906, 2
    %v5908 = vadd.f32 %v5906, %v5907
    %v5909 = vrot.slane %v5908, 1
    %v5910 = vadd.f32 %v5908, %v5909
    %v5911 = vrot.slane %v4925, 4
    %v5912 = vadd.f32 %v4925, %v5911
    %v5913 = vrot.slane %v5912, 2
    %v5914 = vadd.f32 %v5912, %v5913
    %v5915 = vrot.slane %v5914, 1
    %v5916 = vadd.f32 %v5914, %v5915
    %v5917 = vrot.slane %v5245, 4
    %v5918 = vadd.f32 %v5245, %v5917
    %v5919 = vrot.slane %v5918, 2
    %v5920 = vadd.f32 %v5918, %v5919
    %v5921 = vrot.slane %v5920, 1
    %v5922 = vadd.f32 %v5920, %v5921
    %v5923 = vrot.slane %v5565, 4
    %v5924 = vadd.f32 %v5565, %v5923
    %v5925 = vrot.slane %v5924, 2
    %v5926 = vadd.f32 %v5924, %v5925
    %v5927 = vrot.slane %v5926, 1
    %v5928 = vadd.f32 %v5926, %v5927
    %v5929 = vrot.slane %v5885, 4
    %v5930 = vadd.f32 %v5885, %v5929
    %v5931 = vrot.slane %v5930, 2
    %v5932 = vadd.f32 %v5930, %v5931
    %v5933 = vrot.slane %v5932, 1
    %v5934 = vadd.f32 %v5932, %v5933
    %v5935 = vmul.f32 %v5892, %v750
    %v5936 = vmul.f32 %v5898, %v750
    %v5937 = vmul.f32 %v5904, %v750
    %v5938 = vmul.f32 %v5910, %v750
    %v5939 = vmul.f32 %v5916, %v750
    %v5940 = vmul.f32 %v5922, %v750
    %v5941 = vmul.f32 %v5928, %v750
    %v5942 = vmul.f32 %v5934, %v750
    %v5943 = vsub.f32 %v3645, %v5935
    %v5944 = vsub.f32 %v3965, %v5936
    %v5945 = vsub.f32 %v4285, %v5937
    %v5946 = vsub.f32 %v4605, %v5938
    %v5947 = vsub.f32 %v4925, %v5939
    %v5948 = vsub.f32 %v5245, %v5940
    %v5949 = vsub.f32 %v5565, %v5941
    %v5950 = vsub.f32 %v5885, %v5942
    %v5951 = vmul.f32 %v5943, %v5943
    %v5952 = vmul.f32 %v5944, %v5944
    %v5953 = vmul.f32 %v5945, %v5945
    %v5954 = vmul.f32 %v5946, %v5946
    %v5955 = vmul.f32 %v5947, %v5947
    %v5956 = vmul.f32 %v5948, %v5948
    %v5957 = vmul.f32 %v5949, %v5949
    %v5958 = vmul.f32 %v5950, %v5950
    %v5959 = vrot.slane %v5951, 4
    %v5960 = vadd.f32 %v5951, %v5959
    %v5961 = vrot.slane %v5960, 2
    %v5962 = vadd.f32 %v5960, %v5961
    %v5963 = vrot.slane %v5962, 1
    %v5964 = vadd.f32 %v5962, %v5963
    %v5965 = vrot.slane %v5952, 4
    %v5966 = vadd.f32 %v5952, %v5965
    %v5967 = vrot.slane %v5966, 2
    %v5968 = vadd.f32 %v5966, %v5967
    %v5969 = vrot.slane %v5968, 1
    %v5970 = vadd.f32 %v5968, %v5969
    %v5971 = vrot.slane %v5953, 4
    %v5972 = vadd.f32 %v5953, %v5971
    %v5973 = vrot.slane %v5972, 2
    %v5974 = vadd.f32 %v5972, %v5973
    %v5975 = vrot.slane %v5974, 1
    %v5976 = vadd.f32 %v5974, %v5975
    %v5977 = vrot.slane %v5954, 4
    %v5978 = vadd.f32 %v5954, %v5977
    %v5979 = vrot.slane %v5978, 2
    %v5980 = vadd.f32 %v5978, %v5979
    %v5981 = vrot.slane %v5980, 1
    %v5982 = vadd.f32 %v5980, %v5981
    %v5983 = vrot.slane %v5955, 4
    %v5984 = vadd.f32 %v5955, %v5983
    %v5985 = vrot.slane %v5984, 2
    %v5986 = vadd.f32 %v5984, %v5985
    %v5987 = vrot.slane %v5986, 1
    %v5988 = vadd.f32 %v5986, %v5987
    %v5989 = vrot.slane %v5956, 4
    %v5990 = vadd.f32 %v5956, %v5989
    %v5991 = vrot.slane %v5990, 2
    %v5992 = vadd.f32 %v5990, %v5991
    %v5993 = vrot.slane %v5992, 1
    %v5994 = vadd.f32 %v5992, %v5993
    %v5995 = vrot.slane %v5957, 4
    %v5996 = vadd.f32 %v5957, %v5995
    %v5997 = vrot.slane %v5996, 2
    %v5998 = vadd.f32 %v5996, %v5997
    %v5999 = vrot.slane %v5998, 1
    %v6000 = vadd.f32 %v5998, %v5999
    %v6001 = vrot.slane %v5958, 4
    %v6002 = vadd.f32 %v5958, %v6001
    %v6003 = vrot.slane %v6002, 2
    %v6004 = vadd.f32 %v6002, %v6003
    %v6005 = vrot.slane %v6004, 1
    %v6006 = vadd.f32 %v6004, %v6005
    %v6007 = vmul.f32 %v5964, %v750
    %v6008 = vmul.f32 %v5970, %v750
    %v6009 = vmul.f32 %v5976, %v750
    %v6010 = vmul.f32 %v5982, %v750
    %v6011 = vmul.f32 %v5988, %v750
    %v6012 = vmul.f32 %v5994, %v750
    %v6013 = vmul.f32 %v6000, %v750
    %v6014 = vmul.f32 %v6006, %v750
    %v6015 = vadd.f32 %v6007, 1e-05
    %v6016 = vadd.f32 %v6008, 1e-05
    %v6017 = vadd.f32 %v6009, 1e-05
    %v6018 = vadd.f32 %v6010, 1e-05
    %v6019 = vadd.f32 %v6011, 1e-05
    %v6020 = vadd.f32 %v6012, 1e-05
    %v6021 = vadd.f32 %v6013, 1e-05
    %v6022 = vadd.f32 %v6014, 1e-05
    %v6023 = vrsqrt.pop %v6015
    %v6024 = vmul.f32 %v6023, %v6015
    %v6025 = vmul.f32 %v6024, %v6023
    %v6026 = vmul.f32 0.5, %v6025
    %v6027 = vsub.f32 1.5, %v6026
    %v6028 = vmul.f32 %v6023, %v6027
    %vm6029 = vweird.f32 %v6015
    %vm6030 = vweird.f32 %v6023
    %vm6031 = vmor %vm6029, %vm6030
    %v6032 = vsel %vm6031, %v6023, %v6028
    %v6033 = vrsqrt.pop %v6016
    %v6034 = vmul.f32 %v6033, %v6016
    %v6035 = vmul.f32 %v6034, %v6033
    %v6036 = vmul.f32 0.5, %v6035
    %v6037 = vsub.f32 1.5, %v6036
    %v6038 = vmul.f32 %v6033, %v6037
    %vm6039 = vweird.f32 %v6016
    %vm6040 = vweird.f32 %v6033
    %vm6041 = vmor %vm6039, %vm6040
    %v6042 = vsel %vm6041, %v6033, %v6038
    %v6043 = vrsqrt.pop %v6017
    %v6044 = vmul.f32 %v6043, %v6017
    %v6045 = vmul.f32 %v6044, %v6043
    %v6046 = vmul.f32 0.5, %v6045
    %v6047 = vsub.f32 1.5, %v6046
    %v6048 = vmul.f32 %v6043, %v6047
    %vm6049 = vweird.f32 %v6017
    %vm6050 = vweird.f32 %v6043
    %vm6051 = vmor %vm6049, %vm6050
    %v6052 = vsel %vm6051, %v6043, %v6048
    %v6053 = vrsqrt.pop %v6018
    %v6054 = vmul.f32 %v6053, %v6018
    %v6055 = vmul.f32 %v6054, %v6053
    %v6056 = vmul.f32 0.5, %v6055
    %v6057 = vsub.f32 1.5, %v6056
    %v6058 = vmul.f32 %v6053, %v6057
    %vm6059 = vweird.f32 %v6018
    %vm6060 = vweird.f32 %v6053
    %vm6061 = vmor %vm6059, %vm6060
    %v6062 = vsel %vm6061, %v6053, %v6058
    %v6063 = vrsqrt.pop %v6019
    %v6064 = vmul.f32 %v6063, %v6019
    %v6065 = vmul.f32 %v6064, %v6063
    %v6066 = vmul.f32 0.5, %v6065
    %v6067 = vsub.f32 1.5, %v6066
    %v6068 = vmul.f32 %v6063, %v6067
    %vm6069 = vweird.f32 %v6019
    %vm6070 = vweird.f32 %v6063
    %vm6071 = vmor %vm6069, %vm6070
    %v6072 = vsel %vm6071, %v6063, %v6068
    %v6073 = vrsqrt.pop %v6020
    %v6074 = vmul.f32 %v6073, %v6020
    %v6075 = vmul.f32 %v6074, %v6073
    %v6076 = vmul.f32 0.5, %v6075
    %v6077 = vsub.f32 1.5, %v6076
    %v6078 = vmul.f32 %v6073, %v6077
    %vm6079 = vweird.f32 %v6020
    %vm6080 = vweird.f32 %v6073
    %vm6081 = vmor %vm6079, %vm6080
    %v6082 = vsel %vm6081, %v6073, %v6078
    %v6083 = vrsqrt.pop %v6021
    %v6084 = vmul.f32 %v6083, %v6021
    %v6085 = vmul.f32 %v6084, %v6083
    %v6086 = vmul.f32 0.5, %v6085
    %v6087 = vsub.f32 1.5, %v6086
    %v6088 = vmul.f32 %v6083, %v6087
    %vm6089 = vweird.f32 %v6021
    %vm6090 = vweird.f32 %v6083
    %vm6091 = vmor %vm6089, %vm6090
    %v6092 = vsel %vm6091, %v6083, %v6088
    %v6093 = vrsqrt.pop %v6022
    %v6094 = vmul.f32 %v6093, %v6022
    %v6095 = vmul.f32 %v6094, %v6093
    %v6096 = vmul.f32 0.5, %v6095
    %v6097 = vsub.f32 1.5, %v6096
    %v6098 = vmul.f32 %v6093, %v6097
    %vm6099 = vweird.f32 %v6022
    %vm6100 = vweird.f32 %v6093
    %vm6101 = vmor %vm6099, %vm6100
    %v6102 = vsel %vm6101, %v6093, %v6098
    %v6103 = vmul.f32 %v5943, %v6032
    %v6104 = vmul.f32 %v5944, %v6042
    %v6105 = vmul.f32 %v5945, %v6052
    %v6106 = vmul.f32 %v5946, %v6062
    %v6107 = vmul.f32 %v5947, %v6072
    %v6108 = vmul.f32 %v5948, %v6082
    %v6109 = vmul.f32 %v5949, %v6092
    %v6110 = vmul.f32 %v5950, %v6102
    %v6111 = vperm.slane %v3295, 1
    %v6112 = vperm.slane %v3295, 5
    %v6113 = vperm.slane %v3296, 1
    %v6114 = vperm.slane %v3296, 5
    %v6115 = vperm.slane %v3297, 1
    %v6116 = vperm.slane %v3297, 5
    %v6117 = vperm.slane %v3298, 1
    %v6118 = vperm.slane %v3298, 5
    %v6127 = vperm.slane %v6111, 1
    %v6128 = vperm.slane %v6112, 1
    %v6129 = vperm.slane %v6113, 1
    %v6130 = vperm.slane %v6114, 1
    %v6131 = vperm.slane %v6115, 1
    %v6132 = vperm.slane %v6116, 1
    %v6133 = vperm.slane %v6117, 1
    %v6134 = vperm.slane %v6118, 1
    %v6135 = vmul.f32 %v6127, %v6103
    %v6136 = vmul.f32 %v6128, %v6104
    %v6137 = vmul.f32 %v6129, %v6105
    %v6138 = vmul.f32 %v6130, %v6106
    %v6139 = vmul.f32 %v6131, %v6107
    %v6140 = vmul.f32 %v6132, %v6108
    %v6141 = vmul.f32 %v6133, %v6109
    %v6142 = vmul.f32 %v6134, %v6110
    %v6143 = vperm.slane %v3295, 2
    %v6144 = vperm.slane %v3295, 6
    %v6145 = vperm.slane %v3296, 2
    %v6146 = vperm.slane %v3296, 6
    %v6147 = vperm.slane %v3297, 2
    %v6148 = vperm.slane %v3297, 6
    %v6149 = vperm.slane %v3298, 2
    %v6150 = vperm.slane %v3298, 6
    %v6159 = vperm.slane %v6143, 2
    %v6160 = vperm.slane %v6144, 2
    %v6161 = vperm.slane %v6145, 2
    %v6162 = vperm.slane %v6146, 2
    %v6163 = vperm.slane %v6147, 2
    %v6164 = vperm.slane %v6148, 2
    %v6165 = vperm.slane %v6149, 2
    %v6166 = vperm.slane %v6150, 2
    %v6167 = vadd.f32 %v6135, %v6159
    %v6168 = vadd.f32 %v6136, %v6160
    %v6169 = vadd.f32 %v6137, %v6161
    %v6170 = vadd.f32 %v6138, %v6162
    %v6171 = vadd.f32 %v6139, %v6163
    %v6172 = vadd.f32 %v6140, %v6164
    %v6173 = vadd.f32 %v6141, %v6165
    %v6174 = vadd.f32 %v6142, %v6166
    %v6175 = vmax.f32 %v6167, 0.0
    %v6176 = vmax.f32 %v6168, 0.0
    %v6177 = vmax.f32 %v6169, 0.0
    %v6178 = vmax.f32 %v6170, 0.0
    %v6179 = vmax.f32 %v6171, 0.0
    %v6180 = vmax.f32 %v6172, 0.0
    %v6181 = vmax.f32 %v6173, 0.0
    %v6182 = vmax.f32 %v6174, 0.0
    %v6183 = vld [vmem:[#allocation8] sm:$0xff]
    %v6184 = vld [vmem:[#allocation8 + $0x8] sm:$0xff]
    %v6185 = vld [vmem:[#allocation8 + $0x10] sm:$0xff]
    %v6186 = vld [vmem:[#allocation8 + $0x18] sm:$0xff]
    %v6187 = vld [vmem:[#allocation8 + $0x20] sm:$0xff]
    %v6188 = vld [vmem:[#allocation8 + $0x28] sm:$0xff]
    %v6189 = vld [vmem:[#allocation8 + $0x30] sm:$0xff]
    %v6190 = vld [vmem:[#allocation8 + $0x38] sm:$0xff]
    %v6191 = vld [vmem:[#allocation8 + $0x40] sm:$0xff]
    %v6192 = vld [vmem:[#allocation8 + $0x48] sm:$0xff]
    %v6193 = vld [vmem:[#allocation8 + $0x50] sm:$0xff]
    %v6194 = vld [vmem:[#allocation8 + $0x58] sm:$0xff]
    %v6195 = vld [vmem:[#allocation8 + $0x60] sm:$0xff]
    %v6196 = vld [vmem:[#allocation8 + $0x68] sm:$0xff]
    %v6197 = vld [vmem:[#allocation8 + $0x70] sm:$0xff]
    %v6198 = vld [vmem:[#allocation8 + $0x78] sm:$0xff]
    %v6199 = vld [vmem:[#allocation8 + $0x80] sm:$0xff]
    %v6200 = vld [vmem:[#allocation8 + $0x88] sm:$0xff]
    %v6201 = vld [vmem:[#allocation8 + $0x90] sm:$0xff]
    %v6202 = vld [vmem:[#allocation8 + $0x98] sm:$0xff]
    %v6203 = vld [vmem:[#allocation8 + $0xa0] sm:$0xff]
    %v6204 = vld [vmem:[#allocation8 + $0xa8] sm:$0xff]
    %v6205 = vld [vmem:[#allocation8 + $0xb0] sm:$0xff]
    %v6206 = vld [vmem:[#allocation8 + $0xb8] sm:$0xff]
    %v6207 = vld [vmem:[#allocation8 + $0xc0] sm:$0xff]
    %v6208 = vld [vmem:[#allocation8 + $0xc8] sm:$0xff]
    %v6209 = vld [vmem:[#allocation8 + $0xd0] sm:$0xff]
    %v6210 = vld [vmem:[#allocation8 + $0xd8] sm:$0xff]
    %v6211 = vld [vmem:[#allocation8 + $0xe0] sm:$0xff]
    %v6212 = vld [vmem:[#allocation8 + $0xe8] sm:$0xff]
    %v6213 = vld [vmem:[#allocation8 + $0xf0] sm:$0xff]
    %v6214 = vld [vmem:[#allocation8 + $0xf8] sm:$0xff]
    %v6215 = vld [vmem:[#allocation8 + $0x100] sm:$0xff]
    %v6216 = vld [vmem:[#allocation8 + $0x108] sm:$0xff]
    %v6217 = vld [vmem:[#allocation8 + $0x110] sm:$0xff]
    %v6218 = vld [vmem:[#allocation8 + $0x118] sm:$0xff]
    %v6219 = vld [vmem:[#allocation8 + $0x120] sm:$0xff]
    %v6220 = vld [vmem:[#allocation8 + $0x128] sm:$0xff]
    %v6221 = vld [vmem:[#allocation8 + $0x130] sm:$0xff]
    %v6222 = vld [vmem:[#allocation8 + $0x138] sm:$0xff]
    %v6223 = vld [vmem:[#allocation8 + $0x140] sm:$0xff]
    %v6224 = vld [vmem:[#allocation8 + $0x148] sm:$0xff]
    %v6225 = vld [vmem:[#allocation8 + $0x150] sm:$0xff]
    %v6226 = vld [vmem:[#allocation8 + $0x158] sm:$0xff]
    %v6227 = vld [vmem:[#allocation8 + $0x160] sm:$0xff]
    %v6228 = vld [vmem:[#allocation8 + $0x168] sm:$0xff]
    %v6229 = vld [vmem:[#allocation8 + $0x170] sm:$0xff]
    %v6230 = vld [vmem:[#allocation8 + $0x178] sm:$0xff]
    %v6231 = vld [vmem:[#allocation8 + $0x180] sm:$0xff]
    %v6232 = vld [vmem:[#allocation8 + $0x188] sm:$0xff]
    %v6233 = vld [vmem:[#allocation8 + $0x190] sm:$0xff]
    %v6234 = vld [vmem:[#allocation8 + $0x198] sm:$0xff]
    %v6235 = vld [vmem:[#allocation8 + $0x1a0] sm:$0xff]
    %v6236 = vld [vmem:[#allocation8 + $0x1a8] sm:$0xff]
    %v6237 = vld [vmem:[#allocation8 + $0x1b0] sm:$0xff]
    %v6238 = vld [vmem:[#allocation8 + $0x1b8] sm:$0xff]
    %v6239 = vld [vmem:[#allocation8 + $0x1c0] sm:$0xff]
    %v6240 = vld [vmem:[#allocation8 + $0x1c8] sm:$0xff]
    %v6241 = vld [vmem:[#allocation8 + $0x1d0] sm:$0xff]
    %v6242 = vld [vmem:[#allocation8 + $0x1d8] sm:$0xff]
    %v6243 = vld [vmem:[#allocation8 + $0x1e0] sm:$0xff]
    %v6244 = vld [vmem:[#allocation8 + $0x1e8] sm:$0xff]
    %v6245 = vld [vmem:[#allocation8 + $0x1f0] sm:$0xff]
    %v6246 = vld [vmem:[#allocation8 + $0x1f8] sm:$0xff]
    %v6247 = vld [vmem:[#allocation8 + $0x200] sm:$0xff]
    %v6248 = vld [vmem:[#allocation8 + $0x208] sm:$0xff]
    %v6249 = vld [vmem:[#allocation8 + $0x210] sm:$0xff]
    %v6250 = vld [vmem:[#allocation8 + $0x218] sm:$0xff]
    %v6251 = vld [vmem:[#allocation8 + $0x220] sm:$0xff]
    %v6252 = vld [vmem:[#allocation8 + $0x228] sm:$0xff]
    %v6253 = vld [vmem:[#allocation8 + $0x230] sm:$0xff]
    %v6254 = vld [vmem:[#allocation8 + $0x238] sm:$0xff]
    %v6255 = vld [vmem:[#allocation8 + $0x240] sm:$0xff]
    %v6256 = vld [vmem:[#allocation8 + $0x248] sm:$0xff]
    %v6257 = vld [vmem:[#allocation8 + $0x250] sm:$0xff]
    %v6258 = vld [vmem:[#allocation8 + $0x258] sm:$0xff]
    %v6259 = vld [vmem:[#allocation8 + $0x260] sm:$0xff]
    %v6260 = vld [vmem:[#allocation8 + $0x268] sm:$0xff]
    %v6261 = vld [vmem:[#allocation8 + $0x270] sm:$0xff]
    %v6262 = vld [vmem:[#allocation8 + $0x278] sm:$0xff]
    %v6263 = vld [vmem:[#allocation8 + $0x280] sm:$0xff]
    %v6264 = vld [vmem:[#allocation8 + $0x288] sm:$0xff]
    %v6265 = vld [vmem:[#allocation8 + $0x290] sm:$0xff]
    %v6266 = vld [vmem:[#allocation8 + $0x298] sm:$0xff]
    %v6267 = vld [vmem:[#allocation8 + $0x2a0] sm:$0xff]
    %v6268 = vld [vmem:[#allocation8 + $0x2a8] sm:$0xff]
    %v6269 = vld [vmem:[#allocation8 + $0x2b0] sm:$0xff]
    %v6270 = vld [vmem:[#allocation8 + $0x2b8] sm:$0xff]
    %v6271 = vld [vmem:[#allocation8 + $0x2c0] sm:$0xff]
    %v6272 = vld [vmem:[#allocation8 + $0x2c8] sm:$0xff]
    %v6273 = vld [vmem:[#allocation8 + $0x2d0] sm:$0xff]
    %v6274 = vld [vmem:[#allocation8 + $0x2d8] sm:$0xff]
    %v6275 = vld [vmem:[#allocation8 + $0x2e0] sm:$0xff]
    %v6276 = vld [vmem:[#allocation8 + $0x2e8] sm:$0xff]
    %v6277 = vld [vmem:[#allocation8 + $0x2f0] sm:$0xff]
    %v6278 = vld [vmem:[#allocation8 + $0x2f8] sm:$0xff]
    %v6279 = vld [vmem:[#allocation8 + $0x300] sm:$0xff]
    %v6280 = vld [vmem:[#allocation8 + $0x308] sm:$0xff]
    %v6281 = vld [vmem:[#allocation8 + $0x310] sm:$0xff]
    %v6282 = vld [vmem:[#allocation8 + $0x318] sm:$0xff]
    %v6283 = vld [vmem:[#allocation8 + $0x320] sm:$0xff]
    %v6284 = vld [vmem:[#allocation8 + $0x328] sm:$0xff]
    %v6285 = vld [vmem:[#allocation8 + $0x330] sm:$0xff]
    %v6286 = vld [vmem:[#allocation8 + $0x338] sm:$0xff]
    %v6287 = vld [vmem:[#allocation8 + $0x340] sm:$0xff]
    %v6288 = vld [vmem:[#allocation8 + $0x348] sm:$0xff]
    %v6289 = vld [vmem:[#allocation8 + $0x350] sm:$0xff]
    %v6290 = vld [vmem:[#allocation8 + $0x358] sm:$0xff]
    %v6291 = vld [vmem:[#allocation8 + $0x360] sm:$0xff]
    %v6292 = vld [vmem:[#allocation8 + $0x368] sm:$0xff]
    %v6293 = vld [vmem:[#allocation8 + $0x370] sm:$0xff]
    %v6294 = vld [vmem:[#allocation8 + $0x378] sm:$0xff]
    %v6295 = vld [vmem:[#allocation8 + $0x380] sm:$0xff]
    %v6296 = vld [vmem:[#allocation8 + $0x388] sm:$0xff]
    %v6297 = vld [vmem:[#allocation8 + $0x390] sm:$0xff]
    %v6298 = vld [vmem:[#allocation8 + $0x398] sm:$0xff]
    %v6299 = vld [vmem:[#allocation8 + $0x3a0] sm:$0xff]
    %v6300 = vld [vmem:[#allocation8 + $0x3a8] sm:$0xff]
    %v6301 = vld [vmem:[#allocation8 + $0x3b0] sm:$0xff]
    %v6302 = vld [vmem:[#allocation8 + $0x3b8] sm:$0xff]
    %v6303 = vld [vmem:[#allocation8 + $0x3c0] sm:$0xff]
    %v6304 = vld [vmem:[#allocation8 + $0x3c8] sm:$0xff]
    %v6305 = vld [vmem:[#allocation8 + $0x3d0] sm:$0xff]
    %v6306 = vld [vmem:[#allocation8 + $0x3d8] sm:$0xff]
    %v6307 = vld [vmem:[#allocation8 + $0x3e0] sm:$0xff]
    %v6308 = vld [vmem:[#allocation8 + $0x3e8] sm:$0xff]
    %v6309 = vld [vmem:[#allocation8 + $0x3f0] sm:$0xff]
    %v6310 = vld [vmem:[#allocation8 + $0x3f8] sm:$0xff]
    %v6311 = vld [vmem:[#allocation8 + $0x400] sm:$0xff]
    %v6312 = vld [vmem:[#allocation8 + $0x408] sm:$0xff]
    %v6313 = vld [vmem:[#allocation8 + $0x410] sm:$0xff]
    %v6314 = vld [vmem:[#allocation8 + $0x418] sm:$0xff]
    %v6315 = vld [vmem:[#allocation8 + $0x420] sm:$0xff]
    %v6316 = vld [vmem:[#allocation8 + $0x428] sm:$0xff]
    %v6317 = vld [vmem:[#allocation8 + $0x430] sm:$0xff]
    %v6318 = vld [vmem:[#allocation8 + $0x438] sm:$0xff]
    %v6319 = vld [vmem:[#allocation8 + $0x440] sm:$0xff]
    %v6320 = vld [vmem:[#allocation8 + $0x448] sm:$0xff]
    %v6321 = vld [vmem:[#allocation8 + $0x450] sm:$0xff]
    %v6322 = vld [vmem:[#allocation8 + $0x458] sm:$0xff]
    %v6323 = vld [vmem:[#allocation8 + $0x460] sm:$0xff]
    %v6324 = vld [vmem:[#allocation8 + $0x468] sm:$0xff]
    %v6325 = vld [vmem:[#allocation8 + $0x470] sm:$0xff]
    %v6326 = vld [vmem:[#allocation8 + $0x478] sm:$0xff]
    %v6327 = vld [vmem:[#allocation8 + $0x480] sm:$0xff]
    %v6328 = vld [vmem:[#allocation8 + $0x488] sm:$0xff]
    %v6329 = vld [vmem:[#allocation8 + $0x490] sm:$0xff]
    %v6330 = vld [vmem:[#allocation8 + $0x498] sm:$0xff]
    %v6331 = vld [vmem:[#allocation8 + $0x4a0] sm:$0xff]
    %v6332 = vld [vmem:[#allocation8 + $0x4a8] sm:$0xff]
    %v6333 = vld [vmem:[#allocation8 + $0x4b0] sm:$0xff]
    %v6334 = vld [vmem:[#allocation8 + $0x4b8] sm:$0xff]
    %v6335 = vld [vmem:[#allocation8 + $0x4c0] sm:$0xff]
    %v6336 = vld [vmem:[#allocation8 + $0x4c8] sm:$0xff]
    %v6337 = vld [vmem:[#allocation8 + $0x4d0] sm:$0xff]
    %v6338 = vld [vmem:[#allocation8 + $0x4d8] sm:$0xff]
    %v6339 = vld [vmem:[#allocation8 + $0x4e0] sm:$0xff]
    %v6340 = vld [vmem:[#allocation8 + $0x4e8] sm:$0xff]
    %v6341 = vld [vmem:[#allocation8 + $0x4f0] sm:$0xff]
    %v6342 = vld [vmem:[#allocation8 + $0x4f8] sm:$0xff]
    %v6343 = vld [vmem:[#allocation8 + $0x500] sm:$0xff]
    %v6344 = vld [vmem:[#allocation8 + $0x508] sm:$0xff]
    %v6345 = vld [vmem:[#allocation8 + $0x510] sm:$0xff]
    %v6346 = vld [vmem:[#allocation8 + $0x518] sm:$0xff]
    %v6347 = vld [vmem:[#allocation8 + $0x520] sm:$0xff]
    %v6348 = vld [vmem:[#allocation8 + $0x528] sm:$0xff]
    %v6349 = vld [vmem:[#allocation8 + $0x530] sm:$0xff]
    %v6350 = vld [vmem:[#allocation8 + $0x538] sm:$0xff]
    %v6351 = vld [vmem:[#allocation8 + $0x540] sm:$0xff]
    %v6352 = vld [vmem:[#allocation8 + $0x548] sm:$0xff]
    %v6353 = vld [vmem:[#allocation8 + $0x550] sm:$0xff]
    %v6354 = vld [vmem:[#allocation8 + $0x558] sm:$0xff]
    %v6355 = vld [vmem:[#allocation8 + $0x560] sm:$0xff]
    %v6356 = vld [vmem:[#allocation8 + $0x568] sm:$0xff]
    %v6357 = vld [vmem:[#allocation8 + $0x570] sm:$0xff]
    %v6358 = vld [vmem:[#allocation8 + $0x578] sm:$0xff]
    %v6359 = vld [vmem:[#allocation8 + $0x580] sm:$0xff]
    %v6360 = vld [vmem:[#allocation8 + $0x588] sm:$0xff]
    %v6361 = vld [vmem:[#allocation8 + $0x590] sm:$0xff]
    %v6362 = vld [vmem:[#allocation8 + $0x598] sm:$0xff]
    %v6363 = vld [vmem:[#allocation8 + $0x5a0] sm:$0xff]
    %v6364 = vld [vmem:[#allocation8 + $0x5a8] sm:$0xff]
    %v6365 = vld [vmem:[#allocation8 + $0x5b0] sm:$0xff]
    %v6366 = vld [vmem:[#allocation8 + $0x5b8] sm:$0xff]
    %v6367 = vld [vmem:[#allocation8 + $0x5c0] sm:$0xff]
    %v6368 = vld [vmem:[#allocation8 + $0x5c8] sm:$0xff]
    %v6369 = vld [vmem:[#allocation8 + $0x5d0] sm:$0xff]
    %v6370 = vld [vmem:[#allocation8 + $0x5d8] sm:$0xff]
    %v6371 = vld [vmem:[#allocation8 + $0x5e0] sm:$0xff]
    %v6372 = vld [vmem:[#allocation8 + $0x5e8] sm:$0xff]
    %v6373 = vld [vmem:[#allocation8 + $0x5f0] sm:$0xff]
    %v6374 = vld [vmem:[#allocation8 + $0x5f8] sm:$0xff]
    %v6375 = vld [vmem:[#allocation8 + $0x600] sm:$0xff]
    %v6376 = vld [vmem:[#allocation8 + $0x608] sm:$0xff]
    %v6377 = vld [vmem:[#allocation8 + $0x610] sm:$0xff]
    %v6378 = vld [vmem:[#allocation8 + $0x618] sm:$0xff]
    %v6379 = vld [vmem:[#allocation8 + $0x620] sm:$0xff]
    %v6380 = vld [vmem:[#allocation8 + $0x628] sm:$0xff]
    %v6381 = vld [vmem:[#allocation8 + $0x630] sm:$0xff]
    %v6382 = vld [vmem:[#allocation8 + $0x638] sm:$0xff]
    %v6383 = vld [vmem:[#allocation8 + $0x640] sm:$0xff]
    %v6384 = vld [vmem:[#allocation8 + $0x648] sm:$0xff]
    %v6385 = vld [vmem:[#allocation8 + $0x650] sm:$0xff]
    %v6386 = vld [vmem:[#allocation8 + $0x658] sm:$0xff]
    %v6387 = vld [vmem:[#allocation8 + $0x660] sm:$0xff]
    %v6388 = vld [vmem:[#allocation8 + $0x668] sm:$0xff]
    %v6389 = vld [vmem:[#allocation8 + $0x670] sm:$0xff]
    %v6390 = vld [vmem:[#allocation8 + $0x678] sm:$0xff]
    %v6391 = vld [vmem:[#allocation8 + $0x680] sm:$0xff]
    %v6392 = vld [vmem:[#allocation8 + $0x688] sm:$0xff]
    %v6393 = vld [vmem:[#allocation8 + $0x690] sm:$0xff]
    %v6394 = vld [vmem:[#allocation8 + $0x698] sm:$0xff]
    %v6395 = vld [vmem:[#allocation8 + $0x6a0] sm:$0xff]
    %v6396 = vld [vmem:[#allocation8 + $0x6a8] sm:$0xff]
    %v6397 = vld [vmem:[#allocation8 + $0x6b0] sm:$0xff]
    %v6398 = vld [vmem:[#allocation8 + $0x6b8] sm:$0xff]
    %v6399 = vld [vmem:[#allocation8 + $0x6c0] sm:$0xff]
    %v6400 = vld [vmem:[#allocation8 + $0x6c8] sm:$0xff]
    %v6401 = vld [vmem:[#allocation8 + $0x6d0] sm:$0xff]
    %v6402 = vld [vmem:[#allocation8 + $0x6d8] sm:$0xff]
    %v6403 = vld [vmem:[#allocation8 + $0x6e0] sm:$0xff]
    %v6404 = vld [vmem:[#allocation8 + $0x6e8] sm:$0xff]
    %v6405 = vld [vmem:[#allocation8 + $0x6f0] sm:$0xff]
    %v6406 = vld [vmem:[#allocation8 + $0x6f8] sm:$0xff]
    %v6407 = vld [vmem:[#allocation8 + $0x700] sm:$0xff]
    %v6408 = vld [vmem:[#allocation8 + $0x708] sm:$0xff]
    %v6409 = vld [vmem:[#allocation8 + $0x710] sm:$0xff]
    %v6410 = vld [vmem:[#allocation8 + $0x718] sm:$0xff]
    %v6411 = vld [vmem:[#allocation8 + $0x720] sm:$0xff]
    %v6412 = vld [vmem:[#allocation8 + $0x728] sm:$0xff]
    %v6413 = vld [vmem:[#allocation8 + $0x730] sm:$0xff]
    %v6414 = vld [vmem:[#allocation8 + $0x738] sm:$0xff]
    %v6415 = vld [vmem:[#allocation8 + $0x740] sm:$0xff]
    %v6416 = vld [vmem:[#allocation8 + $0x748] sm:$0xff]
    %v6417 = vld [vmem:[#allocation8 + $0x750] sm:$0xff]
    %v6418 = vld [vmem:[#allocation8 + $0x758] sm:$0xff]
    %v6419 = vld [vmem:[#allocation8 + $0x760] sm:$0xff]
    %v6420 = vld [vmem:[#allocation8 + $0x768] sm:$0xff]
    %v6421 = vld [vmem:[#allocation8 + $0x770] sm:$0xff]
    %v6422 = vld [vmem:[#allocation8 + $0x778] sm:$0xff]
    %v6423 = vld [vmem:[#allocation8 + $0x780] sm:$0xff]
    %v6424 = vld [vmem:[#allocation8 + $0x788] sm:$0xff]
    %v6425 = vld [vmem:[#allocation8 + $0x790] sm:$0xff]
    %v6426 = vld [vmem:[#allocation8 + $0x798] sm:$0xff]
    %v6427 = vld [vmem:[#allocation8 + $0x7a0] sm:$0xff]
    %v6428 = vld [vmem:[#allocation8 + $0x7a8] sm:$0xff]
    %v6429 = vld [vmem:[#allocation8 + $0x7b0] sm:$0xff]
    %v6430 = vld [vmem:[#allocation8 + $0x7b8] sm:$0xff]
    %v6431 = vld [vmem:[#allocation8 + $0x7c0] sm:$0xff]
    %v6432 = vld [vmem:[#allocation8 + $0x7c8] sm:$0xff]
    %v6433 = vld [vmem:[#allocation8 + $0x7d0] sm:$0xff]
    %v6434 = vld [vmem:[#allocation8 + $0x7d8] sm:$0xff]
    %v6435 = vld [vmem:[#allocation8 + $0x7e0] sm:$0xff]
    %v6436 = vld [vmem:[#allocation8 + $0x7e8] sm:$0xff]
    %v6437 = vld [vmem:[#allocation8 + $0x7f0] sm:$0xff]
    %v6438 = vld [vmem:[#allocation8 + $0x7f8] sm:$0xff]
    %v6439 = vld [vmem:[#allocation8 + $0x800] sm:$0xff]
    %v6440 = vld [vmem:[#allocation8 + $0x808] sm:$0xff]
    %v6441 = vld [vmem:[#allocation8 + $0x810] sm:$0xff]
    %v6442 = vld [vmem:[#allocation8 + $0x818] sm:$0xff]
    %v6443 = vld [vmem:[#allocation8 + $0x820] sm:$0xff]
    %v6444 = vld [vmem:[#allocation8 + $0x828] sm:$0xff]
    %v6445 = vld [vmem:[#allocation8 + $0x830] sm:$0xff]
    %v6446 = vld [vmem:[#allocation8 + $0x838] sm:$0xff]
    %v6447 = vld [vmem:[#allocation8 + $0x840] sm:$0xff]
    %v6448 = vld [vmem:[#allocation8 + $0x848] sm:$0xff]
    %v6449 = vld [vmem:[#allocation8 + $0x850] sm:$0xff]
    %v6450 = vld [vmem:[#allocation8 + $0x858] sm:$0xff]
    %v6451 = vld [vmem:[#allocation8 + $0x860] sm:$0xff]
    %v6452 = vld [vmem:[#allocation8 + $0x868] sm:$0xff]
    %v6453 = vld [vmem:[#allocation8 + $0x870] sm:$0xff]
    %v6454 = vld [vmem:[#allocation8 + $0x878] sm:$0xff]
    %v6455 = vld [vmem:[#allocation8 + $0x880] sm:$0xff]
    %v6456 = vld [vmem:[#allocation8 + $0x888] sm:$0xff]
    %v6457 = vld [vmem:[#allocation8 + $0x890] sm:$0xff]
    %v6458 = vld [vmem:[#allocation8 + $0x898] sm:$0xff]
    %v6459 = vld [vmem:[#allocation8 + $0x8a0] sm:$0xff]
    %v6460 = vld [vmem:[#allocation8 + $0x8a8] sm:$0xff]
    %v6461 = vld [vmem:[#allocation8 + $0x8b0] sm:$0xff]
    %v6462 = vld [vmem:[#allocation8 + $0x8b8] sm:$0xff]
    %v6463 = vld [vmem:[#allocation8 + $0x8c0] sm:$0xff]
    %v6464 = vld [vmem:[#allocation8 + $0x8c8] sm:$0xff]
    %v6465 = vld [vmem:[#allocation8 + $0x8d0] sm:$0xff]
    %v6466 = vld [vmem:[#allocation8 + $0x8d8] sm:$0xff]
    %v6467 = vld [vmem:[#allocation8 + $0x8e0] sm:$0xff]
    %v6468 = vld [vmem:[#allocation8 + $0x8e8] sm:$0xff]
    %v6469 = vld [vmem:[#allocation8 + $0x8f0] sm:$0xff]
    %v6470 = vld [vmem:[#allocation8 + $0x8f8] sm:$0xff]
    %v6471 = vld [vmem:[#allocation8 + $0x900] sm:$0xff]
    %v6472 = vld [vmem:[#allocation8 + $0x908] sm:$0xff]
    %v6473 = vld [vmem:[#allocation8 + $0x910] sm:$0xff]
    %v6474 = vld [vmem:[#allocation8 + $0x918] sm:$0xff]
    %v6475 = vld [vmem:[#allocation8 + $0x920] sm:$0xff]
    %v6476 = vld [vmem:[#allocation8 + $0x928] sm:$0xff]
    %v6477 = vld [vmem:[#allocation8 + $0x930] sm:$0xff]
    %v6478 = vld [vmem:[#allocation8 + $0x938] sm:$0xff]
    %v6479 = vld [vmem:[#allocation8 + $0x940] sm:$0xff]
    %v6480 = vld [vmem:[#allocation8 + $0x948] sm:$0xff]
    %v6481 = vld [vmem:[#allocation8 + $0x950] sm:$0xff]
    %v6482 = vld [vmem:[#allocation8 + $0x958] sm:$0xff]
    %v6483 = vld [vmem:[#allocation8 + $0x960] sm:$0xff]
    %v6484 = vld [vmem:[#allocation8 + $0x968] sm:$0xff]
    %v6485 = vld [vmem:[#allocation8 + $0x970] sm:$0xff]
    %v6486 = vld [vmem:[#allocation8 + $0x978] sm:$0xff]
    %v6487 = vld [vmem:[#allocation8 + $0x980] sm:$0xff]
    %v6488 = vld [vmem:[#allocation8 + $0x988] sm:$0xff]
    %v6489 = vld [vmem:[#allocation8 + $0x990] sm:$0xff]
    %v6490 = vld [vmem:[#allocation8 + $0x998] sm:$0xff]
    %v6491 = vld [vmem:[#allocation8 + $0x9a0] sm:$0xff]
    %v6492 = vld [vmem:[#allocation8 + $0x9a8] sm:$0xff]
    %v6493 = vld [vmem:[#allocation8 + $0x9b0] sm:$0xff]
    %v6494 = vld [vmem:[#allocation8 + $0x9b8] sm:$0xff]
    %v6495 = vld [vmem:[#allocation8 + $0x9c0] sm:$0xff]
    %v6496 = vld [vmem:[#allocation8 + $0x9c8] sm:$0xff]
    %v6497 = vld [vmem:[#allocation8 + $0x9d0] sm:$0xff]
    %v6498 = vld [vmem:[#allocation8 + $0x9d8] sm:$0xff]
    %v6499 = vld [vmem:[#allocation8 + $0x9e0] sm:$0xff]
    %v6500 = vld [vmem:[#allocation8 + $0x9e8] sm:$0xff]
    %v6501 = vld [vmem:[#allocation8 + $0x9f0] sm:$0xff]
    %v6502 = vld [vmem:[#allocation8 + $0x9f8] sm:$0xff]
    %v6503 = vld [vmem:[#allocation8 + $0xa00] sm:$0xff]
    %v6504 = vld [vmem:[#allocation8 + $0xa08] sm:$0xff]
    %v6505 = vld [vmem:[#allocation8 + $0xa10] sm:$0xff]
    %v6506 = vld [vmem:[#allocation8 + $0xa18] sm:$0xff]
    %v6507 = vld [vmem:[#allocation8 + $0xa20] sm:$0xff]
    %v6508 = vld [vmem:[#allocation8 + $0xa28] sm:$0xff]
    %v6509 = vld [vmem:[#allocation8 + $0xa30] sm:$0xff]
    %v6510 = vld [vmem:[#allocation8 + $0xa38] sm:$0xff]
    %v6511 = vld [vmem:[#allocation8 + $0xa40] sm:$0xff]
    %v6512 = vld [vmem:[#allocation8 + $0xa48] sm:$0xff]
    %v6513 = vld [vmem:[#allocation8 + $0xa50] sm:$0xff]
    %v6514 = vld [vmem:[#allocation8 + $0xa58] sm:$0xff]
    %v6515 = vld [vmem:[#allocation8 + $0xa60] sm:$0xff]
    %v6516 = vld [vmem:[#allocation8 + $0xa68] sm:$0xff]
    %v6517 = vld [vmem:[#allocation8 + $0xa70] sm:$0xff]
    %v6518 = vld [vmem:[#allocation8 + $0xa78] sm:$0xff]
    %v6519 = vld [vmem:[#allocation8 + $0xa80] sm:$0xff]
    %v6520 = vld [vmem:[#allocation8 + $0xa88] sm:$0xff]
    %v6521 = vld [vmem:[#allocation8 + $0xa90] sm:$0xff]
    %v6522 = vld [vmem:[#allocation8 + $0xa98] sm:$0xff]
    %v6523 = vld [vmem:[#allocation8 + $0xaa0] sm:$0xff]
    %v6524 = vld [vmem:[#allocation8 + $0xaa8] sm:$0xff]
    %v6525 = vld [vmem:[#allocation8 + $0xab0] sm:$0xff]
    %v6526 = vld [vmem:[#allocation8 + $0xab8] sm:$0xff]
    %v6527 = vld [vmem:[#allocation8 + $0xac0] sm:$0xff]
    %v6528 = vld [vmem:[#allocation8 + $0xac8] sm:$0xff]
    %v6529 = vld [vmem:[#allocation8 + $0xad0] sm:$0xff]
    %v6530 = vld [vmem:[#allocation8 + $0xad8] sm:$0xff]
    %v6531 = vld [vmem:[#allocation8 + $0xae0] sm:$0xff]
    %v6532 = vld [vmem:[#allocation8 + $0xae8] sm:$0xff]
    %v6533 = vld [vmem:[#allocation8 + $0xaf0] sm:$0xff]
    %v6534 = vld [vmem:[#allocation8 + $0xaf8] sm:$0xff]
    %v6535 = vld [vmem:[#allocation8 + $0xb00] sm:$0xff]
    %v6536 = vld [vmem:[#allocation8 + $0xb08] sm:$0xff]
    %v6537 = vld [vmem:[#allocation8 + $0xb10] sm:$0xff]
    %v6538 = vld [vmem:[#allocation8 + $0xb18] sm:$0xff]
    %v6539 = vld [vmem:[#allocation8 + $0xb20] sm:$0xff]
    %v6540 = vld [vmem:[#allocation8 + $0xb28] sm:$0xff]
    %v6541 = vld [vmem:[#allocation8 + $0xb30] sm:$0xff]
    %v6542 = vld [vmem:[#allocation8 + $0xb38] sm:$0xff]
    %v6543 = vld [vmem:[#allocation8 + $0xb40] sm:$0xff]
    %v6544 = vld [vmem:[#allocation8 + $0xb48] sm:$0xff]
    %v6545 = vld [vmem:[#allocation8 + $0xb50] sm:$0xff]
    %v6546 = vld [vmem:[#allocation8 + $0xb58] sm:$0xff]
    %v6547 = vld [vmem:[#allocation8 + $0xb60] sm:$0xff]
    %v6548 = vld [vmem:[#allocation8 + $0xb68] sm:$0xff]
    %v6549 = vld [vmem:[#allocation8 + $0xb70] sm:$0xff]
    %v6550 = vld [vmem:[#allocation8 + $0xb78] sm:$0xff]
    %v6551 = vld [vmem:[#allocation8 + $0xb80] sm:$0xff]
    %v6552 = vld [vmem:[#allocation8 + $0xb88] sm:$0xff]
    %v6553 = vld [vmem:[#allocation8 + $0xb90] sm:$0xff]
    %v6554 = vld [vmem:[#allocation8 + $0xb98] sm:$0xff]
    %v6555 = vld [vmem:[#allocation8 + $0xba0] sm:$0xff]
    %v6556 = vld [vmem:[#allocation8 + $0xba8] sm:$0xff]
    %v6557 = vld [vmem:[#allocation8 + $0xbb0] sm:$0xff]
    %v6558 = vld [vmem:[#allocation8 + $0xbb8] sm:$0xff]
    %v6559 = vld [vmem:[#allocation8 + $0xbc0] sm:$0xff]
    %v6560 = vld [vmem:[#allocation8 + $0xbc8] sm:$0xff]
    %v6561 = vld [vmem:[#allocation8 + $0xbd0] sm:$0xff]
    %v6562 = vld [vmem:[#allocation8 + $0xbd8] sm:$0xff]
    %v6563 = vld [vmem:[#allocation8 + $0xbe0] sm:$0xff]
    %v6564 = vld [vmem:[#allocation8 + $0xbe8] sm:$0xff]
    %v6565 = vld [vmem:[#allocation8 + $0xbf0] sm:$0xff]
    %v6566 = vld [vmem:[#allocation8 + $0xbf8] sm:$0xff]
    %v6567 = vld [vmem:[#allocation8 + $0xc00] sm:$0xff]
    %v6568 = vld [vmem:[#allocation8 + $0xc08] sm:$0xff]
    %v6569 = vld [vmem:[#allocation8 + $0xc10] sm:$0xff]
    %v6570 = vld [vmem:[#allocation8 + $0xc18] sm:$0xff]
    %v6571 = vld [vmem:[#allocation8 + $0xc20] sm:$0xff]
    %v6572 = vld [vmem:[#allocation8 + $0xc28] sm:$0xff]
    %v6573 = vld [vmem:[#allocation8 + $0xc30] sm:$0xff]
    %v6574 = vld [vmem:[#allocation8 + $0xc38] sm:$0xff]
    %v6575 = vld [vmem:[#allocation8 + $0xc40] sm:$0xff]
    %v6576 = vld [vmem:[#allocation8 + $0xc48] sm:$0xff]
    %v6577 = vld [vmem:[#allocation8 + $0xc50] sm:$0xff]
    %v6578 = vld [vmem:[#allocation8 + $0xc58] sm:$0xff]
    %v6579 = vld [vmem:[#allocation8 + $0xc60] sm:$0xff]
    %v6580 = vld [vmem:[#allocation8 + $0xc68] sm:$0xff]
    %v6581 = vld [vmem:[#allocation8 + $0xc70] sm:$0xff]
    %v6582 = vld [vmem:[#allocation8 + $0xc78] sm:$0xff]
    %v6583 = vld [vmem:[#allocation8 + $0xc80] sm:$0xff]
    %v6584 = vld [vmem:[#allocation8 + $0xc88] sm:$0xff]
    %v6585 = vld [vmem:[#allocation8 + $0xc90] sm:$0xff]
    %v6586 = vld [vmem:[#allocation8 + $0xc98] sm:$0xff]
    %v6587 = vld [vmem:[#allocation8 + $0xca0] sm:$0xff]
    %v6588 = vld [vmem:[#allocation8 + $0xca8] sm:$0xff]
    %v6589 = vld [vmem:[#allocation8 + $0xcb0] sm:$0xff]
    %v6590 = vld [vmem:[#allocation8 + $0xcb8] sm:$0xff]
    %v6591 = vld [vmem:[#allocation8 + $0xcc0] sm:$0xff]
    %v6592 = vld [vmem:[#allocation8 + $0xcc8] sm:$0xff]
    %v6593 = vld [vmem:[#allocation8 + $0xcd0] sm:$0xff]
    %v6594 = vld [vmem:[#allocation8 + $0xcd8] sm:$0xff]
    %v6595 = vld [vmem:[#allocation8 + $0xce0] sm:$0xff]
    %v6596 = vld [vmem:[#allocation8 + $0xce8] sm:$0xff]
    %v6597 = vld [vmem:[#allocation8 + $0xcf0] sm:$0xff]
    %v6598 = vld [vmem:[#allocation8 + $0xcf8] sm:$0xff]
    %v6599 = vld [vmem:[#allocation8 + $0xd00] sm:$0xff]
    %v6600 = vld [vmem:[#allocation8 + $0xd08] sm:$0xff]
    %v6601 = vld [vmem:[#allocation8 + $0xd10] sm:$0xff]
    %v6602 = vld [vmem:[#allocation8 + $0xd18] sm:$0xff]
    %v6603 = vld [vmem:[#allocation8 + $0xd20] sm:$0xff]
    %v6604 = vld [vmem:[#allocation8 + $0xd28] sm:$0xff]
    %v6605 = vld [vmem:[#allocation8 + $0xd30] sm:$0xff]
    %v6606 = vld [vmem:[#allocation8 + $0xd38] sm:$0xff]
    %v6607 = vld [vmem:[#allocation8 + $0xd40] sm:$0xff]
    %v6608 = vld [vmem:[#allocation8 + $0xd48] sm:$0xff]
    %v6609 = vld [vmem:[#allocation8 + $0xd50] sm:$0xff]
    %v6610 = vld [vmem:[#allocation8 + $0xd58] sm:$0xff]
    %v6611 = vld [vmem:[#allocation8 + $0xd60] sm:$0xff]
    %v6612 = vld [vmem:[#allocation8 + $0xd68] sm:$0xff]
    %v6613 = vld [vmem:[#allocation8 + $0xd70] sm:$0xff]
    %v6614 = vld [vmem:[#allocation8 + $0xd78] sm:$0xff]
    %v6615 = vld [vmem:[#allocation8 + $0xd80] sm:$0xff]
    %v6616 = vld [vmem:[#allocation8 + $0xd88] sm:$0xff]
    %v6617 = vld [vmem:[#allocation8 + $0xd90] sm:$0xff]
    %v6618 = vld [vmem:[#allocation8 + $0xd98] sm:$0xff]
    %v6619 = vld [vmem:[#allocation8 + $0xda0] sm:$0xff]
    %v6620 = vld [vmem:[#allocation8 + $0xda8] sm:$0xff]
    %v6621 = vld [vmem:[#allocation8 + $0xdb0] sm:$0xff]
    %v6622 = vld [vmem:[#allocation8 + $0xdb8] sm:$0xff]
    %v6623 = vld [vmem:[#allocation8 + $0xdc0] sm:$0xff]
    %v6624 = vld [vmem:[#allocation8 + $0xdc8] sm:$0xff]
    %v6625 = vld [vmem:[#allocation8 + $0xdd0] sm:$0xff]
    %v6626 = vld [vmem:[#allocation8 + $0xdd8] sm:$0xff]
    %v6627 = vld [vmem:[#allocation8 + $0xde0] sm:$0xff]
    %v6628 = vld [vmem:[#allocation8 + $0xde8] sm:$0xff]
    %v6629 = vld [vmem:[#allocation8 + $0xdf0] sm:$0xff]
    %v6630 = vld [vmem:[#allocation8 + $0xdf8] sm:$0xff]
    %v6631 = vld [vmem:[#allocation8 + $0xe00] sm:$0xff]
    %v6632 = vld [vmem:[#allocation8 + $0xe08] sm:$0xff]
    %v6633 = vld [vmem:[#allocation8 + $0xe10] sm:$0xff]
    %v6634 = vld [vmem:[#allocation8 + $0xe18] sm:$0xff]
    %v6635 = vld [vmem:[#allocation8 + $0xe20] sm:$0xff]
    %v6636 = vld [vmem:[#allocation8 + $0xe28] sm:$0xff]
    %v6637 = vld [vmem:[#allocation8 + $0xe30] sm:$0xff]
    %v6638 = vld [vmem:[#allocation8 + $0xe38] sm:$0xff]
    %v6639 = vld [vmem:[#allocation8 + $0xe40] sm:$0xff]
    %v6640 = vld [vmem:[#allocation8 + $0xe48] sm:$0xff]
    %v6641 = vld [vmem:[#allocation8 + $0xe50] sm:$0xff]
    %v6642 = vld [vmem:[#allocation8 + $0xe58] sm:$0xff]
    %v6643 = vld [vmem:[#allocation8 + $0xe60] sm:$0xff]
    %v6644 = vld [vmem:[#allocation8 + $0xe68] sm:$0xff]
    %v6645 = vld [vmem:[#allocation8 + $0xe70] sm:$0xff]
    %v6646 = vld [vmem:[#allocation8 + $0xe78] sm:$0xff]
    %v6647 = vld [vmem:[#allocation8 + $0xe80] sm:$0xff]
    %v6648 = vld [vmem:[#allocation8 + $0xe88] sm:$0xff]
    %v6649 = vld [vmem:[#allocation8 + $0xe90] sm:$0xff]
    %v6650 = vld [vmem:[#allocation8 + $0xe98] sm:$0xff]
    %v6651 = vld [vmem:[#allocation8 + $0xea0] sm:$0xff]
    %v6652 = vld [vmem:[#allocation8 + $0xea8] sm:$0xff]
    %v6653 = vld [vmem:[#allocation8 + $0xeb0] sm:$0xff]
    %v6654 = vld [vmem:[#allocation8 + $0xeb8] sm:$0xff]
    %v6655 = vld [vmem:[#allocation8 + $0xec0] sm:$0xff]
    %v6656 = vld [vmem:[#allocation8 + $0xec8] sm:$0xff]
    %v6657 = vld [vmem:[#allocation8 + $0xed0] sm:$0xff]
    %v6658 = vld [vmem:[#allocation8 + $0xed8] sm:$0xff]
    %v6659 = vld [vmem:[#allocation8 + $0xee0] sm:$0xff]
    %v6660 = vld [vmem:[#allocation8 + $0xee8] sm:$0xff]
    %v6661 = vld [vmem:[#allocation8 + $0xef0] sm:$0xff]
    %v6662 = vld [vmem:[#allocation8 + $0xef8] sm:$0xff]
    %v6663 = vld [vmem:[#allocation8 + $0xf00] sm:$0xff]
    %v6664 = vld [vmem:[#allocation8 + $0xf08] sm:$0xff]
    %v6665 = vld [vmem:[#allocation8 + $0xf10] sm:$0xff]
    %v6666 = vld [vmem:[#allocation8 + $0xf18] sm:$0xff]
    %v6667 = vld [vmem:[#allocation8 + $0xf20] sm:$0xff]
    %v6668 = vld [vmem:[#allocation8 + $0xf28] sm:$0xff]
    %v6669 = vld [vmem:[#allocation8 + $0xf30] sm:$0xff]
    %v6670 = vld [vmem:[#allocation8 + $0xf38] sm:$0xff]
    %v6671 = vld [vmem:[#allocation8 + $0xf40] sm:$0xff]
    %v6672 = vld [vmem:[#allocation8 + $0xf48] sm:$0xff]
    %v6673 = vld [vmem:[#allocation8 + $0xf50] sm:$0xff]
    %v6674 = vld [vmem:[#allocation8 + $0xf58] sm:$0xff]
    %v6675 = vld [vmem:[#allocation8 + $0xf60] sm:$0xff]
    %v6676 = vld [vmem:[#allocation8 + $0xf68] sm:$0xff]
    %v6677 = vld [vmem:[#allocation8 + $0xf70] sm:$0xff]
    %v6678 = vld [vmem:[#allocation8 + $0xf78] sm:$0xff]
    %v6679 = vld [vmem:[#allocation8 + $0xf80] sm:$0xff]
    %v6680 = vld [vmem:[#allocation8 + $0xf88] sm:$0xff]
    %v6681 = vld [vmem:[#allocation8 + $0xf90] sm:$0xff]
    %v6682 = vld [vmem:[#allocation8 + $0xf98] sm:$0xff]
    %v6683 = vld [vmem:[#allocation8 + $0xfa0] sm:$0xff]
    %v6684 = vld [vmem:[#allocation8 + $0xfa8] sm:$0xff]
    %v6685 = vld [vmem:[#allocation8 + $0xfb0] sm:$0xff]
    %v6686 = vld [vmem:[#allocation8 + $0xfb8] sm:$0xff]
    %v6687 = vld [vmem:[#allocation8 + $0xfc0] sm:$0xff]
    %v6688 = vld [vmem:[#allocation8 + $0xfc8] sm:$0xff]
    %v6689 = vld [vmem:[#allocation8 + $0xfd0] sm:$0xff]
    %v6690 = vld [vmem:[#allocation8 + $0xfd8] sm:$0xff]
    %v6691 = vld [vmem:[#allocation8 + $0xfe0] sm:$0xff]
    %v6692 = vld [vmem:[#allocation8 + $0xfe8] sm:$0xff]
    %v6693 = vld [vmem:[#allocation8 + $0xff0] sm:$0xff]
    %v6694 = vld [vmem:[#allocation8 + $0xff8] sm:$0xff]
    %v6695 = vld [vmem:[%s6] sm:$0x77]
    %v6696 = vld [vmem:[%s6 + $0x8] sm:$0x77]
    %v6699 = vperm.slane %v6695, 0
    %v6700 = vperm.slane %v6695, 4
    %v6701 = vperm.slane %v6696, 0
    %v6702 = vperm.slane %v6696, 4
    %v6707 = vperm.slane %v6699, 0
    %v6708 = vperm.slane %v6700, 0
    %v6709 = vperm.slane %v6701, 0
    %v6710 = vperm.slane %v6702, 0
    %6711 = vmatpush.msra.mxu0 %v6243
    %6712 = vmatpush.msra.mxu0 %v6239
    %6713 = vmatpush.msra.mxu0 %v6235
    %6714 = vmatpush.msra.mxu0 %v6231
    %6715 = vmatpush.msra.mxu0 %v6227
    %6716 = vmatpush.msra.mxu0 %v6223
    %6717 = vmatpush.msra.mxu0 %v6219
    %6718 = vmatpush.msra.mxu0 %v6215
    %6719 = vmatpush.msra.mxu0 %v6211
    %6720 = vmatpush.msra.mxu0 %v6207
    %6721 = vmatpush.msra.mxu0 %v6203
    %6722 = vmatpush.msra.mxu0 %v6199
    %6723 = vmatpush.msra.mxu0 %v6195
    %6724 = vmatpush.msra.mxu0 %v6191
    %6725 = vmatpush.msra.mxu0 %v6187
    %6726 = vmatpush.msra.mxu0 %v6183
    %6727 = vmatmul.f32.gmra.mxu0 %v6175
    %v6728 = vpop.f32.mrf.mxu0
    %v6729 = vadd.f32 %v6707, %v6728
    %6730 = vdwg.mxu0
    %6731 = vmatpush.msra.mxu0 %v6307
    %6732 = vmatpush.msra.mxu0 %v6303
    %6733 = vmatpush.msra.mxu0 %v6299
    %6734 = vmatpush.msra.mxu0 %v6295
    %6735 = vmatpush.msra.mxu0 %v6291
    %6736 = vmatpush.msra.mxu0 %v6287
    %6737 = vmatpush.msra.mxu0 %v6283
    %6738 = vmatpush.msra.mxu0 %v6279
    %6739 = vmatpush.msra.mxu0 %v6275
    %6740 = vmatpush.msra.mxu0 %v6271
    %6741 = vmatpush.msra.mxu0 %v6267
    %6742 = vmatpush.msra.mxu0 %v6263
    %6743 = vmatpush.msra.mxu0 %v6259
    %6744 = vmatpush.msra.mxu0 %v6255
    %6745 = vmatpush.msra.mxu0 %v6251
    %6746 = vmatpush.msra.mxu0 %v6247
    %6747 = vmatmul.f32.gmra.mxu0 %v6176
    %v6748 = vpop.f32.mrf.mxu0
    %v6749 = vadd.f32 %v6729, %v6748
    %6750 = vdwg.mxu0
    %6751 = vmatpush.msra.mxu0 %v6371
    %6752 = vmatpush.msra.mxu0 %v6367
    %6753 = vmatpush.msra.mxu0 %v6363
    %6754 = vmatpush.msra.mxu0 %v6359
    %6755 = vmatpush.msra.mxu0 %v6355
    %6756 = vmatpush.msra.mxu0 %v6351
    %6757 = vmatpush.msra.mxu0 %v6347
    %6758 = vmatpush.msra.mxu0 %v6343
    %6759 = vmatpush.msra.mxu0 %v6339
    %6760 = vmatpush.msra.mxu0 %v6335
    %6761 = vmatpush.msra.mxu0 %v6331
    %6762 = vmatpush.msra.mxu0 %v6327
    %6763 = vmatpush.msra.mxu0 %v6323
    %6764 = vmatpush.msra.mxu0 %v6319
    %6765 = vmatpush.msra.mxu0 %v6315
    %6766 = vmatpush.msra.mxu0 %v6311
    %6767 = vmatmul.f32.gmra.mxu0 %v6177
    %v6768 = vpop.f32.mrf.mxu0
    %v6769 = vadd.f32 %v6749, %v6768
    %6770 = vdwg.mxu0
    %6771 = vmatpush.msra.mxu0 %v6435
    %6772 = vmatpush.msra.mxu0 %v6431
    %6773 = vmatpush.msra.mxu0 %v6427
    %6774 = vmatpush.msra.mxu0 %v6423
    %6775 = vmatpush.msra.mxu0 %v6419
    %6776 = vmatpush.msra.mxu0 %v6415
    %6777 = vmatpush.msra.mxu0 %v6411
    %6778 = vmatpush.msra.mxu0 %v6407
    %6779 = vmatpush.msra.mxu0 %v6403
    %6780 = vmatpush.msra.mxu0 %v6399
    %6781 = vmatpush.msra.mxu0 %v6395
    %6782 = vmatpush.msra.mxu0 %v6391
    %6783 = vmatpush.msra.mxu0 %v6387
    %6784 = vmatpush.msra.mxu0 %v6383
    %6785 = vmatpush.msra.mxu0 %v6379
    %6786 = vmatpush.msra.mxu0 %v6375
    %6787 = vmatmul.f32.gmra.mxu0 %v6178
    %v6788 = vpop.f32.mrf.mxu0
    %v6789 = vadd.f32 %v6769, %v6788
    %6790 = vdwg.mxu0
    %6791 = vmatpush.msra.mxu0 %v6499
    %6792 = vmatpush.msra.mxu0 %v6495
    %6793 = vmatpush.msra.mxu0 %v6491
    %6794 = vmatpush.msra.mxu0 %v6487
    %6795 = vmatpush.msra.mxu0 %v6483
    %6796 = vmatpush.msra.mxu0 %v6479
    %6797 = vmatpush.msra.mxu0 %v6475
    %6798 = vmatpush.msra.mxu0 %v6471
    %6799 = vmatpush.msra.mxu0 %v6467
    %6800 = vmatpush.msra.mxu0 %v6463
    %6801 = vmatpush.msra.mxu0 %v6459
    %6802 = vmatpush.msra.mxu0 %v6455
    %6803 = vmatpush.msra.mxu0 %v6451
    %6804 = vmatpush.msra.mxu0 %v6447
    %6805 = vmatpush.msra.mxu0 %v6443
    %6806 = vmatpush.msra.mxu0 %v6439
    %6807 = vmatmul.f32.gmra.mxu0 %v6179
    %v6808 = vpop.f32.mrf.mxu0
    %v6809 = vadd.f32 %v6789, %v6808
    %6810 = vdwg.mxu0
    %6811 = vmatpush.msra.mxu0 %v6563
    %6812 = vmatpush.msra.mxu0 %v6559
    %6813 = vmatpush.msra.mxu0 %v6555
    %6814 = vmatpush.msra.mxu0 %v6551
    %6815 = vmatpush.msra.mxu0 %v6547
    %6816 = vmatpush.msra.mxu0 %v6543
    %6817 = vmatpush.msra.mxu0 %v6539
    %6818 = vmatpush.msra.mxu0 %v6535
    %6819 = vmatpush.msra.mxu0 %v6531
    %6820 = vmatpush.msra.mxu0 %v6527
    %6821 = vmatpush.msra.mxu0 %v6523
    %6822 = vmatpush.msra.mxu0 %v6519
    %6823 = vmatpush.msra.mxu0 %v6515
    %6824 = vmatpush.msra.mxu0 %v6511
    %6825 = vmatpush.msra.mxu0 %v6507
    %6826 = vmatpush.msra.mxu0 %v6503
    %6827 = vmatmul.f32.gmra.mxu0 %v6180
    %v6828 = vpop.f32.mrf.mxu0
    %v6829 = vadd.f32 %v6809, %v6828
    %6830 = vdwg.mxu0
    %6831 = vmatpush.msra.mxu0 %v6627
    %6832 = vmatpush.msra.mxu0 %v6623
    %6833 = vmatpush.msra.mxu0 %v6619
    %6834 = vmatpush.msra.mxu0 %v6615
    %6835 = vmatpush.msra.mxu0 %v6611
    %6836 = vmatpush.msra.mxu0 %v6607
    %6837 = vmatpush.msra.mxu0 %v6603
    %6838 = vmatpush.msra.mxu0 %v6599
    %6839 = vmatpush.msra.mxu0 %v6595
    %6840 = vmatpush.msra.mxu0 %v6591
    %6841 = vmatpush.msra.mxu0 %v6587
    %6842 = vmatpush.msra.mxu0 %v6583
    %6843 = vmatpush.msra.mxu0 %v6579
    %6844 = vmatpush.msra.mxu0 %v6575
    %6845 = vmatpush.msra.mxu0 %v6571
    %6846 = vmatpush.msra.mxu0 %v6567
    %6847 = vmatmul.f32.gmra.mxu0 %v6181
    %v6848 = vpop.f32.mrf.mxu0
    %v6849 = vadd.f32 %v6829, %v6848
    %6850 = vdwg.mxu0
    %6851 = vmatpush.msra.mxu0 %v6691
    %6852 = vmatpush.msra.mxu0 %v6687
    %6853 = vmatpush.msra.mxu0 %v6683
    %6854 = vmatpush.msra.mxu0 %v6679
    %6855 = vmatpush.msra.mxu0 %v6675
    %6856 = vmatpush.msra.mxu0 %v6671
    %6857 = vmatpush.msra.mxu0 %v6667
    %6858 = vmatpush.msra.mxu0 %v6663
    %6859 = vmatpush.msra.mxu0 %v6659
    %6860 = vmatpush.msra.mxu0 %v6655
    %6861 = vmatpush.msra.mxu0 %v6651
    %6862 = vmatpush.msra.mxu0 %v6647
    %6863 = vmatpush.msra.mxu0 %v6643
    %6864 = vmatpush.msra.mxu0 %v6639
    %6865 = vmatpush.msra.mxu0 %v6635
    %6866 = vmatpush.msra.mxu0 %v6631
    %6867 = vmatmul.f32.gmra.mxu0 %v6182
    %v6868 = vpop.f32.mrf.mxu0
    %v6869 = vadd.f32 %v6849, %v6868
    %6870 = vdwg.mxu0
    %6871 = vmatpush.msra.mxu0 %v6244
    %6872 = vmatpush.msra.mxu0 %v6240
    %6873 = vmatpush.msra.mxu0 %v6236
    %6874 = vmatpush.msra.mxu0 %v6232
    %6875 = vmatpush.msra.mxu0 %v6228
    %6876 = vmatpush.msra.mxu0 %v6224
    %6877 = vmatpush.msra.mxu0 %v6220
    %6878 = vmatpush.msra.mxu0 %v6216
    %6879 = vmatpush.msra.mxu0 %v6212
    %6880 = vmatpush.msra.mxu0 %v6208
    %6881 = vmatpush.msra.mxu0 %v6204
    %6882 = vmatpush.msra.mxu0 %v6200
    %6883 = vmatpush.msra.mxu0 %v6196
    %6884 = vmatpush.msra.mxu0 %v6192
    %6885 = vmatpush.msra.mxu0 %v6188
    %6886 = vmatpush.msra.mxu0 %v6184
    %6887 = vmatmul.f32.gmra.mxu0 %v6175
    %v6888 = vpop.f32.mrf.mxu0
    %v6889 = vadd.f32 %v6708, %v6888
    %6890 = vdwg.mxu0
    %6891 = vmatpush.msra.mxu0 %v6308
    %6892 = vmatpush.msra.mxu0 %v6304
    %6893 = vmatpush.msra.mxu0 %v6300
    %6894 = vmatpush.msra.mxu0 %v6296
    %6895 = vmatpush.msra.mxu0 %v6292
    %6896 = vmatpush.msra.mxu0 %v6288
    %6897 = vmatpush.msra.mxu0 %v6284
    %6898 = vmatpush.msra.mxu0 %v6280
    %6899 = vmatpush.msra.mxu0 %v6276
    %6900 = vmatpush.msra.mxu0 %v6272
    %6901 = vmatpush.msra.mxu0 %v6268
    %6902 = vmatpush.msra.mxu0 %v6264
    %6903 = vmatpush.msra.mxu0 %v6260
    %6904 = vmatpush.msra.mxu0 %v6256
    %6905 = vmatpush.msra.mxu0 %v6252
    %6906 = vmatpush.msra.mxu0 %v6248
    %6907 = vmatmul.f32.gmra.mxu0 %v6176
    %v6908 = vpop.f32.mrf.mxu0
    %v6909 = vadd.f32 %v6889, %v6908
    %6910 = vdwg.mxu0
    %6911 = vmatpush.msra.mxu0 %v6372
    %6912 = vmatpush.msra.mxu0 %v6368
    %6913 = vmatpush.msra.mxu0 %v6364
    %6914 = vmatpush.msra.mxu0 %v6360
    %6915 = vmatpush.msra.mxu0 %v6356
    %6916 = vmatpush.msra.mxu0 %v6352
    %6917 = vmatpush.msra.mxu0 %v6348
    %6918 = vmatpush.msra.mxu0 %v6344
    %6919 = vmatpush.msra.mxu0 %v6340
    %6920 = vmatpush.msra.mxu0 %v6336
    %6921 = vmatpush.msra.mxu0 %v6332
    %6922 = vmatpush.msra.mxu0 %v6328
    %6923 = vmatpush.msra.mxu0 %v6324
    %6924 = vmatpush.msra.mxu0 %v6320
    %6925 = vmatpush.msra.mxu0 %v6316
    %6926 = vmatpush.msra.mxu0 %v6312
    %6927 = vmatmul.f32.gmra.mxu0 %v6177
    %v6928 = vpop.f32.mrf.mxu0
    %v6929 = vadd.f32 %v6909, %v6928
    %6930 = vdwg.mxu0
    %6931 = vmatpush.msra.mxu0 %v6436
    %6932 = vmatpush.msra.mxu0 %v6432
    %6933 = vmatpush.msra.mxu0 %v6428
    %6934 = vmatpush.msra.mxu0 %v6424
    %6935 = vmatpush.msra.mxu0 %v6420
    %6936 = vmatpush.msra.mxu0 %v6416
    %6937 = vmatpush.msra.mxu0 %v6412
    %6938 = vmatpush.msra.mxu0 %v6408
    %6939 = vmatpush.msra.mxu0 %v6404
    %6940 = vmatpush.msra.mxu0 %v6400
    %6941 = vmatpush.msra.mxu0 %v6396
    %6942 = vmatpush.msra.mxu0 %v6392
    %6943 = vmatpush.msra.mxu0 %v6388
    %6944 = vmatpush.msra.mxu0 %v6384
    %6945 = vmatpush.msra.mxu0 %v6380
    %6946 = vmatpush.msra.mxu0 %v6376
    %6947 = vmatmul.f32.gmra.mxu0 %v6178
    %v6948 = vpop.f32.mrf.mxu0
    %v6949 = vadd.f32 %v6929, %v6948
    %6950 = vdwg.mxu0
    %6951 = vmatpush.msra.mxu0 %v6500
    %6952 = vmatpush.msra.mxu0 %v6496
    %6953 = vmatpush.msra.mxu0 %v6492
    %6954 = vmatpush.msra.mxu0 %v6488
    %6955 = vmatpush.msra.mxu0 %v6484
    %6956 = vmatpush.msra.mxu0 %v6480
    %6957 = vmatpush.msra.mxu0 %v6476
    %6958 = vmatpush.msra.mxu0 %v6472
    %6959 = vmatpush.msra.mxu0 %v6468
    %6960 = vmatpush.msra.mxu0 %v6464
    %6961 = vmatpush.msra.mxu0 %v6460
    %6962 = vmatpush.msra.mxu0 %v6456
    %6963 = vmatpush.msra.mxu0 %v6452
    %6964 = vmatpush.msra.mxu0 %v6448
    %6965 = vmatpush.msra.mxu0 %v6444
    %6966 = vmatpush.msra.mxu0 %v6440
    %6967 = vmatmul.f32.gmra.mxu0 %v6179
    %v6968 = vpop.f32.mrf.mxu0
    %v6969 = vadd.f32 %v6949, %v6968
    %6970 = vdwg.mxu0
    %6971 = vmatpush.msra.mxu0 %v6564
    %6972 = vmatpush.msra.mxu0 %v6560
    %6973 = vmatpush.msra.mxu0 %v6556
    %6974 = vmatpush.msra.mxu0 %v6552
    %6975 = vmatpush.msra.mxu0 %v6548
    %6976 = vmatpush.msra.mxu0 %v6544
    %6977 = vmatpush.msra.mxu0 %v6540
    %6978 = vmatpush.msra.mxu0 %v6536
    %6979 = vmatpush.msra.mxu0 %v6532
    %6980 = vmatpush.msra.mxu0 %v6528
    %6981 = vmatpush.msra.mxu0 %v6524
    %6982 = vmatpush.msra.mxu0 %v6520
    %6983 = vmatpush.msra.mxu0 %v6516
    %6984 = vmatpush.msra.mxu0 %v6512
    %6985 = vmatpush.msra.mxu0 %v6508
    %6986 = vmatpush.msra.mxu0 %v6504
    %6987 = vmatmul.f32.gmra.mxu0 %v6180
    %v6988 = vpop.f32.mrf.mxu0
    %v6989 = vadd.f32 %v6969, %v6988
    %6990 = vdwg.mxu0
    %6991 = vmatpush.msra.mxu0 %v6628
    %6992 = vmatpush.msra.mxu0 %v6624
    %6993 = vmatpush.msra.mxu0 %v6620
    %6994 = vmatpush.msra.mxu0 %v6616
    %6995 = vmatpush.msra.mxu0 %v6612
    %6996 = vmatpush.msra.mxu0 %v6608
    %6997 = vmatpush.msra.mxu0 %v6604
    %6998 = vmatpush.msra.mxu0 %v6600
    %6999 = vmatpush.msra.mxu0 %v6596
    %7000 = vmatpush.msra.mxu0 %v6592
    %7001 = vmatpush.msra.mxu0 %v6588
    %7002 = vmatpush.msra.mxu0 %v6584
    %7003 = vmatpush.msra.mxu0 %v6580
    %7004 = vmatpush.msra.mxu0 %v6576
    %7005 = vmatpush.msra.mxu0 %v6572
    %7006 = vmatpush.msra.mxu0 %v6568
    %7007 = vmatmul.f32.gmra.mxu0 %v6181
    %v7008 = vpop.f32.mrf.mxu0
    %v7009 = vadd.f32 %v6989, %v7008
    %7010 = vdwg.mxu0
    %7011 = vmatpush.msra.mxu0 %v6692
    %7012 = vmatpush.msra.mxu0 %v6688
    %7013 = vmatpush.msra.mxu0 %v6684
    %7014 = vmatpush.msra.mxu0 %v6680
    %7015 = vmatpush.msra.mxu0 %v6676
    %7016 = vmatpush.msra.mxu0 %v6672
    %7017 = vmatpush.msra.mxu0 %v6668
    %7018 = vmatpush.msra.mxu0 %v6664
    %7019 = vmatpush.msra.mxu0 %v6660
    %7020 = vmatpush.msra.mxu0 %v6656
    %7021 = vmatpush.msra.mxu0 %v6652
    %7022 = vmatpush.msra.mxu0 %v6648
    %7023 = vmatpush.msra.mxu0 %v6644
    %7024 = vmatpush.msra.mxu0 %v6640
    %7025 = vmatpush.msra.mxu0 %v6636
    %7026 = vmatpush.msra.mxu0 %v6632
    %7027 = vmatmul.f32.gmra.mxu0 %v6182
    %v7028 = vpop.f32.mrf.mxu0
    %v7029 = vadd.f32 %v7009, %v7028
    %7030 = vdwg.mxu0
    %7031 = vmatpush.msra.mxu0 %v6245
    %7032 = vmatpush.msra.mxu0 %v6241
    %7033 = vmatpush.msra.mxu0 %v6237
    %7034 = vmatpush.msra.mxu0 %v6233
    %7035 = vmatpush.msra.mxu0 %v6229
    %7036 = vmatpush.msra.mxu0 %v6225
    %7037 = vmatpush.msra.mxu0 %v6221
    %7038 = vmatpush.msra.mxu0 %v6217
    %7039 = vmatpush.msra.mxu0 %v6213
    %7040 = vmatpush.msra.mxu0 %v6209
    %7041 = vmatpush.msra.mxu0 %v6205
    %7042 = vmatpush.msra.mxu0 %v6201
    %7043 = vmatpush.msra.mxu0 %v6197
    %7044 = vmatpush.msra.mxu0 %v6193
    %7045 = vmatpush.msra.mxu0 %v6189
    %7046 = vmatpush.msra.mxu0 %v6185
    %7047 = vmatmul.f32.gmra.mxu0 %v6175
    %v7048 = vpop.f32.mrf.mxu0
    %v7049 = vadd.f32 %v6709, %v7048
    %7050 = vdwg.mxu0
    %7051 = vmatpush.msra.mxu0 %v6309
    %7052 = vmatpush.msra.mxu0 %v6305
    %7053 = vmatpush.msra.mxu0 %v6301
    %7054 = vmatpush.msra.mxu0 %v6297
    %7055 = vmatpush.msra.mxu0 %v6293
    %7056 = vmatpush.msra.mxu0 %v6289
    %7057 = vmatpush.msra.mxu0 %v6285
    %7058 = vmatpush.msra.mxu0 %v6281
    %7059 = vmatpush.msra.mxu0 %v6277
    %7060 = vmatpush.msra.mxu0 %v6273
    %7061 = vmatpush.msra.mxu0 %v6269
    %7062 = vmatpush.msra.mxu0 %v6265
    %7063 = vmatpush.msra.mxu0 %v6261
    %7064 = vmatpush.msra.mxu0 %v6257
    %7065 = vmatpush.msra.mxu0 %v6253
    %7066 = vmatpush.msra.mxu0 %v6249
    %7067 = vmatmul.f32.gmra.mxu0 %v6176
    %v7068 = vpop.f32.mrf.mxu0
    %v7069 = vadd.f32 %v7049, %v7068
    %7070 = vdwg.mxu0
    %7071 = vmatpush.msra.mxu0 %v6373
    %7072 = vmatpush.msra.mxu0 %v6369
    %7073 = vmatpush.msra.mxu0 %v6365
    %7074 = vmatpush.msra.mxu0 %v6361
    %7075 = vmatpush.msra.mxu0 %v6357
    %7076 = vmatpush.msra.mxu0 %v6353
    %7077 = vmatpush.msra.mxu0 %v6349
    %7078 = vmatpush.msra.mxu0 %v6345
    %7079 = vmatpush.msra.mxu0 %v6341
    %7080 = vmatpush.msra.mxu0 %v6337
    %7081 = vmatpush.msra.mxu0 %v6333
    %7082 = vmatpush.msra.mxu0 %v6329
    %7083 = vmatpush.msra.mxu0 %v6325
    %7084 = vmatpush.msra.mxu0 %v6321
    %7085 = vmatpush.msra.mxu0 %v6317
    %7086 = vmatpush.msra.mxu0 %v6313
    %7087 = vmatmul.f32.gmra.mxu0 %v6177
    %v7088 = vpop.f32.mrf.mxu0
    %v7089 = vadd.f32 %v7069, %v7088
    %7090 = vdwg.mxu0
    %7091 = vmatpush.msra.mxu0 %v6437
    %7092 = vmatpush.msra.mxu0 %v6433
    %7093 = vmatpush.msra.mxu0 %v6429
    %7094 = vmatpush.msra.mxu0 %v6425
    %7095 = vmatpush.msra.mxu0 %v6421
    %7096 = vmatpush.msra.mxu0 %v6417
    %7097 = vmatpush.msra.mxu0 %v6413
    %7098 = vmatpush.msra.mxu0 %v6409
    %7099 = vmatpush.msra.mxu0 %v6405
    %7100 = vmatpush.msra.mxu0 %v6401
    %7101 = vmatpush.msra.mxu0 %v6397
    %7102 = vmatpush.msra.mxu0 %v6393
    %7103 = vmatpush.msra.mxu0 %v6389
    %7104 = vmatpush.msra.mxu0 %v6385
    %7105 = vmatpush.msra.mxu0 %v6381
    %7106 = vmatpush.msra.mxu0 %v6377
    %7107 = vmatmul.f32.gmra.mxu0 %v6178
    %v7108 = vpop.f32.mrf.mxu0
    %v7109 = vadd.f32 %v7089, %v7108
    %7110 = vdwg.mxu0
    %7111 = vmatpush.msra.mxu0 %v6501
    %7112 = vmatpush.msra.mxu0 %v6497
    %7113 = vmatpush.msra.mxu0 %v6493
    %7114 = vmatpush.msra.mxu0 %v6489
    %7115 = vmatpush.msra.mxu0 %v6485
    %7116 = vmatpush.msra.mxu0 %v6481
    %7117 = vmatpush.msra.mxu0 %v6477
    %7118 = vmatpush.msra.mxu0 %v6473
    %7119 = vmatpush.msra.mxu0 %v6469
    %7120 = vmatpush.msra.mxu0 %v6465
    %7121 = vmatpush.msra.mxu0 %v6461
    %7122 = vmatpush.msra.mxu0 %v6457
    %7123 = vmatpush.msra.mxu0 %v6453
    %7124 = vmatpush.msra.mxu0 %v6449
    %7125 = vmatpush.msra.mxu0 %v6445
    %7126 = vmatpush.msra.mxu0 %v6441
    %7127 = vmatmul.f32.gmra.mxu0 %v6179
    %v7128 = vpop.f32.mrf.mxu0
    %v7129 = vadd.f32 %v7109, %v7128
    %7130 = vdwg.mxu0
    %7131 = vmatpush.msra.mxu0 %v6565
    %7132 = vmatpush.msra.mxu0 %v6561
    %7133 = vmatpush.msra.mxu0 %v6557
    %7134 = vmatpush.msra.mxu0 %v6553
    %7135 = vmatpush.msra.mxu0 %v6549
    %7136 = vmatpush.msra.mxu0 %v6545
    %7137 = vmatpush.msra.mxu0 %v6541
    %7138 = vmatpush.msra.mxu0 %v6537
    %7139 = vmatpush.msra.mxu0 %v6533
    %7140 = vmatpush.msra.mxu0 %v6529
    %7141 = vmatpush.msra.mxu0 %v6525
    %7142 = vmatpush.msra.mxu0 %v6521
    %7143 = vmatpush.msra.mxu0 %v6517
    %7144 = vmatpush.msra.mxu0 %v6513
    %7145 = vmatpush.msra.mxu0 %v6509
    %7146 = vmatpush.msra.mxu0 %v6505
    %7147 = vmatmul.f32.gmra.mxu0 %v6180
    %v7148 = vpop.f32.mrf.mxu0
    %v7149 = vadd.f32 %v7129, %v7148
    %7150 = vdwg.mxu0
    %7151 = vmatpush.msra.mxu0 %v6629
    %7152 = vmatpush.msra.mxu0 %v6625
    %7153 = vmatpush.msra.mxu0 %v6621
    %7154 = vmatpush.msra.mxu0 %v6617
    %7155 = vmatpush.msra.mxu0 %v6613
    %7156 = vmatpush.msra.mxu0 %v6609
    %7157 = vmatpush.msra.mxu0 %v6605
    %7158 = vmatpush.msra.mxu0 %v6601
    %7159 = vmatpush.msra.mxu0 %v6597
    %7160 = vmatpush.msra.mxu0 %v6593
    %7161 = vmatpush.msra.mxu0 %v6589
    %7162 = vmatpush.msra.mxu0 %v6585
    %7163 = vmatpush.msra.mxu0 %v6581
    %7164 = vmatpush.msra.mxu0 %v6577
    %7165 = vmatpush.msra.mxu0 %v6573
    %7166 = vmatpush.msra.mxu0 %v6569
    %7167 = vmatmul.f32.gmra.mxu0 %v6181
    %v7168 = vpop.f32.mrf.mxu0
    %v7169 = vadd.f32 %v7149, %v7168
    %7170 = vdwg.mxu0
    %7171 = vmatpush.msra.mxu0 %v6693
    %7172 = vmatpush.msra.mxu0 %v6689
    %7173 = vmatpush.msra.mxu0 %v6685
    %7174 = vmatpush.msra.mxu0 %v6681
    %7175 = vmatpush.msra.mxu0 %v6677
    %7176 = vmatpush.msra.mxu0 %v6673
    %7177 = vmatpush.msra.mxu0 %v6669
    %7178 = vmatpush.msra.mxu0 %v6665
    %7179 = vmatpush.msra.mxu0 %v6661
    %7180 = vmatpush.msra.mxu0 %v6657
    %7181 = vmatpush.msra.mxu0 %v6653
    %7182 = vmatpush.msra.mxu0 %v6649
    %7183 = vmatpush.msra.mxu0 %v6645
    %7184 = vmatpush.msra.mxu0 %v6641
    %7185 = vmatpush.msra.mxu0 %v6637
    %7186 = vmatpush.msra.mxu0 %v6633
    %7187 = vmatmul.f32.gmra.mxu0 %v6182
    %v7188 = vpop.f32.mrf.mxu0
    %v7189 = vadd.f32 %v7169, %v7188
    %7190 = vdwg.mxu0
    %7191 = vmatpush.msra.mxu0 %v6246
    %7192 = vmatpush.msra.mxu0 %v6242
    %7193 = vmatpush.msra.mxu0 %v6238
    %7194 = vmatpush.msra.mxu0 %v6234
    %7195 = vmatpush.msra.mxu0 %v6230
    %7196 = vmatpush.msra.mxu0 %v6226
    %7197 = vmatpush.msra.mxu0 %v6222
    %7198 = vmatpush.msra.mxu0 %v6218
    %7199 = vmatpush.msra.mxu0 %v6214
    %7200 = vmatpush.msra.mxu0 %v6210
    %7201 = vmatpush.msra.mxu0 %v6206
    %7202 = vmatpush.msra.mxu0 %v6202
    %7203 = vmatpush.msra.mxu0 %v6198
    %7204 = vmatpush.msra.mxu0 %v6194
    %7205 = vmatpush.msra.mxu0 %v6190
    %7206 = vmatpush.msra.mxu0 %v6186
    %7207 = vmatmul.f32.gmra.mxu0 %v6175
    %v7208 = vpop.f32.mrf.mxu0
    %v7209 = vadd.f32 %v6710, %v7208
    %7210 = vdwg.mxu0
    %7211 = vmatpush.msra.mxu0 %v6310
    %7212 = vmatpush.msra.mxu0 %v6306
    %7213 = vmatpush.msra.mxu0 %v6302
    %7214 = vmatpush.msra.mxu0 %v6298
    %7215 = vmatpush.msra.mxu0 %v6294
    %7216 = vmatpush.msra.mxu0 %v6290
    %7217 = vmatpush.msra.mxu0 %v6286
    %7218 = vmatpush.msra.mxu0 %v6282
    %7219 = vmatpush.msra.mxu0 %v6278
    %7220 = vmatpush.msra.mxu0 %v6274
    %7221 = vmatpush.msra.mxu0 %v6270
    %7222 = vmatpush.msra.mxu0 %v6266
    %7223 = vmatpush.msra.mxu0 %v6262
    %7224 = vmatpush.msra.mxu0 %v6258
    %7225 = vmatpush.msra.mxu0 %v6254
    %7226 = vmatpush.msra.mxu0 %v6250
    %7227 = vmatmul.f32.gmra.mxu0 %v6176
    %v7228 = vpop.f32.mrf.mxu0
    %v7229 = vadd.f32 %v7209, %v7228
    %7230 = vdwg.mxu0
    %7231 = vmatpush.msra.mxu0 %v6374
    %7232 = vmatpush.msra.mxu0 %v6370
    %7233 = vmatpush.msra.mxu0 %v6366
    %7234 = vmatpush.msra.mxu0 %v6362
    %7235 = vmatpush.msra.mxu0 %v6358
    %7236 = vmatpush.msra.mxu0 %v6354
    %7237 = vmatpush.msra.mxu0 %v6350
    %7238 = vmatpush.msra.mxu0 %v6346
    %7239 = vmatpush.msra.mxu0 %v6342
    %7240 = vmatpush.msra.mxu0 %v6338
    %7241 = vmatpush.msra.mxu0 %v6334
    %7242 = vmatpush.msra.mxu0 %v6330
    %7243 = vmatpush.msra.mxu0 %v6326
    %7244 = vmatpush.msra.mxu0 %v6322
    %7245 = vmatpush.msra.mxu0 %v6318
    %7246 = vmatpush.msra.mxu0 %v6314
    %7247 = vmatmul.f32.gmra.mxu0 %v6177
    %v7248 = vpop.f32.mrf.mxu0
    %v7249 = vadd.f32 %v7229, %v7248
    %7250 = vdwg.mxu0
    %7251 = vmatpush.msra.mxu0 %v6438
    %7252 = vmatpush.msra.mxu0 %v6434
    %7253 = vmatpush.msra.mxu0 %v6430
    %7254 = vmatpush.msra.mxu0 %v6426
    %7255 = vmatpush.msra.mxu0 %v6422
    %7256 = vmatpush.msra.mxu0 %v6418
    %7257 = vmatpush.msra.mxu0 %v6414
    %7258 = vmatpush.msra.mxu0 %v6410
    %7259 = vmatpush.msra.mxu0 %v6406
    %7260 = vmatpush.msra.mxu0 %v6402
    %7261 = vmatpush.msra.mxu0 %v6398
    %7262 = vmatpush.msra.mxu0 %v6394
    %7263 = vmatpush.msra.mxu0 %v6390
    %7264 = vmatpush.msra.mxu0 %v6386
    %7265 = vmatpush.msra.mxu0 %v6382
    %7266 = vmatpush.msra.mxu0 %v6378
    %7267 = vmatmul.f32.gmra.mxu0 %v6178
    %v7268 = vpop.f32.mrf.mxu0
    %v7269 = vadd.f32 %v7249, %v7268
    %7270 = vdwg.mxu0
    %7271 = vmatpush.msra.mxu0 %v6502
    %7272 = vmatpush.msra.mxu0 %v6498
    %7273 = vmatpush.msra.mxu0 %v6494
    %7274 = vmatpush.msra.mxu0 %v6490
    %7275 = vmatpush.msra.mxu0 %v6486
    %7276 = vmatpush.msra.mxu0 %v6482
    %7277 = vmatpush.msra.mxu0 %v6478
    %7278 = vmatpush.msra.mxu0 %v6474
    %7279 = vmatpush.msra.mxu0 %v6470
    %7280 = vmatpush.msra.mxu0 %v6466
    %7281 = vmatpush.msra.mxu0 %v6462
    %7282 = vmatpush.msra.mxu0 %v6458
    %7283 = vmatpush.msra.mxu0 %v6454
    %7284 = vmatpush.msra.mxu0 %v6450
    %7285 = vmatpush.msra.mxu0 %v6446
    %7286 = vmatpush.msra.mxu0 %v6442
    %7287 = vmatmul.f32.gmra.mxu0 %v6179
    %v7288 = vpop.f32.mrf.mxu0
    %v7289 = vadd.f32 %v7269, %v7288
    %7290 = vdwg.mxu0
    %7291 = vmatpush.msra.mxu0 %v6566
    %7292 = vmatpush.msra.mxu0 %v6562
    %7293 = vmatpush.msra.mxu0 %v6558
    %7294 = vmatpush.msra.mxu0 %v6554
    %7295 = vmatpush.msra.mxu0 %v6550
    %7296 = vmatpush.msra.mxu0 %v6546
    %7297 = vmatpush.msra.mxu0 %v6542
    %7298 = vmatpush.msra.mxu0 %v6538
    %7299 = vmatpush.msra.mxu0 %v6534
    %7300 = vmatpush.msra.mxu0 %v6530
    %7301 = vmatpush.msra.mxu0 %v6526
    %7302 = vmatpush.msra.mxu0 %v6522
    %7303 = vmatpush.msra.mxu0 %v6518
    %7304 = vmatpush.msra.mxu0 %v6514
    %7305 = vmatpush.msra.mxu0 %v6510
    %7306 = vmatpush.msra.mxu0 %v6506
    %7307 = vmatmul.f32.gmra.mxu0 %v6180
    %v7308 = vpop.f32.mrf.mxu0
    %v7309 = vadd.f32 %v7289, %v7308
    %7310 = vdwg.mxu0
    %7311 = vmatpush.msra.mxu0 %v6630
    %7312 = vmatpush.msra.mxu0 %v6626
    %7313 = vmatpush.msra.mxu0 %v6622
    %7314 = vmatpush.msra.mxu0 %v6618
    %7315 = vmatpush.msra.mxu0 %v6614
    %7316 = vmatpush.msra.mxu0 %v6610
    %7317 = vmatpush.msra.mxu0 %v6606
    %7318 = vmatpush.msra.mxu0 %v6602
    %7319 = vmatpush.msra.mxu0 %v6598
    %7320 = vmatpush.msra.mxu0 %v6594
    %7321 = vmatpush.msra.mxu0 %v6590
    %7322 = vmatpush.msra.mxu0 %v6586
    %7323 = vmatpush.msra.mxu0 %v6582
    %7324 = vmatpush.msra.mxu0 %v6578
    %7325 = vmatpush.msra.mxu0 %v6574
    %7326 = vmatpush.msra.mxu0 %v6570
    %7327 = vmatmul.f32.gmra.mxu0 %v6181
    %v7328 = vpop.f32.mrf.mxu0
    %v7329 = vadd.f32 %v7309, %v7328
    %7330 = vdwg.mxu0
    %7331 = vmatpush.msra.mxu0 %v6694
    %7332 = vmatpush.msra.mxu0 %v6690
    %7333 = vmatpush.msra.mxu0 %v6686
    %7334 = vmatpush.msra.mxu0 %v6682
    %7335 = vmatpush.msra.mxu0 %v6678
    %7336 = vmatpush.msra.mxu0 %v6674
    %7337 = vmatpush.msra.mxu0 %v6670
    %7338 = vmatpush.msra.mxu0 %v6666
    %7339 = vmatpush.msra.mxu0 %v6662
    %7340 = vmatpush.msra.mxu0 %v6658
    %7341 = vmatpush.msra.mxu0 %v6654
    %7342 = vmatpush.msra.mxu0 %v6650
    %7343 = vmatpush.msra.mxu0 %v6646
    %7344 = vmatpush.msra.mxu0 %v6642
    %7345 = vmatpush.msra.mxu0 %v6638
    %7346 = vmatpush.msra.mxu0 %v6634
    %7347 = vmatmul.f32.gmra.mxu0 %v6182
    %v7348 = vpop.f32.mrf.mxu0
    %v7349 = vadd.f32 %v7329, %v7348
    %7350 = vdwg.mxu0
    %v7351 = vrot.slane %v6869, 4
    %v7352 = vadd.f32 %v6869, %v7351
    %v7353 = vrot.slane %v7352, 2
    %v7354 = vadd.f32 %v7352, %v7353
    %v7355 = vrot.slane %v7354, 1
    %v7356 = vadd.f32 %v7354, %v7355
    %v7357 = vrot.slane %v7029, 4
    %v7358 = vadd.f32 %v7029, %v7357
    %v7359 = vrot.slane %v7358, 2
    %v7360 = vadd.f32 %v7358, %v7359
    %v7361 = vrot.slane %v7360, 1
    %v7362 = vadd.f32 %v7360, %v7361
    %v7363 = vrot.slane %v7189, 4
    %v7364 = vadd.f32 %v7189, %v7363
    %v7365 = vrot.slane %v7364, 2
    %v7366 = vadd.f32 %v7364, %v7365
    %v7367 = vrot.slane %v7366, 1
    %v7368 = vadd.f32 %v7366, %v7367
    %v7369 = vrot.slane %v7349, 4
    %v7370 = vadd.f32 %v7349, %v7369
    %v7371 = vrot.slane %v7370, 2
    %v7372 = vadd.f32 %v7370, %v7371
    %v7373 = vrot.slane %v7372, 1
    %v7374 = vadd.f32 %v7372, %v7373
    %v7375 = vmul.f32 %v7356, %v750
    %v7376 = vmul.f32 %v7362, %v750
    %v7377 = vmul.f32 %v7368, %v750
    %v7378 = vmul.f32 %v7374, %v750
    %v7379 = vsub.f32 %v6869, %v7375
    %v7380 = vsub.f32 %v7029, %v7376
    %v7381 = vsub.f32 %v7189, %v7377
    %v7382 = vsub.f32 %v7349, %v7378
    %v7383 = vmul.f32 %v7379, %v7379
    %v7384 = vmul.f32 %v7380, %v7380
    %v7385 = vmul.f32 %v7381, %v7381
    %v7386 = vmul.f32 %v7382, %v7382
    %v7387 = vrot.slane %v7383, 4
    %v7388 = vadd.f32 %v7383, %v7387
    %v7389 = vrot.slane %v7388, 2
    %v7390 = vadd.f32 %v7388, %v7389
    %v7391 = vrot.slane %v7390, 1
    %v7392 = vadd.f32 %v7390, %v7391
    %v7393 = vrot.slane %v7384, 4
    %v7394 = vadd.f32 %v7384, %v7393
    %v7395 = vrot.slane %v7394, 2
    %v7396 = vadd.f32 %v7394, %v7395
    %v7397 = vrot.slane %v7396, 1
    %v7398 = vadd.f32 %v7396, %v7397
    %v7399 = vrot.slane %v7385, 4
    %v7400 = vadd.f32 %v7385, %v7399
    %v7401 = vrot.slane %v7400, 2
    %v7402 = vadd.f32 %v7400, %v7401
    %v7403 = vrot.slane %v7402, 1
    %v7404 = vadd.f32 %v7402, %v7403
    %v7405 = vrot.slane %v7386, 4
    %v7406 = vadd.f32 %v7386, %v7405
    %v7407 = vrot.slane %v7406, 2
    %v7408 = vadd.f32 %v7406, %v7407
    %v7409 = vrot.slane %v7408, 1
    %v7410 = vadd.f32 %v7408, %v7409
    %v7411 = vmul.f32 %v7392, %v750
    %v7412 = vmul.f32 %v7398, %v750
    %v7413 = vmul.f32 %v7404, %v750
    %v7414 = vmul.f32 %v7410, %v750
    %v7415 = vadd.f32 %v7411, 1e-05
    %v7416 = vadd.f32 %v7412, 1e-05
    %v7417 = vadd.f32 %v7413, 1e-05
    %v7418 = vadd.f32 %v7414, 1e-05
    %v7419 = vrsqrt.pop %v7415
    %v7420 = vmul.f32 %v7419, %v7415
    %v7421 = vmul.f32 %v7420, %v7419
    %v7422 = vmul.f32 0.5, %v7421
    %v7423 = vsub.f32 1.5, %v7422
    %v7424 = vmul.f32 %v7419, %v7423
    %vm7425 = vweird.f32 %v7415
    %vm7426 = vweird.f32 %v7419
    %vm7427 = vmor %vm7425, %vm7426
    %v7428 = vsel %vm7427, %v7419, %v7424
    %v7429 = vrsqrt.pop %v7416
    %v7430 = vmul.f32 %v7429, %v7416
    %v7431 = vmul.f32 %v7430, %v7429
    %v7432 = vmul.f32 0.5, %v7431
    %v7433 = vsub.f32 1.5, %v7432
    %v7434 = vmul.f32 %v7429, %v7433
    %vm7435 = vweird.f32 %v7416
    %vm7436 = vweird.f32 %v7429
    %vm7437 = vmor %vm7435, %vm7436
    %v7438 = vsel %vm7437, %v7429, %v7434
    %v7439 = vrsqrt.pop %v7417
    %v7440 = vmul.f32 %v7439, %v7417
    %v7441 = vmul.f32 %v7440, %v7439
    %v7442 = vmul.f32 0.5, %v7441
    %v7443 = vsub.f32 1.5, %v7442
    %v7444 = vmul.f32 %v7439, %v7443
    %vm7445 = vweird.f32 %v7417
    %vm7446 = vweird.f32 %v7439
    %vm7447 = vmor %vm7445, %vm7446
    %v7448 = vsel %vm7447, %v7439, %v7444
    %v7449 = vrsqrt.pop %v7418
    %v7450 = vmul.f32 %v7449, %v7418
    %v7451 = vmul.f32 %v7450, %v7449
    %v7452 = vmul.f32 0.5, %v7451
    %v7453 = vsub.f32 1.5, %v7452
    %v7454 = vmul.f32 %v7449, %v7453
    %vm7455 = vweird.f32 %v7418
    %vm7456 = vweird.f32 %v7449
    %vm7457 = vmor %vm7455, %vm7456
    %v7458 = vsel %vm7457, %v7449, %v7454
    %v7459 = vmul.f32 %v7379, %v7428
    %v7460 = vmul.f32 %v7380, %v7438
    %v7461 = vmul.f32 %v7381, %v7448
    %v7462 = vmul.f32 %v7382, %v7458
    %v7463 = vperm.slane %v6695, 1
    %v7464 = vperm.slane %v6695, 5
    %v7465 = vperm.slane %v6696, 1
    %v7466 = vperm.slane %v6696, 5
    %v7471 = vperm.slane %v7463, 1
    %v7472 = vperm.slane %v7464, 1
    %v7473 = vperm.slane %v7465, 1
    %v7474 = vperm.slane %v7466, 1
    %v7475 = vmul.f32 %v7471, %v7459
    %v7476 = vmul.f32 %v7472, %v7460
    %v7477 = vmul.f32 %v7473, %v7461
    %v7478 = vmul.f32 %v7474, %v7462
    %v7479 = vperm.slane %v6695, 2
    %v7480 = vperm.slane %v6695, 6
    %v7481 = vperm.slane %v6696, 2
    %v7482 = vperm.slane %v6696, 6
    %v7487 = vperm.slane %v7479, 2
    %v7488 = vperm.slane %v7480, 2
    %v7489 = vperm.slane %v7481, 2
    %v7490 = vperm.slane %v7482, 2
    %v7491 = vadd.f32 %v7475, %v7487
    %v7492 = vadd.f32 %v7476, %v7488
    %v7493 = vadd.f32 %v7477, %v7489
    %v7494 = vadd.f32 %v7478, %v7490
    %v7495 = vmax.f32 %v7491, 0.0
    %v7496 = vmax.f32 %v7492, 0.0
    %v7497 = vmax.f32 %v7493, 0.0
    %v7498 = vmax.f32 %v7494, 0.0
    %v7499 = vld [vmem:[#allocation10] sm:$0xff]
    %v7500 = vld [vmem:[#allocation10 + $0x8] sm:$0xff]
    %v7501 = vld [vmem:[#allocation10 + $0x10] sm:$0xff]
    %v7502 = vld [vmem:[#allocation10 + $0x18] sm:$0xff]
    %v7503 = vld [vmem:[#allocation10 + $0x20] sm:$0xff]
    %v7504 = vld [vmem:[#allocation10 + $0x28] sm:$0xff]
    %v7505 = vld [vmem:[#allocation10 + $0x30] sm:$0xff]
    %v7506 = vld [vmem:[#allocation10 + $0x38] sm:$0xff]
    %v7507 = vld [vmem:[#allocation10 + $0x40] sm:$0xff]
    %v7508 = vld [vmem:[#allocation10 + $0x48] sm:$0xff]
    %v7509 = vld [vmem:[#allocation10 + $0x50] sm:$0xff]
    %v7510 = vld [vmem:[#allocation10 + $0x58] sm:$0xff]
    %v7511 = vld [vmem:[#allocation10 + $0x60] sm:$0xff]
    %v7512 = vld [vmem:[#allocation10 + $0x68] sm:$0xff]
    %v7513 = vld [vmem:[#allocation10 + $0x70] sm:$0xff]
    %v7514 = vld [vmem:[#allocation10 + $0x78] sm:$0xff]
    %v7515 = vld [vmem:[#allocation10 + $0x80] sm:$0xff]
    %v7516 = vld [vmem:[#allocation10 + $0x88] sm:$0xff]
    %v7517 = vld [vmem:[#allocation10 + $0x90] sm:$0xff]
    %v7518 = vld [vmem:[#allocation10 + $0x98] sm:$0xff]
    %v7519 = vld [vmem:[#allocation10 + $0xa0] sm:$0xff]
    %v7520 = vld [vmem:[#allocation10 + $0xa8] sm:$0xff]
    %v7521 = vld [vmem:[#allocation10 + $0xb0] sm:$0xff]
    %v7522 = vld [vmem:[#allocation10 + $0xb8] sm:$0xff]
    %v7523 = vld [vmem:[#allocation10 + $0xc0] sm:$0xff]
    %v7524 = vld [vmem:[#allocation10 + $0xc8] sm:$0xff]
    %v7525 = vld [vmem:[#allocation10 + $0xd0] sm:$0xff]
    %v7526 = vld [vmem:[#allocation10 + $0xd8] sm:$0xff]
    %v7527 = vld [vmem:[#allocation10 + $0xe0] sm:$0xff]
    %v7528 = vld [vmem:[#allocation10 + $0xe8] sm:$0xff]
    %v7529 = vld [vmem:[#allocation10 + $0xf0] sm:$0xff]
    %v7530 = vld [vmem:[#allocation10 + $0xf8] sm:$0xff]
    %v7531 = vld [vmem:[#allocation10 + $0x100] sm:$0xff]
    %v7532 = vld [vmem:[#allocation10 + $0x108] sm:$0xff]
    %v7533 = vld [vmem:[#allocation10 + $0x110] sm:$0xff]
    %v7534 = vld [vmem:[#allocation10 + $0x118] sm:$0xff]
    %v7535 = vld [vmem:[#allocation10 + $0x120] sm:$0xff]
    %v7536 = vld [vmem:[#allocation10 + $0x128] sm:$0xff]
    %v7537 = vld [vmem:[#allocation10 + $0x130] sm:$0xff]
    %v7538 = vld [vmem:[#allocation10 + $0x138] sm:$0xff]
    %v7539 = vld [vmem:[#allocation10 + $0x140] sm:$0xff]
    %v7540 = vld [vmem:[#allocation10 + $0x148] sm:$0xff]
    %v7541 = vld [vmem:[#allocation10 + $0x150] sm:$0xff]
    %v7542 = vld [vmem:[#allocation10 + $0x158] sm:$0xff]
    %v7543 = vld [vmem:[#allocation10 + $0x160] sm:$0xff]
    %v7544 = vld [vmem:[#allocation10 + $0x168] sm:$0xff]
    %v7545 = vld [vmem:[#allocation10 + $0x170] sm:$0xff]
    %v7546 = vld [vmem:[#allocation10 + $0x178] sm:$0xff]
    %v7547 = vld [vmem:[#allocation10 + $0x180] sm:$0xff]
    %v7548 = vld [vmem:[#allocation10 + $0x188] sm:$0xff]
    %v7549 = vld [vmem:[#allocation10 + $0x190] sm:$0xff]
    %v7550 = vld [vmem:[#allocation10 + $0x198] sm:$0xff]
    %v7551 = vld [vmem:[#allocation10 + $0x1a0] sm:$0xff]
    %v7552 = vld [vmem:[#allocation10 + $0x1a8] sm:$0xff]
    %v7553 = vld [vmem:[#allocation10 + $0x1b0] sm:$0xff]
    %v7554 = vld [vmem:[#allocation10 + $0x1b8] sm:$0xff]
    %v7555 = vld [vmem:[#allocation10 + $0x1c0] sm:$0xff]
    %v7556 = vld [vmem:[#allocation10 + $0x1c8] sm:$0xff]
    %v7557 = vld [vmem:[#allocation10 + $0x1d0] sm:$0xff]
    %v7558 = vld [vmem:[#allocation10 + $0x1d8] sm:$0xff]
    %v7559 = vld [vmem:[#allocation10 + $0x1e0] sm:$0xff]
    %v7560 = vld [vmem:[#allocation10 + $0x1e8] sm:$0xff]
    %v7561 = vld [vmem:[#allocation10 + $0x1f0] sm:$0xff]
    %v7562 = vld [vmem:[#allocation10 + $0x1f8] sm:$0xff]
    %v7563 = vld [vmem:[#allocation10 + $0x200] sm:$0xff]
    %v7564 = vld [vmem:[#allocation10 + $0x208] sm:$0xff]
    %v7565 = vld [vmem:[#allocation10 + $0x210] sm:$0xff]
    %v7566 = vld [vmem:[#allocation10 + $0x218] sm:$0xff]
    %v7567 = vld [vmem:[#allocation10 + $0x220] sm:$0xff]
    %v7568 = vld [vmem:[#allocation10 + $0x228] sm:$0xff]
    %v7569 = vld [vmem:[#allocation10 + $0x230] sm:$0xff]
    %v7570 = vld [vmem:[#allocation10 + $0x238] sm:$0xff]
    %v7571 = vld [vmem:[#allocation10 + $0x240] sm:$0xff]
    %v7572 = vld [vmem:[#allocation10 + $0x248] sm:$0xff]
    %v7573 = vld [vmem:[#allocation10 + $0x250] sm:$0xff]
    %v7574 = vld [vmem:[#allocation10 + $0x258] sm:$0xff]
    %v7575 = vld [vmem:[#allocation10 + $0x260] sm:$0xff]
    %v7576 = vld [vmem:[#allocation10 + $0x268] sm:$0xff]
    %v7577 = vld [vmem:[#allocation10 + $0x270] sm:$0xff]
    %v7578 = vld [vmem:[#allocation10 + $0x278] sm:$0xff]
    %v7579 = vld [vmem:[#allocation10 + $0x280] sm:$0xff]
    %v7580 = vld [vmem:[#allocation10 + $0x288] sm:$0xff]
    %v7581 = vld [vmem:[#allocation10 + $0x290] sm:$0xff]
    %v7582 = vld [vmem:[#allocation10 + $0x298] sm:$0xff]
    %v7583 = vld [vmem:[#allocation10 + $0x2a0] sm:$0xff]
    %v7584 = vld [vmem:[#allocation10 + $0x2a8] sm:$0xff]
    %v7585 = vld [vmem:[#allocation10 + $0x2b0] sm:$0xff]
    %v7586 = vld [vmem:[#allocation10 + $0x2b8] sm:$0xff]
    %v7587 = vld [vmem:[#allocation10 + $0x2c0] sm:$0xff]
    %v7588 = vld [vmem:[#allocation10 + $0x2c8] sm:$0xff]
    %v7589 = vld [vmem:[#allocation10 + $0x2d0] sm:$0xff]
    %v7590 = vld [vmem:[#allocation10 + $0x2d8] sm:$0xff]
    %v7591 = vld [vmem:[#allocation10 + $0x2e0] sm:$0xff]
    %v7592 = vld [vmem:[#allocation10 + $0x2e8] sm:$0xff]
    %v7593 = vld [vmem:[#allocation10 + $0x2f0] sm:$0xff]
    %v7594 = vld [vmem:[#allocation10 + $0x2f8] sm:$0xff]
    %v7595 = vld [vmem:[#allocation10 + $0x300] sm:$0xff]
    %v7596 = vld [vmem:[#allocation10 + $0x308] sm:$0xff]
    %v7597 = vld [vmem:[#allocation10 + $0x310] sm:$0xff]
    %v7598 = vld [vmem:[#allocation10 + $0x318] sm:$0xff]
    %v7599 = vld [vmem:[#allocation10 + $0x320] sm:$0xff]
    %v7600 = vld [vmem:[#allocation10 + $0x328] sm:$0xff]
    %v7601 = vld [vmem:[#allocation10 + $0x330] sm:$0xff]
    %v7602 = vld [vmem:[#allocation10 + $0x338] sm:$0xff]
    %v7603 = vld [vmem:[#allocation10 + $0x340] sm:$0xff]
    %v7604 = vld [vmem:[#allocation10 + $0x348] sm:$0xff]
    %v7605 = vld [vmem:[#allocation10 + $0x350] sm:$0xff]
    %v7606 = vld [vmem:[#allocation10 + $0x358] sm:$0xff]
    %v7607 = vld [vmem:[#allocation10 + $0x360] sm:$0xff]
    %v7608 = vld [vmem:[#allocation10 + $0x368] sm:$0xff]
    %v7609 = vld [vmem:[#allocation10 + $0x370] sm:$0xff]
    %v7610 = vld [vmem:[#allocation10 + $0x378] sm:$0xff]
    %v7611 = vld [vmem:[#allocation10 + $0x380] sm:$0xff]
    %v7612 = vld [vmem:[#allocation10 + $0x388] sm:$0xff]
    %v7613 = vld [vmem:[#allocation10 + $0x390] sm:$0xff]
    %v7614 = vld [vmem:[#allocation10 + $0x398] sm:$0xff]
    %v7615 = vld [vmem:[#allocation10 + $0x3a0] sm:$0xff]
    %v7616 = vld [vmem:[#allocation10 + $0x3a8] sm:$0xff]
    %v7617 = vld [vmem:[#allocation10 + $0x3b0] sm:$0xff]
    %v7618 = vld [vmem:[#allocation10 + $0x3b8] sm:$0xff]
    %v7619 = vld [vmem:[#allocation10 + $0x3c0] sm:$0xff]
    %v7620 = vld [vmem:[#allocation10 + $0x3c8] sm:$0xff]
    %v7621 = vld [vmem:[#allocation10 + $0x3d0] sm:$0xff]
    %v7622 = vld [vmem:[#allocation10 + $0x3d8] sm:$0xff]
    %v7623 = vld [vmem:[#allocation10 + $0x3e0] sm:$0xff]
    %v7624 = vld [vmem:[#allocation10 + $0x3e8] sm:$0xff]
    %v7625 = vld [vmem:[#allocation10 + $0x3f0] sm:$0xff]
    %v7626 = vld [vmem:[#allocation10 + $0x3f8] sm:$0xff]
    %v7627 = vld [vmem:[%s8] sm:$0x77]
    %v7629 = vperm.slane %v7627, 0
    %v7630 = vperm.slane %v7627, 4
    %v7633 = vperm.slane %v7629, 0
    %v7634 = vperm.slane %v7630, 0
    %7635 = vmatpush.msra.mxu0 %v7529
    %7636 = vmatpush.msra.mxu0 %v7527
    %7637 = vmatpush.msra.mxu0 %v7525
    %7638 = vmatpush.msra.mxu0 %v7523
    %7639 = vmatpush.msra.mxu0 %v7521
    %7640 = vmatpush.msra.mxu0 %v7519
    %7641 = vmatpush.msra.mxu0 %v7517
    %7642 = vmatpush.msra.mxu0 %v7515
    %7643 = vmatpush.msra.mxu0 %v7513
    %7644 = vmatpush.msra.mxu0 %v7511
    %7645 = vmatpush.msra.mxu0 %v7509
    %7646 = vmatpush.msra.mxu0 %v7507
    %7647 = vmatpush.msra.mxu0 %v7505
    %7648 = vmatpush.msra.mxu0 %v7503
    %7649 = vmatpush.msra.mxu0 %v7501
    %7650 = vmatpush.msra.mxu0 %v7499
    %7651 = vmatmul.f32.gmra.mxu0 %v7495
    %v7652 = vpop.f32.mrf.mxu0
    %v7653 = vadd.f32 %v7633, %v7652
    %7654 = vdwg.mxu0
    %7655 = vmatpush.msra.mxu0 %v7561
    %7656 = vmatpush.msra.mxu0 %v7559
    %7657 = vmatpush.msra.mxu0 %v7557
    %7658 = vmatpush.msra.mxu0 %v7555
    %7659 = vmatpush.msra.mxu0 %v7553
    %7660 = vmatpush.msra.mxu0 %v7551
    %7661 = vmatpush.msra.mxu0 %v7549
    %7662 = vmatpush.msra.mxu0 %v7547
    %7663 = vmatpush.msra.mxu0 %v7545
    %7664 = vmatpush.msra.mxu0 %v7543
    %7665 = vmatpush.msra.mxu0 %v7541
    %7666 = vmatpush.msra.mxu0 %v7539
    %7667 = vmatpush.msra.mxu0 %v7537
    %7668 = vmatpush.msra.mxu0 %v7535
    %7669 = vmatpush.msra.mxu0 %v7533
    %7670 = vmatpush.msra.mxu0 %v7531
    %7671 = vmatmul.f32.gmra.mxu0 %v7496
    %v7672 = vpop.f32.mrf.mxu0
    %v7673 = vadd.f32 %v7653, %v7672
    %7674 = vdwg.mxu0
    %7675 = vmatpush.msra.mxu0 %v7593
    %7676 = vmatpush.msra.mxu0 %v7591
    %7677 = vmatpush.msra.mxu0 %v7589
    %7678 = vmatpush.msra.mxu0 %v7587
    %7679 = vmatpush.msra.mxu0 %v7585
    %7680 = vmatpush.msra.mxu0 %v7583
    %7681 = vmatpush.msra.mxu0 %v7581
    %7682 = vmatpush.msra.mxu0 %v7579
    %7683 = vmatpush.msra.mxu0 %v7577
    %7684 = vmatpush.msra.mxu0 %v7575
    %7685 = vmatpush.msra.mxu0 %v7573
    %7686 = vmatpush.msra.mxu0 %v7571
    %7687 = vmatpush.msra.mxu0 %v7569
    %7688 = vmatpush.msra.mxu0 %v7567
    %7689 = vmatpush.msra.mxu0 %v7565
    %7690 = vmatpush.msra.mxu0 %v7563
    %7691 = vmatmul.f32.gmra.mxu0 %v7497
    %v7692 = vpop.f32.mrf.mxu0
    %v7693 = vadd.f32 %v7673, %v7692
    %7694 = vdwg.mxu0
    %7695 = vmatpush.msra.mxu0 %v7625
    %7696 = vmatpush.msra.mxu0 %v7623
    %7697 = vmatpush.msra.mxu0 %v7621
    %7698 = vmatpush.msra.mxu0 %v7619
    %7699 = vmatpush.msra.mxu0 %v7617
    %7700 = vmatpush.msra.mxu0 %v7615
    %7701 = vmatpush.msra.mxu0 %v7613
    %7702 = vmatpush.msra.mxu0 %v7611
    %7703 = vmatpush.msra.mxu0 %v7609
    %7704 = vmatpush.msra.mxu0 %v7607
    %7705 = vmatpush.msra.mxu0 %v7605
    %7706 = vmatpush.msra.mxu0 %v7603
    %7707 = vmatpush.msra.mxu0 %v7601
    %7708 = vmatpush.msra.mxu0 %v7599
    %7709 = vmatpush.msra.mxu0 %v7597
    %7710 = vmatpush.msra.mxu0 %v7595
    %7711 = vmatmul.f32.gmra.mxu0 %v7498
    %v7712 = vpop.f32.mrf.mxu0
    %v7713 = vadd.f32 %v7693, %v7712
    %7714 = vdwg.mxu0
    %7715 = vmatpush.msra.mxu0 %v7530
    %7716 = vmatpush.msra.mxu0 %v7528
    %7717 = vmatpush.msra.mxu0 %v7526
    %7718 = vmatpush.msra.mxu0 %v7524
    %7719 = vmatpush.msra.mxu0 %v7522
    %7720 = vmatpush.msra.mxu0 %v7520
    %7721 = vmatpush.msra.mxu0 %v7518
    %7722 = vmatpush.msra.mxu0 %v7516
    %7723 = vmatpush.msra.mxu0 %v7514
    %7724 = vmatpush.msra.mxu0 %v7512
    %7725 = vmatpush.msra.mxu0 %v7510
    %7726 = vmatpush.msra.mxu0 %v7508
    %7727 = vmatpush.msra.mxu0 %v7506
    %7728 = vmatpush.msra.mxu0 %v7504
    %7729 = vmatpush.msra.mxu0 %v7502
    %7730 = vmatpush.msra.mxu0 %v7500
    %7731 = vmatmul.f32.gmra.mxu0 %v7495
    %v7732 = vpop.f32.mrf.mxu0
    %v7733 = vadd.f32 %v7634, %v7732
    %7734 = vdwg.mxu0
    %7735 = vmatpush.msra.mxu0 %v7562
    %7736 = vmatpush.msra.mxu0 %v7560
    %7737 = vmatpush.msra.mxu0 %v7558
    %7738 = vmatpush.msra.mxu0 %v7556
    %7739 = vmatpush.msra.mxu0 %v7554
    %7740 = vmatpush.msra.mxu0 %v7552
    %7741 = vmatpush.msra.mxu0 %v7550
    %7742 = vmatpush.msra.mxu0 %v7548
    %7743 = vmatpush.msra.mxu0 %v7546
    %7744 = vmatpush.msra.mxu0 %v7544
    %7745 = vmatpush.msra.mxu0 %v7542
    %7746 = vmatpush.msra.mxu0 %v7540
    %7747 = vmatpush.msra.mxu0 %v7538
    %7748 = vmatpush.msra.mxu0 %v7536
    %7749 = vmatpush.msra.mxu0 %v7534
    %7750 = vmatpush.msra.mxu0 %v7532
    %7751 = vmatmul.f32.gmra.mxu0 %v7496
    %v7752 = vpop.f32.mrf.mxu0
    %v7753 = vadd.f32 %v7733, %v7752
    %7754 = vdwg.mxu0
    %7755 = vmatpush.msra.mxu0 %v7594
    %7756 = vmatpush.msra.mxu0 %v7592
    %7757 = vmatpush.msra.mxu0 %v7590
    %7758 = vmatpush.msra.mxu0 %v7588
    %7759 = vmatpush.msra.mxu0 %v7586
    %7760 = vmatpush.msra.mxu0 %v7584
    %7761 = vmatpush.msra.mxu0 %v7582
    %7762 = vmatpush.msra.mxu0 %v7580
    %7763 = vmatpush.msra.mxu0 %v7578
    %7764 = vmatpush.msra.mxu0 %v7576
    %7765 = vmatpush.msra.mxu0 %v7574
    %7766 = vmatpush.msra.mxu0 %v7572
    %7767 = vmatpush.msra.mxu0 %v7570
    %7768 = vmatpush.msra.mxu0 %v7568
    %7769 = vmatpush.msra.mxu0 %v7566
    %7770 = vmatpush.msra.mxu0 %v7564
    %7771 = vmatmul.f32.gmra.mxu0 %v7497
    %v7772 = vpop.f32.mrf.mxu0
    %v7773 = vadd.f32 %v7753, %v7772
    %7774 = vdwg.mxu0
    %7775 = vmatpush.msra.mxu0 %v7626
    %7776 = vmatpush.msra.mxu0 %v7624
    %7777 = vmatpush.msra.mxu0 %v7622
    %7778 = vmatpush.msra.mxu0 %v7620
    %7779 = vmatpush.msra.mxu0 %v7618
    %7780 = vmatpush.msra.mxu0 %v7616
    %7781 = vmatpush.msra.mxu0 %v7614
    %7782 = vmatpush.msra.mxu0 %v7612
    %7783 = vmatpush.msra.mxu0 %v7610
    %7784 = vmatpush.msra.mxu0 %v7608
    %7785 = vmatpush.msra.mxu0 %v7606
    %7786 = vmatpush.msra.mxu0 %v7604
    %7787 = vmatpush.msra.mxu0 %v7602
    %7788 = vmatpush.msra.mxu0 %v7600
    %7789 = vmatpush.msra.mxu0 %v7598
    %7790 = vmatpush.msra.mxu0 %v7596
    %7791 = vmatmul.f32.gmra.mxu0 %v7498
    %v7792 = vpop.f32.mrf.mxu0
    %v7793 = vadd.f32 %v7773, %v7792
    %7794 = vdwg.mxu0
    %v7795 = vrot.slane %v7713, 4
    %v7796 = vadd.f32 %v7713, %v7795
    %v7797 = vrot.slane %v7796, 2
    %v7798 = vadd.f32 %v7796, %v7797
    %v7799 = vrot.slane %v7798, 1
    %v7800 = vadd.f32 %v7798, %v7799
    %v7801 = vrot.slane %v7793, 4
    %v7802 = vadd.f32 %v7793, %v7801
    %v7803 = vrot.slane %v7802, 2
    %v7804 = vadd.f32 %v7802, %v7803
    %v7805 = vrot.slane %v7804, 1
    %v7806 = vadd.f32 %v7804, %v7805
    %v7807 = vmul.f32 %v7800, %v750
    %v7808 = vmul.f32 %v7806, %v750
    %v7809 = vsub.f32 %v7713, %v7807
    %v7810 = vsub.f32 %v7793, %v7808
    %v7811 = vmul.f32 %v7809, %v7809
    %v7812 = vmul.f32 %v7810, %v7810
    %v7813 = vrot.slane %v7811, 4
    %v7814 = vadd.f32 %v7811, %v7813
    %v7815 = vrot.slane %v7814, 2
    %v7816 = vadd.f32 %v7814, %v7815
    %v7817 = vrot.slane %v7816, 1
    %v7818 = vadd.f32 %v7816, %v7817
    %v7819 = vrot.slane %v7812, 4
    %v7820 = vadd.f32 %v7812, %v7819
    %v7821 = vrot.slane %v7820, 2
    %v7822 = vadd.f32 %v7820, %v7821
    %v7823 = vrot.slane %v7822, 1
    %v7824 = vadd.f32 %v7822, %v7823
    %v7825 = vmul.f32 %v7818, %v750
    %v7826 = vmul.f32 %v7824, %v750
    %v7827 = vadd.f32 %v7825, 1e-05
    %v7828 = vadd.f32 %v7826, 1e-05
    %v7829 = vrsqrt.pop %v7827
    %v7830 = vmul.f32 %v7829, %v7827
    %v7831 = vmul.f32 %v7830, %v7829
    %v7832 = vmul.f32 0.5, %v7831
    %v7833 = vsub.f32 1.5, %v7832
    %v7834 = vmul.f32 %v7829, %v7833
    %vm7835 = vweird.f32 %v7827
    %vm7836 = vweird.f32 %v7829
    %vm7837 = vmor %vm7835, %vm7836
    %v7838 = vsel %vm7837, %v7829, %v7834
    %v7839 = vrsqrt.pop %v7828
    %v7840 = vmul.f32 %v7839, %v7828
    %v7841 = vmul.f32 %v7840, %v7839
    %v7842 = vmul.f32 0.5, %v7841
    %v7843 = vsub.f32 1.5, %v7842
    %v7844 = vmul.f32 %v7839, %v7843
    %vm7845 = vweird.f32 %v7828
    %vm7846 = vweird.f32 %v7839
    %vm7847 = vmor %vm7845, %vm7846
    %v7848 = vsel %vm7847, %v7839, %v7844
    %v7849 = vmul.f32 %v7809, %v7838
    %v7850 = vmul.f32 %v7810, %v7848
    %v7851 = vperm.slane %v7627, 1
    %v7852 = vperm.slane %v7627, 5
    %v7855 = vperm.slane %v7851, 1
    %v7856 = vperm.slane %v7852, 1
    %v7857 = vmul.f32 %v7855, %v7849
    %v7858 = vmul.f32 %v7856, %v7850
    %v7859 = vperm.slane %v7627, 2
    %v7860 = vperm.slane %v7627, 6
    %v7863 = vperm.slane %v7859, 2
    %v7864 = vperm.slane %v7860, 2
    %v7865 = vadd.f32 %v7857, %v7863
    %v7866 = vadd.f32 %v7858, %v7864
    %v7867 = vmax.f32 %v7865, 0.0
    %v7868 = vmax.f32 %v7866, 0.0
    %v7869 = vld [vmem:[#allocation11] sm:$0xff]
    %v7870 = vld [vmem:[#allocation11 + $0x8] sm:$0xff]
    %v7871 = vld [vmem:[#allocation11 + $0x10] sm:$0xff]
    %v7872 = vld [vmem:[#allocation11 + $0x18] sm:$0xff]
    %v7873 = vld [vmem:[#allocation11 + $0x20] sm:$0xff]
    %v7874 = vld [vmem:[#allocation11 + $0x28] sm:$0xff]
    %v7875 = vld [vmem:[#allocation11 + $0x30] sm:$0xff]
    %v7876 = vld [vmem:[#allocation11 + $0x38] sm:$0xff]
    %v7877 = vld [vmem:[#allocation11 + $0x40] sm:$0xff]
    %v7878 = vld [vmem:[#allocation11 + $0x48] sm:$0xff]
    %v7879 = vld [vmem:[#allocation11 + $0x50] sm:$0xff]
    %v7880 = vld [vmem:[#allocation11 + $0x58] sm:$0xff]
    %v7881 = vld [vmem:[#allocation11 + $0x60] sm:$0xff]
    %v7882 = vld [vmem:[#allocation11 + $0x68] sm:$0xff]
    %v7883 = vld [vmem:[#allocation11 + $0x70] sm:$0xff]
    %v7884 = vld [vmem:[#allocation11 + $0x78] sm:$0xff]
    %v7885 = vld [vmem:[#allocation11 + $0x80] sm:$0xff]
    %v7886 = vld [vmem:[#allocation11 + $0x88] sm:$0xff]
    %v7887 = vld [vmem:[#allocation11 + $0x90] sm:$0xff]
    %v7888 = vld [vmem:[#allocation11 + $0x98] sm:$0xff]
    %v7889 = vld [vmem:[#allocation11 + $0xa0] sm:$0xff]
    %v7890 = vld [vmem:[#allocation11 + $0xa8] sm:$0xff]
    %v7891 = vld [vmem:[#allocation11 + $0xb0] sm:$0xff]
    %v7892 = vld [vmem:[#allocation11 + $0xb8] sm:$0xff]
    %v7893 = vld [vmem:[#allocation11 + $0xc0] sm:$0xff]
    %v7894 = vld [vmem:[#allocation11 + $0xc8] sm:$0xff]
    %v7895 = vld [vmem:[#allocation11 + $0xd0] sm:$0xff]
    %v7896 = vld [vmem:[#allocation11 + $0xd8] sm:$0xff]
    %v7897 = vld [vmem:[#allocation11 + $0xe0] sm:$0xff]
    %v7898 = vld [vmem:[#allocation11 + $0xe8] sm:$0xff]
    %v7899 = vld [vmem:[#allocation11 + $0xf0] sm:$0xff]
    %v7900 = vld [vmem:[#allocation11 + $0xf8] sm:$0xff]
    %v7901 = vld [vmem:[%s10] sm:$0x7]
    %v7902 = vperm.slane %v7901, 0
    %7903 = vmatpush.msra.mxu0 %v7884
    %7904 = vmatpush.msra.mxu0 %v7883
    %7905 = vmatpush.msra.mxu0 %v7882
    %7906 = vmatpush.msra.mxu0 %v7881
    %7907 = vmatpush.msra.mxu0 %v7880
    %7908 = vmatpush.msra.mxu0 %v7879
    %7909 = vmatpush.msra.mxu0 %v7878
    %7910 = vmatpush.msra.mxu0 %v7877
    %7911 = vmatpush.msra.mxu0 %v7876
    %7912 = vmatpush.msra.mxu0 %v7875
    %7913 = vmatpush.msra.mxu0 %v7874
    %7914 = vmatpush.msra.mxu0 %v7873
    %7915 = vmatpush.msra.mxu0 %v7872
    %7916 = vmatpush.msra.mxu0 %v7871
    %7917 = vmatpush.msra.mxu0 %v7870
    %7918 = vmatpush.msra.mxu0 %v7869
    %7919 = vmatmul.f32.gmra.mxu0 %v7867
    %v7920 = vpop.f32.mrf.mxu0
    %v7921 = vadd.f32 %v7902, %v7920
    %7922 = vdwg.mxu0
    %7923 = vmatpush.msra.mxu0 %v7900
    %7924 = vmatpush.msra.mxu0 %v7899
    %7925 = vmatpush.msra.mxu0 %v7898
    %7926 = vmatpush.msra.mxu0 %v7897
    %7927 = vmatpush.msra.mxu0 %v7896
    %7928 = vmatpush.msra.mxu0 %v7895
    %7929 = vmatpush.msra.mxu0 %v7894
    %7930 = vmatpush.msra.mxu0 %v7893
    %7931 = vmatpush.msra.mxu0 %v7892
    %7932 = vmatpush.msra.mxu0 %v7891
    %7933 = vmatpush.msra.mxu0 %v7890
    %7934 = vmatpush.msra.mxu0 %v7889
    %7935 = vmatpush.msra.mxu0 %v7888
    %7936 = vmatpush.msra.mxu0 %v7887
    %7937 = vmatpush.msra.mxu0 %v7886
    %7938 = vmatpush.msra.mxu0 %v7885
    %7939 = vmatmul.f32.gmra.mxu0 %v7868
    %v7940 = vpop.f32.mrf.mxu0
    %v7941 = vadd.f32 %v7921, %v7940
    %7942 = vdwg.mxu0
    %v7943 = vrot.slane %v7941, 4
    %v7944 = vadd.f32 %v7941, %v7943
    %v7945 = vrot.slane %v7944, 2
    %v7946 = vadd.f32 %v7944, %v7945
    %v7947 = vrot.slane %v7946, 1
    %v7948 = vadd.f32 %v7946, %v7947
    %v7949 = vmul.f32 %v7948, %v750
    %v7950 = vsub.f32 %v7941, %v7949
    %v7951 = vmul.f32 %v7950, %v7950
    %v7952 = vrot.slane %v7951, 4
    %v7953 = vadd.f32 %v7951, %v7952
    %v7954 = vrot.slane %v7953, 2
    %v7955 = vadd.f32 %v7953, %v7954
    %v7956 = vrot.slane %v7955, 1
    %v7957 = vadd.f32 %v7955, %v7956
    %v7958 = vmul.f32 %v7957, %v750
    %v7959 = vadd.f32 %v7958, 1e-05
    %v7960 = vrsqrt.pop %v7959
    %v7961 = vmul.f32 %v7960, %v7959
    %v7962 = vmul.f32 %v7961, %v7960
    %v7963 = vmul.f32 0.5, %v7962
    %v7964 = vsub.f32 1.5, %v7963
    %v7965 = vmul.f32 %v7960, %v7964
    %vm7966 = vweird.f32 %v7959
    %vm7967 = vweird.f32 %v7960
    %vm7968 = vmor %vm7966, %vm7967
    %v7969 = vsel %vm7968, %v7960, %v7965
    %v7970 = vmul.f32 %v7950, %v7969
    %v7971 = vperm.slane %v7901, 1
    %v7972 = vmul.f32 %v7971, %v7970
    %v7973 = vperm.slane %v7901, 2
    %v7974 = vadd.f32 %v7972, %v7973
    %v7975 = vmax.f32 %v7974, 0.0
    %7976 = vst [vmem:[#allocation13] sm:$0xff] %v7975
    // Predicated region
    $region70: #{encoder_forward.1} parent=1 // pred_check
      _
    $region71: #{encoder_forward.1} parent=1 // pred_check_branch
      %7978 = sbr.rel (0) target = $region73
    $region72: #{encoder_forward.1} parent=1 // pred_region
      %7980 = vsyncadd [#allocation4], 0
      %s7982 = sshll.u32 [#allocation13], 4
      %s7983 = int_to_ptr.vmem [resolvable:$true] %s7982
      %s7984 = sshll.u32 %s11, 4
      %s7985 = int_to_ptr.hbm [resolvable:$true] %s7984
      %7987 = dma.vmem_to_hbm [thread:$0]  %s7983, 128, %s7985, [#allocation4]
    $region73: #{encoder_forward.1} parent=1 // pred_fallthru
      _
    // Predicated region
    $region74: #{encoder_forward.1} parent=1 // pred_check
      _
    $region75: #{encoder_forward.1} parent=1 // pred_check_branch
      %7989 = sbr.rel (0) target = $region77
    $region76: #{encoder_forward.1} parent=1 // pred_region
      %7991 = dma.done [#allocation4], 128
    $region77: #{encoder_forward.1} parent=1 // pred_fallthru
      _
    %7992 = vsyncpa [#allocation3], 1
    %7993 = vsyncpa [#allocation6], 1
    %7994 = vsyncpa [#allocation9], 1
    %7995 = vsyncpa [#allocation12], 1
    %7996 = vsyncpa [#allocation4], 1

</llo_original>
